<compile_context>
chip_gen: v7x
topology: tpu7x:2x2x1
jax: 0.10.0
libtpu: 0.0.40
codegen_flags: <defaults>
</compile_context>

<pallas_src>
import jax
import jax.numpy as jnp
from jax.experimental import pallas as pl
from jax.experimental.pallas import tpu as pltpu


# ---------------------------------------------------------------------------
# Fused middle_block kernel
# ---------------------------------------------------------------------------

_PADL = 8  # left zero-pad inside the scratch (one full sublane tile -> aligned store)


def _middle_block_kernel(x_ref, dw_ref, pw_ref, scale_ref, bias_ref, alpha_ref,
                         o_ref, pad_ref):
    """One batch element: 3 x (PReLU -> dw3x3 -> pw1x1 -> BN) + residual add.

    x_ref     : (1, H, W, C)  f32   input activation (NHWC)
    dw_ref    : (3, 9, 1, C)  f32   depthwise 3x3 weights, tap-major per layer
    pw_ref    : (3, C, C)     bf16  pointwise 1x1 weights (cin, cout) per layer
    scale_ref : (3, 1, C)     f32   folded BN scale  (gamma / sqrt(var + eps))
    bias_ref  : (3, 1, C)     f32   folded BN bias   (beta - mean * scale)
    alpha_ref : (3, 1, C)     f32   PReLU slopes (in_channels for flow 'M')
    o_ref     : (1, H, W, C)  f32
    pad_ref   : (H+2, W+16, C) f32  VMEM scratch, zero border / padded activation
    """
    _, H, W, C = x_ref.shape
    N = H * W

    # Zero the scratch once per program; borders stay zero, interior rewritten.
    pad_ref[...] = jnp.zeros_like(pad_ref)

    x_in = x_ref[...].reshape(N, C)          # residual (kept resident)
    cur = x_in

    for layer in range(3):
        # --- PReLU (applied once per layer, not per tap) --------------------
        alpha = alpha_ref[layer]                                   # (1, C)
        act = jnp.where(cur >= 0.0, cur, cur * alpha)
        # TODO(synk): Dropout2d == identity here.

        # --- stage activation into the zero-bordered scratch -----------------
        # rows 1..H (leading dim), cols _PADL.._PADL+W-1 (sublane-tile aligned)
        pad_ref[1:H + 1, _PADL:_PADL + W, :] = act.reshape(H, W, C)

        # --- depthwise 3x3, padding=1: accumulate 9 shifted taps (VPU, f32) --
        acc = jnp.zeros((N, C), jnp.float32)
        for kh in range(3):
            for kw in range(3):
                tap = pad_ref[kh:kh + H, _PADL - 1 + kw:_PADL - 1 + kw + W, :]
                acc = acc + tap.reshape(N, C) * dw_ref[layer, kh * 3 + kw]

        # --- pointwise 1x1 conv (bf16 MXU matmul, f32 accumulate) + BN -------
        z = jnp.dot(acc.astype(jnp.bfloat16), pw_ref[layer],
                    preferred_element_type=jnp.float32)            # (N, C)
        cur = z * scale_ref[layer] + bias_ref[layer]

    # --- fused residual add ---------------------------------------------------
    o_ref[...] = (x_in + cur).reshape(1, H, W, C)


def middle_block_pallas(x_nhwc, dw, pw, scale, bias, alpha):
    B, H, W, C = x_nhwc.shape
    if W % 8 != 0 or C % 128 != 0:
        raise ValueError("W must be a multiple of 8 and C a multiple of 128")
    return pl.pallas_call(
        _middle_block_kernel,
        out_shape=jax.ShapeDtypeStruct((B, H, W, C), jnp.float32),
        grid=(B,),
        in_specs=[
            pl.BlockSpec((1, H, W, C), lambda b: (b, 0, 0, 0)),
            pl.BlockSpec((3, 9, 1, C), lambda b: (0, 0, 0, 0)),
            pl.BlockSpec((3, C, C), lambda b: (0, 0, 0)),
            pl.BlockSpec((3, 1, C), lambda b: (0, 0, 0)),
            pl.BlockSpec((3, 1, C), lambda b: (0, 0, 0)),
            pl.BlockSpec((3, 1, C), lambda b: (0, 0, 0)),
        ],
        out_specs=pl.BlockSpec((1, H, W, C), lambda b: (b, 0, 0, 0)),
        scratch_shapes=[pltpu.VMEM((H + 2, W + 16, C), jnp.float32)],
        compiler_params=pltpu.CompilerParams(
            dimension_semantics=("parallel",)),
    )(x_nhwc, dw, pw, scale, bias, alpha)


# ---------------------------------------------------------------------------
# Parameters (synthetic, deterministic — shapes match the nn.Module, C=512)
# ---------------------------------------------------------------------------

def init_middle_block(key, c=512):
    ks = jax.random.split(key, 6)
    eps = 1e-5
    dws, pws = [], []
    for l in range(3):
        dws.append(jax.random.normal(ks[2 * l], (9, 1, c), jnp.float32) * (1.0 / 3.0))
        pws.append(jax.random.normal(ks[2 * l + 1], (c, c), jnp.float32) * (1.0 / c ** 0.5))
    dw = jnp.stack(dws)                                # (3, 9, 1, C)  f32
    pw = jnp.stack(pws).astype(jnp.bfloat16)           # (3, C, C)     bf16
    # BatchNorm2d eval-mode defaults: gamma=1, beta=0, running_mean=0, running_var=1
    scale = jnp.full((3, 1, c), 1.0 / (1.0 + eps) ** 0.5, jnp.float32)
    bias = jnp.zeros((3, 1, c), jnp.float32)
    alpha = jnp.full((3, 1, c), 0.25, jnp.float32)     # PyTorch PReLU default
    return {"dw": dw, "pw": pw, "scale": scale, "bias": bias, "alpha": alpha}


# ---------------------------------------------------------------------------
# Forward (NCHW in / NCHW out, like the PyTorch module) + pure-JAX reference
# ---------------------------------------------------------------------------

def middle_block_forward(params, x_nchw):
    x = jnp.transpose(x_nchw, (0, 2, 3, 1)).astype(jnp.float32)     # NCHW -> NHWC
    y = middle_block_pallas(x, params["dw"], params["pw"], params["scale"],
                            params["bias"], params["alpha"])
    return jnp.transpose(y, (0, 3, 1, 2))                           # NHWC -> NCHW


def middle_block_reference(params, x_nchw):
    x = jnp.transpose(x_nchw, (0, 2, 3, 1)).astype(jnp.float32)
    B, H, W, C = x.shape
    cur = x
    for l in range(3):
        a = params["alpha"][l].reshape(1, 1, 1, C)
        act = jnp.where(cur >= 0.0, cur, cur * a)
        padded = jnp.pad(act, ((0, 0), (1, 1), (1, 1), (0, 0)))
        acc = jnp.zeros_like(cur)
        for kh in range(3):
            for kw in range(3):
                w = params["dw"][l, kh * 3 + kw].reshape(1, 1, 1, C)
                acc = acc + padded[:, kh:kh + H, kw:kw + W, :] * w
        z = jnp.dot(acc.reshape(-1, C).astype(jnp.bfloat16), params["pw"][l],
                    preferred_element_type=jnp.float32)
        cur = (z * params["scale"][l] + params["bias"][l]).reshape(B, H, W, C)
    return jnp.transpose(x + cur, (0, 3, 1, 2))


if __name__ == "__main__":
    key = jax.random.PRNGKey(0)
    k_param, k_x = jax.random.split(key)

    batch, channels, height, width = 2, 512, 8, 8      # middle_block is fixed at 512 ch
    params = init_middle_block(k_param, channels)
    x = jax.random.normal(k_x, (batch, channels, height, width), jnp.float32)

    fwd = jax.jit(middle_block_forward)
    y = fwd(params, x)
    jax.block_until_ready(y)

    assert y.shape == (batch, channels, height, width)
    assert bool(jnp.all(jnp.isfinite(y)))

    y_ref = middle_block_reference(params, x)
    max_err = float(jnp.max(jnp.abs(y - y_ref)))
    assert max_err < 5e-2, f"mismatch vs reference: max_err={max_err}"

    print("KERNEL_OK")
</pallas_src>

<mosaic_0001>
module attributes {stable_mosaic.version = 11 : i64} {
  func.func @_middle_block_kernel(%arg0: i32, %arg1: memref<1x8x8x512xf32, #tpu.memory_space<vmem>>, %arg2: memref<3x9x1x512xf32, #tpu.memory_space<vmem>>, %arg3: memref<3x512x512xbf16, #tpu.memory_space<vmem>>, %arg4: memref<3x1x512xf32, #tpu.memory_space<vmem>>, %arg5: memref<3x1x512xf32, #tpu.memory_space<vmem>>, %arg6: memref<3x1x512xf32, #tpu.memory_space<vmem>>, %arg7: memref<1x8x8x512xf32, #tpu.memory_space<vmem>>, %arg8: memref<10x24x512xf32, #tpu.memory_space<vmem>>) attributes {dimension_semantics = [#tpu.dimension_semantics<parallel>], iteration_bounds = array<i64: 2>, scalar_prefetch = 0 : i64, scratch_operands = 1 : i64, tpu.core_type = #tpu.core_type<tc>, window_params = [{transform_indices = @transform_0, window_bounds = array<i64: 1, 8, 8, 512>}, {pipeline_mode = #tpu.pipeline_mode<synchronous>, transform_indices = @transform_1, window_bounds = array<i64: 3, 9, 1, 512>}, {pipeline_mode = #tpu.pipeline_mode<synchronous>, transform_indices = @transform_2, window_bounds = array<i64: 3, 512, 512>}, {pipeline_mode = #tpu.pipeline_mode<synchronous>, transform_indices = @transform_3, window_bounds = array<i64: 3, 1, 512>}, {pipeline_mode = #tpu.pipeline_mode<synchronous>, transform_indices = @transform_4, window_bounds = array<i64: 3, 1, 512>}, {pipeline_mode = #tpu.pipeline_mode<synchronous>, transform_indices = @transform_5, window_bounds = array<i64: 3, 1, 512>}, {transform_indices = @transform_6, window_bounds = array<i64: 1, 8, 8, 512>}]} {
    %cst = arith.constant 0.000000e+00 : f32
    %0 = vector.broadcast %cst : f32 to vector<10x24x512xf32>
    %c0 = arith.constant 0 : index
    %c0_0 = arith.constant 0 : index
    %c0_1 = arith.constant 0 : index
    %1 = vector.load %arg8[%c0, %c0_0, %c0_1] : memref<10x24x512xf32, #tpu.memory_space<vmem>>, vector<10x24x512xf32>
    tpu.vector_store %arg8[%c0, %c0_0, %c0_1], %0 {strides = array<i32>} : memref<10x24x512xf32, #tpu.memory_space<vmem>>, vector<10x24x512xf32>,
    %c0_2 = arith.constant 0 : index
    %c0_3 = arith.constant 0 : index
    %c0_4 = arith.constant 0 : index
    %c0_5 = arith.constant 0 : index
    %2 = vector.load %arg1[%c0_2, %c0_3, %c0_4, %c0_5] : memref<1x8x8x512xf32, #tpu.memory_space<vmem>>, vector<1x8x8x512xf32>
    %3 = vector.shape_cast %2 : vector<1x8x8x512xf32> to vector<64x512xf32>
    %c0_6 = arith.constant 0 : index
    %c0_7 = arith.constant 0 : index
    %c0_8 = arith.constant 0 : index
    %4 = vector.load %arg6[%c0_6, %c0_7, %c0_8] : memref<3x1x512xf32, #tpu.memory_space<vmem>>, vector<1x1x512xf32>
    %5 = vector.shape_cast %4 : vector<1x1x512xf32> to vector<1x512xf32>
    %cst_9 = arith.constant 0.000000e+00 : f32
    %6 = vector.broadcast %cst_9 : f32 to vector<64x512xf32>
    %7 = arith.cmpf oge, %3, %6 : vector<64x512xf32>
    %8 = vector.broadcast %5 : vector<1x512xf32> to vector<64x512xf32>
    %9 = arith.mulf %3, %8 : vector<64x512xf32>
    %10 = arith.select %7, %3, %9 : vector<64x512xi1>, vector<64x512xf32>
    %11 = vector.shape_cast %10 : vector<64x512xf32> to vector<8x8x512xf32>
    %c1 = arith.constant 1 : index
    %c8 = arith.constant 8 : index
    %c0_10 = arith.constant 0 : index
    %12 = vector.load %arg8[%c1, %c8, %c0_10] : memref<10x24x512xf32, #tpu.memory_space<vmem>>, vector<8x8x512xf32>
    tpu.vector_store %arg8[%c1, %c8, %c0_10], %11 {strides = array<i32>} : memref<10x24x512xf32, #tpu.memory_space<vmem>>, vector<8x8x512xf32>,
    %cst_11 = arith.constant 0.000000e+00 : f32
    %13 = vector.broadcast %cst_11 : f32 to vector<64x512xf32>
    %c0_12 = arith.constant 0 : index
    %c7 = arith.constant 7 : index
    %c0_13 = arith.constant 0 : index
    %14 = vector.load %arg8[%c0_12, %c7, %c0_13] : memref<10x24x512xf32, #tpu.memory_space<vmem>>, vector<8x8x512xf32>
    %15 = vector.shape_cast %14 : vector<8x8x512xf32> to vector<64x512xf32>
    %c0_14 = arith.constant 0 : index
    %c0_15 = arith.constant 0 : index
    %c0_16 = arith.constant 0 : index
    %c0_17 = arith.constant 0 : index
    %16 = vector.load %arg2[%c0_14, %c0_15, %c0_16, %c0_17] : memref<3x9x1x512xf32, #tpu.memory_space<vmem>>, vector<1x1x1x512xf32>
    %17 = vector.shape_cast %16 : vector<1x1x1x512xf32> to vector<1x512xf32>
    %18 = vector.broadcast %17 : vector<1x512xf32> to vector<64x512xf32>
    %19 = arith.mulf %15, %18 : vector<64x512xf32>
    %20 = arith.addf %13, %19 : vector<64x512xf32>
    %c0_18 = arith.constant 0 : index
    %c8_19 = arith.constant 8 : index
    %c0_20 = arith.constant 0 : index
    %21 = vector.load %arg8[%c0_18, %c8_19, %c0_20] : memref<10x24x512xf32, #tpu.memory_space<vmem>>, vector<8x8x512xf32>
    %22 = vector.shape_cast %21 : vector<8x8x512xf32> to vector<64x512xf32>
    %c0_21 = arith.constant 0 : index
    %c1_22 = arith.constant 1 : index
    %c0_23 = arith.constant 0 : index
    %c0_24 = arith.constant 0 : index
    %23 = vector.load %arg2[%c0_21, %c1_22, %c0_23, %c0_24] : memref<3x9x1x512xf32, #tpu.memory_space<vmem>>, vector<1x1x1x512xf32>
    %24 = vector.shape_cast %23 : vector<1x1x1x512xf32> to vector<1x512xf32>
    %25 = vector.broadcast %24 : vector<1x512xf32> to vector<64x512xf32>
    %26 = arith.mulf %22, %25 : vector<64x512xf32>
    %27 = arith.addf %20, %26 : vector<64x512xf32>
    %c0_25 = arith.constant 0 : index
    %c9 = arith.constant 9 : index
    %c0_26 = arith.constant 0 : index
    %28 = vector.load %arg8[%c0_25, %c9, %c0_26] : memref<10x24x512xf32, #tpu.memory_space<vmem>>, vector<8x8x512xf32>
    %29 = vector.shape_cast %28 : vector<8x8x512xf32> to vector<64x512xf32>
    %c0_27 = arith.constant 0 : index
    %c2 = arith.constant 2 : index
    %c0_28 = arith.constant 0 : index
    %c0_29 = arith.constant 0 : index
    %30 = vector.load %arg2[%c0_27, %c2, %c0_28, %c0_29] : memref<3x9x1x512xf32, #tpu.memory_space<vmem>>, vector<1x1x1x512xf32>
    %31 = vector.shape_cast %30 : vector<1x1x1x512xf32> to vector<1x512xf32>
    %32 = vector.broadcast %31 : vector<1x512xf32> to vector<64x512xf32>
    %33 = arith.mulf %29, %32 : vector<64x512xf32>
    %34 = arith.addf %27, %33 : vector<64x512xf32>
    %c1_30 = arith.constant 1 : index
    %c7_31 = arith.constant 7 : index
    %c0_32 = arith.constant 0 : index
    %35 = vector.load %arg8[%c1_30, %c7_31, %c0_32] : memref<10x24x512xf32, #tpu.memory_space<vmem>>, vector<8x8x512xf32>
    %36 = vector.shape_cast %35 : vector<8x8x512xf32> to vector<64x512xf32>
    %c0_33 = arith.constant 0 : index
    %c3 = arith.constant 3 : index
    %c0_34 = arith.constant 0 : index
    %c0_35 = arith.constant 0 : index
    %37 = vector.load %arg2[%c0_33, %c3, %c0_34, %c0_35] : memref<3x9x1x512xf32, #tpu.memory_space<vmem>>, vector<1x1x1x512xf32>
    %38 = vector.shape_cast %37 : vector<1x1x1x512xf32> to vector<1x512xf32>
    %39 = vector.broadcast %38 : vector<1x512xf32> to vector<64x512xf32>
    %40 = arith.mulf %36, %39 : vector<64x512xf32>
    %41 = arith.addf %34, %40 : vector<64x512xf32>
    %c1_36 = arith.constant 1 : index
    %c8_37 = arith.constant 8 : index
    %c0_38 = arith.constant 0 : index
    %42 = vector.load %arg8[%c1_36, %c8_37, %c0_38] : memref<10x24x512xf32, #tpu.memory_space<vmem>>, vector<8x8x512xf32>
    %43 = vector.shape_cast %42 : vector<8x8x512xf32> to vector<64x512xf32>
    %c0_39 = arith.constant 0 : index
    %c4 = arith.constant 4 : index
    %c0_40 = arith.constant 0 : index
    %c0_41 = arith.constant 0 : index
    %44 = vector.load %arg2[%c0_39, %c4, %c0_40, %c0_41] : memref<3x9x1x512xf32, #tpu.memory_space<vmem>>, vector<1x1x1x512xf32>
    %45 = vector.shape_cast %44 : vector<1x1x1x512xf32> to vector<1x512xf32>
    %46 = vector.broadcast %45 : vector<1x512xf32> to vector<64x512xf32>
    %47 = arith.mulf %43, %46 : vector<64x512xf32>
    %48 = arith.addf %41, %47 : vector<64x512xf32>
    %c1_42 = arith.constant 1 : index
    %c9_43 = arith.constant 9 : index
    %c0_44 = arith.constant 0 : index
    %49 = vector.load %arg8[%c1_42, %c9_43, %c0_44] : memref<10x24x512xf32, #tpu.memory_space<vmem>>, vector<8x8x512xf32>
    %50 = vector.shape_cast %49 : vector<8x8x512xf32> to vector<64x512xf32>
    %c0_45 = arith.constant 0 : index
    %c5 = arith.constant 5 : index
    %c0_46 = arith.constant 0 : index
    %c0_47 = arith.constant 0 : index
    %51 = vector.load %arg2[%c0_45, %c5, %c0_46, %c0_47] : memref<3x9x1x512xf32, #tpu.memory_space<vmem>>, vector<1x1x1x512xf32>
    %52 = vector.shape_cast %51 : vector<1x1x1x512xf32> to vector<1x512xf32>
    %53 = vector.broadcast %52 : vector<1x512xf32> to vector<64x512xf32>
    %54 = arith.mulf %50, %53 : vector<64x512xf32>
    %55 = arith.addf %48, %54 : vector<64x512xf32>
    %c2_48 = arith.constant 2 : index
    %c7_49 = arith.constant 7 : index
    %c0_50 = arith.constant 0 : index
    %56 = vector.load %arg8[%c2_48, %c7_49, %c0_50] : memref<10x24x512xf32, #tpu.memory_space<vmem>>, vector<8x8x512xf32>
    %57 = vector.shape_cast %56 : vector<8x8x512xf32> to vector<64x512xf32>
    %c0_51 = arith.constant 0 : index
    %c6 = arith.constant 6 : index
    %c0_52 = arith.constant 0 : index
    %c0_53 = arith.constant 0 : index
    %58 = vector.load %arg2[%c0_51, %c6, %c0_52, %c0_53] : memref<3x9x1x512xf32, #tpu.memory_space<vmem>>, vector<1x1x1x512xf32>
    %59 = vector.shape_cast %58 : vector<1x1x1x512xf32> to vector<1x512xf32>
    %60 = vector.broadcast %59 : vector<1x512xf32> to vector<64x512xf32>
    %61 = arith.mulf %57, %60 : vector<64x512xf32>
    %62 = arith.addf %55, %61 : vector<64x512xf32>
    %c2_54 = arith.constant 2 : index
    %c8_55 = arith.constant 8 : index
    %c0_56 = arith.constant 0 : index
    %63 = vector.load %arg8[%c2_54, %c8_55, %c0_56] : memref<10x24x512xf32, #tpu.memory_space<vmem>>, vector<8x8x512xf32>
    %64 = vector.shape_cast %63 : vector<8x8x512xf32> to vector<64x512xf32>
    %c0_57 = arith.constant 0 : index
    %c7_58 = arith.constant 7 : index
    %c0_59 = arith.constant 0 : index
    %c0_60 = arith.constant 0 : index
    %65 = vector.load %arg2[%c0_57, %c7_58, %c0_59, %c0_60] : memref<3x9x1x512xf32, #tpu.memory_space<vmem>>, vector<1x1x1x512xf32>
    %66 = vector.shape_cast %65 : vector<1x1x1x512xf32> to vector<1x512xf32>
    %67 = vector.broadcast %66 : vector<1x512xf32> to vector<64x512xf32>
    %68 = arith.mulf %64, %67 : vector<64x512xf32>
    %69 = arith.addf %62, %68 : vector<64x512xf32>
    %c2_61 = arith.constant 2 : index
    %c9_62 = arith.constant 9 : index
    %c0_63 = arith.constant 0 : index
    %70 = vector.load %arg8[%c2_61, %c9_62, %c0_63] : memref<10x24x512xf32, #tpu.memory_space<vmem>>, vector<8x8x512xf32>
    %71 = vector.shape_cast %70 : vector<8x8x512xf32> to vector<64x512xf32>
    %c0_64 = arith.constant 0 : index
    %c8_65 = arith.constant 8 : index
    %c0_66 = arith.constant 0 : index
    %c0_67 = arith.constant 0 : index
    %72 = vector.load %arg2[%c0_64, %c8_65, %c0_66, %c0_67] : memref<3x9x1x512xf32, #tpu.memory_space<vmem>>, vector<1x1x1x512xf32>
    %73 = vector.shape_cast %72 : vector<1x1x1x512xf32> to vector<1x512xf32>
    %74 = vector.broadcast %73 : vector<1x512xf32> to vector<64x512xf32>
    %75 = arith.mulf %71, %74 : vector<64x512xf32>
    %76 = arith.addf %69, %75 : vector<64x512xf32>
    %77 = arith.truncf %76 : vector<64x512xf32> to vector<64x512xbf16>
    %c0_68 = arith.constant 0 : index
    %c0_69 = arith.constant 0 : index
    %c0_70 = arith.constant 0 : index
    %78 = vector.load %arg3[%c0_68, %c0_69, %c0_70] : memref<3x512x512xbf16, #tpu.memory_space<vmem>>, vector<1x512x512xbf16>
    %79 = vector.shape_cast %78 : vector<1x512x512xbf16> to vector<512x512xbf16>
    %cst_71 = arith.constant dense<0.000000e+00> : vector<64x512xf32>
    %80 = tpu.matmul %77, %79, %cst_71 {dimension_numbers = #tpu.dot_dimension_numbers<[1], [0], [0], [1], [0, 0, 1, 1], [], []>} : vector<64x512xbf16>, vector<512x512xbf16>, vector<64x512xf32> -> vector<64x512xf32>
    %c0_72 = arith.constant 0 : index
    %c0_73 = arith.constant 0 : index
    %c0_74 = arith.constant 0 : index
    %81 = vector.load %arg4[%c0_72, %c0_73, %c0_74] : memref<3x1x512xf32, #tpu.memory_space<vmem>>, vector<1x1x512xf32>
    %82 = vector.shape_cast %81 : vector<1x1x512xf32> to vector<1x512xf32>
    %83 = vector.broadcast %82 : vector<1x512xf32> to vector<64x512xf32>
    %84 = arith.mulf %80, %83 : vector<64x512xf32>
    %c0_75 = arith.constant 0 : index
    %c0_76 = arith.constant 0 : index
    %c0_77 = arith.constant 0 : index
    %85 = vector.load %arg5[%c0_75, %c0_76, %c0_77] : memref<3x1x512xf32, #tpu.memory_space<vmem>>, vector<1x1x512xf32>
    %86 = vector.shape_cast %85 : vector<1x1x512xf32> to vector<1x512xf32>
    %87 = vector.broadcast %86 : vector<1x512xf32> to vector<64x512xf32>
    %88 = arith.addf %84, %87 : vector<64x512xf32>
    %c1_78 = arith.constant 1 : index
    %c0_79 = arith.constant 0 : index
    %c0_80 = arith.constant 0 : index
    %89 = vector.load %arg6[%c1_78, %c0_79, %c0_80] : memref<3x1x512xf32, #tpu.memory_space<vmem>>, vector<1x1x512xf32>
    %90 = vector.shape_cast %89 : vector<1x1x512xf32> to vector<1x512xf32>
    %cst_81 = arith.constant 0.000000e+00 : f32
    %91 = vector.broadcast %cst_81 : f32 to vector<64x512xf32>
    %92 = arith.cmpf oge, %88, %91 : vector<64x512xf32>
    %93 = vector.broadcast %90 : vector<1x512xf32> to vector<64x512xf32>
    %94 = arith.mulf %88, %93 : vector<64x512xf32>
    %95 = arith.select %92, %88, %94 : vector<64x512xi1>, vector<64x512xf32>
    %96 = vector.shape_cast %95 : vector<64x512xf32> to vector<8x8x512xf32>
    %c1_82 = arith.constant 1 : index
    %c8_83 = arith.constant 8 : index
    %c0_84 = arith.constant 0 : index
    %97 = vector.load %arg8[%c1_82, %c8_83, %c0_84] : memref<10x24x512xf32, #tpu.memory_space<vmem>>, vector<8x8x512xf32>
    tpu.vector_store %arg8[%c1_82, %c8_83, %c0_84], %96 {strides = array<i32>} : memref<10x24x512xf32, #tpu.memory_space<vmem>>, vector<8x8x512xf32>,
    %cst_85 = arith.constant 0.000000e+00 : f32
    %98 = vector.broadcast %cst_85 : f32 to vector<64x512xf32>
    %c0_86 = arith.constant 0 : index
    %c7_87 = arith.constant 7 : index
    %c0_88 = arith.constant 0 : index
    %99 = vector.load %arg8[%c0_86, %c7_87, %c0_88] : memref<10x24x512xf32, #tpu.memory_space<vmem>>, vector<8x8x512xf32>
    %100 = vector.shape_cast %99 : vector<8x8x512xf32> to vector<64x512xf32>
    %c1_89 = arith.constant 1 : index
    %c0_90 = arith.constant 0 : index
    %c0_91 = arith.constant 0 : index
    %c0_92 = arith.constant 0 : index
    %101 = vector.load %arg2[%c1_89, %c0_90, %c0_91, %c0_92] : memref<3x9x1x512xf32, #tpu.memory_space<vmem>>, vector<1x1x1x512xf32>
    %102 = vector.shape_cast %101 : vector<1x1x1x512xf32> to vector<1x512xf32>
    %103 = vector.broadcast %102 : vector<1x512xf32> to vector<64x512xf32>
    %104 = arith.mulf %100, %103 : vector<64x512xf32>
    %105 = arith.addf %98, %104 : vector<64x512xf32>
    %c0_93 = arith.constant 0 : index
    %c8_94 = arith.constant 8 : index
    %c0_95 = arith.constant 0 : index
    %106 = vector.load %arg8[%c0_93, %c8_94, %c0_95] : memref<10x24x512xf32, #tpu.memory_space<vmem>>, vector<8x8x512xf32>
    %107 = vector.shape_cast %106 : vector<8x8x512xf32> to vector<64x512xf32>
    %c1_96 = arith.constant 1 : index
    %c1_97 = arith.constant 1 : index
    %c0_98 = arith.constant 0 : index
    %c0_99 = arith.constant 0 : index
    %108 = vector.load %arg2[%c1_96, %c1_97, %c0_98, %c0_99] : memref<3x9x1x512xf32, #tpu.memory_space<vmem>>, vector<1x1x1x512xf32>
    %109 = vector.shape_cast %108 : vector<1x1x1x512xf32> to vector<1x512xf32>
    %110 = vector.broadcast %109 : vector<1x512xf32> to vector<64x512xf32>
    %111 = arith.mulf %107, %110 : vector<64x512xf32>
    %112 = arith.addf %105, %111 : vector<64x512xf32>
    %c0_100 = arith.constant 0 : index
    %c9_101 = arith.constant 9 : index
    %c0_102 = arith.constant 0 : index
    %113 = vector.load %arg8[%c0_100, %c9_101, %c0_102] : memref<10x24x512xf32, #tpu.memory_space<vmem>>, vector<8x8x512xf32>
    %114 = vector.shape_cast %113 : vector<8x8x512xf32> to vector<64x512xf32>
    %c1_103 = arith.constant 1 : index
    %c2_104 = arith.constant 2 : index
    %c0_105 = arith.constant 0 : index
    %c0_106 = arith.constant 0 : index
    %115 = vector.load %arg2[%c1_103, %c2_104, %c0_105, %c0_106] : memref<3x9x1x512xf32, #tpu.memory_space<vmem>>, vector<1x1x1x512xf32>
    %116 = vector.shape_cast %115 : vector<1x1x1x512xf32> to vector<1x512xf32>
    %117 = vector.broadcast %116 : vector<1x512xf32> to vector<64x512xf32>
    %118 = arith.mulf %114, %117 : vector<64x512xf32>
    %119 = arith.addf %112, %118 : vector<64x512xf32>
    %c1_107 = arith.constant 1 : index
    %c7_108 = arith.constant 7 : index
    %c0_109 = arith.constant 0 : index
    %120 = vector.load %arg8[%c1_107, %c7_108, %c0_109] : memref<10x24x512xf32, #tpu.memory_space<vmem>>, vector<8x8x512xf32>
    %121 = vector.shape_cast %120 : vector<8x8x512xf32> to vector<64x512xf32>
    %c1_110 = arith.constant 1 : index
    %c3_111 = arith.constant 3 : index
    %c0_112 = arith.constant 0 : index
    %c0_113 = arith.constant 0 : index
    %122 = vector.load %arg2[%c1_110, %c3_111, %c0_112, %c0_113] : memref<3x9x1x512xf32, #tpu.memory_space<vmem>>, vector<1x1x1x512xf32>
    %123 = vector.shape_cast %122 : vector<1x1x1x512xf32> to vector<1x512xf32>
    %124 = vector.broadcast %123 : vector<1x512xf32> to vector<64x512xf32>
    %125 = arith.mulf %121, %124 : vector<64x512xf32>
    %126 = arith.addf %119, %125 : vector<64x512xf32>
    %c1_114 = arith.constant 1 : index
    %c8_115 = arith.constant 8 : index
    %c0_116 = arith.constant 0 : index
    %127 = vector.load %arg8[%c1_114, %c8_115, %c0_116] : memref<10x24x512xf32, #tpu.memory_space<vmem>>, vector<8x8x512xf32>
    %128 = vector.shape_cast %127 : vector<8x8x512xf32> to vector<64x512xf32>
    %c1_117 = arith.constant 1 : index
    %c4_118 = arith.constant 4 : index
    %c0_119 = arith.constant 0 : index
    %c0_120 = arith.constant 0 : index
    %129 = vector.load %arg2[%c1_117, %c4_118, %c0_119, %c0_120] : memref<3x9x1x512xf32, #tpu.memory_space<vmem>>, vector<1x1x1x512xf32>
    %130 = vector.shape_cast %129 : vector<1x1x1x512xf32> to vector<1x512xf32>
    %131 = vector.broadcast %130 : vector<1x512xf32> to vector<64x512xf32>
    %132 = arith.mulf %128, %131 : vector<64x512xf32>
    %133 = arith.addf %126, %132 : vector<64x512xf32>
    %c1_121 = arith.constant 1 : index
    %c9_122 = arith.constant 9 : index
    %c0_123 = arith.constant 0 : index
    %134 = vector.load %arg8[%c1_121, %c9_122, %c0_123] : memref<10x24x512xf32, #tpu.memory_space<vmem>>, vector<8x8x512xf32>
    %135 = vector.shape_cast %134 : vector<8x8x512xf32> to vector<64x512xf32>
    %c1_124 = arith.constant 1 : index
    %c5_125 = arith.constant 5 : index
    %c0_126 = arith.constant 0 : index
    %c0_127 = arith.constant 0 : index
    %136 = vector.load %arg2[%c1_124, %c5_125, %c0_126, %c0_127] : memref<3x9x1x512xf32, #tpu.memory_space<vmem>>, vector<1x1x1x512xf32>
    %137 = vector.shape_cast %136 : vector<1x1x1x512xf32> to vector<1x512xf32>
    %138 = vector.broadcast %137 : vector<1x512xf32> to vector<64x512xf32>
    %139 = arith.mulf %135, %138 : vector<64x512xf32>
    %140 = arith.addf %133, %139 : vector<64x512xf32>
    %c2_128 = arith.constant 2 : index
    %c7_129 = arith.constant 7 : index
    %c0_130 = arith.constant 0 : index
    %141 = vector.load %arg8[%c2_128, %c7_129, %c0_130] : memref<10x24x512xf32, #tpu.memory_space<vmem>>, vector<8x8x512xf32>
    %142 = vector.shape_cast %141 : vector<8x8x512xf32> to vector<64x512xf32>
    %c1_131 = arith.constant 1 : index
    %c6_132 = arith.constant 6 : index
    %c0_133 = arith.constant 0 : index
    %c0_134 = arith.constant 0 : index
    %143 = vector.load %arg2[%c1_131, %c6_132, %c0_133, %c0_134] : memref<3x9x1x512xf32, #tpu.memory_space<vmem>>, vector<1x1x1x512xf32>
    %144 = vector.shape_cast %143 : vector<1x1x1x512xf32> to vector<1x512xf32>
    %145 = vector.broadcast %144 : vector<1x512xf32> to vector<64x512xf32>
    %146 = arith.mulf %142, %145 : vector<64x512xf32>
    %147 = arith.addf %140, %146 : vector<64x512xf32>
    %c2_135 = arith.constant 2 : index
    %c8_136 = arith.constant 8 : index
    %c0_137 = arith.constant 0 : index
    %148 = vector.load %arg8[%c2_135, %c8_136, %c0_137] : memref<10x24x512xf32, #tpu.memory_space<vmem>>, vector<8x8x512xf32>
    %149 = vector.shape_cast %148 : vector<8x8x512xf32> to vector<64x512xf32>
    %c1_138 = arith.constant 1 : index
    %c7_139 = arith.constant 7 : index
    %c0_140 = arith.constant 0 : index
    %c0_141 = arith.constant 0 : index
    %150 = vector.load %arg2[%c1_138, %c7_139, %c0_140, %c0_141] : memref<3x9x1x512xf32, #tpu.memory_space<vmem>>, vector<1x1x1x512xf32>
    %151 = vector.shape_cast %150 : vector<1x1x1x512xf32> to vector<1x512xf32>
    %152 = vector.broadcast %151 : vector<1x512xf32> to vector<64x512xf32>
    %153 = arith.mulf %149, %152 : vector<64x512xf32>
    %154 = arith.addf %147, %153 : vector<64x512xf32>
    %c2_142 = arith.constant 2 : index
    %c9_143 = arith.constant 9 : index
    %c0_144 = arith.constant 0 : index
    %155 = vector.load %arg8[%c2_142, %c9_143, %c0_144] : memref<10x24x512xf32, #tpu.memory_space<vmem>>, vector<8x8x512xf32>
    %156 = vector.shape_cast %155 : vector<8x8x512xf32> to vector<64x512xf32>
    %c1_145 = arith.constant 1 : index
    %c8_146 = arith.constant 8 : index
    %c0_147 = arith.constant 0 : index
    %c0_148 = arith.constant 0 : index
    %157 = vector.load %arg2[%c1_145, %c8_146, %c0_147, %c0_148] : memref<3x9x1x512xf32, #tpu.memory_space<vmem>>, vector<1x1x1x512xf32>
    %158 = vector.shape_cast %157 : vector<1x1x1x512xf32> to vector<1x512xf32>
    %159 = vector.broadcast %158 : vector<1x512xf32> to vector<64x512xf32>
    %160 = arith.mulf %156, %159 : vector<64x512xf32>
    %161 = arith.addf %154, %160 : vector<64x512xf32>
    %162 = arith.truncf %161 : vector<64x512xf32> to vector<64x512xbf16>
    %c1_149 = arith.constant 1 : index
    %c0_150 = arith.constant 0 : index
    %c0_151 = arith.constant 0 : index
    %163 = vector.load %arg3[%c1_149, %c0_150, %c0_151] : memref<3x512x512xbf16, #tpu.memory_space<vmem>>, vector<1x512x512xbf16>
    %164 = vector.shape_cast %163 : vector<1x512x512xbf16> to vector<512x512xbf16>
    %cst_152 = arith.constant dense<0.000000e+00> : vector<64x512xf32>
    %165 = tpu.matmul %162, %164, %cst_152 {dimension_numbers = #tpu.dot_dimension_numbers<[1], [0], [0], [1], [0, 0, 1, 1], [], []>} : vector<64x512xbf16>, vector<512x512xbf16>, vector<64x512xf32> -> vector<64x512xf32>
    %c1_153 = arith.constant 1 : index
    %c0_154 = arith.constant 0 : index
    %c0_155 = arith.constant 0 : index
    %166 = vector.load %arg4[%c1_153, %c0_154, %c0_155] : memref<3x1x512xf32, #tpu.memory_space<vmem>>, vector<1x1x512xf32>
    %167 = vector.shape_cast %166 : vector<1x1x512xf32> to vector<1x512xf32>
    %168 = vector.broadcast %167 : vector<1x512xf32> to vector<64x512xf32>
    %169 = arith.mulf %165, %168 : vector<64x512xf32>
    %c1_156 = arith.constant 1 : index
    %c0_157 = arith.constant 0 : index
    %c0_158 = arith.constant 0 : index
    %170 = vector.load %arg5[%c1_156, %c0_157, %c0_158] : memref<3x1x512xf32, #tpu.memory_space<vmem>>, vector<1x1x512xf32>
    %171 = vector.shape_cast %170 : vector<1x1x512xf32> to vector<1x512xf32>
    %172 = vector.broadcast %171 : vector<1x512xf32> to vector<64x512xf32>
    %173 = arith.addf %169, %172 : vector<64x512xf32>
    %c2_159 = arith.constant 2 : index
    %c0_160 = arith.constant 0 : index
    %c0_161 = arith.constant 0 : index
    %174 = vector.load %arg6[%c2_159, %c0_160, %c0_161] : memref<3x1x512xf32, #tpu.memory_space<vmem>>, vector<1x1x512xf32>
    %175 = vector.shape_cast %174 : vector<1x1x512xf32> to vector<1x512xf32>
    %cst_162 = arith.constant 0.000000e+00 : f32
    %176 = vector.broadcast %cst_162 : f32 to vector<64x512xf32>
    %177 = arith.cmpf oge, %173, %176 : vector<64x512xf32>
    %178 = vector.broadcast %175 : vector<1x512xf32> to vector<64x512xf32>
    %179 = arith.mulf %173, %178 : vector<64x512xf32>
    %180 = arith.select %177, %173, %179 : vector<64x512xi1>, vector<64x512xf32>
    %181 = vector.shape_cast %180 : vector<64x512xf32> to vector<8x8x512xf32>
    %c1_163 = arith.constant 1 : index
    %c8_164 = arith.constant 8 : index
    %c0_165 = arith.constant 0 : index
    %182 = vector.load %arg8[%c1_163, %c8_164, %c0_165] : memref<10x24x512xf32, #tpu.memory_space<vmem>>, vector<8x8x512xf32>
    tpu.vector_store %arg8[%c1_163, %c8_164, %c0_165], %181 {strides = array<i32>} : memref<10x24x512xf32, #tpu.memory_space<vmem>>, vector<8x8x512xf32>,
    %cst_166 = arith.constant 0.000000e+00 : f32
    %183 = vector.broadcast %cst_166 : f32 to vector<64x512xf32>
    %c0_167 = arith.constant 0 : index
    %c7_168 = arith.constant 7 : index
    %c0_169 = arith.constant 0 : index
    %184 = vector.load %arg8[%c0_167, %c7_168, %c0_169] : memref<10x24x512xf32, #tpu.memory_space<vmem>>, vector<8x8x512xf32>
    %185 = vector.shape_cast %184 : vector<8x8x512xf32> to vector<64x512xf32>
    %c2_170 = arith.constant 2 : index
    %c0_171 = arith.constant 0 : index
    %c0_172 = arith.constant 0 : index
    %c0_173 = arith.constant 0 : index
    %186 = vector.load %arg2[%c2_170, %c0_171, %c0_172, %c0_173] : memref<3x9x1x512xf32, #tpu.memory_space<vmem>>, vector<1x1x1x512xf32>
    %187 = vector.shape_cast %186 : vector<1x1x1x512xf32> to vector<1x512xf32>
    %188 = vector.broadcast %187 : vector<1x512xf32> to vector<64x512xf32>
    %189 = arith.mulf %185, %188 : vector<64x512xf32>
    %190 = arith.addf %183, %189 : vector<64x512xf32>
    %c0_174 = arith.constant 0 : index
    %c8_175 = arith.constant 8 : index
    %c0_176 = arith.constant 0 : index
    %191 = vector.load %arg8[%c0_174, %c8_175, %c0_176] : memref<10x24x512xf32, #tpu.memory_space<vmem>>, vector<8x8x512xf32>
    %192 = vector.shape_cast %191 : vector<8x8x512xf32> to vector<64x512xf32>
    %c2_177 = arith.constant 2 : index
    %c1_178 = arith.constant 1 : index
    %c0_179 = arith.constant 0 : index
    %c0_180 = arith.constant 0 : index
    %193 = vector.load %arg2[%c2_177, %c1_178, %c0_179, %c0_180] : memref<3x9x1x512xf32, #tpu.memory_space<vmem>>, vector<1x1x1x512xf32>
    %194 = vector.shape_cast %193 : vector<1x1x1x512xf32> to vector<1x512xf32>
    %195 = vector.broadcast %194 : vector<1x512xf32> to vector<64x512xf32>
    %196 = arith.mulf %192, %195 : vector<64x512xf32>
    %197 = arith.addf %190, %196 : vector<64x512xf32>
    %c0_181 = arith.constant 0 : index
    %c9_182 = arith.constant 9 : index
    %c0_183 = arith.constant 0 : index
    %198 = vector.load %arg8[%c0_181, %c9_182, %c0_183] : memref<10x24x512xf32, #tpu.memory_space<vmem>>, vector<8x8x512xf32>
    %199 = vector.shape_cast %198 : vector<8x8x512xf32> to vector<64x512xf32>
    %c2_184 = arith.constant 2 : index
    %c2_185 = arith.constant 2 : index
    %c0_186 = arith.constant 0 : index
    %c0_187 = arith.constant 0 : index
    %200 = vector.load %arg2[%c2_184, %c2_185, %c0_186, %c0_187] : memref<3x9x1x512xf32, #tpu.memory_space<vmem>>, vector<1x1x1x512xf32>
    %201 = vector.shape_cast %200 : vector<1x1x1x512xf32> to vector<1x512xf32>
    %202 = vector.broadcast %201 : vector<1x512xf32> to vector<64x512xf32>
    %203 = arith.mulf %199, %202 : vector<64x512xf32>
    %204 = arith.addf %197, %203 : vector<64x512xf32>
    %c1_188 = arith.constant 1 : index
    %c7_189 = arith.constant 7 : index
    %c0_190 = arith.constant 0 : index
    %205 = vector.load %arg8[%c1_188, %c7_189, %c0_190] : memref<10x24x512xf32, #tpu.memory_space<vmem>>, vector<8x8x512xf32>
    %206 = vector.shape_cast %205 : vector<8x8x512xf32> to vector<64x512xf32>
    %c2_191 = arith.constant 2 : index
    %c3_192 = arith.constant 3 : index
    %c0_193 = arith.constant 0 : index
    %c0_194 = arith.constant 0 : index
    %207 = vector.load %arg2[%c2_191, %c3_192, %c0_193, %c0_194] : memref<3x9x1x512xf32, #tpu.memory_space<vmem>>, vector<1x1x1x512xf32>
    %208 = vector.shape_cast %207 : vector<1x1x1x512xf32> to vector<1x512xf32>
    %209 = vector.broadcast %208 : vector<1x512xf32> to vector<64x512xf32>
    %210 = arith.mulf %206, %209 : vector<64x512xf32>
    %211 = arith.addf %204, %210 : vector<64x512xf32>
    %c1_195 = arith.constant 1 : index
    %c8_196 = arith.constant 8 : index
    %c0_197 = arith.constant 0 : index
    %212 = vector.load %arg8[%c1_195, %c8_196, %c0_197] : memref<10x24x512xf32, #tpu.memory_space<vmem>>, vector<8x8x512xf32>
    %213 = vector.shape_cast %212 : vector<8x8x512xf32> to vector<64x512xf32>
    %c2_198 = arith.constant 2 : index
    %c4_199 = arith.constant 4 : index
    %c0_200 = arith.constant 0 : index
    %c0_201 = arith.constant 0 : index
    %214 = vector.load %arg2[%c2_198, %c4_199, %c0_200, %c0_201] : memref<3x9x1x512xf32, #tpu.memory_space<vmem>>, vector<1x1x1x512xf32>
    %215 = vector.shape_cast %214 : vector<1x1x1x512xf32> to vector<1x512xf32>
    %216 = vector.broadcast %215 : vector<1x512xf32> to vector<64x512xf32>
    %217 = arith.mulf %213, %216 : vector<64x512xf32>
    %218 = arith.addf %211, %217 : vector<64x512xf32>
    %c1_202 = arith.constant 1 : index
    %c9_203 = arith.constant 9 : index
    %c0_204 = arith.constant 0 : index
    %219 = vector.load %arg8[%c1_202, %c9_203, %c0_204] : memref<10x24x512xf32, #tpu.memory_space<vmem>>, vector<8x8x512xf32>
    %220 = vector.shape_cast %219 : vector<8x8x512xf32> to vector<64x512xf32>
    %c2_205 = arith.constant 2 : index
    %c5_206 = arith.constant 5 : index
    %c0_207 = arith.constant 0 : index
    %c0_208 = arith.constant 0 : index
    %221 = vector.load %arg2[%c2_205, %c5_206, %c0_207, %c0_208] : memref<3x9x1x512xf32, #tpu.memory_space<vmem>>, vector<1x1x1x512xf32>
    %222 = vector.shape_cast %221 : vector<1x1x1x512xf32> to vector<1x512xf32>
    %223 = vector.broadcast %222 : vector<1x512xf32> to vector<64x512xf32>
    %224 = arith.mulf %220, %223 : vector<64x512xf32>
    %225 = arith.addf %218, %224 : vector<64x512xf32>
    %c2_209 = arith.constant 2 : index
    %c7_210 = arith.constant 7 : index
    %c0_211 = arith.constant 0 : index
    %226 = vector.load %arg8[%c2_209, %c7_210, %c0_211] : memref<10x24x512xf32, #tpu.memory_space<vmem>>, vector<8x8x512xf32>
    %227 = vector.shape_cast %226 : vector<8x8x512xf32> to vector<64x512xf32>
    %c2_212 = arith.constant 2 : index
    %c6_213 = arith.constant 6 : index
    %c0_214 = arith.constant 0 : index
    %c0_215 = arith.constant 0 : index
    %228 = vector.load %arg2[%c2_212, %c6_213, %c0_214, %c0_215] : memref<3x9x1x512xf32, #tpu.memory_space<vmem>>, vector<1x1x1x512xf32>
    %229 = vector.shape_cast %228 : vector<1x1x1x512xf32> to vector<1x512xf32>
    %230 = vector.broadcast %229 : vector<1x512xf32> to vector<64x512xf32>
    %231 = arith.mulf %227, %230 : vector<64x512xf32>
    %232 = arith.addf %225, %231 : vector<64x512xf32>
    %c2_216 = arith.constant 2 : index
    %c8_217 = arith.constant 8 : index
    %c0_218 = arith.constant 0 : index
    %233 = vector.load %arg8[%c2_216, %c8_217, %c0_218] : memref<10x24x512xf32, #tpu.memory_space<vmem>>, vector<8x8x512xf32>
    %234 = vector.shape_cast %233 : vector<8x8x512xf32> to vector<64x512xf32>
    %c2_219 = arith.constant 2 : index
    %c7_220 = arith.constant 7 : index
    %c0_221 = arith.constant 0 : index
    %c0_222 = arith.constant 0 : index
    %235 = vector.load %arg2[%c2_219, %c7_220, %c0_221, %c0_222] : memref<3x9x1x512xf32, #tpu.memory_space<vmem>>, vector<1x1x1x512xf32>
    %236 = vector.shape_cast %235 : vector<1x1x1x512xf32> to vector<1x512xf32>
    %237 = vector.broadcast %236 : vector<1x512xf32> to vector<64x512xf32>
    %238 = arith.mulf %234, %237 : vector<64x512xf32>
    %239 = arith.addf %232, %238 : vector<64x512xf32>
    %c2_223 = arith.constant 2 : index
    %c9_224 = arith.constant 9 : index
    %c0_225 = arith.constant 0 : index
    %240 = vector.load %arg8[%c2_223, %c9_224, %c0_225] : memref<10x24x512xf32, #tpu.memory_space<vmem>>, vector<8x8x512xf32>
    %241 = vector.shape_cast %240 : vector<8x8x512xf32> to vector<64x512xf32>
    %c2_226 = arith.constant 2 : index
    %c8_227 = arith.constant 8 : index
    %c0_228 = arith.constant 0 : index
    %c0_229 = arith.constant 0 : index
    %242 = vector.load %arg2[%c2_226, %c8_227, %c0_228, %c0_229] : memref<3x9x1x512xf32, #tpu.memory_space<vmem>>, vector<1x1x1x512xf32>
    %243 = vector.shape_cast %242 : vector<1x1x1x512xf32> to vector<1x512xf32>
    %244 = vector.broadcast %243 : vector<1x512xf32> to vector<64x512xf32>
    %245 = arith.mulf %241, %244 : vector<64x512xf32>
    %246 = arith.addf %239, %245 : vector<64x512xf32>
    %247 = arith.truncf %246 : vector<64x512xf32> to vector<64x512xbf16>
    %c2_230 = arith.constant 2 : index
    %c0_231 = arith.constant 0 : index
    %c0_232 = arith.constant 0 : index
    %248 = vector.load %arg3[%c2_230, %c0_231, %c0_232] : memref<3x512x512xbf16, #tpu.memory_space<vmem>>, vector<1x512x512xbf16>
    %249 = vector.shape_cast %248 : vector<1x512x512xbf16> to vector<512x512xbf16>
    %cst_233 = arith.constant dense<0.000000e+00> : vector<64x512xf32>
    %250 = tpu.matmul %247, %249, %cst_233 {dimension_numbers = #tpu.dot_dimension_numbers<[1], [0], [0], [1], [0, 0, 1, 1], [], []>} : vector<64x512xbf16>, vector<512x512xbf16>, vector<64x512xf32> -> vector<64x512xf32>
    %c2_234 = arith.constant 2 : index
    %c0_235 = arith.constant 0 : index
    %c0_236 = arith.constant 0 : index
    %251 = vector.load %arg4[%c2_234, %c0_235, %c0_236] : memref<3x1x512xf32, #tpu.memory_space<vmem>>, vector<1x1x512xf32>
    %252 = vector.shape_cast %251 : vector<1x1x512xf32> to vector<1x512xf32>
    %253 = vector.broadcast %252 : vector<1x512xf32> to vector<64x512xf32>
    %254 = arith.mulf %250, %253 : vector<64x512xf32>
    %c2_237 = arith.constant 2 : index
    %c0_238 = arith.constant 0 : index
    %c0_239 = arith.constant 0 : index
    %255 = vector.load %arg5[%c2_237, %c0_238, %c0_239] : memref<3x1x512xf32, #tpu.memory_space<vmem>>, vector<1x1x512xf32>
    %256 = vector.shape_cast %255 : vector<1x1x512xf32> to vector<1x512xf32>
    %257 = vector.broadcast %256 : vector<1x512xf32> to vector<64x512xf32>
    %258 = arith.addf %254, %257 : vector<64x512xf32>
    %259 = arith.addf %3, %258 : vector<64x512xf32>
    %260 = vector.shape_cast %259 : vector<64x512xf32> to vector<1x8x8x512xf32>
    %c0_240 = arith.constant 0 : index
    %c0_241 = arith.constant 0 : index
    %c0_242 = arith.constant 0 : index
    %c0_243 = arith.constant 0 : index
    %261 = vector.load %arg7[%c0_240, %c0_241, %c0_242, %c0_243] : memref<1x8x8x512xf32, #tpu.memory_space<vmem>>, vector<1x8x8x512xf32>
    tpu.vector_store %arg7[%c0_240, %c0_241, %c0_242, %c0_243], %260 {strides = array<i32>} : memref<1x8x8x512xf32, #tpu.memory_space<vmem>>, vector<1x8x8x512xf32>,
    return
  }
  func.func @transform_0(%arg0: i32) -> (i32, i32, i32, i32) {
    %c0_i32 = arith.constant 0 : i32
    %c0_i32_0 = arith.constant 0 : i32
    %c0_i32_1 = arith.constant 0 : i32
    %c0_i32_2 = arith.constant 0 : i32
    return %arg0, %c0_i32, %c0_i32_0, %c0_i32_1 : i32, i32, i32, i32
  }
  func.func @transform_1(%arg0: i32) -> (i32, i32, i32, i32) {
    %c0_i32 = arith.constant 0 : i32
    %c0_i32_0 = arith.constant 0 : i32
    %c0_i32_1 = arith.constant 0 : i32
    %c0_i32_2 = arith.constant 0 : i32
    %c0_i32_3 = arith.constant 0 : i32
    return %c0_i32, %c0_i32_0, %c0_i32_1, %c0_i32_2 : i32, i32, i32, i32
  }
  func.func @transform_2(%arg0: i32) -> (i32, i32, i32) {
    %c0_i32 = arith.constant 0 : i32
    %c0_i32_0 = arith.constant 0 : i32
    %c0_i32_1 = arith.constant 0 : i32
    %c0_i32_2 = arith.constant 0 : i32
    return %c0_i32, %c0_i32_0, %c0_i32_1 : i32, i32, i32
  }
  func.func @transform_3(%arg0: i32) -> (i32, i32, i32) {
    %c0_i32 = arith.constant 0 : i32
    %c0_i32_0 = arith.constant 0 : i32
    %c0_i32_1 = arith.constant 0 : i32
    %c0_i32_2 = arith.constant 0 : i32
    return %c0_i32, %c0_i32_0, %c0_i32_1 : i32, i32, i32
  }
  func.func @transform_4(%arg0: i32) -> (i32, i32, i32) {
    %c0_i32 = arith.constant 0 : i32
    %c0_i32_0 = arith.constant 0 : i32
    %c0_i32_1 = arith.constant 0 : i32
    %c0_i32_2 = arith.constant 0 : i32
    return %c0_i32, %c0_i32_0, %c0_i32_1 : i32, i32, i32
  }
  func.func @transform_5(%arg0: i32) -> (i32, i32, i32) {
    %c0_i32 = arith.constant 0 : i32
    %c0_i32_0 = arith.constant 0 : i32
    %c0_i32_1 = arith.constant 0 : i32
    %c0_i32_2 = arith.constant 0 : i32
    return %c0_i32, %c0_i32_0, %c0_i32_1 : i32, i32, i32
  }
  func.func @transform_6(%arg0: i32) -> (i32, i32, i32, i32) {
    %c0_i32 = arith.constant 0 : i32
    %c0_i32_0 = arith.constant 0 : i32
    %c0_i32_1 = arith.constant 0 : i32
    %c0_i32_2 = arith.constant 0 : i32
    return %arg0, %c0_i32, %c0_i32_0, %c0_i32_1 : i32, i32, i32, i32
  }
}

</mosaic_0001>

<llo_original>
// kernel: middle_block_forward.1
$region0: #{middle_block_forward.1}
  #allocation0 [shape = 'u32[]', space=smem, size = 0x4, offset = 0x4, fixed_abs, tag = 'smem constant byte address 0x4 - core index']
  #allocation1 [shape = 'u32[144,128]{1,0:T(1,128)}', space=vmem, size = 0x12000, scoped, tag = 'internal scratch']
  #allocation2 [shape = 'f32[10,24,512]{2,1,0:T(8,128)}', space=vmem, size = 0x78000, scoped, tag = 'scratch operand']
  %s0 = inlined_call_operand.hbm [shape: f32[2,8,8,512], index: 0, kind: input, shape index: {}]
  %s1 = inlined_call_operand.hbm [shape: f32[3,9,1,512], index: 1, kind: input, shape index: {}]
  %s2 = inlined_call_operand.hbm [shape: bf16[3,512,512], index: 2, kind: input, shape index: {}]
  %s3 = inlined_call_operand.hbm [shape: f32[3,1,512], index: 3, kind: input, shape index: {}]
  %s4 = inlined_call_operand.hbm [shape: f32[3,1,512], index: 4, kind: input, shape index: {}]
  %s5 = inlined_call_operand.hbm [shape: f32[3,1,512], index: 5, kind: input, shape index: {}]
  %s6 = inlined_call_operand.hbm [shape: f32[2,8,8,512], index: 6, kind: output, shape index: {}]
  %s7 = sld [smem:[#allocation0]]
  $region81: #{middle_block_forward.1} parent=0
    _
  %s9 = ssub.s32 1, %s7
  %s10 = scalar_select 0, %s9, %s7
  $region1: #{middle_block_forward.1} parent=0
    #allocation3 [shape = 'u8[262144]{0}', space=vmem, size = 0x40000, scoped, tag = 'input window, operand 0']
    #allocation4 [shape = 's32[2]{0}', space=sflag, size = 0x8, scoped, tag = 'scoped memory for middle_block_forward.1']
    #allocation5 [shape = 's32[2]{0}', space=sflag, size = 0x8, scoped, tag = 'scoped memory for middle_block_forward.1']
    #allocation6 [shape = 'u8[55296]{0}', space=vmem, size = 0xd800, scoped, tag = 'input window, operand 1, single buffered']
    #allocation7 [shape = 's32[1]{0}', space=sflag, size = 0x4, scoped, tag = 'scoped memory for middle_block_forward.1']
    #allocation8 [shape = 'u8[1572864]{0}', space=vmem, size = 0x180000, scoped, tag = 'input window, operand 2, single buffered']
    #allocation9 [shape = 'u8[6144]{0}', space=vmem, size = 0x1800, scoped, tag = 'input window, operand 3, single buffered']
    #allocation10 [shape = 's32[1]{0}', space=sflag, size = 0x4, scoped, tag = 'scoped memory for middle_block_forward.1']
    #allocation11 [shape = 'u8[6144]{0}', space=vmem, size = 0x1800, scoped, tag = 'input window, operand 4, single buffered']
    #allocation12 [shape = 'u8[6144]{0}', space=vmem, size = 0x1800, scoped, tag = 'input window, operand 5, single buffered']
    #allocation13 [shape = 's32[1]{0}', space=sflag, size = 0x4, scoped, tag = 'scoped memory for middle_block_forward.1']
    #allocation14 [shape = 'u8[262144]{0}', space=vmem, size = 0x40000, scoped, tag = 'output window, operand 0']
    %11 = vsyncpa [#allocation4], 0
    %s12 = scalar_lea.sflag [#allocation4], 1
    %13 = vsyncpa %s12, 0
    %14 = vsyncpa [#allocation7], 0
    %15 = vsyncpa [#allocation10], 0
    %16 = vsyncpa [#allocation13], 0
    %17 = vsyncpa [#allocation5], 0
    %s18 = scalar_lea.sflag [#allocation5], 1
    %19 = vsyncpa %s18, 0
    loop: start=0, step=1, limit=4
    $region2: #{middle_block_forward.1} parent=1 // loop_pre_header
      _
    $region3: #{middle_block_forward.1} parent=1 // loop_header
      %s21 = sphi 0, %s25
      %p22 = scmp.ge.s32.totalorder %s21, 4
      %s31 = sphi 0, %s33
      %s34 = sphi 0, %s31
      %s35 = sphi 0, %s34
      %s51 = sphi 0, %s35
      %s55 = sphi 0, %s55
      %s57 = sphi 0, %s55
      %s58 = sphi 0, %s57
      %s72 = sphi 0, %s58
      %s76 = sphi 0, %s76
      %s78 = sphi 0, %s76
      %s79 = sphi 0, %s78
      %s93 = sphi 0, %s79
      %s97 = sphi 0, %s97
      %s99 = sphi 0, %s97
      %s100 = sphi 0, %s99
      %s114 = sphi 0, %s100
      %s118 = sphi 0, %s118
      %s120 = sphi 0, %s118
      %s121 = sphi 0, %s120
      %s135 = sphi 0, %s121
      %s139 = sphi 0, %s139
      %s141 = sphi 0, %s139
      %s142 = sphi 0, %s141
      %s156 = sphi 0, %s142
      %s162 = sphi 0, %s164
      %s165 = sphi 0, %s162
      %s166 = sphi 0, %s165
      %s182 = sphi 0, %s166
    $region4: #{middle_block_forward.1} parent=1 // loop_header_branch
      %24 = sbr.rel (%p22) target = $region8
    $region5: #{middle_block_forward.1} parent=1 // loop_body
      %s26 = ssub.s32 %s21, 1
      %s27 = ssub.s32 %s21, 2
      %s28 = sadd.s32 %s21, 1
      %s29 = ssub.s32 %s21, %s28
      %p30 = scmp.eq.s32.totalorder %s29, 0
      %s32 = sadd.s32 %s31, 1
      %s33 = scalar_select %p30, %s31, %s32
      %p36 = pneg %p30
      %p37 = scmp.eq.s32.totalorder %s21, 1
      %p38 = por %p36, %p37
      %p39 = scmp.ne.s32.totalorder %s31, %s34
      %p40 = scmp.eq.s32.totalorder %s21, 0
      %p41 = por %p39, %p40
      %p42 = scmp.ne.s32.totalorder %s31, %s34
      %p43 = scmp.eq.s32.totalorder %s26, 1
      %p44 = por %p42, %p43
      %p45 = scmp.ne.s32.totalorder %s34, %s35
      %p46 = scmp.eq.s32.totalorder %s26, 0
      %p47 = por %p45, %p46
      %p48 = scmp.ne.s32.totalorder %s34, %s35
      %p49 = scmp.eq.s32.totalorder %s27, 1
      %p50 = por %p48, %p49
      %p52 = scmp.ne.s32.totalorder %s35, %s51
      %p53 = scmp.eq.s32.totalorder %s27, 0
      %p54 = por %p52, %p53
      %s56 = sadd.s32 %s55, 1
      %p59 = scmp.eq.s32.totalorder %s21, 1
      %p60 = scmp.ne.s32.totalorder %s55, %s57
      %p61 = scmp.eq.s32.totalorder %s21, 0
      %p62 = por %p60, %p61
      %p63 = scmp.ne.s32.totalorder %s55, %s57
      %p64 = scmp.eq.s32.totalorder %s26, 1
      %p65 = por %p63, %p64
      %p66 = scmp.ne.s32.totalorder %s57, %s58
      %p67 = scmp.eq.s32.totalorder %s26, 0
      %p68 = por %p66, %p67
      %p69 = scmp.ne.s32.totalorder %s57, %s58
      %p70 = scmp.eq.s32.totalorder %s27, 1
      %p71 = por %p69, %p70
      %p73 = scmp.ne.s32.totalorder %s58, %s72
      %p74 = scmp.eq.s32.totalorder %s27, 0
      %p75 = por %p73, %p74
      %s77 = sadd.s32 %s76, 1
      %p80 = scmp.eq.s32.totalorder %s21, 1
      %p81 = scmp.ne.s32.totalorder %s76, %s78
      %p82 = scmp.eq.s32.totalorder %s21, 0
      %p83 = por %p81, %p82
      %p84 = scmp.ne.s32.totalorder %s76, %s78
      %p85 = scmp.eq.s32.totalorder %s26, 1
      %p86 = por %p84, %p85
      %p87 = scmp.ne.s32.totalorder %s78, %s79
      %p88 = scmp.eq.s32.totalorder %s26, 0
      %p89 = por %p87, %p88
      %p90 = scmp.ne.s32.totalorder %s78, %s79
      %p91 = scmp.eq.s32.totalorder %s27, 1
      %p92 = por %p90, %p91
      %p94 = scmp.ne.s32.totalorder %s79, %s93
      %p95 = scmp.eq.s32.totalorder %s27, 0
      %p96 = por %p94, %p95
      %s98 = sadd.s32 %s97, 1
      %p101 = scmp.eq.s32.totalorder %s21, 1
      %p102 = scmp.ne.s32.totalorder %s97, %s99
      %p103 = scmp.eq.s32.totalorder %s21, 0
      %p104 = por %p102, %p103
      %p105 = scmp.ne.s32.totalorder %s97, %s99
      %p106 = scmp.eq.s32.totalorder %s26, 1
      %p107 = por %p105, %p106
      %p108 = scmp.ne.s32.totalorder %s99, %s100
      %p109 = scmp.eq.s32.totalorder %s26, 0
      %p110 = por %p108, %p109
      %p111 = scmp.ne.s32.totalorder %s99, %s100
      %p112 = scmp.eq.s32.totalorder %s27, 1
      %p113 = por %p111, %p112
      %p115 = scmp.ne.s32.totalorder %s100, %s114
      %p116 = scmp.eq.s32.totalorder %s27, 0
      %p117 = por %p115, %p116
      %s119 = sadd.s32 %s118, 1
      %p122 = scmp.eq.s32.totalorder %s21, 1
      %p123 = scmp.ne.s32.totalorder %s118, %s120
      %p124 = scmp.eq.s32.totalorder %s21, 0
      %p125 = por %p123, %p124
      %p126 = scmp.ne.s32.totalorder %s118, %s120
      %p127 = scmp.eq.s32.totalorder %s26, 1
      %p128 = por %p126, %p127
      %p129 = scmp.ne.s32.totalorder %s120, %s121
      %p130 = scmp.eq.s32.totalorder %s26, 0
      %p131 = por %p129, %p130
      %p132 = scmp.ne.s32.totalorder %s120, %s121
      %p133 = scmp.eq.s32.totalorder %s27, 1
      %p134 = por %p132, %p133
      %p136 = scmp.ne.s32.totalorder %s121, %s135
      %p137 = scmp.eq.s32.totalorder %s27, 0
      %p138 = por %p136, %p137
      %s140 = sadd.s32 %s139, 1
      %p143 = scmp.eq.s32.totalorder %s21, 1
      %p144 = scmp.ne.s32.totalorder %s139, %s141
      %p145 = scmp.eq.s32.totalorder %s21, 0
      %p146 = por %p144, %p145
      %p147 = scmp.ne.s32.totalorder %s139, %s141
      %p148 = scmp.eq.s32.totalorder %s26, 1
      %p149 = por %p147, %p148
      %p150 = scmp.ne.s32.totalorder %s141, %s142
      %p151 = scmp.eq.s32.totalorder %s26, 0
      %p152 = por %p150, %p151
      %p153 = scmp.ne.s32.totalorder %s141, %s142
      %p154 = scmp.eq.s32.totalorder %s27, 1
      %p155 = por %p153, %p154
      %p157 = scmp.ne.s32.totalorder %s142, %s156
      %p158 = scmp.eq.s32.totalorder %s27, 0
      %p159 = por %p157, %p158
      %s160 = ssub.s32 %s21, %s28
      %p161 = scmp.eq.s32.totalorder %s160, 0
      %s163 = sadd.s32 %s162, 1
      %s164 = scalar_select %p161, %s162, %s163
      %p167 = pneg %p161
      %p168 = scmp.eq.s32.totalorder %s21, 1
      %p169 = por %p167, %p168
      %p170 = scmp.ne.s32.totalorder %s162, %s165
      %p171 = scmp.eq.s32.totalorder %s21, 0
      %p172 = por %p170, %p171
      %p173 = scmp.ne.s32.totalorder %s162, %s165
      %p174 = scmp.eq.s32.totalorder %s26, 1
      %p175 = por %p173, %p174
      %p176 = scmp.ne.s32.totalorder %s165, %s166
      %p177 = scmp.eq.s32.totalorder %s26, 0
      %p178 = por %p176, %p177
      %p179 = scmp.ne.s32.totalorder %s165, %s166
      %p180 = scmp.eq.s32.totalorder %s27, 1
      %p181 = por %p179, %p180
      %p183 = scmp.ne.s32.totalorder %s166, %s182
      %p184 = scmp.eq.s32.totalorder %s27, 0
      %p185 = por %p183, %p184
      %p186 = scmp.le.s32.totalorder 1, %s21
      %p187 = scmp.lt.s32.totalorder %s21, 3
      %p188 = pnand %p186, %p187
      %p189 = pneg %p188
      // Predicated region
      $region9: #{middle_block_forward.1} parent=5 // pred_check
        _
      $region10: #{middle_block_forward.1} parent=5 // pred_check_branch
        %191 = sbr.rel (%p188) target = $region12
      $region11: #{middle_block_forward.1} parent=5 // pred_region
        %s192 = ssub.s32 %s21, 1
        // Predicated region
        $region13: #{middle_block_forward.1} parent=11 // pred_check
          %p193 = pneg %p68
        $region14: #{middle_block_forward.1} parent=11 // pred_check_branch
          %195 = sbr.rel (%p193) target = $region16
        $region15: #{middle_block_forward.1} parent=11 // pred_region
          %s197 = ssub.s32 1728, 1728
          %198 = vsyncadd [#allocation7], %s197
          %s199 = sshll.u32 [#allocation6], 4
          %s200 = int_to_ptr.vmem [resolvable:$true] %s199
          %205 = dma.hbm_to_vmem [thread:$0]  %s1, 1728, %s200, [#allocation7], 64, 64, 4
        $region16: #{middle_block_forward.1} parent=11 // pred_fallthru
          _
        // Predicated region
        $region17: #{middle_block_forward.1} parent=11 // pred_check
          %p206 = pneg %p89
        $region18: #{middle_block_forward.1} parent=11 // pred_check_branch
          %208 = sbr.rel (%p206) target = $region20
        $region19: #{middle_block_forward.1} parent=11 // pred_region
          %s210 = ssub.s32 49152, 49152
          %211 = vsyncadd [#allocation7], %s210
          %s212 = sshll.u32 [#allocation8], 4
          %s213 = int_to_ptr.vmem [resolvable:$true] %s212
          %218 = dma.hbm_to_vmem [thread:$0]  %s2, 49152, %s213, [#allocation7], 256, 256, 16
        $region20: #{middle_block_forward.1} parent=11 // pred_fallthru
          _
        // Predicated region
        $region21: #{middle_block_forward.1} parent=11 // pred_check
          %p219 = pneg %p110
        $region22: #{middle_block_forward.1} parent=11 // pred_check_branch
          %221 = sbr.rel (%p219) target = $region24
        $region23: #{middle_block_forward.1} parent=11 // pred_region
          %s223 = ssub.s32 192, 192
          %224 = vsyncadd [#allocation10], %s223
          %s225 = sshll.u32 [#allocation9], 4
          %s226 = int_to_ptr.vmem [resolvable:$true] %s225
          %231 = dma.hbm_to_vmem [thread:$0]  %s3, 192, %s226, [#allocation10], 64, 64, 4
        $region24: #{middle_block_forward.1} parent=11 // pred_fallthru
          _
        // Predicated region
        $region25: #{middle_block_forward.1} parent=11 // pred_check
          %p232 = pneg %p131
        $region26: #{middle_block_forward.1} parent=11 // pred_check_branch
          %234 = sbr.rel (%p232) target = $region28
        $region27: #{middle_block_forward.1} parent=11 // pred_region
          %s236 = ssub.s32 192, 192
          %237 = vsyncadd [#allocation10], %s236
          %s238 = sshll.u32 [#allocation11], 4
          %s239 = int_to_ptr.vmem [resolvable:$true] %s238
          %244 = dma.hbm_to_vmem [thread:$0]  %s4, 192, %s239, [#allocation10], 64, 64, 4
        $region28: #{middle_block_forward.1} parent=11 // pred_fallthru
          _
        // Predicated region
        $region29: #{middle_block_forward.1} parent=11 // pred_check
          %p245 = pneg %p152
        $region30: #{middle_block_forward.1} parent=11 // pred_check_branch
          %247 = sbr.rel (%p245) target = $region32
        $region31: #{middle_block_forward.1} parent=11 // pred_region
          %s249 = ssub.s32 192, 192
          %250 = vsyncadd [#allocation13], %s249
          %s251 = sshll.u32 [#allocation12], 4
          %s252 = int_to_ptr.vmem [resolvable:$true] %s251
          %257 = dma.hbm_to_vmem [thread:$0]  %s5, 192, %s252, [#allocation13], 64, 64, 4
        $region32: #{middle_block_forward.1} parent=11 // pred_fallthru
          _
      $region12: #{middle_block_forward.1} parent=5 // pred_fallthru
        _
      %p258 = scmp.lt.s32.totalorder %s21, 2
      // Predicated region
      $region33: #{middle_block_forward.1} parent=5 // pred_check
        %p259 = pneg %p258
      $region34: #{middle_block_forward.1} parent=5 // pred_check_branch
        %261 = sbr.rel (%p259) target = $region36
      $region35: #{middle_block_forward.1} parent=5 // pred_region
        // Predicated region
        $region37: #{middle_block_forward.1} parent=35 // pred_check
          %p262 = pneg %p41
        $region38: #{middle_block_forward.1} parent=35 // pred_check_branch
          %264 = sbr.rel (%p262) target = $region40
        $region39: #{middle_block_forward.1} parent=35 // pred_region
          %s265 = sand.u32 %s31, 1
          %s266 = scalar_lea.sflag [#allocation4], %s265
          %s267 = sand.u32 %s31, 1
          %s268 = smul.addr %s267, 256
          %s269 = scalar_lea.vmem [#allocation3], %s268
          %s271 = ssub.s32 4096, 4096
          %272 = vsyncadd %s266, %s271
          %s273 = smul.addr %s21, 32
          %s274 = smul.addr %s273, 128
          %s275 = scalar_lea.hbm %s0, %s274
          %s276 = sshll.u32 %s269, 4
          %s277 = int_to_ptr.vmem [resolvable:$true] %s276
          %282 = dma.hbm_to_vmem [thread:$0]  %s275, 4096, %s277, %s266, 512, 512, 32
        $region40: #{middle_block_forward.1} parent=35 // pred_fallthru
          _
      $region36: #{middle_block_forward.1} parent=5 // pred_fallthru
        _
      %p283 = scmp.le.s32.totalorder 1, %s21
      %p284 = scmp.lt.s32.totalorder %s21, 3
      %p285 = pnand %p283, %p284
      %p286 = pneg %p285
      // Predicated region
      $region41: #{middle_block_forward.1} parent=5 // pred_check
        _
      $region42: #{middle_block_forward.1} parent=5 // pred_check_branch
        %288 = sbr.rel (%p285) target = $region44
      $region43: #{middle_block_forward.1} parent=5 // pred_region
        %s289 = ssub.s32 %s21, 1
        %s290 = sand.u32 %s34, 1
        %s291 = scalar_lea.sflag [#allocation4], %s290
        %s292 = sand.u32 %s34, 1
        %s293 = smul.addr %s292, 256
        %s294 = scalar_lea.vmem [#allocation3], %s293
        // Predicated region
        $region45: #{middle_block_forward.1} parent=43 // pred_check
          %p295 = pneg %p47
        $region46: #{middle_block_forward.1} parent=43 // pred_check_branch
          %297 = sbr.rel (%p295) target = $region48
        $region47: #{middle_block_forward.1} parent=43 // pred_region
          %298 = dma.done %s291, 4096
        $region48: #{middle_block_forward.1} parent=43 // pred_fallthru
          _
        // Predicated region
        $region49: #{middle_block_forward.1} parent=43 // pred_check
          %p299 = pneg %p68
        $region50: #{middle_block_forward.1} parent=43 // pred_check_branch
          %301 = sbr.rel (%p299) target = $region52
        $region51: #{middle_block_forward.1} parent=43 // pred_region
          %302 = dma.done [#allocation7], 1728
        $region52: #{middle_block_forward.1} parent=43 // pred_fallthru
          _
        // Predicated region
        $region53: #{middle_block_forward.1} parent=43 // pred_check
          %p303 = pneg %p89
        $region54: #{middle_block_forward.1} parent=43 // pred_check_branch
          %305 = sbr.rel (%p303) target = $region56
        $region55: #{middle_block_forward.1} parent=43 // pred_region
          %306 = dma.done [#allocation7], 49152
        $region56: #{middle_block_forward.1} parent=43 // pred_fallthru
          _
        // Predicated region
        $region57: #{middle_block_forward.1} parent=43 // pred_check
          %p307 = pneg %p110
        $region58: #{middle_block_forward.1} parent=43 // pred_check_branch
          %309 = sbr.rel (%p307) target = $region60
        $region59: #{middle_block_forward.1} parent=43 // pred_region
          %310 = dma.done [#allocation10], 192
        $region60: #{middle_block_forward.1} parent=43 // pred_fallthru
          _
        // Predicated region
        $region61: #{middle_block_forward.1} parent=43 // pred_check
          %p311 = pneg %p131
        $region62: #{middle_block_forward.1} parent=43 // pred_check_branch
          %313 = sbr.rel (%p311) target = $region64
        $region63: #{middle_block_forward.1} parent=43 // pred_region
          %314 = dma.done [#allocation10], 192
        $region64: #{middle_block_forward.1} parent=43 // pred_fallthru
          _
        // Predicated region
        $region65: #{middle_block_forward.1} parent=43 // pred_check
          %p315 = pneg %p152
        $region66: #{middle_block_forward.1} parent=43 // pred_check_branch
          %317 = sbr.rel (%p315) target = $region68
        $region67: #{middle_block_forward.1} parent=43 // pred_region
          %318 = dma.done [#allocation13], 192
        $region68: #{middle_block_forward.1} parent=43 // pred_fallthru
          _
        %s319 = sand.u32 %s34, 1
        %s320 = scalar_lea.sflag [#allocation4], %s319
        %s321 = sand.u32 %s34, 1
        %s322 = smul.addr %s321, 256
        %s323 = scalar_lea.vmem [#allocation3], %s322
        %p324 = pneg %p47
        %p325 = pneg %p44
        %p326 = pneg %p68
        %p327 = pneg %p65
        %p328 = pneg %p89
        %p329 = pneg %p86
        %p330 = pneg %p110
        %p331 = pneg %p107
        %p332 = pneg %p131
        %p333 = pneg %p128
        %p334 = pneg %p152
        %p335 = pneg %p149
        %p336 = pneg %p178
        %p337 = pneg %p175
        %s338 = sand.u32 %s165, 1
        %s339 = scalar_lea.sflag [#allocation5], %s338
        %s340 = sand.u32 %s165, 1
        %s341 = smul.addr %s340, 256
        %s342 = scalar_lea.vmem [#allocation14], %s341
        %343 = vst [vmem:[#allocation2] sm:$0xff] 0.0
        %344 = vst [vmem:[#allocation2 + $0x8] sm:$0xff] 0.0
        %345 = vst [vmem:[#allocation2 + $0x10] sm:$0xff] 0.0
        %346 = vst [vmem:[#allocation2 + $0x18] sm:$0xff] 0.0
        %347 = vst [vmem:[#allocation2 + $0x20] sm:$0xff] 0.0
        %348 = vst [vmem:[#allocation2 + $0x28] sm:$0xff] 0.0
        %349 = vst [vmem:[#allocation2 + $0x30] sm:$0xff] 0.0
        %350 = vst [vmem:[#allocation2 + $0x38] sm:$0xff] 0.0
        %351 = vst [vmem:[#allocation2 + $0x40] sm:$0xff] 0.0
        %352 = vst [vmem:[#allocation2 + $0x48] sm:$0xff] 0.0
        %353 = vst [vmem:[#allocation2 + $0x50] sm:$0xff] 0.0
        %354 = vst [vmem:[#allocation2 + $0x58] sm:$0xff] 0.0
        %355 = vst [vmem:[#allocation2 + $0x60] sm:$0xff] 0.0
        %356 = vst [vmem:[#allocation2 + $0x68] sm:$0xff] 0.0
        %357 = vst [vmem:[#allocation2 + $0x70] sm:$0xff] 0.0
        %358 = vst [vmem:[#allocation2 + $0x78] sm:$0xff] 0.0
        %359 = vst [vmem:[#allocation2 + $0x80] sm:$0xff] 0.0
        %360 = vst [vmem:[#allocation2 + $0x88] sm:$0xff] 0.0
        %361 = vst [vmem:[#allocation2 + $0x90] sm:$0xff] 0.0
        %362 = vst [vmem:[#allocation2 + $0x98] sm:$0xff] 0.0
        %363 = vst [vmem:[#allocation2 + $0xa0] sm:$0xff] 0.0
        %364 = vst [vmem:[#allocation2 + $0xa8] sm:$0xff] 0.0
        %365 = vst [vmem:[#allocation2 + $0xb0] sm:$0xff] 0.0
        %366 = vst [vmem:[#allocation2 + $0xb8] sm:$0xff] 0.0
        %367 = vst [vmem:[#allocation2 + $0xc0] sm:$0xff] 0.0
        %368 = vst [vmem:[#allocation2 + $0xc8] sm:$0xff] 0.0
        %369 = vst [vmem:[#allocation2 + $0xd0] sm:$0xff] 0.0
        %370 = vst [vmem:[#allocation2 + $0xd8] sm:$0xff] 0.0
        %371 = vst [vmem:[#allocation2 + $0xe0] sm:$0xff] 0.0
        %372 = vst [vmem:[#allocation2 + $0xe8] sm:$0xff] 0.0
        %373 = vst [vmem:[#allocation2 + $0xf0] sm:$0xff] 0.0
        %374 = vst [vmem:[#allocation2 + $0xf8] sm:$0xff] 0.0
        %375 = vst [vmem:[#allocation2 + $0x100] sm:$0xff] 0.0
        %376 = vst [vmem:[#allocation2 + $0x108] sm:$0xff] 0.0
        %377 = vst [vmem:[#allocation2 + $0x110] sm:$0xff] 0.0
        %378 = vst [vmem:[#allocation2 + $0x118] sm:$0xff] 0.0
        %379 = vst [vmem:[#allocation2 + $0x120] sm:$0xff] 0.0
        %380 = vst [vmem:[#allocation2 + $0x128] sm:$0xff] 0.0
        %381 = vst [vmem:[#allocation2 + $0x130] sm:$0xff] 0.0
        %382 = vst [vmem:[#allocation2 + $0x138] sm:$0xff] 0.0
        %383 = vst [vmem:[#allocation2 + $0x140] sm:$0xff] 0.0
        %384 = vst [vmem:[#allocation2 + $0x148] sm:$0xff] 0.0
        %385 = vst [vmem:[#allocation2 + $0x150] sm:$0xff] 0.0
        %386 = vst [vmem:[#allocation2 + $0x158] sm:$0xff] 0.0
        %387 = vst [vmem:[#allocation2 + $0x160] sm:$0xff] 0.0
        %388 = vst [vmem:[#allocation2 + $0x168] sm:$0xff] 0.0
        %389 = vst [vmem:[#allocation2 + $0x170] sm:$0xff] 0.0
        %390 = vst [vmem:[#allocation2 + $0x178] sm:$0xff] 0.0
        %391 = vst [vmem:[#allocation2 + $0x180] sm:$0xff] 0.0
        %392 = vst [vmem:[#allocation2 + $0x188] sm:$0xff] 0.0
        %393 = vst [vmem:[#allocation2 + $0x190] sm:$0xff] 0.0
        %394 = vst [vmem:[#allocation2 + $0x198] sm:$0xff] 0.0
        %395 = vst [vmem:[#allocation2 + $0x1a0] sm:$0xff] 0.0
        %396 = vst [vmem:[#allocation2 + $0x1a8] sm:$0xff] 0.0
        %397 = vst [vmem:[#allocation2 + $0x1b0] sm:$0xff] 0.0
        %398 = vst [vmem:[#allocation2 + $0x1b8] sm:$0xff] 0.0
        %399 = vst [vmem:[#allocation2 + $0x1c0] sm:$0xff] 0.0
        %400 = vst [vmem:[#allocation2 + $0x1c8] sm:$0xff] 0.0
        %401 = vst [vmem:[#allocation2 + $0x1d0] sm:$0xff] 0.0
        %402 = vst [vmem:[#allocation2 + $0x1d8] sm:$0xff] 0.0
        %403 = vst [vmem:[#allocation2 + $0x1e0] sm:$0xff] 0.0
        %404 = vst [vmem:[#allocation2 + $0x1e8] sm:$0xff] 0.0
        %405 = vst [vmem:[#allocation2 + $0x1f0] sm:$0xff] 0.0
        %406 = vst [vmem:[#allocation2 + $0x1f8] sm:$0xff] 0.0
        %407 = vst [vmem:[#allocation2 + $0x200] sm:$0xff] 0.0
        %408 = vst [vmem:[#allocation2 + $0x208] sm:$0xff] 0.0
        %409 = vst [vmem:[#allocation2 + $0x210] sm:$0xff] 0.0
        %410 = vst [vmem:[#allocation2 + $0x218] sm:$0xff] 0.0
        %411 = vst [vmem:[#allocation2 + $0x220] sm:$0xff] 0.0
        %412 = vst [vmem:[#allocation2 + $0x228] sm:$0xff] 0.0
        %413 = vst [vmem:[#allocation2 + $0x230] sm:$0xff] 0.0
        %414 = vst [vmem:[#allocation2 + $0x238] sm:$0xff] 0.0
        %415 = vst [vmem:[#allocation2 + $0x240] sm:$0xff] 0.0
        %416 = vst [vmem:[#allocation2 + $0x248] sm:$0xff] 0.0
        %417 = vst [vmem:[#allocation2 + $0x250] sm:$0xff] 0.0
        %418 = vst [vmem:[#allocation2 + $0x258] sm:$0xff] 0.0
        %419 = vst [vmem:[#allocation2 + $0x260] sm:$0xff] 0.0
        %420 = vst [vmem:[#allocation2 + $0x268] sm:$0xff] 0.0
        %421 = vst [vmem:[#allocation2 + $0x270] sm:$0xff] 0.0
        %422 = vst [vmem:[#allocation2 + $0x278] sm:$0xff] 0.0
        %423 = vst [vmem:[#allocation2 + $0x280] sm:$0xff] 0.0
        %424 = vst [vmem:[#allocation2 + $0x288] sm:$0xff] 0.0
        %425 = vst [vmem:[#allocation2 + $0x290] sm:$0xff] 0.0
        %426 = vst [vmem:[#allocation2 + $0x298] sm:$0xff] 0.0
        %427 = vst [vmem:[#allocation2 + $0x2a0] sm:$0xff] 0.0
        %428 = vst [vmem:[#allocation2 + $0x2a8] sm:$0xff] 0.0
        %429 = vst [vmem:[#allocation2 + $0x2b0] sm:$0xff] 0.0
        %430 = vst [vmem:[#allocation2 + $0x2b8] sm:$0xff] 0.0
        %431 = vst [vmem:[#allocation2 + $0x2c0] sm:$0xff] 0.0
        %432 = vst [vmem:[#allocation2 + $0x2c8] sm:$0xff] 0.0
        %433 = vst [vmem:[#allocation2 + $0x2d0] sm:$0xff] 0.0
        %434 = vst [vmem:[#allocation2 + $0x2d8] sm:$0xff] 0.0
        %435 = vst [vmem:[#allocation2 + $0x2e0] sm:$0xff] 0.0
        %436 = vst [vmem:[#allocation2 + $0x2e8] sm:$0xff] 0.0
        %437 = vst [vmem:[#allocation2 + $0x2f0] sm:$0xff] 0.0
        %438 = vst [vmem:[#allocation2 + $0x2f8] sm:$0xff] 0.0
        %439 = vst [vmem:[#allocation2 + $0x300] sm:$0xff] 0.0
        %440 = vst [vmem:[#allocation2 + $0x308] sm:$0xff] 0.0
        %441 = vst [vmem:[#allocation2 + $0x310] sm:$0xff] 0.0
        %442 = vst [vmem:[#allocation2 + $0x318] sm:$0xff] 0.0
        %443 = vst [vmem:[#allocation2 + $0x320] sm:$0xff] 0.0
        %444 = vst [vmem:[#allocation2 + $0x328] sm:$0xff] 0.0
        %445 = vst [vmem:[#allocation2 + $0x330] sm:$0xff] 0.0
        %446 = vst [vmem:[#allocation2 + $0x338] sm:$0xff] 0.0
        %447 = vst [vmem:[#allocation2 + $0x340] sm:$0xff] 0.0
        %448 = vst [vmem:[#allocation2 + $0x348] sm:$0xff] 0.0
        %449 = vst [vmem:[#allocation2 + $0x350] sm:$0xff] 0.0
        %450 = vst [vmem:[#allocation2 + $0x358] sm:$0xff] 0.0
        %451 = vst [vmem:[#allocation2 + $0x360] sm:$0xff] 0.0
        %452 = vst [vmem:[#allocation2 + $0x368] sm:$0xff] 0.0
        %453 = vst [vmem:[#allocation2 + $0x370] sm:$0xff] 0.0
        %454 = vst [vmem:[#allocation2 + $0x378] sm:$0xff] 0.0
        %455 = vst [vmem:[#allocation2 + $0x380] sm:$0xff] 0.0
        %456 = vst [vmem:[#allocation2 + $0x388] sm:$0xff] 0.0
        %457 = vst [vmem:[#allocation2 + $0x390] sm:$0xff] 0.0
        %458 = vst [vmem:[#allocation2 + $0x398] sm:$0xff] 0.0
        %459 = vst [vmem:[#allocation2 + $0x3a0] sm:$0xff] 0.0
        %460 = vst [vmem:[#allocation2 + $0x3a8] sm:$0xff] 0.0
        %461 = vst [vmem:[#allocation2 + $0x3b0] sm:$0xff] 0.0
        %462 = vst [vmem:[#allocation2 + $0x3b8] sm:$0xff] 0.0
        %v463 = vld [vmem:[%s294] sm:$0xff]
        %v464 = vld [vmem:[%s294 + $0x8] sm:$0xff]
        %v465 = vld [vmem:[%s294 + $0x10] sm:$0xff]
        %v466 = vld [vmem:[%s294 + $0x18] sm:$0xff]
        %v467 = vld [vmem:[%s294 + $0x20] sm:$0xff]
        %v468 = vld [vmem:[%s294 + $0x28] sm:$0xff]
        %v469 = vld [vmem:[%s294 + $0x30] sm:$0xff]
        %v470 = vld [vmem:[%s294 + $0x38] sm:$0xff]
        %v471 = vld [vmem:[%s294 + $0x40] sm:$0xff]
        %v472 = vld [vmem:[%s294 + $0x48] sm:$0xff]
        %v473 = vld [vmem:[%s294 + $0x50] sm:$0xff]
        %v474 = vld [vmem:[%s294 + $0x58] sm:$0xff]
        %v475 = vld [vmem:[%s294 + $0x60] sm:$0xff]
        %v476 = vld [vmem:[%s294 + $0x68] sm:$0xff]
        %v477 = vld [vmem:[%s294 + $0x70] sm:$0xff]
        %v478 = vld [vmem:[%s294 + $0x78] sm:$0xff]
        %v479 = vld [vmem:[%s294 + $0x80] sm:$0xff]
        %v480 = vld [vmem:[%s294 + $0x88] sm:$0xff]
        %v481 = vld [vmem:[%s294 + $0x90] sm:$0xff]
        %v482 = vld [vmem:[%s294 + $0x98] sm:$0xff]
        %v483 = vld [vmem:[%s294 + $0xa0] sm:$0xff]
        %v484 = vld [vmem:[%s294 + $0xa8] sm:$0xff]
        %v485 = vld [vmem:[%s294 + $0xb0] sm:$0xff]
        %v486 = vld [vmem:[%s294 + $0xb8] sm:$0xff]
        %v487 = vld [vmem:[%s294 + $0xc0] sm:$0xff]
        %v488 = vld [vmem:[%s294 + $0xc8] sm:$0xff]
        %v489 = vld [vmem:[%s294 + $0xd0] sm:$0xff]
        %v490 = vld [vmem:[%s294 + $0xd8] sm:$0xff]
        %v491 = vld [vmem:[%s294 + $0xe0] sm:$0xff]
        %v492 = vld [vmem:[%s294 + $0xe8] sm:$0xff]
        %v493 = vld [vmem:[%s294 + $0xf0] sm:$0xff]
        %v494 = vld [vmem:[%s294 + $0xf8] sm:$0xff]
        %v495 = vld [vmem:[#allocation12] sm:$0xf]
        %vm496 = vcmp.ge.f32.partialorder %v463, 0.0
        %vm497 = vcmp.ge.f32.partialorder %v464, 0.0
        %vm498 = vcmp.ge.f32.partialorder %v465, 0.0
        %vm499 = vcmp.ge.f32.partialorder %v466, 0.0
        %vm500 = vcmp.ge.f32.partialorder %v467, 0.0
        %vm501 = vcmp.ge.f32.partialorder %v468, 0.0
        %vm502 = vcmp.ge.f32.partialorder %v469, 0.0
        %vm503 = vcmp.ge.f32.partialorder %v470, 0.0
        %vm504 = vcmp.ge.f32.partialorder %v471, 0.0
        %vm505 = vcmp.ge.f32.partialorder %v472, 0.0
        %vm506 = vcmp.ge.f32.partialorder %v473, 0.0
        %vm507 = vcmp.ge.f32.partialorder %v474, 0.0
        %vm508 = vcmp.ge.f32.partialorder %v475, 0.0
        %vm509 = vcmp.ge.f32.partialorder %v476, 0.0
        %vm510 = vcmp.ge.f32.partialorder %v477, 0.0
        %vm511 = vcmp.ge.f32.partialorder %v478, 0.0
        %vm512 = vcmp.ge.f32.partialorder %v479, 0.0
        %vm513 = vcmp.ge.f32.partialorder %v480, 0.0
        %vm514 = vcmp.ge.f32.partialorder %v481, 0.0
        %vm515 = vcmp.ge.f32.partialorder %v482, 0.0
        %vm516 = vcmp.ge.f32.partialorder %v483, 0.0
        %vm517 = vcmp.ge.f32.partialorder %v484, 0.0
        %vm518 = vcmp.ge.f32.partialorder %v485, 0.0
        %vm519 = vcmp.ge.f32.partialorder %v486, 0.0
        %vm520 = vcmp.ge.f32.partialorder %v487, 0.0
        %vm521 = vcmp.ge.f32.partialorder %v488, 0.0
        %vm522 = vcmp.ge.f32.partialorder %v489, 0.0
        %vm523 = vcmp.ge.f32.partialorder %v490, 0.0
        %vm524 = vcmp.ge.f32.partialorder %v491, 0.0
        %vm525 = vcmp.ge.f32.partialorder %v492, 0.0
        %vm526 = vcmp.ge.f32.partialorder %v493, 0.0
        %vm527 = vcmp.ge.f32.partialorder %v494, 0.0
        %v529 = vlaneseq
        %v530 = vshrl.u32 %v529, 7
        %v531 = vsub.s32 0, %v530
        %v532 = vrot.slane %v495, %v531
        %v533 = vlaneseq
        %v534 = vshrl.u32 %v533, 7
        %v535 = vsub.s32 1, %v534
        %v536 = vrot.slane %v495, %v535
        %v537 = vlaneseq
        %v538 = vshrl.u32 %v537, 7
        %v539 = vsub.s32 2, %v538
        %v540 = vrot.slane %v495, %v539
        %v541 = vlaneseq
        %v542 = vshrl.u32 %v541, 7
        %v543 = vsub.s32 3, %v542
        %v544 = vrot.slane %v495, %v543
        %v549 = vmul.f32 %v463, %v532
        %v550 = vmul.f32 %v464, %v536
        %v551 = vmul.f32 %v465, %v540
        %v552 = vmul.f32 %v466, %v544
        %v553 = vmul.f32 %v467, %v532
        %v554 = vmul.f32 %v468, %v536
        %v555 = vmul.f32 %v469, %v540
        %v556 = vmul.f32 %v470, %v544
        %v557 = vmul.f32 %v471, %v532
        %v558 = vmul.f32 %v472, %v536
        %v559 = vmul.f32 %v473, %v540
        %v560 = vmul.f32 %v474, %v544
        %v561 = vmul.f32 %v475, %v532
        %v562 = vmul.f32 %v476, %v536
        %v563 = vmul.f32 %v477, %v540
        %v564 = vmul.f32 %v478, %v544
        %v565 = vmul.f32 %v479, %v532
        %v566 = vmul.f32 %v480, %v536
        %v567 = vmul.f32 %v481, %v540
        %v568 = vmul.f32 %v482, %v544
        %v569 = vmul.f32 %v483, %v532
        %v570 = vmul.f32 %v484, %v536
        %v571 = vmul.f32 %v485, %v540
        %v572 = vmul.f32 %v486, %v544
        %v573 = vmul.f32 %v487, %v532
        %v574 = vmul.f32 %v488, %v536
        %v575 = vmul.f32 %v489, %v540
        %v576 = vmul.f32 %v490, %v544
        %v577 = vmul.f32 %v491, %v532
        %v578 = vmul.f32 %v492, %v536
        %v579 = vmul.f32 %v493, %v540
        %v580 = vmul.f32 %v494, %v544
        %v581 = vsel %vm496, %v463, %v549
        %v582 = vsel %vm497, %v464, %v550
        %v583 = vsel %vm498, %v465, %v551
        %v584 = vsel %vm499, %v466, %v552
        %v585 = vsel %vm500, %v467, %v553
        %v586 = vsel %vm501, %v468, %v554
        %v587 = vsel %vm502, %v469, %v555
        %v588 = vsel %vm503, %v470, %v556
        %v589 = vsel %vm504, %v471, %v557
        %v590 = vsel %vm505, %v472, %v558
        %v591 = vsel %vm506, %v473, %v559
        %v592 = vsel %vm507, %v474, %v560
        %v593 = vsel %vm508, %v475, %v561
        %v594 = vsel %vm509, %v476, %v562
        %v595 = vsel %vm510, %v477, %v563
        %v596 = vsel %vm511, %v478, %v564
        %v597 = vsel %vm512, %v479, %v565
        %v598 = vsel %vm513, %v480, %v566
        %v599 = vsel %vm514, %v481, %v567
        %v600 = vsel %vm515, %v482, %v568
        %v601 = vsel %vm516, %v483, %v569
        %v602 = vsel %vm517, %v484, %v570
        %v603 = vsel %vm518, %v485, %v571
        %v604 = vsel %vm519, %v486, %v572
        %v605 = vsel %vm520, %v487, %v573
        %v606 = vsel %vm521, %v488, %v574
        %v607 = vsel %vm522, %v489, %v575
        %v608 = vsel %vm523, %v490, %v576
        %v609 = vsel %vm524, %v491, %v577
        %v610 = vsel %vm525, %v492, %v578
        %v611 = vsel %vm526, %v493, %v579
        %v612 = vsel %vm527, %v494, %v580
        %s613 = scalar_lea.vmem [#allocation2], 96
        %614 = vst [vmem:[%s613 + $0x20] sm:$0xff] %v581
        %615 = vst [vmem:[%s613 + $0x28] sm:$0xff] %v582
        %616 = vst [vmem:[%s613 + $0x30] sm:$0xff] %v583
        %617 = vst [vmem:[%s613 + $0x38] sm:$0xff] %v584
        %618 = vst [vmem:[%s613 + $0x80] sm:$0xff] %v585
        %619 = vst [vmem:[%s613 + $0x88] sm:$0xff] %v586
        %620 = vst [vmem:[%s613 + $0x90] sm:$0xff] %v587
        %621 = vst [vmem:[%s613 + $0x98] sm:$0xff] %v588
        %622 = vst [vmem:[%s613 + $0xe0] sm:$0xff] %v589
        %623 = vst [vmem:[%s613 + $0xe8] sm:$0xff] %v590
        %624 = vst [vmem:[%s613 + $0xf0] sm:$0xff] %v591
        %625 = vst [vmem:[%s613 + $0xf8] sm:$0xff] %v592
        %626 = vst [vmem:[%s613 + $0x140] sm:$0xff] %v593
        %627 = vst [vmem:[%s613 + $0x148] sm:$0xff] %v594
        %628 = vst [vmem:[%s613 + $0x150] sm:$0xff] %v595
        %629 = vst [vmem:[%s613 + $0x158] sm:$0xff] %v596
        %630 = vst [vmem:[%s613 + $0x1a0] sm:$0xff] %v597
        %631 = vst [vmem:[%s613 + $0x1a8] sm:$0xff] %v598
        %632 = vst [vmem:[%s613 + $0x1b0] sm:$0xff] %v599
        %633 = vst [vmem:[%s613 + $0x1b8] sm:$0xff] %v600
        %634 = vst [vmem:[%s613 + $0x200] sm:$0xff] %v601
        %635 = vst [vmem:[%s613 + $0x208] sm:$0xff] %v602
        %636 = vst [vmem:[%s613 + $0x210] sm:$0xff] %v603
        %637 = vst [vmem:[%s613 + $0x218] sm:$0xff] %v604
        %638 = vst [vmem:[%s613 + $0x260] sm:$0xff] %v605
        %639 = vst [vmem:[%s613 + $0x268] sm:$0xff] %v606
        %640 = vst [vmem:[%s613 + $0x270] sm:$0xff] %v607
        %641 = vst [vmem:[%s613 + $0x278] sm:$0xff] %v608
        %642 = vst [vmem:[%s613 + $0x2c0] sm:$0xff] %v609
        %643 = vst [vmem:[%s613 + $0x2c8] sm:$0xff] %v610
        %644 = vst [vmem:[%s613 + $0x2d0] sm:$0xff] %v611
        %645 = vst [vmem:[%s613 + $0x2d8] sm:$0xff] %v612
        %v646 = vld [vmem:[#allocation2] sm:$0x80]
        %v647 = vld [vmem:[#allocation2 + $0x8] sm:$0x80]
        %v648 = vld [vmem:[#allocation2 + $0x10] sm:$0x80]
        %v649 = vld [vmem:[#allocation2 + $0x18] sm:$0x80]
        %v650 = vld [vmem:[#allocation2 + $0x20] sm:$0x7f]
        %v651 = vld [vmem:[#allocation2 + $0x28] sm:$0x7f]
        %v652 = vld [vmem:[#allocation2 + $0x30] sm:$0x7f]
        %v653 = vld [vmem:[#allocation2 + $0x38] sm:$0x7f]
        %v654 = vld [vmem:[#allocation2 + $0x60] sm:$0x80]
        %v655 = vld [vmem:[#allocation2 + $0x68] sm:$0x80]
        %v656 = vld [vmem:[#allocation2 + $0x70] sm:$0x80]
        %v657 = vld [vmem:[#allocation2 + $0x78] sm:$0x80]
        %v658 = vld [vmem:[#allocation2 + $0x80] sm:$0x7f]
        %v659 = vld [vmem:[#allocation2 + $0x88] sm:$0x7f]
        %v660 = vld [vmem:[#allocation2 + $0x90] sm:$0x7f]
        %v661 = vld [vmem:[#allocation2 + $0x98] sm:$0x7f]
        %v662 = vld [vmem:[#allocation2 + $0xc0] sm:$0x80]
        %v663 = vld [vmem:[#allocation2 + $0xc8] sm:$0x80]
        %v664 = vld [vmem:[#allocation2 + $0xd0] sm:$0x80]
        %v665 = vld [vmem:[#allocation2 + $0xd8] sm:$0x80]
        %v666 = vld [vmem:[#allocation2 + $0xe0] sm:$0x7f]
        %v667 = vld [vmem:[#allocation2 + $0xe8] sm:$0x7f]
        %v668 = vld [vmem:[#allocation2 + $0xf0] sm:$0x7f]
        %v669 = vld [vmem:[#allocation2 + $0xf8] sm:$0x7f]
        %v670 = vld [vmem:[#allocation2 + $0x120] sm:$0x80]
        %v671 = vld [vmem:[#allocation2 + $0x128] sm:$0x80]
        %v672 = vld [vmem:[#allocation2 + $0x130] sm:$0x80]
        %v673 = vld [vmem:[#allocation2 + $0x138] sm:$0x80]
        %v674 = vld [vmem:[#allocation2 + $0x140] sm:$0x7f]
        %v675 = vld [vmem:[#allocation2 + $0x148] sm:$0x7f]
        %v676 = vld [vmem:[#allocation2 + $0x150] sm:$0x7f]
        %v677 = vld [vmem:[#allocation2 + $0x158] sm:$0x7f]
        %v678 = vld [vmem:[#allocation2 + $0x180] sm:$0x80]
        %v679 = vld [vmem:[#allocation2 + $0x188] sm:$0x80]
        %v680 = vld [vmem:[#allocation2 + $0x190] sm:$0x80]
        %v681 = vld [vmem:[#allocation2 + $0x198] sm:$0x80]
        %v682 = vld [vmem:[#allocation2 + $0x1a0] sm:$0x7f]
        %v683 = vld [vmem:[#allocation2 + $0x1a8] sm:$0x7f]
        %v684 = vld [vmem:[#allocation2 + $0x1b0] sm:$0x7f]
        %v685 = vld [vmem:[#allocation2 + $0x1b8] sm:$0x7f]
        %v686 = vld [vmem:[#allocation2 + $0x1e0] sm:$0x80]
        %v687 = vld [vmem:[#allocation2 + $0x1e8] sm:$0x80]
        %v688 = vld [vmem:[#allocation2 + $0x1f0] sm:$0x80]
        %v689 = vld [vmem:[#allocation2 + $0x1f8] sm:$0x80]
        %v690 = vld [vmem:[#allocation2 + $0x200] sm:$0x7f]
        %v691 = vld [vmem:[#allocation2 + $0x208] sm:$0x7f]
        %v692 = vld [vmem:[#allocation2 + $0x210] sm:$0x7f]
        %v693 = vld [vmem:[#allocation2 + $0x218] sm:$0x7f]
        %v694 = vld [vmem:[#allocation2 + $0x240] sm:$0x80]
        %v695 = vld [vmem:[#allocation2 + $0x248] sm:$0x80]
        %v696 = vld [vmem:[#allocation2 + $0x250] sm:$0x80]
        %v697 = vld [vmem:[#allocation2 + $0x258] sm:$0x80]
        %v698 = vld [vmem:[#allocation2 + $0x260] sm:$0x7f]
        %v699 = vld [vmem:[#allocation2 + $0x268] sm:$0x7f]
        %v700 = vld [vmem:[#allocation2 + $0x270] sm:$0x7f]
        %v701 = vld [vmem:[#allocation2 + $0x278] sm:$0x7f]
        %v702 = vld [vmem:[#allocation2 + $0x2a0] sm:$0x80]
        %v703 = vld [vmem:[#allocation2 + $0x2a8] sm:$0x80]
        %v704 = vld [vmem:[#allocation2 + $0x2b0] sm:$0x80]
        %v705 = vld [vmem:[#allocation2 + $0x2b8] sm:$0x80]
        %v706 = vld [vmem:[#allocation2 + $0x2c0] sm:$0x7f]
        %v707 = vld [vmem:[#allocation2 + $0x2c8] sm:$0x7f]
        %v708 = vld [vmem:[#allocation2 + $0x2d0] sm:$0x7f]
        %v709 = vld [vmem:[#allocation2 + $0x2d8] sm:$0x7f]
        %vm774 = vcmask 1040384
        %v775 = vrot.slane %v646, 7
        %v776 = vrot.slane %v650, 7
        %v777 = vsel %vm774, %v775, %v776
        %v778 = vrot.slane %v647, 7
        %v779 = vrot.slane %v651, 7
        %v780 = vsel %vm774, %v778, %v779
        %v781 = vrot.slane %v648, 7
        %v782 = vrot.slane %v652, 7
        %v783 = vsel %vm774, %v781, %v782
        %v784 = vrot.slane %v649, 7
        %v785 = vrot.slane %v653, 7
        %v786 = vsel %vm774, %v784, %v785
        %v787 = vrot.slane %v654, 7
        %v788 = vrot.slane %v658, 7
        %v789 = vsel %vm774, %v787, %v788
        %v790 = vrot.slane %v655, 7
        %v791 = vrot.slane %v659, 7
        %v792 = vsel %vm774, %v790, %v791
        %v793 = vrot.slane %v656, 7
        %v794 = vrot.slane %v660, 7
        %v795 = vsel %vm774, %v793, %v794
        %v796 = vrot.slane %v657, 7
        %v797 = vrot.slane %v661, 7
        %v798 = vsel %vm774, %v796, %v797
        %v799 = vrot.slane %v662, 7
        %v800 = vrot.slane %v666, 7
        %v801 = vsel %vm774, %v799, %v800
        %v802 = vrot.slane %v663, 7
        %v803 = vrot.slane %v667, 7
        %v804 = vsel %vm774, %v802, %v803
        %v805 = vrot.slane %v664, 7
        %v806 = vrot.slane %v668, 7
        %v807 = vsel %vm774, %v805, %v806
        %v808 = vrot.slane %v665, 7
        %v809 = vrot.slane %v669, 7
        %v810 = vsel %vm774, %v808, %v809
        %v811 = vrot.slane %v670, 7
        %v812 = vrot.slane %v674, 7
        %v813 = vsel %vm774, %v811, %v812
        %v814 = vrot.slane %v671, 7
        %v815 = vrot.slane %v675, 7
        %v816 = vsel %vm774, %v814, %v815
        %v817 = vrot.slane %v672, 7
        %v818 = vrot.slane %v676, 7
        %v819 = vsel %vm774, %v817, %v818
        %v820 = vrot.slane %v673, 7
        %v821 = vrot.slane %v677, 7
        %v822 = vsel %vm774, %v820, %v821
        %v823 = vrot.slane %v678, 7
        %v824 = vrot.slane %v682, 7
        %v825 = vsel %vm774, %v823, %v824
        %v826 = vrot.slane %v679, 7
        %v827 = vrot.slane %v683, 7
        %v828 = vsel %vm774, %v826, %v827
        %v829 = vrot.slane %v680, 7
        %v830 = vrot.slane %v684, 7
        %v831 = vsel %vm774, %v829, %v830
        %v832 = vrot.slane %v681, 7
        %v833 = vrot.slane %v685, 7
        %v834 = vsel %vm774, %v832, %v833
        %v835 = vrot.slane %v686, 7
        %v836 = vrot.slane %v690, 7
        %v837 = vsel %vm774, %v835, %v836
        %v838 = vrot.slane %v687, 7
        %v839 = vrot.slane %v691, 7
        %v840 = vsel %vm774, %v838, %v839
        %v841 = vrot.slane %v688, 7
        %v842 = vrot.slane %v692, 7
        %v843 = vsel %vm774, %v841, %v842
        %v844 = vrot.slane %v689, 7
        %v845 = vrot.slane %v693, 7
        %v846 = vsel %vm774, %v844, %v845
        %v847 = vrot.slane %v694, 7
        %v848 = vrot.slane %v698, 7
        %v849 = vsel %vm774, %v847, %v848
        %v850 = vrot.slane %v695, 7
        %v851 = vrot.slane %v699, 7
        %v852 = vsel %vm774, %v850, %v851
        %v853 = vrot.slane %v696, 7
        %v854 = vrot.slane %v700, 7
        %v855 = vsel %vm774, %v853, %v854
        %v856 = vrot.slane %v697, 7
        %v857 = vrot.slane %v701, 7
        %v858 = vsel %vm774, %v856, %v857
        %v859 = vrot.slane %v702, 7
        %v860 = vrot.slane %v706, 7
        %v861 = vsel %vm774, %v859, %v860
        %v862 = vrot.slane %v703, 7
        %v863 = vrot.slane %v707, 7
        %v864 = vsel %vm774, %v862, %v863
        %v865 = vrot.slane %v704, 7
        %v866 = vrot.slane %v708, 7
        %v867 = vsel %vm774, %v865, %v866
        %v868 = vrot.slane %v705, 7
        %v869 = vrot.slane %v709, 7
        %v870 = vsel %vm774, %v868, %v869
        %v903 = vld [vmem:[#allocation6] sm:$0xf]
        %v905 = vlaneseq
        %v906 = vshrl.u32 %v905, 7
        %v907 = vsub.s32 0, %v906
        %v908 = vrot.slane %v903, %v907
        %v909 = vlaneseq
        %v910 = vshrl.u32 %v909, 7
        %v911 = vsub.s32 1, %v910
        %v912 = vrot.slane %v903, %v911
        %v913 = vlaneseq
        %v914 = vshrl.u32 %v913, 7
        %v915 = vsub.s32 2, %v914
        %v916 = vrot.slane %v903, %v915
        %v917 = vlaneseq
        %v918 = vshrl.u32 %v917, 7
        %v919 = vsub.s32 3, %v918
        %v920 = vrot.slane %v903, %v919
        %v925 = vmul.f32 %v777, %v908
        %v926 = vmul.f32 %v780, %v912
        %v927 = vmul.f32 %v783, %v916
        %v928 = vmul.f32 %v786, %v920
        %v929 = vmul.f32 %v789, %v908
        %v930 = vmul.f32 %v792, %v912
        %v931 = vmul.f32 %v795, %v916
        %v932 = vmul.f32 %v798, %v920
        %v933 = vmul.f32 %v801, %v908
        %v934 = vmul.f32 %v804, %v912
        %v935 = vmul.f32 %v807, %v916
        %v936 = vmul.f32 %v810, %v920
        %v937 = vmul.f32 %v813, %v908
        %v938 = vmul.f32 %v816, %v912
        %v939 = vmul.f32 %v819, %v916
        %v940 = vmul.f32 %v822, %v920
        %v941 = vmul.f32 %v825, %v908
        %v942 = vmul.f32 %v828, %v912
        %v943 = vmul.f32 %v831, %v916
        %v944 = vmul.f32 %v834, %v920
        %v945 = vmul.f32 %v837, %v908
        %v946 = vmul.f32 %v840, %v912
        %v947 = vmul.f32 %v843, %v916
        %v948 = vmul.f32 %v846, %v920
        %v949 = vmul.f32 %v849, %v908
        %v950 = vmul.f32 %v852, %v912
        %v951 = vmul.f32 %v855, %v916
        %v952 = vmul.f32 %v858, %v920
        %v953 = vmul.f32 %v861, %v908
        %v954 = vmul.f32 %v864, %v912
        %v955 = vmul.f32 %v867, %v916
        %v956 = vmul.f32 %v870, %v920
        %v957 = vadd.f32 %v925, 0.0
        %v958 = vadd.f32 %v926, 0.0
        %v959 = vadd.f32 %v927, 0.0
        %v960 = vadd.f32 %v928, 0.0
        %v961 = vadd.f32 %v929, 0.0
        %v962 = vadd.f32 %v930, 0.0
        %v963 = vadd.f32 %v931, 0.0
        %v964 = vadd.f32 %v932, 0.0
        %v965 = vadd.f32 %v933, 0.0
        %v966 = vadd.f32 %v934, 0.0
        %v967 = vadd.f32 %v935, 0.0
        %v968 = vadd.f32 %v936, 0.0
        %v969 = vadd.f32 %v937, 0.0
        %v970 = vadd.f32 %v938, 0.0
        %v971 = vadd.f32 %v939, 0.0
        %v972 = vadd.f32 %v940, 0.0
        %v973 = vadd.f32 %v941, 0.0
        %v974 = vadd.f32 %v942, 0.0
        %v975 = vadd.f32 %v943, 0.0
        %v976 = vadd.f32 %v944, 0.0
        %v977 = vadd.f32 %v945, 0.0
        %v978 = vadd.f32 %v946, 0.0
        %v979 = vadd.f32 %v947, 0.0
        %v980 = vadd.f32 %v948, 0.0
        %v981 = vadd.f32 %v949, 0.0
        %v982 = vadd.f32 %v950, 0.0
        %v983 = vadd.f32 %v951, 0.0
        %v984 = vadd.f32 %v952, 0.0
        %v985 = vadd.f32 %v953, 0.0
        %v986 = vadd.f32 %v954, 0.0
        %v987 = vadd.f32 %v955, 0.0
        %v988 = vadd.f32 %v956, 0.0
        %v989 = vld [vmem:[#allocation2 + $0x20] sm:$0xff]
        %v990 = vld [vmem:[#allocation2 + $0x28] sm:$0xff]
        %v991 = vld [vmem:[#allocation2 + $0x30] sm:$0xff]
        %v992 = vld [vmem:[#allocation2 + $0x38] sm:$0xff]
        %v993 = vld [vmem:[#allocation2 + $0x80] sm:$0xff]
        %v994 = vld [vmem:[#allocation2 + $0x88] sm:$0xff]
        %v995 = vld [vmem:[#allocation2 + $0x90] sm:$0xff]
        %v996 = vld [vmem:[#allocation2 + $0x98] sm:$0xff]
        %v997 = vld [vmem:[#allocation2 + $0xe0] sm:$0xff]
        %v998 = vld [vmem:[#allocation2 + $0xe8] sm:$0xff]
        %v999 = vld [vmem:[#allocation2 + $0xf0] sm:$0xff]
        %v1000 = vld [vmem:[#allocation2 + $0xf8] sm:$0xff]
        %v1001 = vld [vmem:[#allocation2 + $0x140] sm:$0xff]
        %v1002 = vld [vmem:[#allocation2 + $0x148] sm:$0xff]
        %v1003 = vld [vmem:[#allocation2 + $0x150] sm:$0xff]
        %v1004 = vld [vmem:[#allocation2 + $0x158] sm:$0xff]
        %v1005 = vld [vmem:[#allocation2 + $0x1a0] sm:$0xff]
        %v1006 = vld [vmem:[#allocation2 + $0x1a8] sm:$0xff]
        %v1007 = vld [vmem:[#allocation2 + $0x1b0] sm:$0xff]
        %v1008 = vld [vmem:[#allocation2 + $0x1b8] sm:$0xff]
        %v1009 = vld [vmem:[#allocation2 + $0x200] sm:$0xff]
        %v1010 = vld [vmem:[#allocation2 + $0x208] sm:$0xff]
        %v1011 = vld [vmem:[#allocation2 + $0x210] sm:$0xff]
        %v1012 = vld [vmem:[#allocation2 + $0x218] sm:$0xff]
        %v1013 = vld [vmem:[#allocation2 + $0x260] sm:$0xff]
        %v1014 = vld [vmem:[#allocation2 + $0x268] sm:$0xff]
        %v1015 = vld [vmem:[#allocation2 + $0x270] sm:$0xff]
        %v1016 = vld [vmem:[#allocation2 + $0x278] sm:$0xff]
        %v1017 = vld [vmem:[#allocation2 + $0x2c0] sm:$0xff]
        %v1018 = vld [vmem:[#allocation2 + $0x2c8] sm:$0xff]
        %v1019 = vld [vmem:[#allocation2 + $0x2d0] sm:$0xff]
        %v1020 = vld [vmem:[#allocation2 + $0x2d8] sm:$0xff]
        %s1021 = scalar_lea.vmem [#allocation6], 4
        %v1022 = vld [vmem:[%s1021] sm:$0xf]
        %v1024 = vlaneseq
        %v1025 = vshrl.u32 %v1024, 7
        %v1026 = vsub.s32 0, %v1025
        %v1027 = vrot.slane %v1022, %v1026
        %v1028 = vlaneseq
        %v1029 = vshrl.u32 %v1028, 7
        %v1030 = vsub.s32 1, %v1029
        %v1031 = vrot.slane %v1022, %v1030
        %v1032 = vlaneseq
        %v1033 = vshrl.u32 %v1032, 7
        %v1034 = vsub.s32 2, %v1033
        %v1035 = vrot.slane %v1022, %v1034
        %v1036 = vlaneseq
        %v1037 = vshrl.u32 %v1036, 7
        %v1038 = vsub.s32 3, %v1037
        %v1039 = vrot.slane %v1022, %v1038
        %v1044 = vmul.f32 %v989, %v1027
        %v1045 = vmul.f32 %v990, %v1031
        %v1046 = vmul.f32 %v991, %v1035
        %v1047 = vmul.f32 %v992, %v1039
        %v1048 = vmul.f32 %v993, %v1027
        %v1049 = vmul.f32 %v994, %v1031
        %v1050 = vmul.f32 %v995, %v1035
        %v1051 = vmul.f32 %v996, %v1039
        %v1052 = vmul.f32 %v997, %v1027
        %v1053 = vmul.f32 %v998, %v1031
        %v1054 = vmul.f32 %v999, %v1035
        %v1055 = vmul.f32 %v1000, %v1039
        %v1056 = vmul.f32 %v1001, %v1027
        %v1057 = vmul.f32 %v1002, %v1031
        %v1058 = vmul.f32 %v1003, %v1035
        %v1059 = vmul.f32 %v1004, %v1039
        %v1060 = vmul.f32 %v1005, %v1027
        %v1061 = vmul.f32 %v1006, %v1031
        %v1062 = vmul.f32 %v1007, %v1035
        %v1063 = vmul.f32 %v1008, %v1039
        %v1064 = vmul.f32 %v1009, %v1027
        %v1065 = vmul.f32 %v1010, %v1031
        %v1066 = vmul.f32 %v1011, %v1035
        %v1067 = vmul.f32 %v1012, %v1039
        %v1068 = vmul.f32 %v1013, %v1027
        %v1069 = vmul.f32 %v1014, %v1031
        %v1070 = vmul.f32 %v1015, %v1035
        %v1071 = vmul.f32 %v1016, %v1039
        %v1072 = vmul.f32 %v1017, %v1027
        %v1073 = vmul.f32 %v1018, %v1031
        %v1074 = vmul.f32 %v1019, %v1035
        %v1075 = vmul.f32 %v1020, %v1039
        %v1076 = vadd.f32 %v957, %v1044
        %v1077 = vadd.f32 %v958, %v1045
        %v1078 = vadd.f32 %v959, %v1046
        %v1079 = vadd.f32 %v960, %v1047
        %v1080 = vadd.f32 %v961, %v1048
        %v1081 = vadd.f32 %v962, %v1049
        %v1082 = vadd.f32 %v963, %v1050
        %v1083 = vadd.f32 %v964, %v1051
        %v1084 = vadd.f32 %v965, %v1052
        %v1085 = vadd.f32 %v966, %v1053
        %v1086 = vadd.f32 %v967, %v1054
        %v1087 = vadd.f32 %v968, %v1055
        %v1088 = vadd.f32 %v969, %v1056
        %v1089 = vadd.f32 %v970, %v1057
        %v1090 = vadd.f32 %v971, %v1058
        %v1091 = vadd.f32 %v972, %v1059
        %v1092 = vadd.f32 %v973, %v1060
        %v1093 = vadd.f32 %v974, %v1061
        %v1094 = vadd.f32 %v975, %v1062
        %v1095 = vadd.f32 %v976, %v1063
        %v1096 = vadd.f32 %v977, %v1064
        %v1097 = vadd.f32 %v978, %v1065
        %v1098 = vadd.f32 %v979, %v1066
        %v1099 = vadd.f32 %v980, %v1067
        %v1100 = vadd.f32 %v981, %v1068
        %v1101 = vadd.f32 %v982, %v1069
        %v1102 = vadd.f32 %v983, %v1070
        %v1103 = vadd.f32 %v984, %v1071
        %v1104 = vadd.f32 %v985, %v1072
        %v1105 = vadd.f32 %v986, %v1073
        %v1106 = vadd.f32 %v987, %v1074
        %v1107 = vadd.f32 %v988, %v1075
        %v1108 = vld [vmem:[#allocation2 + $0x20] sm:$0xfe]
        %v1109 = vld [vmem:[#allocation2 + $0x28] sm:$0xfe]
        %v1110 = vld [vmem:[#allocation2 + $0x30] sm:$0xfe]
        %v1111 = vld [vmem:[#allocation2 + $0x38] sm:$0xfe]
        %v1112 = vld [vmem:[#allocation2 + $0x40] sm:$0x1]
        %v1113 = vld [vmem:[#allocation2 + $0x48] sm:$0x1]
        %v1114 = vld [vmem:[#allocation2 + $0x50] sm:$0x1]
        %v1115 = vld [vmem:[#allocation2 + $0x58] sm:$0x1]
        %v1116 = vld [vmem:[#allocation2 + $0x80] sm:$0xfe]
        %v1117 = vld [vmem:[#allocation2 + $0x88] sm:$0xfe]
        %v1118 = vld [vmem:[#allocation2 + $0x90] sm:$0xfe]
        %v1119 = vld [vmem:[#allocation2 + $0x98] sm:$0xfe]
        %v1120 = vld [vmem:[#allocation2 + $0xa0] sm:$0x1]
        %v1121 = vld [vmem:[#allocation2 + $0xa8] sm:$0x1]
        %v1122 = vld [vmem:[#allocation2 + $0xb0] sm:$0x1]
        %v1123 = vld [vmem:[#allocation2 + $0xb8] sm:$0x1]
        %v1124 = vld [vmem:[#allocation2 + $0xe0] sm:$0xfe]
        %v1125 = vld [vmem:[#allocation2 + $0xe8] sm:$0xfe]
        %v1126 = vld [vmem:[#allocation2 + $0xf0] sm:$0xfe]
        %v1127 = vld [vmem:[#allocation2 + $0xf8] sm:$0xfe]
        %v1128 = vld [vmem:[#allocation2 + $0x100] sm:$0x1]
        %v1129 = vld [vmem:[#allocation2 + $0x108] sm:$0x1]
        %v1130 = vld [vmem:[#allocation2 + $0x110] sm:$0x1]
        %v1131 = vld [vmem:[#allocation2 + $0x118] sm:$0x1]
        %v1132 = vld [vmem:[#allocation2 + $0x140] sm:$0xfe]
        %v1133 = vld [vmem:[#allocation2 + $0x148] sm:$0xfe]
        %v1134 = vld [vmem:[#allocation2 + $0x150] sm:$0xfe]
        %v1135 = vld [vmem:[#allocation2 + $0x158] sm:$0xfe]
        %v1136 = vld [vmem:[#allocation2 + $0x160] sm:$0x1]
        %v1137 = vld [vmem:[#allocation2 + $0x168] sm:$0x1]
        %v1138 = vld [vmem:[#allocation2 + $0x170] sm:$0x1]
        %v1139 = vld [vmem:[#allocation2 + $0x178] sm:$0x1]
        %v1140 = vld [vmem:[#allocation2 + $0x1a0] sm:$0xfe]
        %v1141 = vld [vmem:[#allocation2 + $0x1a8] sm:$0xfe]
        %v1142 = vld [vmem:[#allocation2 + $0x1b0] sm:$0xfe]
        %v1143 = vld [vmem:[#allocation2 + $0x1b8] sm:$0xfe]
        %v1144 = vld [vmem:[#allocation2 + $0x1c0] sm:$0x1]
        %v1145 = vld [vmem:[#allocation2 + $0x1c8] sm:$0x1]
        %v1146 = vld [vmem:[#allocation2 + $0x1d0] sm:$0x1]
        %v1147 = vld [vmem:[#allocation2 + $0x1d8] sm:$0x1]
        %v1148 = vld [vmem:[#allocation2 + $0x200] sm:$0xfe]
        %v1149 = vld [vmem:[#allocation2 + $0x208] sm:$0xfe]
        %v1150 = vld [vmem:[#allocation2 + $0x210] sm:$0xfe]
        %v1151 = vld [vmem:[#allocation2 + $0x218] sm:$0xfe]
        %v1152 = vld [vmem:[#allocation2 + $0x220] sm:$0x1]
        %v1153 = vld [vmem:[#allocation2 + $0x228] sm:$0x1]
        %v1154 = vld [vmem:[#allocation2 + $0x230] sm:$0x1]
        %v1155 = vld [vmem:[#allocation2 + $0x238] sm:$0x1]
        %v1156 = vld [vmem:[#allocation2 + $0x260] sm:$0xfe]
        %v1157 = vld [vmem:[#allocation2 + $0x268] sm:$0xfe]
        %v1158 = vld [vmem:[#allocation2 + $0x270] sm:$0xfe]
        %v1159 = vld [vmem:[#allocation2 + $0x278] sm:$0xfe]
        %v1160 = vld [vmem:[#allocation2 + $0x280] sm:$0x1]
        %v1161 = vld [vmem:[#allocation2 + $0x288] sm:$0x1]
        %v1162 = vld [vmem:[#allocation2 + $0x290] sm:$0x1]
        %v1163 = vld [vmem:[#allocation2 + $0x298] sm:$0x1]
        %v1164 = vld [vmem:[#allocation2 + $0x2c0] sm:$0xfe]
        %v1165 = vld [vmem:[#allocation2 + $0x2c8] sm:$0xfe]
        %v1166 = vld [vmem:[#allocation2 + $0x2d0] sm:$0xfe]
        %v1167 = vld [vmem:[#allocation2 + $0x2d8] sm:$0xfe]
        %v1168 = vld [vmem:[#allocation2 + $0x2e0] sm:$0x1]
        %v1169 = vld [vmem:[#allocation2 + $0x2e8] sm:$0x1]
        %v1170 = vld [vmem:[#allocation2 + $0x2f0] sm:$0x1]
        %v1171 = vld [vmem:[#allocation2 + $0x2f8] sm:$0x1]
        %vm1236 = vcmask 1046528
        %v1237 = vrot.slane %v1108, 1
        %v1238 = vrot.slane %v1112, 1
        %v1239 = vsel %vm1236, %v1237, %v1238
        %v1240 = vrot.slane %v1109, 1
        %v1241 = vrot.slane %v1113, 1
        %v1242 = vsel %vm1236, %v1240, %v1241
        %v1243 = vrot.slane %v1110, 1
        %v1244 = vrot.slane %v1114, 1
        %v1245 = vsel %vm1236, %v1243, %v1244
        %v1246 = vrot.slane %v1111, 1
        %v1247 = vrot.slane %v1115, 1
        %v1248 = vsel %vm1236, %v1246, %v1247
        %v1249 = vrot.slane %v1116, 1
        %v1250 = vrot.slane %v1120, 1
        %v1251 = vsel %vm1236, %v1249, %v1250
        %v1252 = vrot.slane %v1117, 1
        %v1253 = vrot.slane %v1121, 1
        %v1254 = vsel %vm1236, %v1252, %v1253
        %v1255 = vrot.slane %v1118, 1
        %v1256 = vrot.slane %v1122, 1
        %v1257 = vsel %vm1236, %v1255, %v1256
        %v1258 = vrot.slane %v1119, 1
        %v1259 = vrot.slane %v1123, 1
        %v1260 = vsel %vm1236, %v1258, %v1259
        %v1261 = vrot.slane %v1124, 1
        %v1262 = vrot.slane %v1128, 1
        %v1263 = vsel %vm1236, %v1261, %v1262
        %v1264 = vrot.slane %v1125, 1
        %v1265 = vrot.slane %v1129, 1
        %v1266 = vsel %vm1236, %v1264, %v1265
        %v1267 = vrot.slane %v1126, 1
        %v1268 = vrot.slane %v1130, 1
        %v1269 = vsel %vm1236, %v1267, %v1268
        %v1270 = vrot.slane %v1127, 1
        %v1271 = vrot.slane %v1131, 1
        %v1272 = vsel %vm1236, %v1270, %v1271
        %v1273 = vrot.slane %v1132, 1
        %v1274 = vrot.slane %v1136, 1
        %v1275 = vsel %vm1236, %v1273, %v1274
        %v1276 = vrot.slane %v1133, 1
        %v1277 = vrot.slane %v1137, 1
        %v1278 = vsel %vm1236, %v1276, %v1277
        %v1279 = vrot.slane %v1134, 1
        %v1280 = vrot.slane %v1138, 1
        %v1281 = vsel %vm1236, %v1279, %v1280
        %v1282 = vrot.slane %v1135, 1
        %v1283 = vrot.slane %v1139, 1
        %v1284 = vsel %vm1236, %v1282, %v1283
        %v1285 = vrot.slane %v1140, 1
        %v1286 = vrot.slane %v1144, 1
        %v1287 = vsel %vm1236, %v1285, %v1286
        %v1288 = vrot.slane %v1141, 1
        %v1289 = vrot.slane %v1145, 1
        %v1290 = vsel %vm1236, %v1288, %v1289
        %v1291 = vrot.slane %v1142, 1
        %v1292 = vrot.slane %v1146, 1
        %v1293 = vsel %vm1236, %v1291, %v1292
        %v1294 = vrot.slane %v1143, 1
        %v1295 = vrot.slane %v1147, 1
        %v1296 = vsel %vm1236, %v1294, %v1295
        %v1297 = vrot.slane %v1148, 1
        %v1298 = vrot.slane %v1152, 1
        %v1299 = vsel %vm1236, %v1297, %v1298
        %v1300 = vrot.slane %v1149, 1
        %v1301 = vrot.slane %v1153, 1
        %v1302 = vsel %vm1236, %v1300, %v1301
        %v1303 = vrot.slane %v1150, 1
        %v1304 = vrot.slane %v1154, 1
        %v1305 = vsel %vm1236, %v1303, %v1304
        %v1306 = vrot.slane %v1151, 1
        %v1307 = vrot.slane %v1155, 1
        %v1308 = vsel %vm1236, %v1306, %v1307
        %v1309 = vrot.slane %v1156, 1
        %v1310 = vrot.slane %v1160, 1
        %v1311 = vsel %vm1236, %v1309, %v1310
        %v1312 = vrot.slane %v1157, 1
        %v1313 = vrot.slane %v1161, 1
        %v1314 = vsel %vm1236, %v1312, %v1313
        %v1315 = vrot.slane %v1158, 1
        %v1316 = vrot.slane %v1162, 1
        %v1317 = vsel %vm1236, %v1315, %v1316
        %v1318 = vrot.slane %v1159, 1
        %v1319 = vrot.slane %v1163, 1
        %v1320 = vsel %vm1236, %v1318, %v1319
        %v1321 = vrot.slane %v1164, 1
        %v1322 = vrot.slane %v1168, 1
        %v1323 = vsel %vm1236, %v1321, %v1322
        %v1324 = vrot.slane %v1165, 1
        %v1325 = vrot.slane %v1169, 1
        %v1326 = vsel %vm1236, %v1324, %v1325
        %v1327 = vrot.slane %v1166, 1
        %v1328 = vrot.slane %v1170, 1
        %v1329 = vsel %vm1236, %v1327, %v1328
        %v1330 = vrot.slane %v1167, 1
        %v1331 = vrot.slane %v1171, 1
        %v1332 = vsel %vm1236, %v1330, %v1331
        %s1365 = scalar_lea.vmem [#allocation6], 8
        %v1366 = vld [vmem:[%s1365] sm:$0xf]
        %v1368 = vlaneseq
        %v1369 = vshrl.u32 %v1368, 7
        %v1370 = vsub.s32 0, %v1369
        %v1371 = vrot.slane %v1366, %v1370
        %v1372 = vlaneseq
        %v1373 = vshrl.u32 %v1372, 7
        %v1374 = vsub.s32 1, %v1373
        %v1375 = vrot.slane %v1366, %v1374
        %v1376 = vlaneseq
        %v1377 = vshrl.u32 %v1376, 7
        %v1378 = vsub.s32 2, %v1377
        %v1379 = vrot.slane %v1366, %v1378
        %v1380 = vlaneseq
        %v1381 = vshrl.u32 %v1380, 7
        %v1382 = vsub.s32 3, %v1381
        %v1383 = vrot.slane %v1366, %v1382
        %v1388 = vmul.f32 %v1239, %v1371
        %v1389 = vmul.f32 %v1242, %v1375
        %v1390 = vmul.f32 %v1245, %v1379
        %v1391 = vmul.f32 %v1248, %v1383
        %v1392 = vmul.f32 %v1251, %v1371
        %v1393 = vmul.f32 %v1254, %v1375
        %v1394 = vmul.f32 %v1257, %v1379
        %v1395 = vmul.f32 %v1260, %v1383
        %v1396 = vmul.f32 %v1263, %v1371
        %v1397 = vmul.f32 %v1266, %v1375
        %v1398 = vmul.f32 %v1269, %v1379
        %v1399 = vmul.f32 %v1272, %v1383
        %v1400 = vmul.f32 %v1275, %v1371
        %v1401 = vmul.f32 %v1278, %v1375
        %v1402 = vmul.f32 %v1281, %v1379
        %v1403 = vmul.f32 %v1284, %v1383
        %v1404 = vmul.f32 %v1287, %v1371
        %v1405 = vmul.f32 %v1290, %v1375
        %v1406 = vmul.f32 %v1293, %v1379
        %v1407 = vmul.f32 %v1296, %v1383
        %v1408 = vmul.f32 %v1299, %v1371
        %v1409 = vmul.f32 %v1302, %v1375
        %v1410 = vmul.f32 %v1305, %v1379
        %v1411 = vmul.f32 %v1308, %v1383
        %v1412 = vmul.f32 %v1311, %v1371
        %v1413 = vmul.f32 %v1314, %v1375
        %v1414 = vmul.f32 %v1317, %v1379
        %v1415 = vmul.f32 %v1320, %v1383
        %v1416 = vmul.f32 %v1323, %v1371
        %v1417 = vmul.f32 %v1326, %v1375
        %v1418 = vmul.f32 %v1329, %v1379
        %v1419 = vmul.f32 %v1332, %v1383
        %v1420 = vadd.f32 %v1076, %v1388
        %v1421 = vadd.f32 %v1077, %v1389
        %v1422 = vadd.f32 %v1078, %v1390
        %v1423 = vadd.f32 %v1079, %v1391
        %v1424 = vadd.f32 %v1080, %v1392
        %v1425 = vadd.f32 %v1081, %v1393
        %v1426 = vadd.f32 %v1082, %v1394
        %v1427 = vadd.f32 %v1083, %v1395
        %v1428 = vadd.f32 %v1084, %v1396
        %v1429 = vadd.f32 %v1085, %v1397
        %v1430 = vadd.f32 %v1086, %v1398
        %v1431 = vadd.f32 %v1087, %v1399
        %v1432 = vadd.f32 %v1088, %v1400
        %v1433 = vadd.f32 %v1089, %v1401
        %v1434 = vadd.f32 %v1090, %v1402
        %v1435 = vadd.f32 %v1091, %v1403
        %v1436 = vadd.f32 %v1092, %v1404
        %v1437 = vadd.f32 %v1093, %v1405
        %v1438 = vadd.f32 %v1094, %v1406
        %v1439 = vadd.f32 %v1095, %v1407
        %v1440 = vadd.f32 %v1096, %v1408
        %v1441 = vadd.f32 %v1097, %v1409
        %v1442 = vadd.f32 %v1098, %v1410
        %v1443 = vadd.f32 %v1099, %v1411
        %v1444 = vadd.f32 %v1100, %v1412
        %v1445 = vadd.f32 %v1101, %v1413
        %v1446 = vadd.f32 %v1102, %v1414
        %v1447 = vadd.f32 %v1103, %v1415
        %v1448 = vadd.f32 %v1104, %v1416
        %v1449 = vadd.f32 %v1105, %v1417
        %v1450 = vadd.f32 %v1106, %v1418
        %v1451 = vadd.f32 %v1107, %v1419
        %v1452 = vld [vmem:[%s613] sm:$0x80]
        %v1453 = vld [vmem:[%s613 + $0x8] sm:$0x80]
        %v1454 = vld [vmem:[%s613 + $0x10] sm:$0x80]
        %v1455 = vld [vmem:[%s613 + $0x18] sm:$0x80]
        %v1456 = vld [vmem:[%s613 + $0x20] sm:$0x7f]
        %v1457 = vld [vmem:[%s613 + $0x28] sm:$0x7f]
        %v1458 = vld [vmem:[%s613 + $0x30] sm:$0x7f]
        %v1459 = vld [vmem:[%s613 + $0x38] sm:$0x7f]
        %v1460 = vld [vmem:[%s613 + $0x60] sm:$0x80]
        %v1461 = vld [vmem:[%s613 + $0x68] sm:$0x80]
        %v1462 = vld [vmem:[%s613 + $0x70] sm:$0x80]
        %v1463 = vld [vmem:[%s613 + $0x78] sm:$0x80]
        %v1464 = vld [vmem:[%s613 + $0x80] sm:$0x7f]
        %v1465 = vld [vmem:[%s613 + $0x88] sm:$0x7f]
        %v1466 = vld [vmem:[%s613 + $0x90] sm:$0x7f]
        %v1467 = vld [vmem:[%s613 + $0x98] sm:$0x7f]
        %v1468 = vld [vmem:[%s613 + $0xc0] sm:$0x80]
        %v1469 = vld [vmem:[%s613 + $0xc8] sm:$0x80]
        %v1470 = vld [vmem:[%s613 + $0xd0] sm:$0x80]
        %v1471 = vld [vmem:[%s613 + $0xd8] sm:$0x80]
        %v1472 = vld [vmem:[%s613 + $0xe0] sm:$0x7f]
        %v1473 = vld [vmem:[%s613 + $0xe8] sm:$0x7f]
        %v1474 = vld [vmem:[%s613 + $0xf0] sm:$0x7f]
        %v1475 = vld [vmem:[%s613 + $0xf8] sm:$0x7f]
        %v1476 = vld [vmem:[%s613 + $0x120] sm:$0x80]
        %v1477 = vld [vmem:[%s613 + $0x128] sm:$0x80]
        %v1478 = vld [vmem:[%s613 + $0x130] sm:$0x80]
        %v1479 = vld [vmem:[%s613 + $0x138] sm:$0x80]
        %v1480 = vld [vmem:[%s613 + $0x140] sm:$0x7f]
        %v1481 = vld [vmem:[%s613 + $0x148] sm:$0x7f]
        %v1482 = vld [vmem:[%s613 + $0x150] sm:$0x7f]
        %v1483 = vld [vmem:[%s613 + $0x158] sm:$0x7f]
        %v1484 = vld [vmem:[%s613 + $0x180] sm:$0x80]
        %v1485 = vld [vmem:[%s613 + $0x188] sm:$0x80]
        %v1486 = vld [vmem:[%s613 + $0x190] sm:$0x80]
        %v1487 = vld [vmem:[%s613 + $0x198] sm:$0x80]
        %v1488 = vld [vmem:[%s613 + $0x1a0] sm:$0x7f]
        %v1489 = vld [vmem:[%s613 + $0x1a8] sm:$0x7f]
        %v1490 = vld [vmem:[%s613 + $0x1b0] sm:$0x7f]
        %v1491 = vld [vmem:[%s613 + $0x1b8] sm:$0x7f]
        %v1492 = vld [vmem:[%s613 + $0x1e0] sm:$0x80]
        %v1493 = vld [vmem:[%s613 + $0x1e8] sm:$0x80]
        %v1494 = vld [vmem:[%s613 + $0x1f0] sm:$0x80]
        %v1495 = vld [vmem:[%s613 + $0x1f8] sm:$0x80]
        %v1496 = vld [vmem:[%s613 + $0x200] sm:$0x7f]
        %v1497 = vld [vmem:[%s613 + $0x208] sm:$0x7f]
        %v1498 = vld [vmem:[%s613 + $0x210] sm:$0x7f]
        %v1499 = vld [vmem:[%s613 + $0x218] sm:$0x7f]
        %v1500 = vld [vmem:[%s613 + $0x240] sm:$0x80]
        %v1501 = vld [vmem:[%s613 + $0x248] sm:$0x80]
        %v1502 = vld [vmem:[%s613 + $0x250] sm:$0x80]
        %v1503 = vld [vmem:[%s613 + $0x258] sm:$0x80]
        %v1504 = vld [vmem:[%s613 + $0x260] sm:$0x7f]
        %v1505 = vld [vmem:[%s613 + $0x268] sm:$0x7f]
        %v1506 = vld [vmem:[%s613 + $0x270] sm:$0x7f]
        %v1507 = vld [vmem:[%s613 + $0x278] sm:$0x7f]
        %v1508 = vld [vmem:[%s613 + $0x2a0] sm:$0x80]
        %v1509 = vld [vmem:[%s613 + $0x2a8] sm:$0x80]
        %v1510 = vld [vmem:[%s613 + $0x2b0] sm:$0x80]
        %v1511 = vld [vmem:[%s613 + $0x2b8] sm:$0x80]
        %v1512 = vld [vmem:[%s613 + $0x2c0] sm:$0x7f]
        %v1513 = vld [vmem:[%s613 + $0x2c8] sm:$0x7f]
        %v1514 = vld [vmem:[%s613 + $0x2d0] sm:$0x7f]
        %v1515 = vld [vmem:[%s613 + $0x2d8] sm:$0x7f]
        %v1580 = vrot.slane %v1452, 7
        %v1581 = vrot.slane %v1456, 7
        %v1582 = vsel %vm774, %v1580, %v1581
        %v1583 = vrot.slane %v1453, 7
        %v1584 = vrot.slane %v1457, 7
        %v1585 = vsel %vm774, %v1583, %v1584
        %v1586 = vrot.slane %v1454, 7
        %v1587 = vrot.slane %v1458, 7
        %v1588 = vsel %vm774, %v1586, %v1587
        %v1589 = vrot.slane %v1455, 7
        %v1590 = vrot.slane %v1459, 7
        %v1591 = vsel %vm774, %v1589, %v1590
        %v1592 = vrot.slane %v1460, 7
        %v1593 = vrot.slane %v1464, 7
        %v1594 = vsel %vm774, %v1592, %v1593
        %v1595 = vrot.slane %v1461, 7
        %v1596 = vrot.slane %v1465, 7
        %v1597 = vsel %vm774, %v1595, %v1596
        %v1598 = vrot.slane %v1462, 7
        %v1599 = vrot.slane %v1466, 7
        %v1600 = vsel %vm774, %v1598, %v1599
        %v1601 = vrot.slane %v1463, 7
        %v1602 = vrot.slane %v1467, 7
        %v1603 = vsel %vm774, %v1601, %v1602
        %v1604 = vrot.slane %v1468, 7
        %v1605 = vrot.slane %v1472, 7
        %v1606 = vsel %vm774, %v1604, %v1605
        %v1607 = vrot.slane %v1469, 7
        %v1608 = vrot.slane %v1473, 7
        %v1609 = vsel %vm774, %v1607, %v1608
        %v1610 = vrot.slane %v1470, 7
        %v1611 = vrot.slane %v1474, 7
        %v1612 = vsel %vm774, %v1610, %v1611
        %v1613 = vrot.slane %v1471, 7
        %v1614 = vrot.slane %v1475, 7
        %v1615 = vsel %vm774, %v1613, %v1614
        %v1616 = vrot.slane %v1476, 7
        %v1617 = vrot.slane %v1480, 7
        %v1618 = vsel %vm774, %v1616, %v1617
        %v1619 = vrot.slane %v1477, 7
        %v1620 = vrot.slane %v1481, 7
        %v1621 = vsel %vm774, %v1619, %v1620
        %v1622 = vrot.slane %v1478, 7
        %v1623 = vrot.slane %v1482, 7
        %v1624 = vsel %vm774, %v1622, %v1623
        %v1625 = vrot.slane %v1479, 7
        %v1626 = vrot.slane %v1483, 7
        %v1627 = vsel %vm774, %v1625, %v1626
        %v1628 = vrot.slane %v1484, 7
        %v1629 = vrot.slane %v1488, 7
        %v1630 = vsel %vm774, %v1628, %v1629
        %v1631 = vrot.slane %v1485, 7
        %v1632 = vrot.slane %v1489, 7
        %v1633 = vsel %vm774, %v1631, %v1632
        %v1634 = vrot.slane %v1486, 7
        %v1635 = vrot.slane %v1490, 7
        %v1636 = vsel %vm774, %v1634, %v1635
        %v1637 = vrot.slane %v1487, 7
        %v1638 = vrot.slane %v1491, 7
        %v1639 = vsel %vm774, %v1637, %v1638
        %v1640 = vrot.slane %v1492, 7
        %v1641 = vrot.slane %v1496, 7
        %v1642 = vsel %vm774, %v1640, %v1641
        %v1643 = vrot.slane %v1493, 7
        %v1644 = vrot.slane %v1497, 7
        %v1645 = vsel %vm774, %v1643, %v1644
        %v1646 = vrot.slane %v1494, 7
        %v1647 = vrot.slane %v1498, 7
        %v1648 = vsel %vm774, %v1646, %v1647
        %v1649 = vrot.slane %v1495, 7
        %v1650 = vrot.slane %v1499, 7
        %v1651 = vsel %vm774, %v1649, %v1650
        %v1652 = vrot.slane %v1500, 7
        %v1653 = vrot.slane %v1504, 7
        %v1654 = vsel %vm774, %v1652, %v1653
        %v1655 = vrot.slane %v1501, 7
        %v1656 = vrot.slane %v1505, 7
        %v1657 = vsel %vm774, %v1655, %v1656
        %v1658 = vrot.slane %v1502, 7
        %v1659 = vrot.slane %v1506, 7
        %v1660 = vsel %vm774, %v1658, %v1659
        %v1661 = vrot.slane %v1503, 7
        %v1662 = vrot.slane %v1507, 7
        %v1663 = vsel %vm774, %v1661, %v1662
        %v1664 = vrot.slane %v1508, 7
        %v1665 = vrot.slane %v1512, 7
        %v1666 = vsel %vm774, %v1664, %v1665
        %v1667 = vrot.slane %v1509, 7
        %v1668 = vrot.slane %v1513, 7
        %v1669 = vsel %vm774, %v1667, %v1668
        %v1670 = vrot.slane %v1510, 7
        %v1671 = vrot.slane %v1514, 7
        %v1672 = vsel %vm774, %v1670, %v1671
        %v1673 = vrot.slane %v1511, 7
        %v1674 = vrot.slane %v1515, 7
        %v1675 = vsel %vm774, %v1673, %v1674
        %s1708 = scalar_lea.vmem [#allocation6], 12
        %v1709 = vld [vmem:[%s1708] sm:$0xf]
        %v1711 = vlaneseq
        %v1712 = vshrl.u32 %v1711, 7
        %v1713 = vsub.s32 0, %v1712
        %v1714 = vrot.slane %v1709, %v1713
        %v1715 = vlaneseq
        %v1716 = vshrl.u32 %v1715, 7
        %v1717 = vsub.s32 1, %v1716
        %v1718 = vrot.slane %v1709, %v1717
        %v1719 = vlaneseq
        %v1720 = vshrl.u32 %v1719, 7
        %v1721 = vsub.s32 2, %v1720
        %v1722 = vrot.slane %v1709, %v1721
        %v1723 = vlaneseq
        %v1724 = vshrl.u32 %v1723, 7
        %v1725 = vsub.s32 3, %v1724
        %v1726 = vrot.slane %v1709, %v1725
        %v1731 = vmul.f32 %v1582, %v1714
        %v1732 = vmul.f32 %v1585, %v1718
        %v1733 = vmul.f32 %v1588, %v1722
        %v1734 = vmul.f32 %v1591, %v1726
        %v1735 = vmul.f32 %v1594, %v1714
        %v1736 = vmul.f32 %v1597, %v1718
        %v1737 = vmul.f32 %v1600, %v1722
        %v1738 = vmul.f32 %v1603, %v1726
        %v1739 = vmul.f32 %v1606, %v1714
        %v1740 = vmul.f32 %v1609, %v1718
        %v1741 = vmul.f32 %v1612, %v1722
        %v1742 = vmul.f32 %v1615, %v1726
        %v1743 = vmul.f32 %v1618, %v1714
        %v1744 = vmul.f32 %v1621, %v1718
        %v1745 = vmul.f32 %v1624, %v1722
        %v1746 = vmul.f32 %v1627, %v1726
        %v1747 = vmul.f32 %v1630, %v1714
        %v1748 = vmul.f32 %v1633, %v1718
        %v1749 = vmul.f32 %v1636, %v1722
        %v1750 = vmul.f32 %v1639, %v1726
        %v1751 = vmul.f32 %v1642, %v1714
        %v1752 = vmul.f32 %v1645, %v1718
        %v1753 = vmul.f32 %v1648, %v1722
        %v1754 = vmul.f32 %v1651, %v1726
        %v1755 = vmul.f32 %v1654, %v1714
        %v1756 = vmul.f32 %v1657, %v1718
        %v1757 = vmul.f32 %v1660, %v1722
        %v1758 = vmul.f32 %v1663, %v1726
        %v1759 = vmul.f32 %v1666, %v1714
        %v1760 = vmul.f32 %v1669, %v1718
        %v1761 = vmul.f32 %v1672, %v1722
        %v1762 = vmul.f32 %v1675, %v1726
        %v1763 = vadd.f32 %v1420, %v1731
        %v1764 = vadd.f32 %v1421, %v1732
        %v1765 = vadd.f32 %v1422, %v1733
        %v1766 = vadd.f32 %v1423, %v1734
        %v1767 = vadd.f32 %v1424, %v1735
        %v1768 = vadd.f32 %v1425, %v1736
        %v1769 = vadd.f32 %v1426, %v1737
        %v1770 = vadd.f32 %v1427, %v1738
        %v1771 = vadd.f32 %v1428, %v1739
        %v1772 = vadd.f32 %v1429, %v1740
        %v1773 = vadd.f32 %v1430, %v1741
        %v1774 = vadd.f32 %v1431, %v1742
        %v1775 = vadd.f32 %v1432, %v1743
        %v1776 = vadd.f32 %v1433, %v1744
        %v1777 = vadd.f32 %v1434, %v1745
        %v1778 = vadd.f32 %v1435, %v1746
        %v1779 = vadd.f32 %v1436, %v1747
        %v1780 = vadd.f32 %v1437, %v1748
        %v1781 = vadd.f32 %v1438, %v1749
        %v1782 = vadd.f32 %v1439, %v1750
        %v1783 = vadd.f32 %v1440, %v1751
        %v1784 = vadd.f32 %v1441, %v1752
        %v1785 = vadd.f32 %v1442, %v1753
        %v1786 = vadd.f32 %v1443, %v1754
        %v1787 = vadd.f32 %v1444, %v1755
        %v1788 = vadd.f32 %v1445, %v1756
        %v1789 = vadd.f32 %v1446, %v1757
        %v1790 = vadd.f32 %v1447, %v1758
        %v1791 = vadd.f32 %v1448, %v1759
        %v1792 = vadd.f32 %v1449, %v1760
        %v1793 = vadd.f32 %v1450, %v1761
        %v1794 = vadd.f32 %v1451, %v1762
        %v1795 = vld [vmem:[%s613 + $0x20] sm:$0xff]
        %v1796 = vld [vmem:[%s613 + $0x28] sm:$0xff]
        %v1797 = vld [vmem:[%s613 + $0x30] sm:$0xff]
        %v1798 = vld [vmem:[%s613 + $0x38] sm:$0xff]
        %v1799 = vld [vmem:[%s613 + $0x80] sm:$0xff]
        %v1800 = vld [vmem:[%s613 + $0x88] sm:$0xff]
        %v1801 = vld [vmem:[%s613 + $0x90] sm:$0xff]
        %v1802 = vld [vmem:[%s613 + $0x98] sm:$0xff]
        %v1803 = vld [vmem:[%s613 + $0xe0] sm:$0xff]
        %v1804 = vld [vmem:[%s613 + $0xe8] sm:$0xff]
        %v1805 = vld [vmem:[%s613 + $0xf0] sm:$0xff]
        %v1806 = vld [vmem:[%s613 + $0xf8] sm:$0xff]
        %v1807 = vld [vmem:[%s613 + $0x140] sm:$0xff]
        %v1808 = vld [vmem:[%s613 + $0x148] sm:$0xff]
        %v1809 = vld [vmem:[%s613 + $0x150] sm:$0xff]
        %v1810 = vld [vmem:[%s613 + $0x158] sm:$0xff]
        %v1811 = vld [vmem:[%s613 + $0x1a0] sm:$0xff]
        %v1812 = vld [vmem:[%s613 + $0x1a8] sm:$0xff]
        %v1813 = vld [vmem:[%s613 + $0x1b0] sm:$0xff]
        %v1814 = vld [vmem:[%s613 + $0x1b8] sm:$0xff]
        %v1815 = vld [vmem:[%s613 + $0x200] sm:$0xff]
        %v1816 = vld [vmem:[%s613 + $0x208] sm:$0xff]
        %v1817 = vld [vmem:[%s613 + $0x210] sm:$0xff]
        %v1818 = vld [vmem:[%s613 + $0x218] sm:$0xff]
        %v1819 = vld [vmem:[%s613 + $0x260] sm:$0xff]
        %v1820 = vld [vmem:[%s613 + $0x268] sm:$0xff]
        %v1821 = vld [vmem:[%s613 + $0x270] sm:$0xff]
        %v1822 = vld [vmem:[%s613 + $0x278] sm:$0xff]
        %v1823 = vld [vmem:[%s613 + $0x2c0] sm:$0xff]
        %v1824 = vld [vmem:[%s613 + $0x2c8] sm:$0xff]
        %v1825 = vld [vmem:[%s613 + $0x2d0] sm:$0xff]
        %v1826 = vld [vmem:[%s613 + $0x2d8] sm:$0xff]
        %s1827 = scalar_lea.vmem [#allocation6], 16
        %v1828 = vld [vmem:[%s1827] sm:$0xf]
        %v1830 = vlaneseq
        %v1831 = vshrl.u32 %v1830, 7
        %v1832 = vsub.s32 0, %v1831
        %v1833 = vrot.slane %v1828, %v1832
        %v1834 = vlaneseq
        %v1835 = vshrl.u32 %v1834, 7
        %v1836 = vsub.s32 1, %v1835
        %v1837 = vrot.slane %v1828, %v1836
        %v1838 = vlaneseq
        %v1839 = vshrl.u32 %v1838, 7
        %v1840 = vsub.s32 2, %v1839
        %v1841 = vrot.slane %v1828, %v1840
        %v1842 = vlaneseq
        %v1843 = vshrl.u32 %v1842, 7
        %v1844 = vsub.s32 3, %v1843
        %v1845 = vrot.slane %v1828, %v1844
        %v1850 = vmul.f32 %v1795, %v1833
        %v1851 = vmul.f32 %v1796, %v1837
        %v1852 = vmul.f32 %v1797, %v1841
        %v1853 = vmul.f32 %v1798, %v1845
        %v1854 = vmul.f32 %v1799, %v1833
        %v1855 = vmul.f32 %v1800, %v1837
        %v1856 = vmul.f32 %v1801, %v1841
        %v1857 = vmul.f32 %v1802, %v1845
        %v1858 = vmul.f32 %v1803, %v1833
        %v1859 = vmul.f32 %v1804, %v1837
        %v1860 = vmul.f32 %v1805, %v1841
        %v1861 = vmul.f32 %v1806, %v1845
        %v1862 = vmul.f32 %v1807, %v1833
        %v1863 = vmul.f32 %v1808, %v1837
        %v1864 = vmul.f32 %v1809, %v1841
        %v1865 = vmul.f32 %v1810, %v1845
        %v1866 = vmul.f32 %v1811, %v1833
        %v1867 = vmul.f32 %v1812, %v1837
        %v1868 = vmul.f32 %v1813, %v1841
        %v1869 = vmul.f32 %v1814, %v1845
        %v1870 = vmul.f32 %v1815, %v1833
        %v1871 = vmul.f32 %v1816, %v1837
        %v1872 = vmul.f32 %v1817, %v1841
        %v1873 = vmul.f32 %v1818, %v1845
        %v1874 = vmul.f32 %v1819, %v1833
        %v1875 = vmul.f32 %v1820, %v1837
        %v1876 = vmul.f32 %v1821, %v1841
        %v1877 = vmul.f32 %v1822, %v1845
        %v1878 = vmul.f32 %v1823, %v1833
        %v1879 = vmul.f32 %v1824, %v1837
        %v1880 = vmul.f32 %v1825, %v1841
        %v1881 = vmul.f32 %v1826, %v1845
        %v1882 = vadd.f32 %v1763, %v1850
        %v1883 = vadd.f32 %v1764, %v1851
        %v1884 = vadd.f32 %v1765, %v1852
        %v1885 = vadd.f32 %v1766, %v1853
        %v1886 = vadd.f32 %v1767, %v1854
        %v1887 = vadd.f32 %v1768, %v1855
        %v1888 = vadd.f32 %v1769, %v1856
        %v1889 = vadd.f32 %v1770, %v1857
        %v1890 = vadd.f32 %v1771, %v1858
        %v1891 = vadd.f32 %v1772, %v1859
        %v1892 = vadd.f32 %v1773, %v1860
        %v1893 = vadd.f32 %v1774, %v1861
        %v1894 = vadd.f32 %v1775, %v1862
        %v1895 = vadd.f32 %v1776, %v1863
        %v1896 = vadd.f32 %v1777, %v1864
        %v1897 = vadd.f32 %v1778, %v1865
        %v1898 = vadd.f32 %v1779, %v1866
        %v1899 = vadd.f32 %v1780, %v1867
        %v1900 = vadd.f32 %v1781, %v1868
        %v1901 = vadd.f32 %v1782, %v1869
        %v1902 = vadd.f32 %v1783, %v1870
        %v1903 = vadd.f32 %v1784, %v1871
        %v1904 = vadd.f32 %v1785, %v1872
        %v1905 = vadd.f32 %v1786, %v1873
        %v1906 = vadd.f32 %v1787, %v1874
        %v1907 = vadd.f32 %v1788, %v1875
        %v1908 = vadd.f32 %v1789, %v1876
        %v1909 = vadd.f32 %v1790, %v1877
        %v1910 = vadd.f32 %v1791, %v1878
        %v1911 = vadd.f32 %v1792, %v1879
        %v1912 = vadd.f32 %v1793, %v1880
        %v1913 = vadd.f32 %v1794, %v1881
        %v1914 = vld [vmem:[%s613 + $0x20] sm:$0xfe]
        %v1915 = vld [vmem:[%s613 + $0x28] sm:$0xfe]
        %v1916 = vld [vmem:[%s613 + $0x30] sm:$0xfe]
        %v1917 = vld [vmem:[%s613 + $0x38] sm:$0xfe]
        %v1918 = vld [vmem:[%s613 + $0x40] sm:$0x1]
        %v1919 = vld [vmem:[%s613 + $0x48] sm:$0x1]
        %v1920 = vld [vmem:[%s613 + $0x50] sm:$0x1]
        %v1921 = vld [vmem:[%s613 + $0x58] sm:$0x1]
        %v1922 = vld [vmem:[%s613 + $0x80] sm:$0xfe]
        %v1923 = vld [vmem:[%s613 + $0x88] sm:$0xfe]
        %v1924 = vld [vmem:[%s613 + $0x90] sm:$0xfe]
        %v1925 = vld [vmem:[%s613 + $0x98] sm:$0xfe]
        %v1926 = vld [vmem:[%s613 + $0xa0] sm:$0x1]
        %v1927 = vld [vmem:[%s613 + $0xa8] sm:$0x1]
        %v1928 = vld [vmem:[%s613 + $0xb0] sm:$0x1]
        %v1929 = vld [vmem:[%s613 + $0xb8] sm:$0x1]
        %v1930 = vld [vmem:[%s613 + $0xe0] sm:$0xfe]
        %v1931 = vld [vmem:[%s613 + $0xe8] sm:$0xfe]
        %v1932 = vld [vmem:[%s613 + $0xf0] sm:$0xfe]
        %v1933 = vld [vmem:[%s613 + $0xf8] sm:$0xfe]
        %v1934 = vld [vmem:[%s613 + $0x100] sm:$0x1]
        %v1935 = vld [vmem:[%s613 + $0x108] sm:$0x1]
        %v1936 = vld [vmem:[%s613 + $0x110] sm:$0x1]
        %v1937 = vld [vmem:[%s613 + $0x118] sm:$0x1]
        %v1938 = vld [vmem:[%s613 + $0x140] sm:$0xfe]
        %v1939 = vld [vmem:[%s613 + $0x148] sm:$0xfe]
        %v1940 = vld [vmem:[%s613 + $0x150] sm:$0xfe]
        %v1941 = vld [vmem:[%s613 + $0x158] sm:$0xfe]
        %v1942 = vld [vmem:[%s613 + $0x160] sm:$0x1]
        %v1943 = vld [vmem:[%s613 + $0x168] sm:$0x1]
        %v1944 = vld [vmem:[%s613 + $0x170] sm:$0x1]
        %v1945 = vld [vmem:[%s613 + $0x178] sm:$0x1]
        %v1946 = vld [vmem:[%s613 + $0x1a0] sm:$0xfe]
        %v1947 = vld [vmem:[%s613 + $0x1a8] sm:$0xfe]
        %v1948 = vld [vmem:[%s613 + $0x1b0] sm:$0xfe]
        %v1949 = vld [vmem:[%s613 + $0x1b8] sm:$0xfe]
        %v1950 = vld [vmem:[%s613 + $0x1c0] sm:$0x1]
        %v1951 = vld [vmem:[%s613 + $0x1c8] sm:$0x1]
        %v1952 = vld [vmem:[%s613 + $0x1d0] sm:$0x1]
        %v1953 = vld [vmem:[%s613 + $0x1d8] sm:$0x1]
        %v1954 = vld [vmem:[%s613 + $0x200] sm:$0xfe]
        %v1955 = vld [vmem:[%s613 + $0x208] sm:$0xfe]
        %v1956 = vld [vmem:[%s613 + $0x210] sm:$0xfe]
        %v1957 = vld [vmem:[%s613 + $0x218] sm:$0xfe]
        %v1958 = vld [vmem:[%s613 + $0x220] sm:$0x1]
        %v1959 = vld [vmem:[%s613 + $0x228] sm:$0x1]
        %v1960 = vld [vmem:[%s613 + $0x230] sm:$0x1]
        %v1961 = vld [vmem:[%s613 + $0x238] sm:$0x1]
        %v1962 = vld [vmem:[%s613 + $0x260] sm:$0xfe]
        %v1963 = vld [vmem:[%s613 + $0x268] sm:$0xfe]
        %v1964 = vld [vmem:[%s613 + $0x270] sm:$0xfe]
        %v1965 = vld [vmem:[%s613 + $0x278] sm:$0xfe]
        %v1966 = vld [vmem:[%s613 + $0x280] sm:$0x1]
        %v1967 = vld [vmem:[%s613 + $0x288] sm:$0x1]
        %v1968 = vld [vmem:[%s613 + $0x290] sm:$0x1]
        %v1969 = vld [vmem:[%s613 + $0x298] sm:$0x1]
        %v1970 = vld [vmem:[%s613 + $0x2c0] sm:$0xfe]
        %v1971 = vld [vmem:[%s613 + $0x2c8] sm:$0xfe]
        %v1972 = vld [vmem:[%s613 + $0x2d0] sm:$0xfe]
        %v1973 = vld [vmem:[%s613 + $0x2d8] sm:$0xfe]
        %v1974 = vld [vmem:[%s613 + $0x2e0] sm:$0x1]
        %v1975 = vld [vmem:[%s613 + $0x2e8] sm:$0x1]
        %v1976 = vld [vmem:[%s613 + $0x2f0] sm:$0x1]
        %v1977 = vld [vmem:[%s613 + $0x2f8] sm:$0x1]
        %v2042 = vrot.slane %v1914, 1
        %v2043 = vrot.slane %v1918, 1
        %v2044 = vsel %vm1236, %v2042, %v2043
        %v2045 = vrot.slane %v1915, 1
        %v2046 = vrot.slane %v1919, 1
        %v2047 = vsel %vm1236, %v2045, %v2046
        %v2048 = vrot.slane %v1916, 1
        %v2049 = vrot.slane %v1920, 1
        %v2050 = vsel %vm1236, %v2048, %v2049
        %v2051 = vrot.slane %v1917, 1
        %v2052 = vrot.slane %v1921, 1
        %v2053 = vsel %vm1236, %v2051, %v2052
        %v2054 = vrot.slane %v1922, 1
        %v2055 = vrot.slane %v1926, 1
        %v2056 = vsel %vm1236, %v2054, %v2055
        %v2057 = vrot.slane %v1923, 1
        %v2058 = vrot.slane %v1927, 1
        %v2059 = vsel %vm1236, %v2057, %v2058
        %v2060 = vrot.slane %v1924, 1
        %v2061 = vrot.slane %v1928, 1
        %v2062 = vsel %vm1236, %v2060, %v2061
        %v2063 = vrot.slane %v1925, 1
        %v2064 = vrot.slane %v1929, 1
        %v2065 = vsel %vm1236, %v2063, %v2064
        %v2066 = vrot.slane %v1930, 1
        %v2067 = vrot.slane %v1934, 1
        %v2068 = vsel %vm1236, %v2066, %v2067
        %v2069 = vrot.slane %v1931, 1
        %v2070 = vrot.slane %v1935, 1
        %v2071 = vsel %vm1236, %v2069, %v2070
        %v2072 = vrot.slane %v1932, 1
        %v2073 = vrot.slane %v1936, 1
        %v2074 = vsel %vm1236, %v2072, %v2073
        %v2075 = vrot.slane %v1933, 1
        %v2076 = vrot.slane %v1937, 1
        %v2077 = vsel %vm1236, %v2075, %v2076
        %v2078 = vrot.slane %v1938, 1
        %v2079 = vrot.slane %v1942, 1
        %v2080 = vsel %vm1236, %v2078, %v2079
        %v2081 = vrot.slane %v1939, 1
        %v2082 = vrot.slane %v1943, 1
        %v2083 = vsel %vm1236, %v2081, %v2082
        %v2084 = vrot.slane %v1940, 1
        %v2085 = vrot.slane %v1944, 1
        %v2086 = vsel %vm1236, %v2084, %v2085
        %v2087 = vrot.slane %v1941, 1
        %v2088 = vrot.slane %v1945, 1
        %v2089 = vsel %vm1236, %v2087, %v2088
        %v2090 = vrot.slane %v1946, 1
        %v2091 = vrot.slane %v1950, 1
        %v2092 = vsel %vm1236, %v2090, %v2091
        %v2093 = vrot.slane %v1947, 1
        %v2094 = vrot.slane %v1951, 1
        %v2095 = vsel %vm1236, %v2093, %v2094
        %v2096 = vrot.slane %v1948, 1
        %v2097 = vrot.slane %v1952, 1
        %v2098 = vsel %vm1236, %v2096, %v2097
        %v2099 = vrot.slane %v1949, 1
        %v2100 = vrot.slane %v1953, 1
        %v2101 = vsel %vm1236, %v2099, %v2100
        %v2102 = vrot.slane %v1954, 1
        %v2103 = vrot.slane %v1958, 1
        %v2104 = vsel %vm1236, %v2102, %v2103
        %v2105 = vrot.slane %v1955, 1
        %v2106 = vrot.slane %v1959, 1
        %v2107 = vsel %vm1236, %v2105, %v2106
        %v2108 = vrot.slane %v1956, 1
        %v2109 = vrot.slane %v1960, 1
        %v2110 = vsel %vm1236, %v2108, %v2109
        %v2111 = vrot.slane %v1957, 1
        %v2112 = vrot.slane %v1961, 1
        %v2113 = vsel %vm1236, %v2111, %v2112
        %v2114 = vrot.slane %v1962, 1
        %v2115 = vrot.slane %v1966, 1
        %v2116 = vsel %vm1236, %v2114, %v2115
        %v2117 = vrot.slane %v1963, 1
        %v2118 = vrot.slane %v1967, 1
        %v2119 = vsel %vm1236, %v2117, %v2118
        %v2120 = vrot.slane %v1964, 1
        %v2121 = vrot.slane %v1968, 1
        %v2122 = vsel %vm1236, %v2120, %v2121
        %v2123 = vrot.slane %v1965, 1
        %v2124 = vrot.slane %v1969, 1
        %v2125 = vsel %vm1236, %v2123, %v2124
        %v2126 = vrot.slane %v1970, 1
        %v2127 = vrot.slane %v1974, 1
        %v2128 = vsel %vm1236, %v2126, %v2127
        %v2129 = vrot.slane %v1971, 1
        %v2130 = vrot.slane %v1975, 1
        %v2131 = vsel %vm1236, %v2129, %v2130
        %v2132 = vrot.slane %v1972, 1
        %v2133 = vrot.slane %v1976, 1
        %v2134 = vsel %vm1236, %v2132, %v2133
        %v2135 = vrot.slane %v1973, 1
        %v2136 = vrot.slane %v1977, 1
        %v2137 = vsel %vm1236, %v2135, %v2136
        %s2170 = scalar_lea.vmem [#allocation6], 20
        %v2171 = vld [vmem:[%s2170] sm:$0xf]
        %v2173 = vlaneseq
        %v2174 = vshrl.u32 %v2173, 7
        %v2175 = vsub.s32 0, %v2174
        %v2176 = vrot.slane %v2171, %v2175
        %v2177 = vlaneseq
        %v2178 = vshrl.u32 %v2177, 7
        %v2179 = vsub.s32 1, %v2178
        %v2180 = vrot.slane %v2171, %v2179
        %v2181 = vlaneseq
        %v2182 = vshrl.u32 %v2181, 7
        %v2183 = vsub.s32 2, %v2182
        %v2184 = vrot.slane %v2171, %v2183
        %v2185 = vlaneseq
        %v2186 = vshrl.u32 %v2185, 7
        %v2187 = vsub.s32 3, %v2186
        %v2188 = vrot.slane %v2171, %v2187
        %v2193 = vmul.f32 %v2044, %v2176
        %v2194 = vmul.f32 %v2047, %v2180
        %v2195 = vmul.f32 %v2050, %v2184
        %v2196 = vmul.f32 %v2053, %v2188
        %v2197 = vmul.f32 %v2056, %v2176
        %v2198 = vmul.f32 %v2059, %v2180
        %v2199 = vmul.f32 %v2062, %v2184
        %v2200 = vmul.f32 %v2065, %v2188
        %v2201 = vmul.f32 %v2068, %v2176
        %v2202 = vmul.f32 %v2071, %v2180
        %v2203 = vmul.f32 %v2074, %v2184
        %v2204 = vmul.f32 %v2077, %v2188
        %v2205 = vmul.f32 %v2080, %v2176
        %v2206 = vmul.f32 %v2083, %v2180
        %v2207 = vmul.f32 %v2086, %v2184
        %v2208 = vmul.f32 %v2089, %v2188
        %v2209 = vmul.f32 %v2092, %v2176
        %v2210 = vmul.f32 %v2095, %v2180
        %v2211 = vmul.f32 %v2098, %v2184
        %v2212 = vmul.f32 %v2101, %v2188
        %v2213 = vmul.f32 %v2104, %v2176
        %v2214 = vmul.f32 %v2107, %v2180
        %v2215 = vmul.f32 %v2110, %v2184
        %v2216 = vmul.f32 %v2113, %v2188
        %v2217 = vmul.f32 %v2116, %v2176
        %v2218 = vmul.f32 %v2119, %v2180
        %v2219 = vmul.f32 %v2122, %v2184
        %v2220 = vmul.f32 %v2125, %v2188
        %v2221 = vmul.f32 %v2128, %v2176
        %v2222 = vmul.f32 %v2131, %v2180
        %v2223 = vmul.f32 %v2134, %v2184
        %v2224 = vmul.f32 %v2137, %v2188
        %v2225 = vadd.f32 %v1882, %v2193
        %v2226 = vadd.f32 %v1883, %v2194
        %v2227 = vadd.f32 %v1884, %v2195
        %v2228 = vadd.f32 %v1885, %v2196
        %v2229 = vadd.f32 %v1886, %v2197
        %v2230 = vadd.f32 %v1887, %v2198
        %v2231 = vadd.f32 %v1888, %v2199
        %v2232 = vadd.f32 %v1889, %v2200
        %v2233 = vadd.f32 %v1890, %v2201
        %v2234 = vadd.f32 %v1891, %v2202
        %v2235 = vadd.f32 %v1892, %v2203
        %v2236 = vadd.f32 %v1893, %v2204
        %v2237 = vadd.f32 %v1894, %v2205
        %v2238 = vadd.f32 %v1895, %v2206
        %v2239 = vadd.f32 %v1896, %v2207
        %v2240 = vadd.f32 %v1897, %v2208
        %v2241 = vadd.f32 %v1898, %v2209
        %v2242 = vadd.f32 %v1899, %v2210
        %v2243 = vadd.f32 %v1900, %v2211
        %v2244 = vadd.f32 %v1901, %v2212
        %v2245 = vadd.f32 %v1902, %v2213
        %v2246 = vadd.f32 %v1903, %v2214
        %v2247 = vadd.f32 %v1904, %v2215
        %v2248 = vadd.f32 %v1905, %v2216
        %v2249 = vadd.f32 %v1906, %v2217
        %v2250 = vadd.f32 %v1907, %v2218
        %v2251 = vadd.f32 %v1908, %v2219
        %v2252 = vadd.f32 %v1909, %v2220
        %v2253 = vadd.f32 %v1910, %v2221
        %v2254 = vadd.f32 %v1911, %v2222
        %v2255 = vadd.f32 %v1912, %v2223
        %v2256 = vadd.f32 %v1913, %v2224
        %s2257 = scalar_lea.vmem [#allocation2], 192
        %v2258 = vld [vmem:[%s2257] sm:$0x80]
        %v2259 = vld [vmem:[%s2257 + $0x8] sm:$0x80]
        %v2260 = vld [vmem:[%s2257 + $0x10] sm:$0x80]
        %v2261 = vld [vmem:[%s2257 + $0x18] sm:$0x80]
        %v2262 = vld [vmem:[%s2257 + $0x20] sm:$0x7f]
        %v2263 = vld [vmem:[%s2257 + $0x28] sm:$0x7f]
        %v2264 = vld [vmem:[%s2257 + $0x30] sm:$0x7f]
        %v2265 = vld [vmem:[%s2257 + $0x38] sm:$0x7f]
        %v2266 = vld [vmem:[%s2257 + $0x60] sm:$0x80]
        %v2267 = vld [vmem:[%s2257 + $0x68] sm:$0x80]
        %v2268 = vld [vmem:[%s2257 + $0x70] sm:$0x80]
        %v2269 = vld [vmem:[%s2257 + $0x78] sm:$0x80]
        %v2270 = vld [vmem:[%s2257 + $0x80] sm:$0x7f]
        %v2271 = vld [vmem:[%s2257 + $0x88] sm:$0x7f]
        %v2272 = vld [vmem:[%s2257 + $0x90] sm:$0x7f]
        %v2273 = vld [vmem:[%s2257 + $0x98] sm:$0x7f]
        %v2274 = vld [vmem:[%s2257 + $0xc0] sm:$0x80]
        %v2275 = vld [vmem:[%s2257 + $0xc8] sm:$0x80]
        %v2276 = vld [vmem:[%s2257 + $0xd0] sm:$0x80]
        %v2277 = vld [vmem:[%s2257 + $0xd8] sm:$0x80]
        %v2278 = vld [vmem:[%s2257 + $0xe0] sm:$0x7f]
        %v2279 = vld [vmem:[%s2257 + $0xe8] sm:$0x7f]
        %v2280 = vld [vmem:[%s2257 + $0xf0] sm:$0x7f]
        %v2281 = vld [vmem:[%s2257 + $0xf8] sm:$0x7f]
        %v2282 = vld [vmem:[%s2257 + $0x120] sm:$0x80]
        %v2283 = vld [vmem:[%s2257 + $0x128] sm:$0x80]
        %v2284 = vld [vmem:[%s2257 + $0x130] sm:$0x80]
        %v2285 = vld [vmem:[%s2257 + $0x138] sm:$0x80]
        %v2286 = vld [vmem:[%s2257 + $0x140] sm:$0x7f]
        %v2287 = vld [vmem:[%s2257 + $0x148] sm:$0x7f]
        %v2288 = vld [vmem:[%s2257 + $0x150] sm:$0x7f]
        %v2289 = vld [vmem:[%s2257 + $0x158] sm:$0x7f]
        %v2290 = vld [vmem:[%s2257 + $0x180] sm:$0x80]
        %v2291 = vld [vmem:[%s2257 + $0x188] sm:$0x80]
        %v2292 = vld [vmem:[%s2257 + $0x190] sm:$0x80]
        %v2293 = vld [vmem:[%s2257 + $0x198] sm:$0x80]
        %v2294 = vld [vmem:[%s2257 + $0x1a0] sm:$0x7f]
        %v2295 = vld [vmem:[%s2257 + $0x1a8] sm:$0x7f]
        %v2296 = vld [vmem:[%s2257 + $0x1b0] sm:$0x7f]
        %v2297 = vld [vmem:[%s2257 + $0x1b8] sm:$0x7f]
        %v2298 = vld [vmem:[%s2257 + $0x1e0] sm:$0x80]
        %v2299 = vld [vmem:[%s2257 + $0x1e8] sm:$0x80]
        %v2300 = vld [vmem:[%s2257 + $0x1f0] sm:$0x80]
        %v2301 = vld [vmem:[%s2257 + $0x1f8] sm:$0x80]
        %v2302 = vld [vmem:[%s2257 + $0x200] sm:$0x7f]
        %v2303 = vld [vmem:[%s2257 + $0x208] sm:$0x7f]
        %v2304 = vld [vmem:[%s2257 + $0x210] sm:$0x7f]
        %v2305 = vld [vmem:[%s2257 + $0x218] sm:$0x7f]
        %v2306 = vld [vmem:[%s2257 + $0x240] sm:$0x80]
        %v2307 = vld [vmem:[%s2257 + $0x248] sm:$0x80]
        %v2308 = vld [vmem:[%s2257 + $0x250] sm:$0x80]
        %v2309 = vld [vmem:[%s2257 + $0x258] sm:$0x80]
        %v2310 = vld [vmem:[%s2257 + $0x260] sm:$0x7f]
        %v2311 = vld [vmem:[%s2257 + $0x268] sm:$0x7f]
        %v2312 = vld [vmem:[%s2257 + $0x270] sm:$0x7f]
        %v2313 = vld [vmem:[%s2257 + $0x278] sm:$0x7f]
        %v2314 = vld [vmem:[%s2257 + $0x2a0] sm:$0x80]
        %v2315 = vld [vmem:[%s2257 + $0x2a8] sm:$0x80]
        %v2316 = vld [vmem:[%s2257 + $0x2b0] sm:$0x80]
        %v2317 = vld [vmem:[%s2257 + $0x2b8] sm:$0x80]
        %v2318 = vld [vmem:[%s2257 + $0x2c0] sm:$0x7f]
        %v2319 = vld [vmem:[%s2257 + $0x2c8] sm:$0x7f]
        %v2320 = vld [vmem:[%s2257 + $0x2d0] sm:$0x7f]
        %v2321 = vld [vmem:[%s2257 + $0x2d8] sm:$0x7f]
        %v2386 = vrot.slane %v2258, 7
        %v2387 = vrot.slane %v2262, 7
        %v2388 = vsel %vm774, %v2386, %v2387
        %v2389 = vrot.slane %v2259, 7
        %v2390 = vrot.slane %v2263, 7
        %v2391 = vsel %vm774, %v2389, %v2390
        %v2392 = vrot.slane %v2260, 7
        %v2393 = vrot.slane %v2264, 7
        %v2394 = vsel %vm774, %v2392, %v2393
        %v2395 = vrot.slane %v2261, 7
        %v2396 = vrot.slane %v2265, 7
        %v2397 = vsel %vm774, %v2395, %v2396
        %v2398 = vrot.slane %v2266, 7
        %v2399 = vrot.slane %v2270, 7
        %v2400 = vsel %vm774, %v2398, %v2399
        %v2401 = vrot.slane %v2267, 7
        %v2402 = vrot.slane %v2271, 7
        %v2403 = vsel %vm774, %v2401, %v2402
        %v2404 = vrot.slane %v2268, 7
        %v2405 = vrot.slane %v2272, 7
        %v2406 = vsel %vm774, %v2404, %v2405
        %v2407 = vrot.slane %v2269, 7
        %v2408 = vrot.slane %v2273, 7
        %v2409 = vsel %vm774, %v2407, %v2408
        %v2410 = vrot.slane %v2274, 7
        %v2411 = vrot.slane %v2278, 7
        %v2412 = vsel %vm774, %v2410, %v2411
        %v2413 = vrot.slane %v2275, 7
        %v2414 = vrot.slane %v2279, 7
        %v2415 = vsel %vm774, %v2413, %v2414
        %v2416 = vrot.slane %v2276, 7
        %v2417 = vrot.slane %v2280, 7
        %v2418 = vsel %vm774, %v2416, %v2417
        %v2419 = vrot.slane %v2277, 7
        %v2420 = vrot.slane %v2281, 7
        %v2421 = vsel %vm774, %v2419, %v2420
        %v2422 = vrot.slane %v2282, 7
        %v2423 = vrot.slane %v2286, 7
        %v2424 = vsel %vm774, %v2422, %v2423
        %v2425 = vrot.slane %v2283, 7
        %v2426 = vrot.slane %v2287, 7
        %v2427 = vsel %vm774, %v2425, %v2426
        %v2428 = vrot.slane %v2284, 7
        %v2429 = vrot.slane %v2288, 7
        %v2430 = vsel %vm774, %v2428, %v2429
        %v2431 = vrot.slane %v2285, 7
        %v2432 = vrot.slane %v2289, 7
        %v2433 = vsel %vm774, %v2431, %v2432
        %v2434 = vrot.slane %v2290, 7
        %v2435 = vrot.slane %v2294, 7
        %v2436 = vsel %vm774, %v2434, %v2435
        %v2437 = vrot.slane %v2291, 7
        %v2438 = vrot.slane %v2295, 7
        %v2439 = vsel %vm774, %v2437, %v2438
        %v2440 = vrot.slane %v2292, 7
        %v2441 = vrot.slane %v2296, 7
        %v2442 = vsel %vm774, %v2440, %v2441
        %v2443 = vrot.slane %v2293, 7
        %v2444 = vrot.slane %v2297, 7
        %v2445 = vsel %vm774, %v2443, %v2444
        %v2446 = vrot.slane %v2298, 7
        %v2447 = vrot.slane %v2302, 7
        %v2448 = vsel %vm774, %v2446, %v2447
        %v2449 = vrot.slane %v2299, 7
        %v2450 = vrot.slane %v2303, 7
        %v2451 = vsel %vm774, %v2449, %v2450
        %v2452 = vrot.slane %v2300, 7
        %v2453 = vrot.slane %v2304, 7
        %v2454 = vsel %vm774, %v2452, %v2453
        %v2455 = vrot.slane %v2301, 7
        %v2456 = vrot.slane %v2305, 7
        %v2457 = vsel %vm774, %v2455, %v2456
        %v2458 = vrot.slane %v2306, 7
        %v2459 = vrot.slane %v2310, 7
        %v2460 = vsel %vm774, %v2458, %v2459
        %v2461 = vrot.slane %v2307, 7
        %v2462 = vrot.slane %v2311, 7
        %v2463 = vsel %vm774, %v2461, %v2462
        %v2464 = vrot.slane %v2308, 7
        %v2465 = vrot.slane %v2312, 7
        %v2466 = vsel %vm774, %v2464, %v2465
        %v2467 = vrot.slane %v2309, 7
        %v2468 = vrot.slane %v2313, 7
        %v2469 = vsel %vm774, %v2467, %v2468
        %v2470 = vrot.slane %v2314, 7
        %v2471 = vrot.slane %v2318, 7
        %v2472 = vsel %vm774, %v2470, %v2471
        %v2473 = vrot.slane %v2315, 7
        %v2474 = vrot.slane %v2319, 7
        %v2475 = vsel %vm774, %v2473, %v2474
        %v2476 = vrot.slane %v2316, 7
        %v2477 = vrot.slane %v2320, 7
        %v2478 = vsel %vm774, %v2476, %v2477
        %v2479 = vrot.slane %v2317, 7
        %v2480 = vrot.slane %v2321, 7
        %v2481 = vsel %vm774, %v2479, %v2480
        %s2514 = scalar_lea.vmem [#allocation6], 24
        %v2515 = vld [vmem:[%s2514] sm:$0xf]
        %v2517 = vlaneseq
        %v2518 = vshrl.u32 %v2517, 7
        %v2519 = vsub.s32 0, %v2518
        %v2520 = vrot.slane %v2515, %v2519
        %v2521 = vlaneseq
        %v2522 = vshrl.u32 %v2521, 7
        %v2523 = vsub.s32 1, %v2522
        %v2524 = vrot.slane %v2515, %v2523
        %v2525 = vlaneseq
        %v2526 = vshrl.u32 %v2525, 7
        %v2527 = vsub.s32 2, %v2526
        %v2528 = vrot.slane %v2515, %v2527
        %v2529 = vlaneseq
        %v2530 = vshrl.u32 %v2529, 7
        %v2531 = vsub.s32 3, %v2530
        %v2532 = vrot.slane %v2515, %v2531
        %v2537 = vmul.f32 %v2388, %v2520
        %v2538 = vmul.f32 %v2391, %v2524
        %v2539 = vmul.f32 %v2394, %v2528
        %v2540 = vmul.f32 %v2397, %v2532
        %v2541 = vmul.f32 %v2400, %v2520
        %v2542 = vmul.f32 %v2403, %v2524
        %v2543 = vmul.f32 %v2406, %v2528
        %v2544 = vmul.f32 %v2409, %v2532
        %v2545 = vmul.f32 %v2412, %v2520
        %v2546 = vmul.f32 %v2415, %v2524
        %v2547 = vmul.f32 %v2418, %v2528
        %v2548 = vmul.f32 %v2421, %v2532
        %v2549 = vmul.f32 %v2424, %v2520
        %v2550 = vmul.f32 %v2427, %v2524
        %v2551 = vmul.f32 %v2430, %v2528
        %v2552 = vmul.f32 %v2433, %v2532
        %v2553 = vmul.f32 %v2436, %v2520
        %v2554 = vmul.f32 %v2439, %v2524
        %v2555 = vmul.f32 %v2442, %v2528
        %v2556 = vmul.f32 %v2445, %v2532
        %v2557 = vmul.f32 %v2448, %v2520
        %v2558 = vmul.f32 %v2451, %v2524
        %v2559 = vmul.f32 %v2454, %v2528
        %v2560 = vmul.f32 %v2457, %v2532
        %v2561 = vmul.f32 %v2460, %v2520
        %v2562 = vmul.f32 %v2463, %v2524
        %v2563 = vmul.f32 %v2466, %v2528
        %v2564 = vmul.f32 %v2469, %v2532
        %v2565 = vmul.f32 %v2472, %v2520
        %v2566 = vmul.f32 %v2475, %v2524
        %v2567 = vmul.f32 %v2478, %v2528
        %v2568 = vmul.f32 %v2481, %v2532
        %v2569 = vadd.f32 %v2225, %v2537
        %v2570 = vadd.f32 %v2226, %v2538
        %v2571 = vadd.f32 %v2227, %v2539
        %v2572 = vadd.f32 %v2228, %v2540
        %v2573 = vadd.f32 %v2229, %v2541
        %v2574 = vadd.f32 %v2230, %v2542
        %v2575 = vadd.f32 %v2231, %v2543
        %v2576 = vadd.f32 %v2232, %v2544
        %v2577 = vadd.f32 %v2233, %v2545
        %v2578 = vadd.f32 %v2234, %v2546
        %v2579 = vadd.f32 %v2235, %v2547
        %v2580 = vadd.f32 %v2236, %v2548
        %v2581 = vadd.f32 %v2237, %v2549
        %v2582 = vadd.f32 %v2238, %v2550
        %v2583 = vadd.f32 %v2239, %v2551
        %v2584 = vadd.f32 %v2240, %v2552
        %v2585 = vadd.f32 %v2241, %v2553
        %v2586 = vadd.f32 %v2242, %v2554
        %v2587 = vadd.f32 %v2243, %v2555
        %v2588 = vadd.f32 %v2244, %v2556
        %v2589 = vadd.f32 %v2245, %v2557
        %v2590 = vadd.f32 %v2246, %v2558
        %v2591 = vadd.f32 %v2247, %v2559
        %v2592 = vadd.f32 %v2248, %v2560
        %v2593 = vadd.f32 %v2249, %v2561
        %v2594 = vadd.f32 %v2250, %v2562
        %v2595 = vadd.f32 %v2251, %v2563
        %v2596 = vadd.f32 %v2252, %v2564
        %v2597 = vadd.f32 %v2253, %v2565
        %v2598 = vadd.f32 %v2254, %v2566
        %v2599 = vadd.f32 %v2255, %v2567
        %v2600 = vadd.f32 %v2256, %v2568
        %v2601 = vld [vmem:[%s2257 + $0x20] sm:$0xff]
        %v2602 = vld [vmem:[%s2257 + $0x28] sm:$0xff]
        %v2603 = vld [vmem:[%s2257 + $0x30] sm:$0xff]
        %v2604 = vld [vmem:[%s2257 + $0x38] sm:$0xff]
        %v2605 = vld [vmem:[%s2257 + $0x80] sm:$0xff]
        %v2606 = vld [vmem:[%s2257 + $0x88] sm:$0xff]
        %v2607 = vld [vmem:[%s2257 + $0x90] sm:$0xff]
        %v2608 = vld [vmem:[%s2257 + $0x98] sm:$0xff]
        %v2609 = vld [vmem:[%s2257 + $0xe0] sm:$0xff]
        %v2610 = vld [vmem:[%s2257 + $0xe8] sm:$0xff]
        %v2611 = vld [vmem:[%s2257 + $0xf0] sm:$0xff]
        %v2612 = vld [vmem:[%s2257 + $0xf8] sm:$0xff]
        %v2613 = vld [vmem:[%s2257 + $0x140] sm:$0xff]
        %v2614 = vld [vmem:[%s2257 + $0x148] sm:$0xff]
        %v2615 = vld [vmem:[%s2257 + $0x150] sm:$0xff]
        %v2616 = vld [vmem:[%s2257 + $0x158] sm:$0xff]
        %v2617 = vld [vmem:[%s2257 + $0x1a0] sm:$0xff]
        %v2618 = vld [vmem:[%s2257 + $0x1a8] sm:$0xff]
        %v2619 = vld [vmem:[%s2257 + $0x1b0] sm:$0xff]
        %v2620 = vld [vmem:[%s2257 + $0x1b8] sm:$0xff]
        %v2621 = vld [vmem:[%s2257 + $0x200] sm:$0xff]
        %v2622 = vld [vmem:[%s2257 + $0x208] sm:$0xff]
        %v2623 = vld [vmem:[%s2257 + $0x210] sm:$0xff]
        %v2624 = vld [vmem:[%s2257 + $0x218] sm:$0xff]
        %v2625 = vld [vmem:[%s2257 + $0x260] sm:$0xff]
        %v2626 = vld [vmem:[%s2257 + $0x268] sm:$0xff]
        %v2627 = vld [vmem:[%s2257 + $0x270] sm:$0xff]
        %v2628 = vld [vmem:[%s2257 + $0x278] sm:$0xff]
        %v2629 = vld [vmem:[%s2257 + $0x2c0] sm:$0xff]
        %v2630 = vld [vmem:[%s2257 + $0x2c8] sm:$0xff]
        %v2631 = vld [vmem:[%s2257 + $0x2d0] sm:$0xff]
        %v2632 = vld [vmem:[%s2257 + $0x2d8] sm:$0xff]
        %s2633 = scalar_lea.vmem [#allocation6], 28
        %v2634 = vld [vmem:[%s2633] sm:$0xf]
        %v2636 = vlaneseq
        %v2637 = vshrl.u32 %v2636, 7
        %v2638 = vsub.s32 0, %v2637
        %v2639 = vrot.slane %v2634, %v2638
        %v2640 = vlaneseq
        %v2641 = vshrl.u32 %v2640, 7
        %v2642 = vsub.s32 1, %v2641
        %v2643 = vrot.slane %v2634, %v2642
        %v2644 = vlaneseq
        %v2645 = vshrl.u32 %v2644, 7
        %v2646 = vsub.s32 2, %v2645
        %v2647 = vrot.slane %v2634, %v2646
        %v2648 = vlaneseq
        %v2649 = vshrl.u32 %v2648, 7
        %v2650 = vsub.s32 3, %v2649
        %v2651 = vrot.slane %v2634, %v2650
        %v2656 = vmul.f32 %v2601, %v2639
        %v2657 = vmul.f32 %v2602, %v2643
        %v2658 = vmul.f32 %v2603, %v2647
        %v2659 = vmul.f32 %v2604, %v2651
        %v2660 = vmul.f32 %v2605, %v2639
        %v2661 = vmul.f32 %v2606, %v2643
        %v2662 = vmul.f32 %v2607, %v2647
        %v2663 = vmul.f32 %v2608, %v2651
        %v2664 = vmul.f32 %v2609, %v2639
        %v2665 = vmul.f32 %v2610, %v2643
        %v2666 = vmul.f32 %v2611, %v2647
        %v2667 = vmul.f32 %v2612, %v2651
        %v2668 = vmul.f32 %v2613, %v2639
        %v2669 = vmul.f32 %v2614, %v2643
        %v2670 = vmul.f32 %v2615, %v2647
        %v2671 = vmul.f32 %v2616, %v2651
        %v2672 = vmul.f32 %v2617, %v2639
        %v2673 = vmul.f32 %v2618, %v2643
        %v2674 = vmul.f32 %v2619, %v2647
        %v2675 = vmul.f32 %v2620, %v2651
        %v2676 = vmul.f32 %v2621, %v2639
        %v2677 = vmul.f32 %v2622, %v2643
        %v2678 = vmul.f32 %v2623, %v2647
        %v2679 = vmul.f32 %v2624, %v2651
        %v2680 = vmul.f32 %v2625, %v2639
        %v2681 = vmul.f32 %v2626, %v2643
        %v2682 = vmul.f32 %v2627, %v2647
        %v2683 = vmul.f32 %v2628, %v2651
        %v2684 = vmul.f32 %v2629, %v2639
        %v2685 = vmul.f32 %v2630, %v2643
        %v2686 = vmul.f32 %v2631, %v2647
        %v2687 = vmul.f32 %v2632, %v2651
        %v2688 = vadd.f32 %v2569, %v2656
        %v2689 = vadd.f32 %v2570, %v2657
        %v2690 = vadd.f32 %v2571, %v2658
        %v2691 = vadd.f32 %v2572, %v2659
        %v2692 = vadd.f32 %v2573, %v2660
        %v2693 = vadd.f32 %v2574, %v2661
        %v2694 = vadd.f32 %v2575, %v2662
        %v2695 = vadd.f32 %v2576, %v2663
        %v2696 = vadd.f32 %v2577, %v2664
        %v2697 = vadd.f32 %v2578, %v2665
        %v2698 = vadd.f32 %v2579, %v2666
        %v2699 = vadd.f32 %v2580, %v2667
        %v2700 = vadd.f32 %v2581, %v2668
        %v2701 = vadd.f32 %v2582, %v2669
        %v2702 = vadd.f32 %v2583, %v2670
        %v2703 = vadd.f32 %v2584, %v2671
        %v2704 = vadd.f32 %v2585, %v2672
        %v2705 = vadd.f32 %v2586, %v2673
        %v2706 = vadd.f32 %v2587, %v2674
        %v2707 = vadd.f32 %v2588, %v2675
        %v2708 = vadd.f32 %v2589, %v2676
        %v2709 = vadd.f32 %v2590, %v2677
        %v2710 = vadd.f32 %v2591, %v2678
        %v2711 = vadd.f32 %v2592, %v2679
        %v2712 = vadd.f32 %v2593, %v2680
        %v2713 = vadd.f32 %v2594, %v2681
        %v2714 = vadd.f32 %v2595, %v2682
        %v2715 = vadd.f32 %v2596, %v2683
        %v2716 = vadd.f32 %v2597, %v2684
        %v2717 = vadd.f32 %v2598, %v2685
        %v2718 = vadd.f32 %v2599, %v2686
        %v2719 = vadd.f32 %v2600, %v2687
        %v2720 = vld [vmem:[%s2257 + $0x20] sm:$0xfe]
        %v2721 = vld [vmem:[%s2257 + $0x28] sm:$0xfe]
        %v2722 = vld [vmem:[%s2257 + $0x30] sm:$0xfe]
        %v2723 = vld [vmem:[%s2257 + $0x38] sm:$0xfe]
        %v2724 = vld [vmem:[%s2257 + $0x40] sm:$0x1]
        %v2725 = vld [vmem:[%s2257 + $0x48] sm:$0x1]
        %v2726 = vld [vmem:[%s2257 + $0x50] sm:$0x1]
        %v2727 = vld [vmem:[%s2257 + $0x58] sm:$0x1]
        %v2728 = vld [vmem:[%s2257 + $0x80] sm:$0xfe]
        %v2729 = vld [vmem:[%s2257 + $0x88] sm:$0xfe]
        %v2730 = vld [vmem:[%s2257 + $0x90] sm:$0xfe]
        %v2731 = vld [vmem:[%s2257 + $0x98] sm:$0xfe]
        %v2732 = vld [vmem:[%s2257 + $0xa0] sm:$0x1]
        %v2733 = vld [vmem:[%s2257 + $0xa8] sm:$0x1]
        %v2734 = vld [vmem:[%s2257 + $0xb0] sm:$0x1]
        %v2735 = vld [vmem:[%s2257 + $0xb8] sm:$0x1]
        %v2736 = vld [vmem:[%s2257 + $0xe0] sm:$0xfe]
        %v2737 = vld [vmem:[%s2257 + $0xe8] sm:$0xfe]
        %v2738 = vld [vmem:[%s2257 + $0xf0] sm:$0xfe]
        %v2739 = vld [vmem:[%s2257 + $0xf8] sm:$0xfe]
        %v2740 = vld [vmem:[%s2257 + $0x100] sm:$0x1]
        %v2741 = vld [vmem:[%s2257 + $0x108] sm:$0x1]
        %v2742 = vld [vmem:[%s2257 + $0x110] sm:$0x1]
        %v2743 = vld [vmem:[%s2257 + $0x118] sm:$0x1]
        %v2744 = vld [vmem:[%s2257 + $0x140] sm:$0xfe]
        %v2745 = vld [vmem:[%s2257 + $0x148] sm:$0xfe]
        %v2746 = vld [vmem:[%s2257 + $0x150] sm:$0xfe]
        %v2747 = vld [vmem:[%s2257 + $0x158] sm:$0xfe]
        %v2748 = vld [vmem:[%s2257 + $0x160] sm:$0x1]
        %v2749 = vld [vmem:[%s2257 + $0x168] sm:$0x1]
        %v2750 = vld [vmem:[%s2257 + $0x170] sm:$0x1]
        %v2751 = vld [vmem:[%s2257 + $0x178] sm:$0x1]
        %v2752 = vld [vmem:[%s2257 + $0x1a0] sm:$0xfe]
        %v2753 = vld [vmem:[%s2257 + $0x1a8] sm:$0xfe]
        %v2754 = vld [vmem:[%s2257 + $0x1b0] sm:$0xfe]
        %v2755 = vld [vmem:[%s2257 + $0x1b8] sm:$0xfe]
        %v2756 = vld [vmem:[%s2257 + $0x1c0] sm:$0x1]
        %v2757 = vld [vmem:[%s2257 + $0x1c8] sm:$0x1]
        %v2758 = vld [vmem:[%s2257 + $0x1d0] sm:$0x1]
        %v2759 = vld [vmem:[%s2257 + $0x1d8] sm:$0x1]
        %v2760 = vld [vmem:[%s2257 + $0x200] sm:$0xfe]
        %v2761 = vld [vmem:[%s2257 + $0x208] sm:$0xfe]
        %v2762 = vld [vmem:[%s2257 + $0x210] sm:$0xfe]
        %v2763 = vld [vmem:[%s2257 + $0x218] sm:$0xfe]
        %v2764 = vld [vmem:[%s2257 + $0x220] sm:$0x1]
        %v2765 = vld [vmem:[%s2257 + $0x228] sm:$0x1]
        %v2766 = vld [vmem:[%s2257 + $0x230] sm:$0x1]
        %v2767 = vld [vmem:[%s2257 + $0x238] sm:$0x1]
        %v2768 = vld [vmem:[%s2257 + $0x260] sm:$0xfe]
        %v2769 = vld [vmem:[%s2257 + $0x268] sm:$0xfe]
        %v2770 = vld [vmem:[%s2257 + $0x270] sm:$0xfe]
        %v2771 = vld [vmem:[%s2257 + $0x278] sm:$0xfe]
        %v2772 = vld [vmem:[%s2257 + $0x280] sm:$0x1]
        %v2773 = vld [vmem:[%s2257 + $0x288] sm:$0x1]
        %v2774 = vld [vmem:[%s2257 + $0x290] sm:$0x1]
        %v2775 = vld [vmem:[%s2257 + $0x298] sm:$0x1]
        %v2776 = vld [vmem:[%s2257 + $0x2c0] sm:$0xfe]
        %v2777 = vld [vmem:[%s2257 + $0x2c8] sm:$0xfe]
        %v2778 = vld [vmem:[%s2257 + $0x2d0] sm:$0xfe]
        %v2779 = vld [vmem:[%s2257 + $0x2d8] sm:$0xfe]
        %v2780 = vld [vmem:[%s2257 + $0x2e0] sm:$0x1]
        %v2781 = vld [vmem:[%s2257 + $0x2e8] sm:$0x1]
        %v2782 = vld [vmem:[%s2257 + $0x2f0] sm:$0x1]
        %v2783 = vld [vmem:[%s2257 + $0x2f8] sm:$0x1]
        %v2848 = vrot.slane %v2720, 1
        %v2849 = vrot.slane %v2724, 1
        %v2850 = vsel %vm1236, %v2848, %v2849
        %v2851 = vrot.slane %v2721, 1
        %v2852 = vrot.slane %v2725, 1
        %v2853 = vsel %vm1236, %v2851, %v2852
        %v2854 = vrot.slane %v2722, 1
        %v2855 = vrot.slane %v2726, 1
        %v2856 = vsel %vm1236, %v2854, %v2855
        %v2857 = vrot.slane %v2723, 1
        %v2858 = vrot.slane %v2727, 1
        %v2859 = vsel %vm1236, %v2857, %v2858
        %v2860 = vrot.slane %v2728, 1
        %v2861 = vrot.slane %v2732, 1
        %v2862 = vsel %vm1236, %v2860, %v2861
        %v2863 = vrot.slane %v2729, 1
        %v2864 = vrot.slane %v2733, 1
        %v2865 = vsel %vm1236, %v2863, %v2864
        %v2866 = vrot.slane %v2730, 1
        %v2867 = vrot.slane %v2734, 1
        %v2868 = vsel %vm1236, %v2866, %v2867
        %v2869 = vrot.slane %v2731, 1
        %v2870 = vrot.slane %v2735, 1
        %v2871 = vsel %vm1236, %v2869, %v2870
        %v2872 = vrot.slane %v2736, 1
        %v2873 = vrot.slane %v2740, 1
        %v2874 = vsel %vm1236, %v2872, %v2873
        %v2875 = vrot.slane %v2737, 1
        %v2876 = vrot.slane %v2741, 1
        %v2877 = vsel %vm1236, %v2875, %v2876
        %v2878 = vrot.slane %v2738, 1
        %v2879 = vrot.slane %v2742, 1
        %v2880 = vsel %vm1236, %v2878, %v2879
        %v2881 = vrot.slane %v2739, 1
        %v2882 = vrot.slane %v2743, 1
        %v2883 = vsel %vm1236, %v2881, %v2882
        %v2884 = vrot.slane %v2744, 1
        %v2885 = vrot.slane %v2748, 1
        %v2886 = vsel %vm1236, %v2884, %v2885
        %v2887 = vrot.slane %v2745, 1
        %v2888 = vrot.slane %v2749, 1
        %v2889 = vsel %vm1236, %v2887, %v2888
        %v2890 = vrot.slane %v2746, 1
        %v2891 = vrot.slane %v2750, 1
        %v2892 = vsel %vm1236, %v2890, %v2891
        %v2893 = vrot.slane %v2747, 1
        %v2894 = vrot.slane %v2751, 1
        %v2895 = vsel %vm1236, %v2893, %v2894
        %v2896 = vrot.slane %v2752, 1
        %v2897 = vrot.slane %v2756, 1
        %v2898 = vsel %vm1236, %v2896, %v2897
        %v2899 = vrot.slane %v2753, 1
        %v2900 = vrot.slane %v2757, 1
        %v2901 = vsel %vm1236, %v2899, %v2900
        %v2902 = vrot.slane %v2754, 1
        %v2903 = vrot.slane %v2758, 1
        %v2904 = vsel %vm1236, %v2902, %v2903
        %v2905 = vrot.slane %v2755, 1
        %v2906 = vrot.slane %v2759, 1
        %v2907 = vsel %vm1236, %v2905, %v2906
        %v2908 = vrot.slane %v2760, 1
        %v2909 = vrot.slane %v2764, 1
        %v2910 = vsel %vm1236, %v2908, %v2909
        %v2911 = vrot.slane %v2761, 1
        %v2912 = vrot.slane %v2765, 1
        %v2913 = vsel %vm1236, %v2911, %v2912
        %v2914 = vrot.slane %v2762, 1
        %v2915 = vrot.slane %v2766, 1
        %v2916 = vsel %vm1236, %v2914, %v2915
        %v2917 = vrot.slane %v2763, 1
        %v2918 = vrot.slane %v2767, 1
        %v2919 = vsel %vm1236, %v2917, %v2918
        %v2920 = vrot.slane %v2768, 1
        %v2921 = vrot.slane %v2772, 1
        %v2922 = vsel %vm1236, %v2920, %v2921
        %v2923 = vrot.slane %v2769, 1
        %v2924 = vrot.slane %v2773, 1
        %v2925 = vsel %vm1236, %v2923, %v2924
        %v2926 = vrot.slane %v2770, 1
        %v2927 = vrot.slane %v2774, 1
        %v2928 = vsel %vm1236, %v2926, %v2927
        %v2929 = vrot.slane %v2771, 1
        %v2930 = vrot.slane %v2775, 1
        %v2931 = vsel %vm1236, %v2929, %v2930
        %v2932 = vrot.slane %v2776, 1
        %v2933 = vrot.slane %v2780, 1
        %v2934 = vsel %vm1236, %v2932, %v2933
        %v2935 = vrot.slane %v2777, 1
        %v2936 = vrot.slane %v2781, 1
        %v2937 = vsel %vm1236, %v2935, %v2936
        %v2938 = vrot.slane %v2778, 1
        %v2939 = vrot.slane %v2782, 1
        %v2940 = vsel %vm1236, %v2938, %v2939
        %v2941 = vrot.slane %v2779, 1
        %v2942 = vrot.slane %v2783, 1
        %v2943 = vsel %vm1236, %v2941, %v2942
        %s2976 = scalar_lea.vmem [#allocation6], 32
        %v2977 = vld [vmem:[%s2976] sm:$0xf]
        %v2979 = vlaneseq
        %v2980 = vshrl.u32 %v2979, 7
        %v2981 = vsub.s32 0, %v2980
        %v2982 = vrot.slane %v2977, %v2981
        %v2983 = vlaneseq
        %v2984 = vshrl.u32 %v2983, 7
        %v2985 = vsub.s32 1, %v2984
        %v2986 = vrot.slane %v2977, %v2985
        %v2987 = vlaneseq
        %v2988 = vshrl.u32 %v2987, 7
        %v2989 = vsub.s32 2, %v2988
        %v2990 = vrot.slane %v2977, %v2989
        %v2991 = vlaneseq
        %v2992 = vshrl.u32 %v2991, 7
        %v2993 = vsub.s32 3, %v2992
        %v2994 = vrot.slane %v2977, %v2993
        %v2999 = vmul.f32 %v2850, %v2982
        %v3000 = vmul.f32 %v2853, %v2986
        %v3001 = vmul.f32 %v2856, %v2990
        %v3002 = vmul.f32 %v2859, %v2994
        %v3003 = vmul.f32 %v2862, %v2982
        %v3004 = vmul.f32 %v2865, %v2986
        %v3005 = vmul.f32 %v2868, %v2990
        %v3006 = vmul.f32 %v2871, %v2994
        %v3007 = vmul.f32 %v2874, %v2982
        %v3008 = vmul.f32 %v2877, %v2986
        %v3009 = vmul.f32 %v2880, %v2990
        %v3010 = vmul.f32 %v2883, %v2994
        %v3011 = vmul.f32 %v2886, %v2982
        %v3012 = vmul.f32 %v2889, %v2986
        %v3013 = vmul.f32 %v2892, %v2990
        %v3014 = vmul.f32 %v2895, %v2994
        %v3015 = vmul.f32 %v2898, %v2982
        %v3016 = vmul.f32 %v2901, %v2986
        %v3017 = vmul.f32 %v2904, %v2990
        %v3018 = vmul.f32 %v2907, %v2994
        %v3019 = vmul.f32 %v2910, %v2982
        %v3020 = vmul.f32 %v2913, %v2986
        %v3021 = vmul.f32 %v2916, %v2990
        %v3022 = vmul.f32 %v2919, %v2994
        %v3023 = vmul.f32 %v2922, %v2982
        %v3024 = vmul.f32 %v2925, %v2986
        %v3025 = vmul.f32 %v2928, %v2990
        %v3026 = vmul.f32 %v2931, %v2994
        %v3027 = vmul.f32 %v2934, %v2982
        %v3028 = vmul.f32 %v2937, %v2986
        %v3029 = vmul.f32 %v2940, %v2990
        %v3030 = vmul.f32 %v2943, %v2994
        %v3031 = vadd.f32 %v2688, %v2999
        %v3032 = vadd.f32 %v2689, %v3000
        %v3033 = vadd.f32 %v2690, %v3001
        %v3034 = vadd.f32 %v2691, %v3002
        %v3035 = vadd.f32 %v2692, %v3003
        %v3036 = vadd.f32 %v2693, %v3004
        %v3037 = vadd.f32 %v2694, %v3005
        %v3038 = vadd.f32 %v2695, %v3006
        %v3039 = vadd.f32 %v2696, %v3007
        %v3040 = vadd.f32 %v2697, %v3008
        %v3041 = vadd.f32 %v2698, %v3009
        %v3042 = vadd.f32 %v2699, %v3010
        %v3043 = vadd.f32 %v2700, %v3011
        %v3044 = vadd.f32 %v2701, %v3012
        %v3045 = vadd.f32 %v2702, %v3013
        %v3046 = vadd.f32 %v2703, %v3014
        %v3047 = vadd.f32 %v2704, %v3015
        %v3048 = vadd.f32 %v2705, %v3016
        %v3049 = vadd.f32 %v2706, %v3017
        %v3050 = vadd.f32 %v2707, %v3018
        %v3051 = vadd.f32 %v2708, %v3019
        %v3052 = vadd.f32 %v2709, %v3020
        %v3053 = vadd.f32 %v2710, %v3021
        %v3054 = vadd.f32 %v2711, %v3022
        %v3055 = vadd.f32 %v2712, %v3023
        %v3056 = vadd.f32 %v2713, %v3024
        %v3057 = vadd.f32 %v2714, %v3025
        %v3058 = vadd.f32 %v2715, %v3026
        %v3059 = vadd.f32 %v2716, %v3027
        %v3060 = vadd.f32 %v2717, %v3028
        %v3061 = vadd.f32 %v2718, %v3029
        %v3062 = vadd.f32 %v2719, %v3030
        %v3063 = vpack.c.bf16 %v3035, %v3031
        %v3064 = vpack.c.bf16 %v3036, %v3032
        %v3065 = vpack.c.bf16 %v3037, %v3033
        %v3066 = vpack.c.bf16 %v3038, %v3034
        %v3067 = vpack.c.bf16 %v3043, %v3039
        %v3068 = vpack.c.bf16 %v3044, %v3040
        %v3069 = vpack.c.bf16 %v3045, %v3041
        %v3070 = vpack.c.bf16 %v3046, %v3042
        %v3071 = vpack.c.bf16 %v3051, %v3047
        %v3072 = vpack.c.bf16 %v3052, %v3048
        %v3073 = vpack.c.bf16 %v3053, %v3049
        %v3074 = vpack.c.bf16 %v3054, %v3050
        %v3075 = vpack.c.bf16 %v3059, %v3055
        %v3076 = vpack.c.bf16 %v3060, %v3056
        %v3077 = vpack.c.bf16 %v3061, %v3057
        %v3078 = vpack.c.bf16 %v3062, %v3058
        %v3079 = vld [vmem:[#allocation8] sm:$0xff]
        %v3080 = vld [vmem:[#allocation8 + $0x8] sm:$0xff]
        %v3081 = vld [vmem:[#allocation8 + $0x10] sm:$0xff]
        %v3082 = vld [vmem:[#allocation8 + $0x18] sm:$0xff]
        %v3083 = vld [vmem:[#allocation8 + $0x20] sm:$0xff]
        %v3084 = vld [vmem:[#allocation8 + $0x28] sm:$0xff]
        %v3085 = vld [vmem:[#allocation8 + $0x30] sm:$0xff]
        %v3086 = vld [vmem:[#allocation8 + $0x38] sm:$0xff]
        %v3087 = vld [vmem:[#allocation8 + $0x40] sm:$0xff]
        %v3088 = vld [vmem:[#allocation8 + $0x48] sm:$0xff]
        %v3089 = vld [vmem:[#allocation8 + $0x50] sm:$0xff]
        %v3090 = vld [vmem:[#allocation8 + $0x58] sm:$0xff]
        %v3091 = vld [vmem:[#allocation8 + $0x60] sm:$0xff]
        %v3092 = vld [vmem:[#allocation8 + $0x68] sm:$0xff]
        %v3093 = vld [vmem:[#allocation8 + $0x70] sm:$0xff]
        %v3094 = vld [vmem:[#allocation8 + $0x78] sm:$0xff]
        %v3095 = vld [vmem:[#allocation8 + $0x80] sm:$0xff]
        %v3096 = vld [vmem:[#allocation8 + $0x88] sm:$0xff]
        %v3097 = vld [vmem:[#allocation8 + $0x90] sm:$0xff]
        %v3098 = vld [vmem:[#allocation8 + $0x98] sm:$0xff]
        %v3099 = vld [vmem:[#allocation8 + $0xa0] sm:$0xff]
        %v3100 = vld [vmem:[#allocation8 + $0xa8] sm:$0xff]
        %v3101 = vld [vmem:[#allocation8 + $0xb0] sm:$0xff]
        %v3102 = vld [vmem:[#allocation8 + $0xb8] sm:$0xff]
        %v3103 = vld [vmem:[#allocation8 + $0xc0] sm:$0xff]
        %v3104 = vld [vmem:[#allocation8 + $0xc8] sm:$0xff]
        %v3105 = vld [vmem:[#allocation8 + $0xd0] sm:$0xff]
        %v3106 = vld [vmem:[#allocation8 + $0xd8] sm:$0xff]
        %v3107 = vld [vmem:[#allocation8 + $0xe0] sm:$0xff]
        %v3108 = vld [vmem:[#allocation8 + $0xe8] sm:$0xff]
        %v3109 = vld [vmem:[#allocation8 + $0xf0] sm:$0xff]
        %v3110 = vld [vmem:[#allocation8 + $0xf8] sm:$0xff]
        %v3111 = vld [vmem:[#allocation8 + $0x100] sm:$0xff]
        %v3112 = vld [vmem:[#allocation8 + $0x108] sm:$0xff]
        %v3113 = vld [vmem:[#allocation8 + $0x110] sm:$0xff]
        %v3114 = vld [vmem:[#allocation8 + $0x118] sm:$0xff]
        %v3115 = vld [vmem:[#allocation8 + $0x120] sm:$0xff]
        %v3116 = vld [vmem:[#allocation8 + $0x128] sm:$0xff]
        %v3117 = vld [vmem:[#allocation8 + $0x130] sm:$0xff]
        %v3118 = vld [vmem:[#allocation8 + $0x138] sm:$0xff]
        %v3119 = vld [vmem:[#allocation8 + $0x140] sm:$0xff]
        %v3120 = vld [vmem:[#allocation8 + $0x148] sm:$0xff]
        %v3121 = vld [vmem:[#allocation8 + $0x150] sm:$0xff]
        %v3122 = vld [vmem:[#allocation8 + $0x158] sm:$0xff]
        %v3123 = vld [vmem:[#allocation8 + $0x160] sm:$0xff]
        %v3124 = vld [vmem:[#allocation8 + $0x168] sm:$0xff]
        %v3125 = vld [vmem:[#allocation8 + $0x170] sm:$0xff]
        %v3126 = vld [vmem:[#allocation8 + $0x178] sm:$0xff]
        %v3127 = vld [vmem:[#allocation8 + $0x180] sm:$0xff]
        %v3128 = vld [vmem:[#allocation8 + $0x188] sm:$0xff]
        %v3129 = vld [vmem:[#allocation8 + $0x190] sm:$0xff]
        %v3130 = vld [vmem:[#allocation8 + $0x198] sm:$0xff]
        %v3131 = vld [vmem:[#allocation8 + $0x1a0] sm:$0xff]
        %v3132 = vld [vmem:[#allocation8 + $0x1a8] sm:$0xff]
        %v3133 = vld [vmem:[#allocation8 + $0x1b0] sm:$0xff]
        %v3134 = vld [vmem:[#allocation8 + $0x1b8] sm:$0xff]
        %v3135 = vld [vmem:[#allocation8 + $0x1c0] sm:$0xff]
        %v3136 = vld [vmem:[#allocation8 + $0x1c8] sm:$0xff]
        %v3137 = vld [vmem:[#allocation8 + $0x1d0] sm:$0xff]
        %v3138 = vld [vmem:[#allocation8 + $0x1d8] sm:$0xff]
        %v3139 = vld [vmem:[#allocation8 + $0x1e0] sm:$0xff]
        %v3140 = vld [vmem:[#allocation8 + $0x1e8] sm:$0xff]
        %v3141 = vld [vmem:[#allocation8 + $0x1f0] sm:$0xff]
        %v3142 = vld [vmem:[#allocation8 + $0x1f8] sm:$0xff]
        %v3143 = vld [vmem:[#allocation8 + $0x200] sm:$0xff]
        %v3144 = vld [vmem:[#allocation8 + $0x208] sm:$0xff]
        %v3145 = vld [vmem:[#allocation8 + $0x210] sm:$0xff]
        %v3146 = vld [vmem:[#allocation8 + $0x218] sm:$0xff]
        %v3147 = vld [vmem:[#allocation8 + $0x220] sm:$0xff]
        %v3148 = vld [vmem:[#allocation8 + $0x228] sm:$0xff]
        %v3149 = vld [vmem:[#allocation8 + $0x230] sm:$0xff]
        %v3150 = vld [vmem:[#allocation8 + $0x238] sm:$0xff]
        %v3151 = vld [vmem:[#allocation8 + $0x240] sm:$0xff]
        %v3152 = vld [vmem:[#allocation8 + $0x248] sm:$0xff]
        %v3153 = vld [vmem:[#allocation8 + $0x250] sm:$0xff]
        %v3154 = vld [vmem:[#allocation8 + $0x258] sm:$0xff]
        %v3155 = vld [vmem:[#allocation8 + $0x260] sm:$0xff]
        %v3156 = vld [vmem:[#allocation8 + $0x268] sm:$0xff]
        %v3157 = vld [vmem:[#allocation8 + $0x270] sm:$0xff]
        %v3158 = vld [vmem:[#allocation8 + $0x278] sm:$0xff]
        %v3159 = vld [vmem:[#allocation8 + $0x280] sm:$0xff]
        %v3160 = vld [vmem:[#allocation8 + $0x288] sm:$0xff]
        %v3161 = vld [vmem:[#allocation8 + $0x290] sm:$0xff]
        %v3162 = vld [vmem:[#allocation8 + $0x298] sm:$0xff]
        %v3163 = vld [vmem:[#allocation8 + $0x2a0] sm:$0xff]
        %v3164 = vld [vmem:[#allocation8 + $0x2a8] sm:$0xff]
        %v3165 = vld [vmem:[#allocation8 + $0x2b0] sm:$0xff]
        %v3166 = vld [vmem:[#allocation8 + $0x2b8] sm:$0xff]
        %v3167 = vld [vmem:[#allocation8 + $0x2c0] sm:$0xff]
        %v3168 = vld [vmem:[#allocation8 + $0x2c8] sm:$0xff]
        %v3169 = vld [vmem:[#allocation8 + $0x2d0] sm:$0xff]
        %v3170 = vld [vmem:[#allocation8 + $0x2d8] sm:$0xff]
        %v3171 = vld [vmem:[#allocation8 + $0x2e0] sm:$0xff]
        %v3172 = vld [vmem:[#allocation8 + $0x2e8] sm:$0xff]
        %v3173 = vld [vmem:[#allocation8 + $0x2f0] sm:$0xff]
        %v3174 = vld [vmem:[#allocation8 + $0x2f8] sm:$0xff]
        %v3175 = vld [vmem:[#allocation8 + $0x300] sm:$0xff]
        %v3176 = vld [vmem:[#allocation8 + $0x308] sm:$0xff]
        %v3177 = vld [vmem:[#allocation8 + $0x310] sm:$0xff]
        %v3178 = vld [vmem:[#allocation8 + $0x318] sm:$0xff]
        %v3179 = vld [vmem:[#allocation8 + $0x320] sm:$0xff]
        %v3180 = vld [vmem:[#allocation8 + $0x328] sm:$0xff]
        %v3181 = vld [vmem:[#allocation8 + $0x330] sm:$0xff]
        %v3182 = vld [vmem:[#allocation8 + $0x338] sm:$0xff]
        %v3183 = vld [vmem:[#allocation8 + $0x340] sm:$0xff]
        %v3184 = vld [vmem:[#allocation8 + $0x348] sm:$0xff]
        %v3185 = vld [vmem:[#allocation8 + $0x350] sm:$0xff]
        %v3186 = vld [vmem:[#allocation8 + $0x358] sm:$0xff]
        %v3187 = vld [vmem:[#allocation8 + $0x360] sm:$0xff]
        %v3188 = vld [vmem:[#allocation8 + $0x368] sm:$0xff]
        %v3189 = vld [vmem:[#allocation8 + $0x370] sm:$0xff]
        %v3190 = vld [vmem:[#allocation8 + $0x378] sm:$0xff]
        %v3191 = vld [vmem:[#allocation8 + $0x380] sm:$0xff]
        %v3192 = vld [vmem:[#allocation8 + $0x388] sm:$0xff]
        %v3193 = vld [vmem:[#allocation8 + $0x390] sm:$0xff]
        %v3194 = vld [vmem:[#allocation8 + $0x398] sm:$0xff]
        %v3195 = vld [vmem:[#allocation8 + $0x3a0] sm:$0xff]
        %v3196 = vld [vmem:[#allocation8 + $0x3a8] sm:$0xff]
        %v3197 = vld [vmem:[#allocation8 + $0x3b0] sm:$0xff]
        %v3198 = vld [vmem:[#allocation8 + $0x3b8] sm:$0xff]
        %v3199 = vld [vmem:[#allocation8 + $0x3c0] sm:$0xff]
        %v3200 = vld [vmem:[#allocation8 + $0x3c8] sm:$0xff]
        %v3201 = vld [vmem:[#allocation8 + $0x3d0] sm:$0xff]
        %v3202 = vld [vmem:[#allocation8 + $0x3d8] sm:$0xff]
        %v3203 = vld [vmem:[#allocation8 + $0x3e0] sm:$0xff]
        %v3204 = vld [vmem:[#allocation8 + $0x3e8] sm:$0xff]
        %v3205 = vld [vmem:[#allocation8 + $0x3f0] sm:$0xff]
        %v3206 = vld [vmem:[#allocation8 + $0x3f8] sm:$0xff]
        %v3335 = vunpack.c.l.b16 %v3079
        %v3336 = vunpack.c.h.b16 %v3079
        %v3337 = vunpack.c.l.b16 %v3080
        %v3338 = vunpack.c.h.b16 %v3080
        %v3339 = vunpack.c.l.b16 %v3081
        %v3340 = vunpack.c.h.b16 %v3081
        %v3341 = vunpack.c.l.b16 %v3082
        %v3342 = vunpack.c.h.b16 %v3082
        %v3343 = vunpack.c.l.b16 %v3083
        %v3344 = vunpack.c.h.b16 %v3083
        %v3345 = vunpack.c.l.b16 %v3084
        %v3346 = vunpack.c.h.b16 %v3084
        %v3347 = vunpack.c.l.b16 %v3085
        %v3348 = vunpack.c.h.b16 %v3085
        %v3349 = vunpack.c.l.b16 %v3086
        %v3350 = vunpack.c.h.b16 %v3086
        %v3351 = vunpack.c.l.b16 %v3087
        %v3352 = vunpack.c.h.b16 %v3087
        %v3353 = vunpack.c.l.b16 %v3088
        %v3354 = vunpack.c.h.b16 %v3088
        %v3355 = vunpack.c.l.b16 %v3089
        %v3356 = vunpack.c.h.b16 %v3089
        %v3357 = vunpack.c.l.b16 %v3090
        %v3358 = vunpack.c.h.b16 %v3090
        %v3359 = vunpack.c.l.b16 %v3091
        %v3360 = vunpack.c.h.b16 %v3091
        %v3361 = vunpack.c.l.b16 %v3092
        %v3362 = vunpack.c.h.b16 %v3092
        %v3363 = vunpack.c.l.b16 %v3093
        %v3364 = vunpack.c.h.b16 %v3093
        %v3365 = vunpack.c.l.b16 %v3094
        %v3366 = vunpack.c.h.b16 %v3094
        %v3367 = vunpack.c.l.b16 %v3095
        %v3368 = vunpack.c.h.b16 %v3095
        %v3369 = vunpack.c.l.b16 %v3096
        %v3370 = vunpack.c.h.b16 %v3096
        %v3371 = vunpack.c.l.b16 %v3097
        %v3372 = vunpack.c.h.b16 %v3097
        %v3373 = vunpack.c.l.b16 %v3098
        %v3374 = vunpack.c.h.b16 %v3098
        %v3375 = vunpack.c.l.b16 %v3099
        %v3376 = vunpack.c.h.b16 %v3099
        %v3377 = vunpack.c.l.b16 %v3100
        %v3378 = vunpack.c.h.b16 %v3100
        %v3379 = vunpack.c.l.b16 %v3101
        %v3380 = vunpack.c.h.b16 %v3101
        %v3381 = vunpack.c.l.b16 %v3102
        %v3382 = vunpack.c.h.b16 %v3102
        %v3383 = vunpack.c.l.b16 %v3103
        %v3384 = vunpack.c.h.b16 %v3103
        %v3385 = vunpack.c.l.b16 %v3104
        %v3386 = vunpack.c.h.b16 %v3104
        %v3387 = vunpack.c.l.b16 %v3105
        %v3388 = vunpack.c.h.b16 %v3105
        %v3389 = vunpack.c.l.b16 %v3106
        %v3390 = vunpack.c.h.b16 %v3106
        %v3391 = vunpack.c.l.b16 %v3107
        %v3392 = vunpack.c.h.b16 %v3107
        %v3393 = vunpack.c.l.b16 %v3108
        %v3394 = vunpack.c.h.b16 %v3108
        %v3395 = vunpack.c.l.b16 %v3109
        %v3396 = vunpack.c.h.b16 %v3109
        %v3397 = vunpack.c.l.b16 %v3110
        %v3398 = vunpack.c.h.b16 %v3110
        %v3399 = vunpack.c.l.b16 %v3111
        %v3400 = vunpack.c.h.b16 %v3111
        %v3401 = vunpack.c.l.b16 %v3112
        %v3402 = vunpack.c.h.b16 %v3112
        %v3403 = vunpack.c.l.b16 %v3113
        %v3404 = vunpack.c.h.b16 %v3113
        %v3405 = vunpack.c.l.b16 %v3114
        %v3406 = vunpack.c.h.b16 %v3114
        %v3407 = vunpack.c.l.b16 %v3115
        %v3408 = vunpack.c.h.b16 %v3115
        %v3409 = vunpack.c.l.b16 %v3116
        %v3410 = vunpack.c.h.b16 %v3116
        %v3411 = vunpack.c.l.b16 %v3117
        %v3412 = vunpack.c.h.b16 %v3117
        %v3413 = vunpack.c.l.b16 %v3118
        %v3414 = vunpack.c.h.b16 %v3118
        %v3415 = vunpack.c.l.b16 %v3119
        %v3416 = vunpack.c.h.b16 %v3119
        %v3417 = vunpack.c.l.b16 %v3120
        %v3418 = vunpack.c.h.b16 %v3120
        %v3419 = vunpack.c.l.b16 %v3121
        %v3420 = vunpack.c.h.b16 %v3121
        %v3421 = vunpack.c.l.b16 %v3122
        %v3422 = vunpack.c.h.b16 %v3122
        %v3423 = vunpack.c.l.b16 %v3123
        %v3424 = vunpack.c.h.b16 %v3123
        %v3425 = vunpack.c.l.b16 %v3124
        %v3426 = vunpack.c.h.b16 %v3124
        %v3427 = vunpack.c.l.b16 %v3125
        %v3428 = vunpack.c.h.b16 %v3125
        %v3429 = vunpack.c.l.b16 %v3126
        %v3430 = vunpack.c.h.b16 %v3126
        %v3431 = vunpack.c.l.b16 %v3127
        %v3432 = vunpack.c.h.b16 %v3127
        %v3433 = vunpack.c.l.b16 %v3128
        %v3434 = vunpack.c.h.b16 %v3128
        %v3435 = vunpack.c.l.b16 %v3129
        %v3436 = vunpack.c.h.b16 %v3129
        %v3437 = vunpack.c.l.b16 %v3130
        %v3438 = vunpack.c.h.b16 %v3130
        %v3439 = vunpack.c.l.b16 %v3131
        %v3440 = vunpack.c.h.b16 %v3131
        %v3441 = vunpack.c.l.b16 %v3132
        %v3442 = vunpack.c.h.b16 %v3132
        %v3443 = vunpack.c.l.b16 %v3133
        %v3444 = vunpack.c.h.b16 %v3133
        %v3445 = vunpack.c.l.b16 %v3134
        %v3446 = vunpack.c.h.b16 %v3134
        %v3447 = vunpack.c.l.b16 %v3135
        %v3448 = vunpack.c.h.b16 %v3135
        %v3449 = vunpack.c.l.b16 %v3136
        %v3450 = vunpack.c.h.b16 %v3136
        %v3451 = vunpack.c.l.b16 %v3137
        %v3452 = vunpack.c.h.b16 %v3137
        %v3453 = vunpack.c.l.b16 %v3138
        %v3454 = vunpack.c.h.b16 %v3138
        %v3455 = vunpack.c.l.b16 %v3139
        %v3456 = vunpack.c.h.b16 %v3139
        %v3457 = vunpack.c.l.b16 %v3140
        %v3458 = vunpack.c.h.b16 %v3140
        %v3459 = vunpack.c.l.b16 %v3141
        %v3460 = vunpack.c.h.b16 %v3141
        %v3461 = vunpack.c.l.b16 %v3142
        %v3462 = vunpack.c.h.b16 %v3142
        %v3463 = vunpack.c.l.b16 %v3143
        %v3464 = vunpack.c.h.b16 %v3143
        %v3465 = vunpack.c.l.b16 %v3144
        %v3466 = vunpack.c.h.b16 %v3144
        %v3467 = vunpack.c.l.b16 %v3145
        %v3468 = vunpack.c.h.b16 %v3145
        %v3469 = vunpack.c.l.b16 %v3146
        %v3470 = vunpack.c.h.b16 %v3146
        %v3471 = vunpack.c.l.b16 %v3147
        %v3472 = vunpack.c.h.b16 %v3147
        %v3473 = vunpack.c.l.b16 %v3148
        %v3474 = vunpack.c.h.b16 %v3148
        %v3475 = vunpack.c.l.b16 %v3149
        %v3476 = vunpack.c.h.b16 %v3149
        %v3477 = vunpack.c.l.b16 %v3150
        %v3478 = vunpack.c.h.b16 %v3150
        %v3479 = vunpack.c.l.b16 %v3151
        %v3480 = vunpack.c.h.b16 %v3151
        %v3481 = vunpack.c.l.b16 %v3152
        %v3482 = vunpack.c.h.b16 %v3152
        %v3483 = vunpack.c.l.b16 %v3153
        %v3484 = vunpack.c.h.b16 %v3153
        %v3485 = vunpack.c.l.b16 %v3154
        %v3486 = vunpack.c.h.b16 %v3154
        %v3487 = vunpack.c.l.b16 %v3155
        %v3488 = vunpack.c.h.b16 %v3155
        %v3489 = vunpack.c.l.b16 %v3156
        %v3490 = vunpack.c.h.b16 %v3156
        %v3491 = vunpack.c.l.b16 %v3157
        %v3492 = vunpack.c.h.b16 %v3157
        %v3493 = vunpack.c.l.b16 %v3158
        %v3494 = vunpack.c.h.b16 %v3158
        %v3495 = vunpack.c.l.b16 %v3159
        %v3496 = vunpack.c.h.b16 %v3159
        %v3497 = vunpack.c.l.b16 %v3160
        %v3498 = vunpack.c.h.b16 %v3160
        %v3499 = vunpack.c.l.b16 %v3161
        %v3500 = vunpack.c.h.b16 %v3161
        %v3501 = vunpack.c.l.b16 %v3162
        %v3502 = vunpack.c.h.b16 %v3162
        %v3503 = vunpack.c.l.b16 %v3163
        %v3504 = vunpack.c.h.b16 %v3163
        %v3505 = vunpack.c.l.b16 %v3164
        %v3506 = vunpack.c.h.b16 %v3164
        %v3507 = vunpack.c.l.b16 %v3165
        %v3508 = vunpack.c.h.b16 %v3165
        %v3509 = vunpack.c.l.b16 %v3166
        %v3510 = vunpack.c.h.b16 %v3166
        %v3511 = vunpack.c.l.b16 %v3167
        %v3512 = vunpack.c.h.b16 %v3167
        %v3513 = vunpack.c.l.b16 %v3168
        %v3514 = vunpack.c.h.b16 %v3168
        %v3515 = vunpack.c.l.b16 %v3169
        %v3516 = vunpack.c.h.b16 %v3169
        %v3517 = vunpack.c.l.b16 %v3170
        %v3518 = vunpack.c.h.b16 %v3170
        %v3519 = vunpack.c.l.b16 %v3171
        %v3520 = vunpack.c.h.b16 %v3171
        %v3521 = vunpack.c.l.b16 %v3172
        %v3522 = vunpack.c.h.b16 %v3172
        %v3523 = vunpack.c.l.b16 %v3173
        %v3524 = vunpack.c.h.b16 %v3173
        %v3525 = vunpack.c.l.b16 %v3174
        %v3526 = vunpack.c.h.b16 %v3174
        %v3527 = vunpack.c.l.b16 %v3175
        %v3528 = vunpack.c.h.b16 %v3175
        %v3529 = vunpack.c.l.b16 %v3176
        %v3530 = vunpack.c.h.b16 %v3176
        %v3531 = vunpack.c.l.b16 %v3177
        %v3532 = vunpack.c.h.b16 %v3177
        %v3533 = vunpack.c.l.b16 %v3178
        %v3534 = vunpack.c.h.b16 %v3178
        %v3535 = vunpack.c.l.b16 %v3179
        %v3536 = vunpack.c.h.b16 %v3179
        %v3537 = vunpack.c.l.b16 %v3180
        %v3538 = vunpack.c.h.b16 %v3180
        %v3539 = vunpack.c.l.b16 %v3181
        %v3540 = vunpack.c.h.b16 %v3181
        %v3541 = vunpack.c.l.b16 %v3182
        %v3542 = vunpack.c.h.b16 %v3182
        %v3543 = vunpack.c.l.b16 %v3183
        %v3544 = vunpack.c.h.b16 %v3183
        %v3545 = vunpack.c.l.b16 %v3184
        %v3546 = vunpack.c.h.b16 %v3184
        %v3547 = vunpack.c.l.b16 %v3185
        %v3548 = vunpack.c.h.b16 %v3185
        %v3549 = vunpack.c.l.b16 %v3186
        %v3550 = vunpack.c.h.b16 %v3186
        %v3551 = vunpack.c.l.b16 %v3187
        %v3552 = vunpack.c.h.b16 %v3187
        %v3553 = vunpack.c.l.b16 %v3188
        %v3554 = vunpack.c.h.b16 %v3188
        %v3555 = vunpack.c.l.b16 %v3189
        %v3556 = vunpack.c.h.b16 %v3189
        %v3557 = vunpack.c.l.b16 %v3190
        %v3558 = vunpack.c.h.b16 %v3190
        %v3559 = vunpack.c.l.b16 %v3191
        %v3560 = vunpack.c.h.b16 %v3191
        %v3561 = vunpack.c.l.b16 %v3192
        %v3562 = vunpack.c.h.b16 %v3192
        %v3563 = vunpack.c.l.b16 %v3193
        %v3564 = vunpack.c.h.b16 %v3193
        %v3565 = vunpack.c.l.b16 %v3194
        %v3566 = vunpack.c.h.b16 %v3194
        %v3567 = vunpack.c.l.b16 %v3195
        %v3568 = vunpack.c.h.b16 %v3195
        %v3569 = vunpack.c.l.b16 %v3196
        %v3570 = vunpack.c.h.b16 %v3196
        %v3571 = vunpack.c.l.b16 %v3197
        %v3572 = vunpack.c.h.b16 %v3197
        %v3573 = vunpack.c.l.b16 %v3198
        %v3574 = vunpack.c.h.b16 %v3198
        %v3575 = vunpack.c.l.b16 %v3199
        %v3576 = vunpack.c.h.b16 %v3199
        %v3577 = vunpack.c.l.b16 %v3200
        %v3578 = vunpack.c.h.b16 %v3200
        %v3579 = vunpack.c.l.b16 %v3201
        %v3580 = vunpack.c.h.b16 %v3201
        %v3581 = vunpack.c.l.b16 %v3202
        %v3582 = vunpack.c.h.b16 %v3202
        %v3583 = vunpack.c.l.b16 %v3203
        %v3584 = vunpack.c.h.b16 %v3203
        %v3585 = vunpack.c.l.b16 %v3204
        %v3586 = vunpack.c.h.b16 %v3204
        %v3587 = vunpack.c.l.b16 %v3205
        %v3588 = vunpack.c.h.b16 %v3205
        %v3589 = vunpack.c.l.b16 %v3206
        %v3590 = vunpack.c.h.b16 %v3206
        %v3591 = vpack.c.b16 %v3339, %v3335
        %v3592 = vpack.c.b16 %v3340, %v3336
        %v3593 = vpack.c.b16 %v3341, %v3337
        %v3594 = vpack.c.b16 %v3342, %v3338
        %v3595 = vpack.c.b16 %v3347, %v3343
        %v3596 = vpack.c.b16 %v3348, %v3344
        %v3597 = vpack.c.b16 %v3349, %v3345
        %v3598 = vpack.c.b16 %v3350, %v3346
        %v3599 = vpack.c.b16 %v3355, %v3351
        %v3600 = vpack.c.b16 %v3356, %v3352
        %v3601 = vpack.c.b16 %v3357, %v3353
        %v3602 = vpack.c.b16 %v3358, %v3354
        %v3603 = vpack.c.b16 %v3363, %v3359
        %v3604 = vpack.c.b16 %v3364, %v3360
        %v3605 = vpack.c.b16 %v3365, %v3361
        %v3606 = vpack.c.b16 %v3366, %v3362
        %v3607 = vpack.c.b16 %v3371, %v3367
        %v3608 = vpack.c.b16 %v3372, %v3368
        %v3609 = vpack.c.b16 %v3373, %v3369
        %v3610 = vpack.c.b16 %v3374, %v3370
        %v3611 = vpack.c.b16 %v3379, %v3375
        %v3612 = vpack.c.b16 %v3380, %v3376
        %v3613 = vpack.c.b16 %v3381, %v3377
        %v3614 = vpack.c.b16 %v3382, %v3378
        %v3615 = vpack.c.b16 %v3387, %v3383
        %v3616 = vpack.c.b16 %v3388, %v3384
        %v3617 = vpack.c.b16 %v3389, %v3385
        %v3618 = vpack.c.b16 %v3390, %v3386
        %v3619 = vpack.c.b16 %v3395, %v3391
        %v3620 = vpack.c.b16 %v3396, %v3392
        %v3621 = vpack.c.b16 %v3397, %v3393
        %v3622 = vpack.c.b16 %v3398, %v3394
        %v3623 = vpack.c.b16 %v3403, %v3399
        %v3624 = vpack.c.b16 %v3404, %v3400
        %v3625 = vpack.c.b16 %v3405, %v3401
        %v3626 = vpack.c.b16 %v3406, %v3402
        %v3627 = vpack.c.b16 %v3411, %v3407
        %v3628 = vpack.c.b16 %v3412, %v3408
        %v3629 = vpack.c.b16 %v3413, %v3409
        %v3630 = vpack.c.b16 %v3414, %v3410
        %v3631 = vpack.c.b16 %v3419, %v3415
        %v3632 = vpack.c.b16 %v3420, %v3416
        %v3633 = vpack.c.b16 %v3421, %v3417
        %v3634 = vpack.c.b16 %v3422, %v3418
        %v3635 = vpack.c.b16 %v3427, %v3423
        %v3636 = vpack.c.b16 %v3428, %v3424
        %v3637 = vpack.c.b16 %v3429, %v3425
        %v3638 = vpack.c.b16 %v3430, %v3426
        %v3639 = vpack.c.b16 %v3435, %v3431
        %v3640 = vpack.c.b16 %v3436, %v3432
        %v3641 = vpack.c.b16 %v3437, %v3433
        %v3642 = vpack.c.b16 %v3438, %v3434
        %v3643 = vpack.c.b16 %v3443, %v3439
        %v3644 = vpack.c.b16 %v3444, %v3440
        %v3645 = vpack.c.b16 %v3445, %v3441
        %v3646 = vpack.c.b16 %v3446, %v3442
        %v3647 = vpack.c.b16 %v3451, %v3447
        %v3648 = vpack.c.b16 %v3452, %v3448
        %v3649 = vpack.c.b16 %v3453, %v3449
        %v3650 = vpack.c.b16 %v3454, %v3450
        %v3651 = vpack.c.b16 %v3459, %v3455
        %v3652 = vpack.c.b16 %v3460, %v3456
        %v3653 = vpack.c.b16 %v3461, %v3457
        %v3654 = vpack.c.b16 %v3462, %v3458
        %v3655 = vpack.c.b16 %v3467, %v3463
        %v3656 = vpack.c.b16 %v3468, %v3464
        %v3657 = vpack.c.b16 %v3469, %v3465
        %v3658 = vpack.c.b16 %v3470, %v3466
        %v3659 = vpack.c.b16 %v3475, %v3471
        %v3660 = vpack.c.b16 %v3476, %v3472
        %v3661 = vpack.c.b16 %v3477, %v3473
        %v3662 = vpack.c.b16 %v3478, %v3474
        %v3663 = vpack.c.b16 %v3483, %v3479
        %v3664 = vpack.c.b16 %v3484, %v3480
        %v3665 = vpack.c.b16 %v3485, %v3481
        %v3666 = vpack.c.b16 %v3486, %v3482
        %v3667 = vpack.c.b16 %v3491, %v3487
        %v3668 = vpack.c.b16 %v3492, %v3488
        %v3669 = vpack.c.b16 %v3493, %v3489
        %v3670 = vpack.c.b16 %v3494, %v3490
        %v3671 = vpack.c.b16 %v3499, %v3495
        %v3672 = vpack.c.b16 %v3500, %v3496
        %v3673 = vpack.c.b16 %v3501, %v3497
        %v3674 = vpack.c.b16 %v3502, %v3498
        %v3675 = vpack.c.b16 %v3507, %v3503
        %v3676 = vpack.c.b16 %v3508, %v3504
        %v3677 = vpack.c.b16 %v3509, %v3505
        %v3678 = vpack.c.b16 %v3510, %v3506
        %v3679 = vpack.c.b16 %v3515, %v3511
        %v3680 = vpack.c.b16 %v3516, %v3512
        %v3681 = vpack.c.b16 %v3517, %v3513
        %v3682 = vpack.c.b16 %v3518, %v3514
        %v3683 = vpack.c.b16 %v3523, %v3519
        %v3684 = vpack.c.b16 %v3524, %v3520
        %v3685 = vpack.c.b16 %v3525, %v3521
        %v3686 = vpack.c.b16 %v3526, %v3522
        %v3687 = vpack.c.b16 %v3531, %v3527
        %v3688 = vpack.c.b16 %v3532, %v3528
        %v3689 = vpack.c.b16 %v3533, %v3529
        %v3690 = vpack.c.b16 %v3534, %v3530
        %v3691 = vpack.c.b16 %v3539, %v3535
        %v3692 = vpack.c.b16 %v3540, %v3536
        %v3693 = vpack.c.b16 %v3541, %v3537
        %v3694 = vpack.c.b16 %v3542, %v3538
        %v3695 = vpack.c.b16 %v3547, %v3543
        %v3696 = vpack.c.b16 %v3548, %v3544
        %v3697 = vpack.c.b16 %v3549, %v3545
        %v3698 = vpack.c.b16 %v3550, %v3546
        %v3699 = vpack.c.b16 %v3555, %v3551
        %v3700 = vpack.c.b16 %v3556, %v3552
        %v3701 = vpack.c.b16 %v3557, %v3553
        %v3702 = vpack.c.b16 %v3558, %v3554
        %v3703 = vpack.c.b16 %v3563, %v3559
        %v3704 = vpack.c.b16 %v3564, %v3560
        %v3705 = vpack.c.b16 %v3565, %v3561
        %v3706 = vpack.c.b16 %v3566, %v3562
        %v3707 = vpack.c.b16 %v3571, %v3567
        %v3708 = vpack.c.b16 %v3572, %v3568
        %v3709 = vpack.c.b16 %v3573, %v3569
        %v3710 = vpack.c.b16 %v3574, %v3570
        %v3711 = vpack.c.b16 %v3579, %v3575
        %v3712 = vpack.c.b16 %v3580, %v3576
        %v3713 = vpack.c.b16 %v3581, %v3577
        %v3714 = vpack.c.b16 %v3582, %v3578
        %v3715 = vpack.c.b16 %v3587, %v3583
        %v3716 = vpack.c.b16 %v3588, %v3584
        %v3717 = vpack.c.b16 %v3589, %v3585
        %v3718 = vpack.c.b16 %v3590, %v3586
        %3847 = vmatprep.subr.bf16.mxu0 %v3592
        %3848 = vmatpush1.bf16.msra.mxu0 %v3591
        %3849 = vmatprep.subr.bf16.mxu0 %v3596
        %3850 = vmatpush1.bf16.msra.mxu0 %v3595
        %3851 = vmatprep.subr.bf16.mxu0 %v3600
        %3852 = vmatpush1.bf16.msra.mxu0 %v3599
        %3853 = vmatprep.subr.bf16.mxu0 %v3604
        %3854 = vmatpush1.bf16.msra.mxu0 %v3603
        %3855 = vmatprep.subr.bf16.mxu0 %v3608
        %3856 = vmatpush1.bf16.msra.mxu0 %v3607
        %3857 = vmatprep.subr.bf16.mxu0 %v3612
        %3858 = vmatpush1.bf16.msra.mxu0 %v3611
        %3859 = vmatprep.subr.bf16.mxu0 %v3616
        %3860 = vmatpush1.bf16.msra.mxu0 %v3615
        %3861 = vmatprep.subr.bf16.mxu0 %v3620
        %3862 = vmatpush1.bf16.msra.mxu0 %v3619
        %3863 = vmatprep.subr.bf16.mxu0 %v3624
        %3864 = vmatpush1.bf16.msra.mxu0 %v3623
        %3865 = vmatprep.subr.bf16.mxu0 %v3628
        %3866 = vmatpush1.bf16.msra.mxu0 %v3627
        %3867 = vmatprep.subr.bf16.mxu0 %v3632
        %3868 = vmatpush1.bf16.msra.mxu0 %v3631
        %3869 = vmatprep.subr.bf16.mxu0 %v3636
        %3870 = vmatpush1.bf16.msra.mxu0 %v3635
        %3871 = vmatprep.subr.bf16.mxu0 %v3640
        %3872 = vmatpush1.bf16.msra.mxu0 %v3639
        %3873 = vmatprep.subr.bf16.mxu0 %v3644
        %3874 = vmatpush1.bf16.msra.mxu0 %v3643
        %3875 = vmatprep.subr.bf16.mxu0 %v3648
        %3876 = vmatpush1.bf16.msra.mxu0 %v3647
        %3877 = vmatprep.subr.bf16.mxu0 %v3652
        %3878 = vmatpush1.bf16.msra.mxu0 %v3651
        %3879 = vmatprep.mubr.bf16.mxu0 %v3064
        %3880 = vmatmul.mubr.bf16.gmra.mrb[0].mxu0 %v3063
        %v3881 = vpop.f32.mrb[0].mxu0
        %v3882 = vadd.f32 0.0, %v3881
        %v3883 = vpop.f32.mrb[0].mxu0
        %v3884 = vadd.f32 0.0, %v3883
        %v3885 = vpop.f32.mrb[0].mxu0
        %v3886 = vadd.f32 0.0, %v3885
        %v3887 = vpop.f32.mrb[0].mxu0
        %v3888 = vadd.f32 0.0, %v3887
        %3889 = vmatprep.mubr.bf16.mxu0 %v3068
        %3890 = vmatmul.mubr.bf16.gmra.mrb[0].mxu0 %v3067
        %v3891 = vpop.f32.mrb[0].mxu0
        %v3892 = vadd.f32 0.0, %v3891
        %v3893 = vpop.f32.mrb[0].mxu0
        %v3894 = vadd.f32 0.0, %v3893
        %v3895 = vpop.f32.mrb[0].mxu0
        %v3896 = vadd.f32 0.0, %v3895
        %v3897 = vpop.f32.mrb[0].mxu0
        %v3898 = vadd.f32 0.0, %v3897
        %3899 = vmatprep.mubr.bf16.mxu0 %v3072
        %3900 = vmatmul.mubr.bf16.gmra.mrb[0].mxu0 %v3071
        %v3901 = vpop.f32.mrb[0].mxu0
        %v3902 = vadd.f32 0.0, %v3901
        %v3903 = vpop.f32.mrb[0].mxu0
        %v3904 = vadd.f32 0.0, %v3903
        %v3905 = vpop.f32.mrb[0].mxu0
        %v3906 = vadd.f32 0.0, %v3905
        %v3907 = vpop.f32.mrb[0].mxu0
        %v3908 = vadd.f32 0.0, %v3907
        %3909 = vmatprep.mubr.bf16.mxu0 %v3076
        %3910 = vmatmul.mubr.bf16.gmra.mrb[0].mxu0 %v3075
        %v3911 = vpop.f32.mrb[0].mxu0
        %v3912 = vadd.f32 0.0, %v3911
        %v3913 = vpop.f32.mrb[0].mxu0
        %v3914 = vadd.f32 0.0, %v3913
        %v3915 = vpop.f32.mrb[0].mxu0
        %v3916 = vadd.f32 0.0, %v3915
        %v3917 = vpop.f32.mrb[0].mxu0
        %v3918 = vadd.f32 0.0, %v3917
        %3919 = vdwg.mxu0
        %3920 = vmatprep.subr.bf16.mxu0 %v3656
        %3921 = vmatpush1.bf16.msra.mxu0 %v3655
        %3922 = vmatprep.subr.bf16.mxu0 %v3660
        %3923 = vmatpush1.bf16.msra.mxu0 %v3659
        %3924 = vmatprep.subr.bf16.mxu0 %v3664
        %3925 = vmatpush1.bf16.msra.mxu0 %v3663
        %3926 = vmatprep.subr.bf16.mxu0 %v3668
        %3927 = vmatpush1.bf16.msra.mxu0 %v3667
        %3928 = vmatprep.subr.bf16.mxu0 %v3672
        %3929 = vmatpush1.bf16.msra.mxu0 %v3671
        %3930 = vmatprep.subr.bf16.mxu0 %v3676
        %3931 = vmatpush1.bf16.msra.mxu0 %v3675
        %3932 = vmatprep.subr.bf16.mxu0 %v3680
        %3933 = vmatpush1.bf16.msra.mxu0 %v3679
        %3934 = vmatprep.subr.bf16.mxu0 %v3684
        %3935 = vmatpush1.bf16.msra.mxu0 %v3683
        %3936 = vmatprep.subr.bf16.mxu0 %v3688
        %3937 = vmatpush1.bf16.msra.mxu0 %v3687
        %3938 = vmatprep.subr.bf16.mxu0 %v3692
        %3939 = vmatpush1.bf16.msra.mxu0 %v3691
        %3940 = vmatprep.subr.bf16.mxu0 %v3696
        %3941 = vmatpush1.bf16.msra.mxu0 %v3695
        %3942 = vmatprep.subr.bf16.mxu0 %v3700
        %3943 = vmatpush1.bf16.msra.mxu0 %v3699
        %3944 = vmatprep.subr.bf16.mxu0 %v3704
        %3945 = vmatpush1.bf16.msra.mxu0 %v3703
        %3946 = vmatprep.subr.bf16.mxu0 %v3708
        %3947 = vmatpush1.bf16.msra.mxu0 %v3707
        %3948 = vmatprep.subr.bf16.mxu0 %v3712
        %3949 = vmatpush1.bf16.msra.mxu0 %v3711
        %3950 = vmatprep.subr.bf16.mxu0 %v3716
        %3951 = vmatpush1.bf16.msra.mxu0 %v3715
        %3952 = vmatprep.mubr.bf16.mxu0 %v3066
        %3953 = vmatmul.mubr.bf16.gmra.mrb[0].mxu0 %v3065
        %v3954 = vpop.f32.mrb[0].mxu0
        %v3955 = vadd.f32 %v3882, %v3954
        %v3956 = vpop.f32.mrb[0].mxu0
        %v3957 = vadd.f32 %v3884, %v3956
        %v3958 = vpop.f32.mrb[0].mxu0
        %v3959 = vadd.f32 %v3886, %v3958
        %v3960 = vpop.f32.mrb[0].mxu0
        %v3961 = vadd.f32 %v3888, %v3960
        %3962 = vmatprep.mubr.bf16.mxu0 %v3070
        %3963 = vmatmul.mubr.bf16.gmra.mrb[0].mxu0 %v3069
        %v3964 = vpop.f32.mrb[0].mxu0
        %v3965 = vadd.f32 %v3892, %v3964
        %v3966 = vpop.f32.mrb[0].mxu0
        %v3967 = vadd.f32 %v3894, %v3966
        %v3968 = vpop.f32.mrb[0].mxu0
        %v3969 = vadd.f32 %v3896, %v3968
        %v3970 = vpop.f32.mrb[0].mxu0
        %v3971 = vadd.f32 %v3898, %v3970
        %3972 = vmatprep.mubr.bf16.mxu0 %v3074
        %3973 = vmatmul.mubr.bf16.gmra.mrb[0].mxu0 %v3073
        %v3974 = vpop.f32.mrb[0].mxu0
        %v3975 = vadd.f32 %v3902, %v3974
        %v3976 = vpop.f32.mrb[0].mxu0
        %v3977 = vadd.f32 %v3904, %v3976
        %v3978 = vpop.f32.mrb[0].mxu0
        %v3979 = vadd.f32 %v3906, %v3978
        %v3980 = vpop.f32.mrb[0].mxu0
        %v3981 = vadd.f32 %v3908, %v3980
        %3982 = vmatprep.mubr.bf16.mxu0 %v3078
        %3983 = vmatmul.mubr.bf16.gmra.mrb[0].mxu0 %v3077
        %v3984 = vpop.f32.mrb[0].mxu0
        %v3985 = vadd.f32 %v3912, %v3984
        %v3986 = vpop.f32.mrb[0].mxu0
        %v3987 = vadd.f32 %v3914, %v3986
        %v3988 = vpop.f32.mrb[0].mxu0
        %v3989 = vadd.f32 %v3916, %v3988
        %v3990 = vpop.f32.mrb[0].mxu0
        %v3991 = vadd.f32 %v3918, %v3990
        %3992 = vdwg.mxu0
        %3993 = vmatprep.subr.bf16.mxu0 %v3594
        %3994 = vmatpush1.bf16.msra.mxu0 %v3593
        %3995 = vmatprep.subr.bf16.mxu0 %v3598
        %3996 = vmatpush1.bf16.msra.mxu0 %v3597
        %3997 = vmatprep.subr.bf16.mxu0 %v3602
        %3998 = vmatpush1.bf16.msra.mxu0 %v3601
        %3999 = vmatprep.subr.bf16.mxu0 %v3606
        %4000 = vmatpush1.bf16.msra.mxu0 %v3605
        %4001 = vmatprep.subr.bf16.mxu0 %v3610
        %4002 = vmatpush1.bf16.msra.mxu0 %v3609
        %4003 = vmatprep.subr.bf16.mxu0 %v3614
        %4004 = vmatpush1.bf16.msra.mxu0 %v3613
        %4005 = vmatprep.subr.bf16.mxu0 %v3618
        %4006 = vmatpush1.bf16.msra.mxu0 %v3617
        %4007 = vmatprep.subr.bf16.mxu0 %v3622
        %4008 = vmatpush1.bf16.msra.mxu0 %v3621
        %4009 = vmatprep.subr.bf16.mxu0 %v3626
        %4010 = vmatpush1.bf16.msra.mxu0 %v3625
        %4011 = vmatprep.subr.bf16.mxu0 %v3630
        %4012 = vmatpush1.bf16.msra.mxu0 %v3629
        %4013 = vmatprep.subr.bf16.mxu0 %v3634
        %4014 = vmatpush1.bf16.msra.mxu0 %v3633
        %4015 = vmatprep.subr.bf16.mxu0 %v3638
        %4016 = vmatpush1.bf16.msra.mxu0 %v3637
        %4017 = vmatprep.subr.bf16.mxu0 %v3642
        %4018 = vmatpush1.bf16.msra.mxu0 %v3641
        %4019 = vmatprep.subr.bf16.mxu0 %v3646
        %4020 = vmatpush1.bf16.msra.mxu0 %v3645
        %4021 = vmatprep.subr.bf16.mxu0 %v3650
        %4022 = vmatpush1.bf16.msra.mxu0 %v3649
        %4023 = vmatprep.subr.bf16.mxu0 %v3654
        %4024 = vmatpush1.bf16.msra.mxu0 %v3653
        %4025 = vmatprep.mubr.bf16.mxu0 %v3064
        %4026 = vmatmul.mubr.bf16.gmra.mrb[0].mxu0 %v3063
        %v4027 = vpop.f32.mrb[0].mxu0
        %v4028 = vadd.f32 0.0, %v4027
        %v4029 = vpop.f32.mrb[0].mxu0
        %v4030 = vadd.f32 0.0, %v4029
        %v4031 = vpop.f32.mrb[0].mxu0
        %v4032 = vadd.f32 0.0, %v4031
        %v4033 = vpop.f32.mrb[0].mxu0
        %v4034 = vadd.f32 0.0, %v4033
        %4035 = vmatprep.mubr.bf16.mxu0 %v3068
        %4036 = vmatmul.mubr.bf16.gmra.mrb[0].mxu0 %v3067
        %v4037 = vpop.f32.mrb[0].mxu0
        %v4038 = vadd.f32 0.0, %v4037
        %v4039 = vpop.f32.mrb[0].mxu0
        %v4040 = vadd.f32 0.0, %v4039
        %v4041 = vpop.f32.mrb[0].mxu0
        %v4042 = vadd.f32 0.0, %v4041
        %v4043 = vpop.f32.mrb[0].mxu0
        %v4044 = vadd.f32 0.0, %v4043
        %4045 = vmatprep.mubr.bf16.mxu0 %v3072
        %4046 = vmatmul.mubr.bf16.gmra.mrb[0].mxu0 %v3071
        %v4047 = vpop.f32.mrb[0].mxu0
        %v4048 = vadd.f32 0.0, %v4047
        %v4049 = vpop.f32.mrb[0].mxu0
        %v4050 = vadd.f32 0.0, %v4049
        %v4051 = vpop.f32.mrb[0].mxu0
        %v4052 = vadd.f32 0.0, %v4051
        %v4053 = vpop.f32.mrb[0].mxu0
        %v4054 = vadd.f32 0.0, %v4053
        %4055 = vmatprep.mubr.bf16.mxu0 %v3076
        %4056 = vmatmul.mubr.bf16.gmra.mrb[0].mxu0 %v3075
        %v4057 = vpop.f32.mrb[0].mxu0
        %v4058 = vadd.f32 0.0, %v4057
        %v4059 = vpop.f32.mrb[0].mxu0
        %v4060 = vadd.f32 0.0, %v4059
        %v4061 = vpop.f32.mrb[0].mxu0
        %v4062 = vadd.f32 0.0, %v4061
        %v4063 = vpop.f32.mrb[0].mxu0
        %v4064 = vadd.f32 0.0, %v4063
        %4065 = vdwg.mxu0
        %4066 = vmatprep.subr.bf16.mxu0 %v3658
        %4067 = vmatpush1.bf16.msra.mxu0 %v3657
        %4068 = vmatprep.subr.bf16.mxu0 %v3662
        %4069 = vmatpush1.bf16.msra.mxu0 %v3661
        %4070 = vmatprep.subr.bf16.mxu0 %v3666
        %4071 = vmatpush1.bf16.msra.mxu0 %v3665
        %4072 = vmatprep.subr.bf16.mxu0 %v3670
        %4073 = vmatpush1.bf16.msra.mxu0 %v3669
        %4074 = vmatprep.subr.bf16.mxu0 %v3674
        %4075 = vmatpush1.bf16.msra.mxu0 %v3673
        %4076 = vmatprep.subr.bf16.mxu0 %v3678
        %4077 = vmatpush1.bf16.msra.mxu0 %v3677
        %4078 = vmatprep.subr.bf16.mxu0 %v3682
        %4079 = vmatpush1.bf16.msra.mxu0 %v3681
        %4080 = vmatprep.subr.bf16.mxu0 %v3686
        %4081 = vmatpush1.bf16.msra.mxu0 %v3685
        %4082 = vmatprep.subr.bf16.mxu0 %v3690
        %4083 = vmatpush1.bf16.msra.mxu0 %v3689
        %4084 = vmatprep.subr.bf16.mxu0 %v3694
        %4085 = vmatpush1.bf16.msra.mxu0 %v3693
        %4086 = vmatprep.subr.bf16.mxu0 %v3698
        %4087 = vmatpush1.bf16.msra.mxu0 %v3697
        %4088 = vmatprep.subr.bf16.mxu0 %v3702
        %4089 = vmatpush1.bf16.msra.mxu0 %v3701
        %4090 = vmatprep.subr.bf16.mxu0 %v3706
        %4091 = vmatpush1.bf16.msra.mxu0 %v3705
        %4092 = vmatprep.subr.bf16.mxu0 %v3710
        %4093 = vmatpush1.bf16.msra.mxu0 %v3709
        %4094 = vmatprep.subr.bf16.mxu0 %v3714
        %4095 = vmatpush1.bf16.msra.mxu0 %v3713
        %4096 = vmatprep.subr.bf16.mxu0 %v3718
        %4097 = vmatpush1.bf16.msra.mxu0 %v3717
        %4098 = vmatprep.mubr.bf16.mxu0 %v3066
        %4099 = vmatmul.mubr.bf16.gmra.mrb[0].mxu0 %v3065
        %v4100 = vpop.f32.mrb[0].mxu0
        %v4101 = vadd.f32 %v4028, %v4100
        %v4102 = vpop.f32.mrb[0].mxu0
        %v4103 = vadd.f32 %v4030, %v4102
        %v4104 = vpop.f32.mrb[0].mxu0
        %v4105 = vadd.f32 %v4032, %v4104
        %v4106 = vpop.f32.mrb[0].mxu0
        %v4107 = vadd.f32 %v4034, %v4106
        %4108 = vmatprep.mubr.bf16.mxu0 %v3070
        %4109 = vmatmul.mubr.bf16.gmra.mrb[0].mxu0 %v3069
        %v4110 = vpop.f32.mrb[0].mxu0
        %v4111 = vadd.f32 %v4038, %v4110
        %v4112 = vpop.f32.mrb[0].mxu0
        %v4113 = vadd.f32 %v4040, %v4112
        %v4114 = vpop.f32.mrb[0].mxu0
        %v4115 = vadd.f32 %v4042, %v4114
        %v4116 = vpop.f32.mrb[0].mxu0
        %v4117 = vadd.f32 %v4044, %v4116
        %4118 = vmatprep.mubr.bf16.mxu0 %v3074
        %4119 = vmatmul.mubr.bf16.gmra.mrb[0].mxu0 %v3073
        %v4120 = vpop.f32.mrb[0].mxu0
        %v4121 = vadd.f32 %v4048, %v4120
        %v4122 = vpop.f32.mrb[0].mxu0
        %v4123 = vadd.f32 %v4050, %v4122
        %v4124 = vpop.f32.mrb[0].mxu0
        %v4125 = vadd.f32 %v4052, %v4124
        %v4126 = vpop.f32.mrb[0].mxu0
        %v4127 = vadd.f32 %v4054, %v4126
        %4128 = vmatprep.mubr.bf16.mxu0 %v3078
        %4129 = vmatmul.mubr.bf16.gmra.mrb[0].mxu0 %v3077
        %v4130 = vpop.f32.mrb[0].mxu0
        %v4131 = vadd.f32 %v4058, %v4130
        %v4132 = vpop.f32.mrb[0].mxu0
        %v4133 = vadd.f32 %v4060, %v4132
        %v4134 = vpop.f32.mrb[0].mxu0
        %v4135 = vadd.f32 %v4062, %v4134
        %v4136 = vpop.f32.mrb[0].mxu0
        %v4137 = vadd.f32 %v4064, %v4136
        %4138 = vdwg.mxu0
        %v4139 = vld [vmem:[#allocation9] sm:$0xf]
        %v4141 = vlaneseq
        %v4142 = vshrl.u32 %v4141, 7
        %v4143 = vsub.s32 0, %v4142
        %v4144 = vrot.slane %v4139, %v4143
        %v4145 = vlaneseq
        %v4146 = vshrl.u32 %v4145, 7
        %v4147 = vsub.s32 1, %v4146
        %v4148 = vrot.slane %v4139, %v4147
        %v4149 = vlaneseq
        %v4150 = vshrl.u32 %v4149, 7
        %v4151 = vsub.s32 2, %v4150
        %v4152 = vrot.slane %v4139, %v4151
        %v4153 = vlaneseq
        %v4154 = vshrl.u32 %v4153, 7
        %v4155 = vsub.s32 3, %v4154
        %v4156 = vrot.slane %v4139, %v4155
        %v4161 = vmul.f32 %v3955, %v4144
        %v4162 = vmul.f32 %v3957, %v4148
        %v4163 = vmul.f32 %v4101, %v4152
        %v4164 = vmul.f32 %v4103, %v4156
        %v4165 = vmul.f32 %v3959, %v4144
        %v4166 = vmul.f32 %v3961, %v4148
        %v4167 = vmul.f32 %v4105, %v4152
        %v4168 = vmul.f32 %v4107, %v4156
        %v4169 = vmul.f32 %v3965, %v4144
        %v4170 = vmul.f32 %v3967, %v4148
        %v4171 = vmul.f32 %v4111, %v4152
        %v4172 = vmul.f32 %v4113, %v4156
        %v4173 = vmul.f32 %v3969, %v4144
        %v4174 = vmul.f32 %v3971, %v4148
        %v4175 = vmul.f32 %v4115, %v4152
        %v4176 = vmul.f32 %v4117, %v4156
        %v4177 = vmul.f32 %v3975, %v4144
        %v4178 = vmul.f32 %v3977, %v4148
        %v4179 = vmul.f32 %v4121, %v4152
        %v4180 = vmul.f32 %v4123, %v4156
        %v4181 = vmul.f32 %v3979, %v4144
        %v4182 = vmul.f32 %v3981, %v4148
        %v4183 = vmul.f32 %v4125, %v4152
        %v4184 = vmul.f32 %v4127, %v4156
        %v4185 = vmul.f32 %v3985, %v4144
        %v4186 = vmul.f32 %v3987, %v4148
        %v4187 = vmul.f32 %v4131, %v4152
        %v4188 = vmul.f32 %v4133, %v4156
        %v4189 = vmul.f32 %v3989, %v4144
        %v4190 = vmul.f32 %v3991, %v4148
        %v4191 = vmul.f32 %v4135, %v4152
        %v4192 = vmul.f32 %v4137, %v4156
        %v4193 = vld [vmem:[#allocation11] sm:$0xf]
        %v4195 = vlaneseq
        %v4196 = vshrl.u32 %v4195, 7
        %v4197 = vsub.s32 0, %v4196
        %v4198 = vrot.slane %v4193, %v4197
        %v4199 = vlaneseq
        %v4200 = vshrl.u32 %v4199, 7
        %v4201 = vsub.s32 1, %v4200
        %v4202 = vrot.slane %v4193, %v4201
        %v4203 = vlaneseq
        %v4204 = vshrl.u32 %v4203, 7
        %v4205 = vsub.s32 2, %v4204
        %v4206 = vrot.slane %v4193, %v4205
        %v4207 = vlaneseq
        %v4208 = vshrl.u32 %v4207, 7
        %v4209 = vsub.s32 3, %v4208
        %v4210 = vrot.slane %v4193, %v4209
        %v4215 = vadd.f32 %v4161, %v4198
        %v4216 = vadd.f32 %v4162, %v4202
        %v4217 = vadd.f32 %v4163, %v4206
        %v4218 = vadd.f32 %v4164, %v4210
        %v4219 = vadd.f32 %v4165, %v4198
        %v4220 = vadd.f32 %v4166, %v4202
        %v4221 = vadd.f32 %v4167, %v4206
        %v4222 = vadd.f32 %v4168, %v4210
        %v4223 = vadd.f32 %v4169, %v4198
        %v4224 = vadd.f32 %v4170, %v4202
        %v4225 = vadd.f32 %v4171, %v4206
        %v4226 = vadd.f32 %v4172, %v4210
        %v4227 = vadd.f32 %v4173, %v4198
        %v4228 = vadd.f32 %v4174, %v4202
        %v4229 = vadd.f32 %v4175, %v4206
        %v4230 = vadd.f32 %v4176, %v4210
        %v4231 = vadd.f32 %v4177, %v4198
        %v4232 = vadd.f32 %v4178, %v4202
        %v4233 = vadd.f32 %v4179, %v4206
        %v4234 = vadd.f32 %v4180, %v4210
        %v4235 = vadd.f32 %v4181, %v4198
        %v4236 = vadd.f32 %v4182, %v4202
        %v4237 = vadd.f32 %v4183, %v4206
        %v4238 = vadd.f32 %v4184, %v4210
        %v4239 = vadd.f32 %v4185, %v4198
        %v4240 = vadd.f32 %v4186, %v4202
        %v4241 = vadd.f32 %v4187, %v4206
        %v4242 = vadd.f32 %v4188, %v4210
        %v4243 = vadd.f32 %v4189, %v4198
        %v4244 = vadd.f32 %v4190, %v4202
        %v4245 = vadd.f32 %v4191, %v4206
        %v4246 = vadd.f32 %v4192, %v4210
        %s4247 = scalar_lea.vmem [#allocation12], 4
        %v4248 = vld [vmem:[%s4247] sm:$0xf]
        %vm4249 = vcmp.ge.f32.partialorder %v4215, 0.0
        %vm4250 = vcmp.ge.f32.partialorder %v4216, 0.0
        %vm4251 = vcmp.ge.f32.partialorder %v4217, 0.0
        %vm4252 = vcmp.ge.f32.partialorder %v4218, 0.0
        %vm4253 = vcmp.ge.f32.partialorder %v4219, 0.0
        %vm4254 = vcmp.ge.f32.partialorder %v4220, 0.0
        %vm4255 = vcmp.ge.f32.partialorder %v4221, 0.0
        %vm4256 = vcmp.ge.f32.partialorder %v4222, 0.0
        %vm4257 = vcmp.ge.f32.partialorder %v4223, 0.0
        %vm4258 = vcmp.ge.f32.partialorder %v4224, 0.0
        %vm4259 = vcmp.ge.f32.partialorder %v4225, 0.0
        %vm4260 = vcmp.ge.f32.partialorder %v4226, 0.0
        %vm4261 = vcmp.ge.f32.partialorder %v4227, 0.0
        %vm4262 = vcmp.ge.f32.partialorder %v4228, 0.0
        %vm4263 = vcmp.ge.f32.partialorder %v4229, 0.0
        %vm4264 = vcmp.ge.f32.partialorder %v4230, 0.0
        %vm4265 = vcmp.ge.f32.partialorder %v4231, 0.0
        %vm4266 = vcmp.ge.f32.partialorder %v4232, 0.0
        %vm4267 = vcmp.ge.f32.partialorder %v4233, 0.0
        %vm4268 = vcmp.ge.f32.partialorder %v4234, 0.0
        %vm4269 = vcmp.ge.f32.partialorder %v4235, 0.0
        %vm4270 = vcmp.ge.f32.partialorder %v4236, 0.0
        %vm4271 = vcmp.ge.f32.partialorder %v4237, 0.0
        %vm4272 = vcmp.ge.f32.partialorder %v4238, 0.0
        %vm4273 = vcmp.ge.f32.partialorder %v4239, 0.0
        %vm4274 = vcmp.ge.f32.partialorder %v4240, 0.0
        %vm4275 = vcmp.ge.f32.partialorder %v4241, 0.0
        %vm4276 = vcmp.ge.f32.partialorder %v4242, 0.0
        %vm4277 = vcmp.ge.f32.partialorder %v4243, 0.0
        %vm4278 = vcmp.ge.f32.partialorder %v4244, 0.0
        %vm4279 = vcmp.ge.f32.partialorder %v4245, 0.0
        %vm4280 = vcmp.ge.f32.partialorder %v4246, 0.0
        %v4282 = vlaneseq
        %v4283 = vshrl.u32 %v4282, 7
        %v4284 = vsub.s32 0, %v4283
        %v4285 = vrot.slane %v4248, %v4284
        %v4286 = vlaneseq
        %v4287 = vshrl.u32 %v4286, 7
        %v4288 = vsub.s32 1, %v4287
        %v4289 = vrot.slane %v4248, %v4288
        %v4290 = vlaneseq
        %v4291 = vshrl.u32 %v4290, 7
        %v4292 = vsub.s32 2, %v4291
        %v4293 = vrot.slane %v4248, %v4292
        %v4294 = vlaneseq
        %v4295 = vshrl.u32 %v4294, 7
        %v4296 = vsub.s32 3, %v4295
        %v4297 = vrot.slane %v4248, %v4296
        %v4302 = vmul.f32 %v4215, %v4285
        %v4303 = vmul.f32 %v4216, %v4289
        %v4304 = vmul.f32 %v4217, %v4293
        %v4305 = vmul.f32 %v4218, %v4297
        %v4306 = vmul.f32 %v4219, %v4285
        %v4307 = vmul.f32 %v4220, %v4289
        %v4308 = vmul.f32 %v4221, %v4293
        %v4309 = vmul.f32 %v4222, %v4297
        %v4310 = vmul.f32 %v4223, %v4285
        %v4311 = vmul.f32 %v4224, %v4289
        %v4312 = vmul.f32 %v4225, %v4293
        %v4313 = vmul.f32 %v4226, %v4297
        %v4314 = vmul.f32 %v4227, %v4285
        %v4315 = vmul.f32 %v4228, %v4289
        %v4316 = vmul.f32 %v4229, %v4293
        %v4317 = vmul.f32 %v4230, %v4297
        %v4318 = vmul.f32 %v4231, %v4285
        %v4319 = vmul.f32 %v4232, %v4289
        %v4320 = vmul.f32 %v4233, %v4293
        %v4321 = vmul.f32 %v4234, %v4297
        %v4322 = vmul.f32 %v4235, %v4285
        %v4323 = vmul.f32 %v4236, %v4289
        %v4324 = vmul.f32 %v4237, %v4293
        %v4325 = vmul.f32 %v4238, %v4297
        %v4326 = vmul.f32 %v4239, %v4285
        %v4327 = vmul.f32 %v4240, %v4289
        %v4328 = vmul.f32 %v4241, %v4293
        %v4329 = vmul.f32 %v4242, %v4297
        %v4330 = vmul.f32 %v4243, %v4285
        %v4331 = vmul.f32 %v4244, %v4289
        %v4332 = vmul.f32 %v4245, %v4293
        %v4333 = vmul.f32 %v4246, %v4297
        %v4334 = vsel %vm4249, %v4215, %v4302
        %v4335 = vsel %vm4250, %v4216, %v4303
        %v4336 = vsel %vm4251, %v4217, %v4304
        %v4337 = vsel %vm4252, %v4218, %v4305
        %v4338 = vsel %vm4253, %v4219, %v4306
        %v4339 = vsel %vm4254, %v4220, %v4307
        %v4340 = vsel %vm4255, %v4221, %v4308
        %v4341 = vsel %vm4256, %v4222, %v4309
        %v4342 = vsel %vm4257, %v4223, %v4310
        %v4343 = vsel %vm4258, %v4224, %v4311
        %v4344 = vsel %vm4259, %v4225, %v4312
        %v4345 = vsel %vm4260, %v4226, %v4313
        %v4346 = vsel %vm4261, %v4227, %v4314
        %v4347 = vsel %vm4262, %v4228, %v4315
        %v4348 = vsel %vm4263, %v4229, %v4316
        %v4349 = vsel %vm4264, %v4230, %v4317
        %v4350 = vsel %vm4265, %v4231, %v4318
        %v4351 = vsel %vm4266, %v4232, %v4319
        %v4352 = vsel %vm4267, %v4233, %v4320
        %v4353 = vsel %vm4268, %v4234, %v4321
        %v4354 = vsel %vm4269, %v4235, %v4322
        %v4355 = vsel %vm4270, %v4236, %v4323
        %v4356 = vsel %vm4271, %v4237, %v4324
        %v4357 = vsel %vm4272, %v4238, %v4325
        %v4358 = vsel %vm4273, %v4239, %v4326
        %v4359 = vsel %vm4274, %v4240, %v4327
        %v4360 = vsel %vm4275, %v4241, %v4328
        %v4361 = vsel %vm4276, %v4242, %v4329
        %v4362 = vsel %vm4277, %v4243, %v4330
        %v4363 = vsel %vm4278, %v4244, %v4331
        %v4364 = vsel %vm4279, %v4245, %v4332
        %v4365 = vsel %vm4280, %v4246, %v4333
        %4366 = vst [vmem:[%s613 + $0x20] sm:$0xff] %v4334
        %4367 = vst [vmem:[%s613 + $0x28] sm:$0xff] %v4335
        %4368 = vst [vmem:[%s613 + $0x30] sm:$0xff] %v4336
        %4369 = vst [vmem:[%s613 + $0x38] sm:$0xff] %v4337
        %4370 = vst [vmem:[%s613 + $0x80] sm:$0xff] %v4338
        %4371 = vst [vmem:[%s613 + $0x88] sm:$0xff] %v4339
        %4372 = vst [vmem:[%s613 + $0x90] sm:$0xff] %v4340
        %4373 = vst [vmem:[%s613 + $0x98] sm:$0xff] %v4341
        %4374 = vst [vmem:[%s613 + $0xe0] sm:$0xff] %v4342
        %4375 = vst [vmem:[%s613 + $0xe8] sm:$0xff] %v4343
        %4376 = vst [vmem:[%s613 + $0xf0] sm:$0xff] %v4344
        %4377 = vst [vmem:[%s613 + $0xf8] sm:$0xff] %v4345
        %4378 = vst [vmem:[%s613 + $0x140] sm:$0xff] %v4346
        %4379 = vst [vmem:[%s613 + $0x148] sm:$0xff] %v4347
        %4380 = vst [vmem:[%s613 + $0x150] sm:$0xff] %v4348
        %4381 = vst [vmem:[%s613 + $0x158] sm:$0xff] %v4349
        %4382 = vst [vmem:[%s613 + $0x1a0] sm:$0xff] %v4350
        %4383 = vst [vmem:[%s613 + $0x1a8] sm:$0xff] %v4351
        %4384 = vst [vmem:[%s613 + $0x1b0] sm:$0xff] %v4352
        %4385 = vst [vmem:[%s613 + $0x1b8] sm:$0xff] %v4353
        %4386 = vst [vmem:[%s613 + $0x200] sm:$0xff] %v4354
        %4387 = vst [vmem:[%s613 + $0x208] sm:$0xff] %v4355
        %4388 = vst [vmem:[%s613 + $0x210] sm:$0xff] %v4356
        %4389 = vst [vmem:[%s613 + $0x218] sm:$0xff] %v4357
        %4390 = vst [vmem:[%s613 + $0x260] sm:$0xff] %v4358
        %4391 = vst [vmem:[%s613 + $0x268] sm:$0xff] %v4359
        %4392 = vst [vmem:[%s613 + $0x270] sm:$0xff] %v4360
        %4393 = vst [vmem:[%s613 + $0x278] sm:$0xff] %v4361
        %4394 = vst [vmem:[%s613 + $0x2c0] sm:$0xff] %v4362
        %4395 = vst [vmem:[%s613 + $0x2c8] sm:$0xff] %v4363
        %4396 = vst [vmem:[%s613 + $0x2d0] sm:$0xff] %v4364
        %4397 = vst [vmem:[%s613 + $0x2d8] sm:$0xff] %v4365
        %v4398 = vld [vmem:[#allocation2] sm:$0x80]
        %v4399 = vld [vmem:[#allocation2 + $0x8] sm:$0x80]
        %v4400 = vld [vmem:[#allocation2 + $0x10] sm:$0x80]
        %v4401 = vld [vmem:[#allocation2 + $0x18] sm:$0x80]
        %v4402 = vld [vmem:[#allocation2 + $0x20] sm:$0x7f]
        %v4403 = vld [vmem:[#allocation2 + $0x28] sm:$0x7f]
        %v4404 = vld [vmem:[#allocation2 + $0x30] sm:$0x7f]
        %v4405 = vld [vmem:[#allocation2 + $0x38] sm:$0x7f]
        %v4406 = vld [vmem:[#allocation2 + $0x60] sm:$0x80]
        %v4407 = vld [vmem:[#allocation2 + $0x68] sm:$0x80]
        %v4408 = vld [vmem:[#allocation2 + $0x70] sm:$0x80]
        %v4409 = vld [vmem:[#allocation2 + $0x78] sm:$0x80]
        %v4410 = vld [vmem:[#allocation2 + $0x80] sm:$0x7f]
        %v4411 = vld [vmem:[#allocation2 + $0x88] sm:$0x7f]
        %v4412 = vld [vmem:[#allocation2 + $0x90] sm:$0x7f]
        %v4413 = vld [vmem:[#allocation2 + $0x98] sm:$0x7f]
        %v4414 = vld [vmem:[#allocation2 + $0xc0] sm:$0x80]
        %v4415 = vld [vmem:[#allocation2 + $0xc8] sm:$0x80]
        %v4416 = vld [vmem:[#allocation2 + $0xd0] sm:$0x80]
        %v4417 = vld [vmem:[#allocation2 + $0xd8] sm:$0x80]
        %v4418 = vld [vmem:[#allocation2 + $0xe0] sm:$0x7f]
        %v4419 = vld [vmem:[#allocation2 + $0xe8] sm:$0x7f]
        %v4420 = vld [vmem:[#allocation2 + $0xf0] sm:$0x7f]
        %v4421 = vld [vmem:[#allocation2 + $0xf8] sm:$0x7f]
        %v4422 = vld [vmem:[#allocation2 + $0x120] sm:$0x80]
        %v4423 = vld [vmem:[#allocation2 + $0x128] sm:$0x80]
        %v4424 = vld [vmem:[#allocation2 + $0x130] sm:$0x80]
        %v4425 = vld [vmem:[#allocation2 + $0x138] sm:$0x80]
        %v4426 = vld [vmem:[#allocation2 + $0x140] sm:$0x7f]
        %v4427 = vld [vmem:[#allocation2 + $0x148] sm:$0x7f]
        %v4428 = vld [vmem:[#allocation2 + $0x150] sm:$0x7f]
        %v4429 = vld [vmem:[#allocation2 + $0x158] sm:$0x7f]
        %v4430 = vld [vmem:[#allocation2 + $0x180] sm:$0x80]
        %v4431 = vld [vmem:[#allocation2 + $0x188] sm:$0x80]
        %v4432 = vld [vmem:[#allocation2 + $0x190] sm:$0x80]
        %v4433 = vld [vmem:[#allocation2 + $0x198] sm:$0x80]
        %v4434 = vld [vmem:[#allocation2 + $0x1a0] sm:$0x7f]
        %v4435 = vld [vmem:[#allocation2 + $0x1a8] sm:$0x7f]
        %v4436 = vld [vmem:[#allocation2 + $0x1b0] sm:$0x7f]
        %v4437 = vld [vmem:[#allocation2 + $0x1b8] sm:$0x7f]
        %v4438 = vld [vmem:[#allocation2 + $0x1e0] sm:$0x80]
        %v4439 = vld [vmem:[#allocation2 + $0x1e8] sm:$0x80]
        %v4440 = vld [vmem:[#allocation2 + $0x1f0] sm:$0x80]
        %v4441 = vld [vmem:[#allocation2 + $0x1f8] sm:$0x80]
        %v4442 = vld [vmem:[#allocation2 + $0x200] sm:$0x7f]
        %v4443 = vld [vmem:[#allocation2 + $0x208] sm:$0x7f]
        %v4444 = vld [vmem:[#allocation2 + $0x210] sm:$0x7f]
        %v4445 = vld [vmem:[#allocation2 + $0x218] sm:$0x7f]
        %v4446 = vld [vmem:[#allocation2 + $0x240] sm:$0x80]
        %v4447 = vld [vmem:[#allocation2 + $0x248] sm:$0x80]
        %v4448 = vld [vmem:[#allocation2 + $0x250] sm:$0x80]
        %v4449 = vld [vmem:[#allocation2 + $0x258] sm:$0x80]
        %v4450 = vld [vmem:[#allocation2 + $0x260] sm:$0x7f]
        %v4451 = vld [vmem:[#allocation2 + $0x268] sm:$0x7f]
        %v4452 = vld [vmem:[#allocation2 + $0x270] sm:$0x7f]
        %v4453 = vld [vmem:[#allocation2 + $0x278] sm:$0x7f]
        %v4454 = vld [vmem:[#allocation2 + $0x2a0] sm:$0x80]
        %v4455 = vld [vmem:[#allocation2 + $0x2a8] sm:$0x80]
        %v4456 = vld [vmem:[#allocation2 + $0x2b0] sm:$0x80]
        %v4457 = vld [vmem:[#allocation2 + $0x2b8] sm:$0x80]
        %v4458 = vld [vmem:[#allocation2 + $0x2c0] sm:$0x7f]
        %v4459 = vld [vmem:[#allocation2 + $0x2c8] sm:$0x7f]
        %v4460 = vld [vmem:[#allocation2 + $0x2d0] sm:$0x7f]
        %v4461 = vld [vmem:[#allocation2 + $0x2d8] sm:$0x7f]
        %v4526 = vrot.slane %v4398, 7
        %v4527 = vrot.slane %v4402, 7
        %v4528 = vsel %vm774, %v4526, %v4527
        %v4529 = vrot.slane %v4399, 7
        %v4530 = vrot.slane %v4403, 7
        %v4531 = vsel %vm774, %v4529, %v4530
        %v4532 = vrot.slane %v4400, 7
        %v4533 = vrot.slane %v4404, 7
        %v4534 = vsel %vm774, %v4532, %v4533
        %v4535 = vrot.slane %v4401, 7
        %v4536 = vrot.slane %v4405, 7
        %v4537 = vsel %vm774, %v4535, %v4536
        %v4538 = vrot.slane %v4406, 7
        %v4539 = vrot.slane %v4410, 7
        %v4540 = vsel %vm774, %v4538, %v4539
        %v4541 = vrot.slane %v4407, 7
        %v4542 = vrot.slane %v4411, 7
        %v4543 = vsel %vm774, %v4541, %v4542
        %v4544 = vrot.slane %v4408, 7
        %v4545 = vrot.slane %v4412, 7
        %v4546 = vsel %vm774, %v4544, %v4545
        %v4547 = vrot.slane %v4409, 7
        %v4548 = vrot.slane %v4413, 7
        %v4549 = vsel %vm774, %v4547, %v4548
        %v4550 = vrot.slane %v4414, 7
        %v4551 = vrot.slane %v4418, 7
        %v4552 = vsel %vm774, %v4550, %v4551
        %v4553 = vrot.slane %v4415, 7
        %v4554 = vrot.slane %v4419, 7
        %v4555 = vsel %vm774, %v4553, %v4554
        %v4556 = vrot.slane %v4416, 7
        %v4557 = vrot.slane %v4420, 7
        %v4558 = vsel %vm774, %v4556, %v4557
        %v4559 = vrot.slane %v4417, 7
        %v4560 = vrot.slane %v4421, 7
        %v4561 = vsel %vm774, %v4559, %v4560
        %v4562 = vrot.slane %v4422, 7
        %v4563 = vrot.slane %v4426, 7
        %v4564 = vsel %vm774, %v4562, %v4563
        %v4565 = vrot.slane %v4423, 7
        %v4566 = vrot.slane %v4427, 7
        %v4567 = vsel %vm774, %v4565, %v4566
        %v4568 = vrot.slane %v4424, 7
        %v4569 = vrot.slane %v4428, 7
        %v4570 = vsel %vm774, %v4568, %v4569
        %v4571 = vrot.slane %v4425, 7
        %v4572 = vrot.slane %v4429, 7
        %v4573 = vsel %vm774, %v4571, %v4572
        %v4574 = vrot.slane %v4430, 7
        %v4575 = vrot.slane %v4434, 7
        %v4576 = vsel %vm774, %v4574, %v4575
        %v4577 = vrot.slane %v4431, 7
        %v4578 = vrot.slane %v4435, 7
        %v4579 = vsel %vm774, %v4577, %v4578
        %v4580 = vrot.slane %v4432, 7
        %v4581 = vrot.slane %v4436, 7
        %v4582 = vsel %vm774, %v4580, %v4581
        %v4583 = vrot.slane %v4433, 7
        %v4584 = vrot.slane %v4437, 7
        %v4585 = vsel %vm774, %v4583, %v4584
        %v4586 = vrot.slane %v4438, 7
        %v4587 = vrot.slane %v4442, 7
        %v4588 = vsel %vm774, %v4586, %v4587
        %v4589 = vrot.slane %v4439, 7
        %v4590 = vrot.slane %v4443, 7
        %v4591 = vsel %vm774, %v4589, %v4590
        %v4592 = vrot.slane %v4440, 7
        %v4593 = vrot.slane %v4444, 7
        %v4594 = vsel %vm774, %v4592, %v4593
        %v4595 = vrot.slane %v4441, 7
        %v4596 = vrot.slane %v4445, 7
        %v4597 = vsel %vm774, %v4595, %v4596
        %v4598 = vrot.slane %v4446, 7
        %v4599 = vrot.slane %v4450, 7
        %v4600 = vsel %vm774, %v4598, %v4599
        %v4601 = vrot.slane %v4447, 7
        %v4602 = vrot.slane %v4451, 7
        %v4603 = vsel %vm774, %v4601, %v4602
        %v4604 = vrot.slane %v4448, 7
        %v4605 = vrot.slane %v4452, 7
        %v4606 = vsel %vm774, %v4604, %v4605
        %v4607 = vrot.slane %v4449, 7
        %v4608 = vrot.slane %v4453, 7
        %v4609 = vsel %vm774, %v4607, %v4608
        %v4610 = vrot.slane %v4454, 7
        %v4611 = vrot.slane %v4458, 7
        %v4612 = vsel %vm774, %v4610, %v4611
        %v4613 = vrot.slane %v4455, 7
        %v4614 = vrot.slane %v4459, 7
        %v4615 = vsel %vm774, %v4613, %v4614
        %v4616 = vrot.slane %v4456, 7
        %v4617 = vrot.slane %v4460, 7
        %v4618 = vsel %vm774, %v4616, %v4617
        %v4619 = vrot.slane %v4457, 7
        %v4620 = vrot.slane %v4461, 7
        %v4621 = vsel %vm774, %v4619, %v4620
        %s4654 = scalar_lea.vmem [#allocation6], 36
        %v4655 = vld [vmem:[%s4654] sm:$0xf]
        %v4657 = vlaneseq
        %v4658 = vshrl.u32 %v4657, 7
        %v4659 = vsub.s32 0, %v4658
        %v4660 = vrot.slane %v4655, %v4659
        %v4661 = vlaneseq
        %v4662 = vshrl.u32 %v4661, 7
        %v4663 = vsub.s32 1, %v4662
        %v4664 = vrot.slane %v4655, %v4663
        %v4665 = vlaneseq
        %v4666 = vshrl.u32 %v4665, 7
        %v4667 = vsub.s32 2, %v4666
        %v4668 = vrot.slane %v4655, %v4667
        %v4669 = vlaneseq
        %v4670 = vshrl.u32 %v4669, 7
        %v4671 = vsub.s32 3, %v4670
        %v4672 = vrot.slane %v4655, %v4671
        %v4677 = vmul.f32 %v4528, %v4660
        %v4678 = vmul.f32 %v4531, %v4664
        %v4679 = vmul.f32 %v4534, %v4668
        %v4680 = vmul.f32 %v4537, %v4672
        %v4681 = vmul.f32 %v4540, %v4660
        %v4682 = vmul.f32 %v4543, %v4664
        %v4683 = vmul.f32 %v4546, %v4668
        %v4684 = vmul.f32 %v4549, %v4672
        %v4685 = vmul.f32 %v4552, %v4660
        %v4686 = vmul.f32 %v4555, %v4664
        %v4687 = vmul.f32 %v4558, %v4668
        %v4688 = vmul.f32 %v4561, %v4672
        %v4689 = vmul.f32 %v4564, %v4660
        %v4690 = vmul.f32 %v4567, %v4664
        %v4691 = vmul.f32 %v4570, %v4668
        %v4692 = vmul.f32 %v4573, %v4672
        %v4693 = vmul.f32 %v4576, %v4660
        %v4694 = vmul.f32 %v4579, %v4664
        %v4695 = vmul.f32 %v4582, %v4668
        %v4696 = vmul.f32 %v4585, %v4672
        %v4697 = vmul.f32 %v4588, %v4660
        %v4698 = vmul.f32 %v4591, %v4664
        %v4699 = vmul.f32 %v4594, %v4668
        %v4700 = vmul.f32 %v4597, %v4672
        %v4701 = vmul.f32 %v4600, %v4660
        %v4702 = vmul.f32 %v4603, %v4664
        %v4703 = vmul.f32 %v4606, %v4668
        %v4704 = vmul.f32 %v4609, %v4672
        %v4705 = vmul.f32 %v4612, %v4660
        %v4706 = vmul.f32 %v4615, %v4664
        %v4707 = vmul.f32 %v4618, %v4668
        %v4708 = vmul.f32 %v4621, %v4672
        %v4709 = vadd.f32 %v4677, 0.0
        %v4710 = vadd.f32 %v4678, 0.0
        %v4711 = vadd.f32 %v4679, 0.0
        %v4712 = vadd.f32 %v4680, 0.0
        %v4713 = vadd.f32 %v4681, 0.0
        %v4714 = vadd.f32 %v4682, 0.0
        %v4715 = vadd.f32 %v4683, 0.0
        %v4716 = vadd.f32 %v4684, 0.0
        %v4717 = vadd.f32 %v4685, 0.0
        %v4718 = vadd.f32 %v4686, 0.0
        %v4719 = vadd.f32 %v4687, 0.0
        %v4720 = vadd.f32 %v4688, 0.0
        %v4721 = vadd.f32 %v4689, 0.0
        %v4722 = vadd.f32 %v4690, 0.0
        %v4723 = vadd.f32 %v4691, 0.0
        %v4724 = vadd.f32 %v4692, 0.0
        %v4725 = vadd.f32 %v4693, 0.0
        %v4726 = vadd.f32 %v4694, 0.0
        %v4727 = vadd.f32 %v4695, 0.0
        %v4728 = vadd.f32 %v4696, 0.0
        %v4729 = vadd.f32 %v4697, 0.0
        %v4730 = vadd.f32 %v4698, 0.0
        %v4731 = vadd.f32 %v4699, 0.0
        %v4732 = vadd.f32 %v4700, 0.0
        %v4733 = vadd.f32 %v4701, 0.0
        %v4734 = vadd.f32 %v4702, 0.0
        %v4735 = vadd.f32 %v4703, 0.0
        %v4736 = vadd.f32 %v4704, 0.0
        %v4737 = vadd.f32 %v4705, 0.0
        %v4738 = vadd.f32 %v4706, 0.0
        %v4739 = vadd.f32 %v4707, 0.0
        %v4740 = vadd.f32 %v4708, 0.0
        %v4741 = vld [vmem:[#allocation2 + $0x20] sm:$0xff]
        %v4742 = vld [vmem:[#allocation2 + $0x28] sm:$0xff]
        %v4743 = vld [vmem:[#allocation2 + $0x30] sm:$0xff]
        %v4744 = vld [vmem:[#allocation2 + $0x38] sm:$0xff]
        %v4745 = vld [vmem:[#allocation2 + $0x80] sm:$0xff]
        %v4746 = vld [vmem:[#allocation2 + $0x88] sm:$0xff]
        %v4747 = vld [vmem:[#allocation2 + $0x90] sm:$0xff]
        %v4748 = vld [vmem:[#allocation2 + $0x98] sm:$0xff]
        %v4749 = vld [vmem:[#allocation2 + $0xe0] sm:$0xff]
        %v4750 = vld [vmem:[#allocation2 + $0xe8] sm:$0xff]
        %v4751 = vld [vmem:[#allocation2 + $0xf0] sm:$0xff]
        %v4752 = vld [vmem:[#allocation2 + $0xf8] sm:$0xff]
        %v4753 = vld [vmem:[#allocation2 + $0x140] sm:$0xff]
        %v4754 = vld [vmem:[#allocation2 + $0x148] sm:$0xff]
        %v4755 = vld [vmem:[#allocation2 + $0x150] sm:$0xff]
        %v4756 = vld [vmem:[#allocation2 + $0x158] sm:$0xff]
        %v4757 = vld [vmem:[#allocation2 + $0x1a0] sm:$0xff]
        %v4758 = vld [vmem:[#allocation2 + $0x1a8] sm:$0xff]
        %v4759 = vld [vmem:[#allocation2 + $0x1b0] sm:$0xff]
        %v4760 = vld [vmem:[#allocation2 + $0x1b8] sm:$0xff]
        %v4761 = vld [vmem:[#allocation2 + $0x200] sm:$0xff]
        %v4762 = vld [vmem:[#allocation2 + $0x208] sm:$0xff]
        %v4763 = vld [vmem:[#allocation2 + $0x210] sm:$0xff]
        %v4764 = vld [vmem:[#allocation2 + $0x218] sm:$0xff]
        %v4765 = vld [vmem:[#allocation2 + $0x260] sm:$0xff]
        %v4766 = vld [vmem:[#allocation2 + $0x268] sm:$0xff]
        %v4767 = vld [vmem:[#allocation2 + $0x270] sm:$0xff]
        %v4768 = vld [vmem:[#allocation2 + $0x278] sm:$0xff]
        %v4769 = vld [vmem:[#allocation2 + $0x2c0] sm:$0xff]
        %v4770 = vld [vmem:[#allocation2 + $0x2c8] sm:$0xff]
        %v4771 = vld [vmem:[#allocation2 + $0x2d0] sm:$0xff]
        %v4772 = vld [vmem:[#allocation2 + $0x2d8] sm:$0xff]
        %s4773 = scalar_lea.vmem [#allocation6], 40
        %v4774 = vld [vmem:[%s4773] sm:$0xf]
        %v4776 = vlaneseq
        %v4777 = vshrl.u32 %v4776, 7
        %v4778 = vsub.s32 0, %v4777
        %v4779 = vrot.slane %v4774, %v4778
        %v4780 = vlaneseq
        %v4781 = vshrl.u32 %v4780, 7
        %v4782 = vsub.s32 1, %v4781
        %v4783 = vrot.slane %v4774, %v4782
        %v4784 = vlaneseq
        %v4785 = vshrl.u32 %v4784, 7
        %v4786 = vsub.s32 2, %v4785
        %v4787 = vrot.slane %v4774, %v4786
        %v4788 = vlaneseq
        %v4789 = vshrl.u32 %v4788, 7
        %v4790 = vsub.s32 3, %v4789
        %v4791 = vrot.slane %v4774, %v4790
        %v4796 = vmul.f32 %v4741, %v4779
        %v4797 = vmul.f32 %v4742, %v4783
        %v4798 = vmul.f32 %v4743, %v4787
        %v4799 = vmul.f32 %v4744, %v4791
        %v4800 = vmul.f32 %v4745, %v4779
        %v4801 = vmul.f32 %v4746, %v4783
        %v4802 = vmul.f32 %v4747, %v4787
        %v4803 = vmul.f32 %v4748, %v4791
        %v4804 = vmul.f32 %v4749, %v4779
        %v4805 = vmul.f32 %v4750, %v4783
        %v4806 = vmul.f32 %v4751, %v4787
        %v4807 = vmul.f32 %v4752, %v4791
        %v4808 = vmul.f32 %v4753, %v4779
        %v4809 = vmul.f32 %v4754, %v4783
        %v4810 = vmul.f32 %v4755, %v4787
        %v4811 = vmul.f32 %v4756, %v4791
        %v4812 = vmul.f32 %v4757, %v4779
        %v4813 = vmul.f32 %v4758, %v4783
        %v4814 = vmul.f32 %v4759, %v4787
        %v4815 = vmul.f32 %v4760, %v4791
        %v4816 = vmul.f32 %v4761, %v4779
        %v4817 = vmul.f32 %v4762, %v4783
        %v4818 = vmul.f32 %v4763, %v4787
        %v4819 = vmul.f32 %v4764, %v4791
        %v4820 = vmul.f32 %v4765, %v4779
        %v4821 = vmul.f32 %v4766, %v4783
        %v4822 = vmul.f32 %v4767, %v4787
        %v4823 = vmul.f32 %v4768, %v4791
        %v4824 = vmul.f32 %v4769, %v4779
        %v4825 = vmul.f32 %v4770, %v4783
        %v4826 = vmul.f32 %v4771, %v4787
        %v4827 = vmul.f32 %v4772, %v4791
        %v4828 = vadd.f32 %v4709, %v4796
        %v4829 = vadd.f32 %v4710, %v4797
        %v4830 = vadd.f32 %v4711, %v4798
        %v4831 = vadd.f32 %v4712, %v4799
        %v4832 = vadd.f32 %v4713, %v4800
        %v4833 = vadd.f32 %v4714, %v4801
        %v4834 = vadd.f32 %v4715, %v4802
        %v4835 = vadd.f32 %v4716, %v4803
        %v4836 = vadd.f32 %v4717, %v4804
        %v4837 = vadd.f32 %v4718, %v4805
        %v4838 = vadd.f32 %v4719, %v4806
        %v4839 = vadd.f32 %v4720, %v4807
        %v4840 = vadd.f32 %v4721, %v4808
        %v4841 = vadd.f32 %v4722, %v4809
        %v4842 = vadd.f32 %v4723, %v4810
        %v4843 = vadd.f32 %v4724, %v4811
        %v4844 = vadd.f32 %v4725, %v4812
        %v4845 = vadd.f32 %v4726, %v4813
        %v4846 = vadd.f32 %v4727, %v4814
        %v4847 = vadd.f32 %v4728, %v4815
        %v4848 = vadd.f32 %v4729, %v4816
        %v4849 = vadd.f32 %v4730, %v4817
        %v4850 = vadd.f32 %v4731, %v4818
        %v4851 = vadd.f32 %v4732, %v4819
        %v4852 = vadd.f32 %v4733, %v4820
        %v4853 = vadd.f32 %v4734, %v4821
        %v4854 = vadd.f32 %v4735, %v4822
        %v4855 = vadd.f32 %v4736, %v4823
        %v4856 = vadd.f32 %v4737, %v4824
        %v4857 = vadd.f32 %v4738, %v4825
        %v4858 = vadd.f32 %v4739, %v4826
        %v4859 = vadd.f32 %v4740, %v4827
        %v4860 = vld [vmem:[#allocation2 + $0x20] sm:$0xfe]
        %v4861 = vld [vmem:[#allocation2 + $0x28] sm:$0xfe]
        %v4862 = vld [vmem:[#allocation2 + $0x30] sm:$0xfe]
        %v4863 = vld [vmem:[#allocation2 + $0x38] sm:$0xfe]
        %v4864 = vld [vmem:[#allocation2 + $0x40] sm:$0x1]
        %v4865 = vld [vmem:[#allocation2 + $0x48] sm:$0x1]
        %v4866 = vld [vmem:[#allocation2 + $0x50] sm:$0x1]
        %v4867 = vld [vmem:[#allocation2 + $0x58] sm:$0x1]
        %v4868 = vld [vmem:[#allocation2 + $0x80] sm:$0xfe]
        %v4869 = vld [vmem:[#allocation2 + $0x88] sm:$0xfe]
        %v4870 = vld [vmem:[#allocation2 + $0x90] sm:$0xfe]
        %v4871 = vld [vmem:[#allocation2 + $0x98] sm:$0xfe]
        %v4872 = vld [vmem:[#allocation2 + $0xa0] sm:$0x1]
        %v4873 = vld [vmem:[#allocation2 + $0xa8] sm:$0x1]
        %v4874 = vld [vmem:[#allocation2 + $0xb0] sm:$0x1]
        %v4875 = vld [vmem:[#allocation2 + $0xb8] sm:$0x1]
        %v4876 = vld [vmem:[#allocation2 + $0xe0] sm:$0xfe]
        %v4877 = vld [vmem:[#allocation2 + $0xe8] sm:$0xfe]
        %v4878 = vld [vmem:[#allocation2 + $0xf0] sm:$0xfe]
        %v4879 = vld [vmem:[#allocation2 + $0xf8] sm:$0xfe]
        %v4880 = vld [vmem:[#allocation2 + $0x100] sm:$0x1]
        %v4881 = vld [vmem:[#allocation2 + $0x108] sm:$0x1]
        %v4882 = vld [vmem:[#allocation2 + $0x110] sm:$0x1]
        %v4883 = vld [vmem:[#allocation2 + $0x118] sm:$0x1]
        %v4884 = vld [vmem:[#allocation2 + $0x140] sm:$0xfe]
        %v4885 = vld [vmem:[#allocation2 + $0x148] sm:$0xfe]
        %v4886 = vld [vmem:[#allocation2 + $0x150] sm:$0xfe]
        %v4887 = vld [vmem:[#allocation2 + $0x158] sm:$0xfe]
        %v4888 = vld [vmem:[#allocation2 + $0x160] sm:$0x1]
        %v4889 = vld [vmem:[#allocation2 + $0x168] sm:$0x1]
        %v4890 = vld [vmem:[#allocation2 + $0x170] sm:$0x1]
        %v4891 = vld [vmem:[#allocation2 + $0x178] sm:$0x1]
        %v4892 = vld [vmem:[#allocation2 + $0x1a0] sm:$0xfe]
        %v4893 = vld [vmem:[#allocation2 + $0x1a8] sm:$0xfe]
        %v4894 = vld [vmem:[#allocation2 + $0x1b0] sm:$0xfe]
        %v4895 = vld [vmem:[#allocation2 + $0x1b8] sm:$0xfe]
        %v4896 = vld [vmem:[#allocation2 + $0x1c0] sm:$0x1]
        %v4897 = vld [vmem:[#allocation2 + $0x1c8] sm:$0x1]
        %v4898 = vld [vmem:[#allocation2 + $0x1d0] sm:$0x1]
        %v4899 = vld [vmem:[#allocation2 + $0x1d8] sm:$0x1]
        %v4900 = vld [vmem:[#allocation2 + $0x200] sm:$0xfe]
        %v4901 = vld [vmem:[#allocation2 + $0x208] sm:$0xfe]
        %v4902 = vld [vmem:[#allocation2 + $0x210] sm:$0xfe]
        %v4903 = vld [vmem:[#allocation2 + $0x218] sm:$0xfe]
        %v4904 = vld [vmem:[#allocation2 + $0x220] sm:$0x1]
        %v4905 = vld [vmem:[#allocation2 + $0x228] sm:$0x1]
        %v4906 = vld [vmem:[#allocation2 + $0x230] sm:$0x1]
        %v4907 = vld [vmem:[#allocation2 + $0x238] sm:$0x1]
        %v4908 = vld [vmem:[#allocation2 + $0x260] sm:$0xfe]
        %v4909 = vld [vmem:[#allocation2 + $0x268] sm:$0xfe]
        %v4910 = vld [vmem:[#allocation2 + $0x270] sm:$0xfe]
        %v4911 = vld [vmem:[#allocation2 + $0x278] sm:$0xfe]
        %v4912 = vld [vmem:[#allocation2 + $0x280] sm:$0x1]
        %v4913 = vld [vmem:[#allocation2 + $0x288] sm:$0x1]
        %v4914 = vld [vmem:[#allocation2 + $0x290] sm:$0x1]
        %v4915 = vld [vmem:[#allocation2 + $0x298] sm:$0x1]
        %v4916 = vld [vmem:[#allocation2 + $0x2c0] sm:$0xfe]
        %v4917 = vld [vmem:[#allocation2 + $0x2c8] sm:$0xfe]
        %v4918 = vld [vmem:[#allocation2 + $0x2d0] sm:$0xfe]
        %v4919 = vld [vmem:[#allocation2 + $0x2d8] sm:$0xfe]
        %v4920 = vld [vmem:[#allocation2 + $0x2e0] sm:$0x1]
        %v4921 = vld [vmem:[#allocation2 + $0x2e8] sm:$0x1]
        %v4922 = vld [vmem:[#allocation2 + $0x2f0] sm:$0x1]
        %v4923 = vld [vmem:[#allocation2 + $0x2f8] sm:$0x1]
        %v4988 = vrot.slane %v4860, 1
        %v4989 = vrot.slane %v4864, 1
        %v4990 = vsel %vm1236, %v4988, %v4989
        %v4991 = vrot.slane %v4861, 1
        %v4992 = vrot.slane %v4865, 1
        %v4993 = vsel %vm1236, %v4991, %v4992
        %v4994 = vrot.slane %v4862, 1
        %v4995 = vrot.slane %v4866, 1
        %v4996 = vsel %vm1236, %v4994, %v4995
        %v4997 = vrot.slane %v4863, 1
        %v4998 = vrot.slane %v4867, 1
        %v4999 = vsel %vm1236, %v4997, %v4998
        %v5000 = vrot.slane %v4868, 1
        %v5001 = vrot.slane %v4872, 1
        %v5002 = vsel %vm1236, %v5000, %v5001
        %v5003 = vrot.slane %v4869, 1
        %v5004 = vrot.slane %v4873, 1
        %v5005 = vsel %vm1236, %v5003, %v5004
        %v5006 = vrot.slane %v4870, 1
        %v5007 = vrot.slane %v4874, 1
        %v5008 = vsel %vm1236, %v5006, %v5007
        %v5009 = vrot.slane %v4871, 1
        %v5010 = vrot.slane %v4875, 1
        %v5011 = vsel %vm1236, %v5009, %v5010
        %v5012 = vrot.slane %v4876, 1
        %v5013 = vrot.slane %v4880, 1
        %v5014 = vsel %vm1236, %v5012, %v5013
        %v5015 = vrot.slane %v4877, 1
        %v5016 = vrot.slane %v4881, 1
        %v5017 = vsel %vm1236, %v5015, %v5016
        %v5018 = vrot.slane %v4878, 1
        %v5019 = vrot.slane %v4882, 1
        %v5020 = vsel %vm1236, %v5018, %v5019
        %v5021 = vrot.slane %v4879, 1
        %v5022 = vrot.slane %v4883, 1
        %v5023 = vsel %vm1236, %v5021, %v5022
        %v5024 = vrot.slane %v4884, 1
        %v5025 = vrot.slane %v4888, 1
        %v5026 = vsel %vm1236, %v5024, %v5025
        %v5027 = vrot.slane %v4885, 1
        %v5028 = vrot.slane %v4889, 1
        %v5029 = vsel %vm1236, %v5027, %v5028
        %v5030 = vrot.slane %v4886, 1
        %v5031 = vrot.slane %v4890, 1
        %v5032 = vsel %vm1236, %v5030, %v5031
        %v5033 = vrot.slane %v4887, 1
        %v5034 = vrot.slane %v4891, 1
        %v5035 = vsel %vm1236, %v5033, %v5034
        %v5036 = vrot.slane %v4892, 1
        %v5037 = vrot.slane %v4896, 1
        %v5038 = vsel %vm1236, %v5036, %v5037
        %v5039 = vrot.slane %v4893, 1
        %v5040 = vrot.slane %v4897, 1
        %v5041 = vsel %vm1236, %v5039, %v5040
        %v5042 = vrot.slane %v4894, 1
        %v5043 = vrot.slane %v4898, 1
        %v5044 = vsel %vm1236, %v5042, %v5043
        %v5045 = vrot.slane %v4895, 1
        %v5046 = vrot.slane %v4899, 1
        %v5047 = vsel %vm1236, %v5045, %v5046
        %v5048 = vrot.slane %v4900, 1
        %v5049 = vrot.slane %v4904, 1
        %v5050 = vsel %vm1236, %v5048, %v5049
        %v5051 = vrot.slane %v4901, 1
        %v5052 = vrot.slane %v4905, 1
        %v5053 = vsel %vm1236, %v5051, %v5052
        %v5054 = vrot.slane %v4902, 1
        %v5055 = vrot.slane %v4906, 1
        %v5056 = vsel %vm1236, %v5054, %v5055
        %v5057 = vrot.slane %v4903, 1
        %v5058 = vrot.slane %v4907, 1
        %v5059 = vsel %vm1236, %v5057, %v5058
        %v5060 = vrot.slane %v4908, 1
        %v5061 = vrot.slane %v4912, 1
        %v5062 = vsel %vm1236, %v5060, %v5061
        %v5063 = vrot.slane %v4909, 1
        %v5064 = vrot.slane %v4913, 1
        %v5065 = vsel %vm1236, %v5063, %v5064
        %v5066 = vrot.slane %v4910, 1
        %v5067 = vrot.slane %v4914, 1
        %v5068 = vsel %vm1236, %v5066, %v5067
        %v5069 = vrot.slane %v4911, 1
        %v5070 = vrot.slane %v4915, 1
        %v5071 = vsel %vm1236, %v5069, %v5070
        %v5072 = vrot.slane %v4916, 1
        %v5073 = vrot.slane %v4920, 1
        %v5074 = vsel %vm1236, %v5072, %v5073
        %v5075 = vrot.slane %v4917, 1
        %v5076 = vrot.slane %v4921, 1
        %v5077 = vsel %vm1236, %v5075, %v5076
        %v5078 = vrot.slane %v4918, 1
        %v5079 = vrot.slane %v4922, 1
        %v5080 = vsel %vm1236, %v5078, %v5079
        %v5081 = vrot.slane %v4919, 1
        %v5082 = vrot.slane %v4923, 1
        %v5083 = vsel %vm1236, %v5081, %v5082
        %s5116 = scalar_lea.vmem [#allocation6], 44
        %v5117 = vld [vmem:[%s5116] sm:$0xf]
        %v5119 = vlaneseq
        %v5120 = vshrl.u32 %v5119, 7
        %v5121 = vsub.s32 0, %v5120
        %v5122 = vrot.slane %v5117, %v5121
        %v5123 = vlaneseq
        %v5124 = vshrl.u32 %v5123, 7
        %v5125 = vsub.s32 1, %v5124
        %v5126 = vrot.slane %v5117, %v5125
        %v5127 = vlaneseq
        %v5128 = vshrl.u32 %v5127, 7
        %v5129 = vsub.s32 2, %v5128
        %v5130 = vrot.slane %v5117, %v5129
        %v5131 = vlaneseq
        %v5132 = vshrl.u32 %v5131, 7
        %v5133 = vsub.s32 3, %v5132
        %v5134 = vrot.slane %v5117, %v5133
        %v5139 = vmul.f32 %v4990, %v5122
        %v5140 = vmul.f32 %v4993, %v5126
        %v5141 = vmul.f32 %v4996, %v5130
        %v5142 = vmul.f32 %v4999, %v5134
        %v5143 = vmul.f32 %v5002, %v5122
        %v5144 = vmul.f32 %v5005, %v5126
        %v5145 = vmul.f32 %v5008, %v5130
        %v5146 = vmul.f32 %v5011, %v5134
        %v5147 = vmul.f32 %v5014, %v5122
        %v5148 = vmul.f32 %v5017, %v5126
        %v5149 = vmul.f32 %v5020, %v5130
        %v5150 = vmul.f32 %v5023, %v5134
        %v5151 = vmul.f32 %v5026, %v5122
        %v5152 = vmul.f32 %v5029, %v5126
        %v5153 = vmul.f32 %v5032, %v5130
        %v5154 = vmul.f32 %v5035, %v5134
        %v5155 = vmul.f32 %v5038, %v5122
        %v5156 = vmul.f32 %v5041, %v5126
        %v5157 = vmul.f32 %v5044, %v5130
        %v5158 = vmul.f32 %v5047, %v5134
        %v5159 = vmul.f32 %v5050, %v5122
        %v5160 = vmul.f32 %v5053, %v5126
        %v5161 = vmul.f32 %v5056, %v5130
        %v5162 = vmul.f32 %v5059, %v5134
        %v5163 = vmul.f32 %v5062, %v5122
        %v5164 = vmul.f32 %v5065, %v5126
        %v5165 = vmul.f32 %v5068, %v5130
        %v5166 = vmul.f32 %v5071, %v5134
        %v5167 = vmul.f32 %v5074, %v5122
        %v5168 = vmul.f32 %v5077, %v5126
        %v5169 = vmul.f32 %v5080, %v5130
        %v5170 = vmul.f32 %v5083, %v5134
        %v5171 = vadd.f32 %v4828, %v5139
        %v5172 = vadd.f32 %v4829, %v5140
        %v5173 = vadd.f32 %v4830, %v5141
        %v5174 = vadd.f32 %v4831, %v5142
        %v5175 = vadd.f32 %v4832, %v5143
        %v5176 = vadd.f32 %v4833, %v5144
        %v5177 = vadd.f32 %v4834, %v5145
        %v5178 = vadd.f32 %v4835, %v5146
        %v5179 = vadd.f32 %v4836, %v5147
        %v5180 = vadd.f32 %v4837, %v5148
        %v5181 = vadd.f32 %v4838, %v5149
        %v5182 = vadd.f32 %v4839, %v5150
        %v5183 = vadd.f32 %v4840, %v5151
        %v5184 = vadd.f32 %v4841, %v5152
        %v5185 = vadd.f32 %v4842, %v5153
        %v5186 = vadd.f32 %v4843, %v5154
        %v5187 = vadd.f32 %v4844, %v5155
        %v5188 = vadd.f32 %v4845, %v5156
        %v5189 = vadd.f32 %v4846, %v5157
        %v5190 = vadd.f32 %v4847, %v5158
        %v5191 = vadd.f32 %v4848, %v5159
        %v5192 = vadd.f32 %v4849, %v5160
        %v5193 = vadd.f32 %v4850, %v5161
        %v5194 = vadd.f32 %v4851, %v5162
        %v5195 = vadd.f32 %v4852, %v5163
        %v5196 = vadd.f32 %v4853, %v5164
        %v5197 = vadd.f32 %v4854, %v5165
        %v5198 = vadd.f32 %v4855, %v5166
        %v5199 = vadd.f32 %v4856, %v5167
        %v5200 = vadd.f32 %v4857, %v5168
        %v5201 = vadd.f32 %v4858, %v5169
        %v5202 = vadd.f32 %v4859, %v5170
        %v5203 = vld [vmem:[%s613] sm:$0x80]
        %v5204 = vld [vmem:[%s613 + $0x8] sm:$0x80]
        %v5205 = vld [vmem:[%s613 + $0x10] sm:$0x80]
        %v5206 = vld [vmem:[%s613 + $0x18] sm:$0x80]
        %v5207 = vld [vmem:[%s613 + $0x20] sm:$0x7f]
        %v5208 = vld [vmem:[%s613 + $0x28] sm:$0x7f]
        %v5209 = vld [vmem:[%s613 + $0x30] sm:$0x7f]
        %v5210 = vld [vmem:[%s613 + $0x38] sm:$0x7f]
        %v5211 = vld [vmem:[%s613 + $0x60] sm:$0x80]
        %v5212 = vld [vmem:[%s613 + $0x68] sm:$0x80]
        %v5213 = vld [vmem:[%s613 + $0x70] sm:$0x80]
        %v5214 = vld [vmem:[%s613 + $0x78] sm:$0x80]
        %v5215 = vld [vmem:[%s613 + $0x80] sm:$0x7f]
        %v5216 = vld [vmem:[%s613 + $0x88] sm:$0x7f]
        %v5217 = vld [vmem:[%s613 + $0x90] sm:$0x7f]
        %v5218 = vld [vmem:[%s613 + $0x98] sm:$0x7f]
        %v5219 = vld [vmem:[%s613 + $0xc0] sm:$0x80]
        %v5220 = vld [vmem:[%s613 + $0xc8] sm:$0x80]
        %v5221 = vld [vmem:[%s613 + $0xd0] sm:$0x80]
        %v5222 = vld [vmem:[%s613 + $0xd8] sm:$0x80]
        %v5223 = vld [vmem:[%s613 + $0xe0] sm:$0x7f]
        %v5224 = vld [vmem:[%s613 + $0xe8] sm:$0x7f]
        %v5225 = vld [vmem:[%s613 + $0xf0] sm:$0x7f]
        %v5226 = vld [vmem:[%s613 + $0xf8] sm:$0x7f]
        %v5227 = vld [vmem:[%s613 + $0x120] sm:$0x80]
        %v5228 = vld [vmem:[%s613 + $0x128] sm:$0x80]
        %v5229 = vld [vmem:[%s613 + $0x130] sm:$0x80]
        %v5230 = vld [vmem:[%s613 + $0x138] sm:$0x80]
        %v5231 = vld [vmem:[%s613 + $0x140] sm:$0x7f]
        %v5232 = vld [vmem:[%s613 + $0x148] sm:$0x7f]
        %v5233 = vld [vmem:[%s613 + $0x150] sm:$0x7f]
        %v5234 = vld [vmem:[%s613 + $0x158] sm:$0x7f]
        %v5235 = vld [vmem:[%s613 + $0x180] sm:$0x80]
        %v5236 = vld [vmem:[%s613 + $0x188] sm:$0x80]
        %v5237 = vld [vmem:[%s613 + $0x190] sm:$0x80]
        %v5238 = vld [vmem:[%s613 + $0x198] sm:$0x80]
        %v5239 = vld [vmem:[%s613 + $0x1a0] sm:$0x7f]
        %v5240 = vld [vmem:[%s613 + $0x1a8] sm:$0x7f]
        %v5241 = vld [vmem:[%s613 + $0x1b0] sm:$0x7f]
        %v5242 = vld [vmem:[%s613 + $0x1b8] sm:$0x7f]
        %v5243 = vld [vmem:[%s613 + $0x1e0] sm:$0x80]
        %v5244 = vld [vmem:[%s613 + $0x1e8] sm:$0x80]
        %v5245 = vld [vmem:[%s613 + $0x1f0] sm:$0x80]
        %v5246 = vld [vmem:[%s613 + $0x1f8] sm:$0x80]
        %v5247 = vld [vmem:[%s613 + $0x200] sm:$0x7f]
        %v5248 = vld [vmem:[%s613 + $0x208] sm:$0x7f]
        %v5249 = vld [vmem:[%s613 + $0x210] sm:$0x7f]
        %v5250 = vld [vmem:[%s613 + $0x218] sm:$0x7f]
        %v5251 = vld [vmem:[%s613 + $0x240] sm:$0x80]
        %v5252 = vld [vmem:[%s613 + $0x248] sm:$0x80]
        %v5253 = vld [vmem:[%s613 + $0x250] sm:$0x80]
        %v5254 = vld [vmem:[%s613 + $0x258] sm:$0x80]
        %v5255 = vld [vmem:[%s613 + $0x260] sm:$0x7f]
        %v5256 = vld [vmem:[%s613 + $0x268] sm:$0x7f]
        %v5257 = vld [vmem:[%s613 + $0x270] sm:$0x7f]
        %v5258 = vld [vmem:[%s613 + $0x278] sm:$0x7f]
        %v5259 = vld [vmem:[%s613 + $0x2a0] sm:$0x80]
        %v5260 = vld [vmem:[%s613 + $0x2a8] sm:$0x80]
        %v5261 = vld [vmem:[%s613 + $0x2b0] sm:$0x80]
        %v5262 = vld [vmem:[%s613 + $0x2b8] sm:$0x80]
        %v5263 = vld [vmem:[%s613 + $0x2c0] sm:$0x7f]
        %v5264 = vld [vmem:[%s613 + $0x2c8] sm:$0x7f]
        %v5265 = vld [vmem:[%s613 + $0x2d0] sm:$0x7f]
        %v5266 = vld [vmem:[%s613 + $0x2d8] sm:$0x7f]
        %v5331 = vrot.slane %v5203, 7
        %v5332 = vrot.slane %v5207, 7
        %v5333 = vsel %vm774, %v5331, %v5332
        %v5334 = vrot.slane %v5204, 7
        %v5335 = vrot.slane %v5208, 7
        %v5336 = vsel %vm774, %v5334, %v5335
        %v5337 = vrot.slane %v5205, 7
        %v5338 = vrot.slane %v5209, 7
        %v5339 = vsel %vm774, %v5337, %v5338
        %v5340 = vrot.slane %v5206, 7
        %v5341 = vrot.slane %v5210, 7
        %v5342 = vsel %vm774, %v5340, %v5341
        %v5343 = vrot.slane %v5211, 7
        %v5344 = vrot.slane %v5215, 7
        %v5345 = vsel %vm774, %v5343, %v5344
        %v5346 = vrot.slane %v5212, 7
        %v5347 = vrot.slane %v5216, 7
        %v5348 = vsel %vm774, %v5346, %v5347
        %v5349 = vrot.slane %v5213, 7
        %v5350 = vrot.slane %v5217, 7
        %v5351 = vsel %vm774, %v5349, %v5350
        %v5352 = vrot.slane %v5214, 7
        %v5353 = vrot.slane %v5218, 7
        %v5354 = vsel %vm774, %v5352, %v5353
        %v5355 = vrot.slane %v5219, 7
        %v5356 = vrot.slane %v5223, 7
        %v5357 = vsel %vm774, %v5355, %v5356
        %v5358 = vrot.slane %v5220, 7
        %v5359 = vrot.slane %v5224, 7
        %v5360 = vsel %vm774, %v5358, %v5359
        %v5361 = vrot.slane %v5221, 7
        %v5362 = vrot.slane %v5225, 7
        %v5363 = vsel %vm774, %v5361, %v5362
        %v5364 = vrot.slane %v5222, 7
        %v5365 = vrot.slane %v5226, 7
        %v5366 = vsel %vm774, %v5364, %v5365
        %v5367 = vrot.slane %v5227, 7
        %v5368 = vrot.slane %v5231, 7
        %v5369 = vsel %vm774, %v5367, %v5368
        %v5370 = vrot.slane %v5228, 7
        %v5371 = vrot.slane %v5232, 7
        %v5372 = vsel %vm774, %v5370, %v5371
        %v5373 = vrot.slane %v5229, 7
        %v5374 = vrot.slane %v5233, 7
        %v5375 = vsel %vm774, %v5373, %v5374
        %v5376 = vrot.slane %v5230, 7
        %v5377 = vrot.slane %v5234, 7
        %v5378 = vsel %vm774, %v5376, %v5377
        %v5379 = vrot.slane %v5235, 7
        %v5380 = vrot.slane %v5239, 7
        %v5381 = vsel %vm774, %v5379, %v5380
        %v5382 = vrot.slane %v5236, 7
        %v5383 = vrot.slane %v5240, 7
        %v5384 = vsel %vm774, %v5382, %v5383
        %v5385 = vrot.slane %v5237, 7
        %v5386 = vrot.slane %v5241, 7
        %v5387 = vsel %vm774, %v5385, %v5386
        %v5388 = vrot.slane %v5238, 7
        %v5389 = vrot.slane %v5242, 7
        %v5390 = vsel %vm774, %v5388, %v5389
        %v5391 = vrot.slane %v5243, 7
        %v5392 = vrot.slane %v5247, 7
        %v5393 = vsel %vm774, %v5391, %v5392
        %v5394 = vrot.slane %v5244, 7
        %v5395 = vrot.slane %v5248, 7
        %v5396 = vsel %vm774, %v5394, %v5395
        %v5397 = vrot.slane %v5245, 7
        %v5398 = vrot.slane %v5249, 7
        %v5399 = vsel %vm774, %v5397, %v5398
        %v5400 = vrot.slane %v5246, 7
        %v5401 = vrot.slane %v5250, 7
        %v5402 = vsel %vm774, %v5400, %v5401
        %v5403 = vrot.slane %v5251, 7
        %v5404 = vrot.slane %v5255, 7
        %v5405 = vsel %vm774, %v5403, %v5404
        %v5406 = vrot.slane %v5252, 7
        %v5407 = vrot.slane %v5256, 7
        %v5408 = vsel %vm774, %v5406, %v5407
        %v5409 = vrot.slane %v5253, 7
        %v5410 = vrot.slane %v5257, 7
        %v5411 = vsel %vm774, %v5409, %v5410
        %v5412 = vrot.slane %v5254, 7
        %v5413 = vrot.slane %v5258, 7
        %v5414 = vsel %vm774, %v5412, %v5413
        %v5415 = vrot.slane %v5259, 7
        %v5416 = vrot.slane %v5263, 7
        %v5417 = vsel %vm774, %v5415, %v5416
        %v5418 = vrot.slane %v5260, 7
        %v5419 = vrot.slane %v5264, 7
        %v5420 = vsel %vm774, %v5418, %v5419
        %v5421 = vrot.slane %v5261, 7
        %v5422 = vrot.slane %v5265, 7
        %v5423 = vsel %vm774, %v5421, %v5422
        %v5424 = vrot.slane %v5262, 7
        %v5425 = vrot.slane %v5266, 7
        %v5426 = vsel %vm774, %v5424, %v5425
        %s5459 = scalar_lea.vmem [#allocation6], 48
        %v5460 = vld [vmem:[%s5459] sm:$0xf]
        %v5462 = vlaneseq
        %v5463 = vshrl.u32 %v5462, 7
        %v5464 = vsub.s32 0, %v5463
        %v5465 = vrot.slane %v5460, %v5464
        %v5466 = vlaneseq
        %v5467 = vshrl.u32 %v5466, 7
        %v5468 = vsub.s32 1, %v5467
        %v5469 = vrot.slane %v5460, %v5468
        %v5470 = vlaneseq
        %v5471 = vshrl.u32 %v5470, 7
        %v5472 = vsub.s32 2, %v5471
        %v5473 = vrot.slane %v5460, %v5472
        %v5474 = vlaneseq
        %v5475 = vshrl.u32 %v5474, 7
        %v5476 = vsub.s32 3, %v5475
        %v5477 = vrot.slane %v5460, %v5476
        %v5482 = vmul.f32 %v5333, %v5465
        %v5483 = vmul.f32 %v5336, %v5469
        %v5484 = vmul.f32 %v5339, %v5473
        %v5485 = vmul.f32 %v5342, %v5477
        %v5486 = vmul.f32 %v5345, %v5465
        %v5487 = vmul.f32 %v5348, %v5469
        %v5488 = vmul.f32 %v5351, %v5473
        %v5489 = vmul.f32 %v5354, %v5477
        %v5490 = vmul.f32 %v5357, %v5465
        %v5491 = vmul.f32 %v5360, %v5469
        %v5492 = vmul.f32 %v5363, %v5473
        %v5493 = vmul.f32 %v5366, %v5477
        %v5494 = vmul.f32 %v5369, %v5465
        %v5495 = vmul.f32 %v5372, %v5469
        %v5496 = vmul.f32 %v5375, %v5473
        %v5497 = vmul.f32 %v5378, %v5477
        %v5498 = vmul.f32 %v5381, %v5465
        %v5499 = vmul.f32 %v5384, %v5469
        %v5500 = vmul.f32 %v5387, %v5473
        %v5501 = vmul.f32 %v5390, %v5477
        %v5502 = vmul.f32 %v5393, %v5465
        %v5503 = vmul.f32 %v5396, %v5469
        %v5504 = vmul.f32 %v5399, %v5473
        %v5505 = vmul.f32 %v5402, %v5477
        %v5506 = vmul.f32 %v5405, %v5465
        %v5507 = vmul.f32 %v5408, %v5469
        %v5508 = vmul.f32 %v5411, %v5473
        %v5509 = vmul.f32 %v5414, %v5477
        %v5510 = vmul.f32 %v5417, %v5465
        %v5511 = vmul.f32 %v5420, %v5469
        %v5512 = vmul.f32 %v5423, %v5473
        %v5513 = vmul.f32 %v5426, %v5477
        %v5514 = vadd.f32 %v5171, %v5482
        %v5515 = vadd.f32 %v5172, %v5483
        %v5516 = vadd.f32 %v5173, %v5484
        %v5517 = vadd.f32 %v5174, %v5485
        %v5518 = vadd.f32 %v5175, %v5486
        %v5519 = vadd.f32 %v5176, %v5487
        %v5520 = vadd.f32 %v5177, %v5488
        %v5521 = vadd.f32 %v5178, %v5489
        %v5522 = vadd.f32 %v5179, %v5490
        %v5523 = vadd.f32 %v5180, %v5491
        %v5524 = vadd.f32 %v5181, %v5492
        %v5525 = vadd.f32 %v5182, %v5493
        %v5526 = vadd.f32 %v5183, %v5494
        %v5527 = vadd.f32 %v5184, %v5495
        %v5528 = vadd.f32 %v5185, %v5496
        %v5529 = vadd.f32 %v5186, %v5497
        %v5530 = vadd.f32 %v5187, %v5498
        %v5531 = vadd.f32 %v5188, %v5499
        %v5532 = vadd.f32 %v5189, %v5500
        %v5533 = vadd.f32 %v5190, %v5501
        %v5534 = vadd.f32 %v5191, %v5502
        %v5535 = vadd.f32 %v5192, %v5503
        %v5536 = vadd.f32 %v5193, %v5504
        %v5537 = vadd.f32 %v5194, %v5505
        %v5538 = vadd.f32 %v5195, %v5506
        %v5539 = vadd.f32 %v5196, %v5507
        %v5540 = vadd.f32 %v5197, %v5508
        %v5541 = vadd.f32 %v5198, %v5509
        %v5542 = vadd.f32 %v5199, %v5510
        %v5543 = vadd.f32 %v5200, %v5511
        %v5544 = vadd.f32 %v5201, %v5512
        %v5545 = vadd.f32 %v5202, %v5513
        %v5546 = vld [vmem:[%s613 + $0x20] sm:$0xff]
        %v5547 = vld [vmem:[%s613 + $0x28] sm:$0xff]
        %v5548 = vld [vmem:[%s613 + $0x30] sm:$0xff]
        %v5549 = vld [vmem:[%s613 + $0x38] sm:$0xff]
        %v5550 = vld [vmem:[%s613 + $0x80] sm:$0xff]
        %v5551 = vld [vmem:[%s613 + $0x88] sm:$0xff]
        %v5552 = vld [vmem:[%s613 + $0x90] sm:$0xff]
        %v5553 = vld [vmem:[%s613 + $0x98] sm:$0xff]
        %v5554 = vld [vmem:[%s613 + $0xe0] sm:$0xff]
        %v5555 = vld [vmem:[%s613 + $0xe8] sm:$0xff]
        %v5556 = vld [vmem:[%s613 + $0xf0] sm:$0xff]
        %v5557 = vld [vmem:[%s613 + $0xf8] sm:$0xff]
        %v5558 = vld [vmem:[%s613 + $0x140] sm:$0xff]
        %v5559 = vld [vmem:[%s613 + $0x148] sm:$0xff]
        %v5560 = vld [vmem:[%s613 + $0x150] sm:$0xff]
        %v5561 = vld [vmem:[%s613 + $0x158] sm:$0xff]
        %v5562 = vld [vmem:[%s613 + $0x1a0] sm:$0xff]
        %v5563 = vld [vmem:[%s613 + $0x1a8] sm:$0xff]
        %v5564 = vld [vmem:[%s613 + $0x1b0] sm:$0xff]
        %v5565 = vld [vmem:[%s613 + $0x1b8] sm:$0xff]
        %v5566 = vld [vmem:[%s613 + $0x200] sm:$0xff]
        %v5567 = vld [vmem:[%s613 + $0x208] sm:$0xff]
        %v5568 = vld [vmem:[%s613 + $0x210] sm:$0xff]
        %v5569 = vld [vmem:[%s613 + $0x218] sm:$0xff]
        %v5570 = vld [vmem:[%s613 + $0x260] sm:$0xff]
        %v5571 = vld [vmem:[%s613 + $0x268] sm:$0xff]
        %v5572 = vld [vmem:[%s613 + $0x270] sm:$0xff]
        %v5573 = vld [vmem:[%s613 + $0x278] sm:$0xff]
        %v5574 = vld [vmem:[%s613 + $0x2c0] sm:$0xff]
        %v5575 = vld [vmem:[%s613 + $0x2c8] sm:$0xff]
        %v5576 = vld [vmem:[%s613 + $0x2d0] sm:$0xff]
        %v5577 = vld [vmem:[%s613 + $0x2d8] sm:$0xff]
        %s5578 = scalar_lea.vmem [#allocation6], 52
        %v5579 = vld [vmem:[%s5578] sm:$0xf]
        %v5581 = vlaneseq
        %v5582 = vshrl.u32 %v5581, 7
        %v5583 = vsub.s32 0, %v5582
        %v5584 = vrot.slane %v5579, %v5583
        %v5585 = vlaneseq
        %v5586 = vshrl.u32 %v5585, 7
        %v5587 = vsub.s32 1, %v5586
        %v5588 = vrot.slane %v5579, %v5587
        %v5589 = vlaneseq
        %v5590 = vshrl.u32 %v5589, 7
        %v5591 = vsub.s32 2, %v5590
        %v5592 = vrot.slane %v5579, %v5591
        %v5593 = vlaneseq
        %v5594 = vshrl.u32 %v5593, 7
        %v5595 = vsub.s32 3, %v5594
        %v5596 = vrot.slane %v5579, %v5595
        %v5601 = vmul.f32 %v5546, %v5584
        %v5602 = vmul.f32 %v5547, %v5588
        %v5603 = vmul.f32 %v5548, %v5592
        %v5604 = vmul.f32 %v5549, %v5596
        %v5605 = vmul.f32 %v5550, %v5584
        %v5606 = vmul.f32 %v5551, %v5588
        %v5607 = vmul.f32 %v5552, %v5592
        %v5608 = vmul.f32 %v5553, %v5596
        %v5609 = vmul.f32 %v5554, %v5584
        %v5610 = vmul.f32 %v5555, %v5588
        %v5611 = vmul.f32 %v5556, %v5592
        %v5612 = vmul.f32 %v5557, %v5596
        %v5613 = vmul.f32 %v5558, %v5584
        %v5614 = vmul.f32 %v5559, %v5588
        %v5615 = vmul.f32 %v5560, %v5592
        %v5616 = vmul.f32 %v5561, %v5596
        %v5617 = vmul.f32 %v5562, %v5584
        %v5618 = vmul.f32 %v5563, %v5588
        %v5619 = vmul.f32 %v5564, %v5592
        %v5620 = vmul.f32 %v5565, %v5596
        %v5621 = vmul.f32 %v5566, %v5584
        %v5622 = vmul.f32 %v5567, %v5588
        %v5623 = vmul.f32 %v5568, %v5592
        %v5624 = vmul.f32 %v5569, %v5596
        %v5625 = vmul.f32 %v5570, %v5584
        %v5626 = vmul.f32 %v5571, %v5588
        %v5627 = vmul.f32 %v5572, %v5592
        %v5628 = vmul.f32 %v5573, %v5596
        %v5629 = vmul.f32 %v5574, %v5584
        %v5630 = vmul.f32 %v5575, %v5588
        %v5631 = vmul.f32 %v5576, %v5592
        %v5632 = vmul.f32 %v5577, %v5596
        %v5633 = vadd.f32 %v5514, %v5601
        %v5634 = vadd.f32 %v5515, %v5602
        %v5635 = vadd.f32 %v5516, %v5603
        %v5636 = vadd.f32 %v5517, %v5604
        %v5637 = vadd.f32 %v5518, %v5605
        %v5638 = vadd.f32 %v5519, %v5606
        %v5639 = vadd.f32 %v5520, %v5607
        %v5640 = vadd.f32 %v5521, %v5608
        %v5641 = vadd.f32 %v5522, %v5609
        %v5642 = vadd.f32 %v5523, %v5610
        %v5643 = vadd.f32 %v5524, %v5611
        %v5644 = vadd.f32 %v5525, %v5612
        %v5645 = vadd.f32 %v5526, %v5613
        %v5646 = vadd.f32 %v5527, %v5614
        %v5647 = vadd.f32 %v5528, %v5615
        %v5648 = vadd.f32 %v5529, %v5616
        %v5649 = vadd.f32 %v5530, %v5617
        %v5650 = vadd.f32 %v5531, %v5618
        %v5651 = vadd.f32 %v5532, %v5619
        %v5652 = vadd.f32 %v5533, %v5620
        %v5653 = vadd.f32 %v5534, %v5621
        %v5654 = vadd.f32 %v5535, %v5622
        %v5655 = vadd.f32 %v5536, %v5623
        %v5656 = vadd.f32 %v5537, %v5624
        %v5657 = vadd.f32 %v5538, %v5625
        %v5658 = vadd.f32 %v5539, %v5626
        %v5659 = vadd.f32 %v5540, %v5627
        %v5660 = vadd.f32 %v5541, %v5628
        %v5661 = vadd.f32 %v5542, %v5629
        %v5662 = vadd.f32 %v5543, %v5630
        %v5663 = vadd.f32 %v5544, %v5631
        %v5664 = vadd.f32 %v5545, %v5632
        %v5665 = vld [vmem:[%s613 + $0x20] sm:$0xfe]
        %v5666 = vld [vmem:[%s613 + $0x28] sm:$0xfe]
        %v5667 = vld [vmem:[%s613 + $0x30] sm:$0xfe]
        %v5668 = vld [vmem:[%s613 + $0x38] sm:$0xfe]
        %v5669 = vld [vmem:[%s613 + $0x40] sm:$0x1]
        %v5670 = vld [vmem:[%s613 + $0x48] sm:$0x1]
        %v5671 = vld [vmem:[%s613 + $0x50] sm:$0x1]
        %v5672 = vld [vmem:[%s613 + $0x58] sm:$0x1]
        %v5673 = vld [vmem:[%s613 + $0x80] sm:$0xfe]
        %v5674 = vld [vmem:[%s613 + $0x88] sm:$0xfe]
        %v5675 = vld [vmem:[%s613 + $0x90] sm:$0xfe]
        %v5676 = vld [vmem:[%s613 + $0x98] sm:$0xfe]
        %v5677 = vld [vmem:[%s613 + $0xa0] sm:$0x1]
        %v5678 = vld [vmem:[%s613 + $0xa8] sm:$0x1]
        %v5679 = vld [vmem:[%s613 + $0xb0] sm:$0x1]
        %v5680 = vld [vmem:[%s613 + $0xb8] sm:$0x1]
        %v5681 = vld [vmem:[%s613 + $0xe0] sm:$0xfe]
        %v5682 = vld [vmem:[%s613 + $0xe8] sm:$0xfe]
        %v5683 = vld [vmem:[%s613 + $0xf0] sm:$0xfe]
        %v5684 = vld [vmem:[%s613 + $0xf8] sm:$0xfe]
        %v5685 = vld [vmem:[%s613 + $0x100] sm:$0x1]
        %v5686 = vld [vmem:[%s613 + $0x108] sm:$0x1]
        %v5687 = vld [vmem:[%s613 + $0x110] sm:$0x1]
        %v5688 = vld [vmem:[%s613 + $0x118] sm:$0x1]
        %v5689 = vld [vmem:[%s613 + $0x140] sm:$0xfe]
        %v5690 = vld [vmem:[%s613 + $0x148] sm:$0xfe]
        %v5691 = vld [vmem:[%s613 + $0x150] sm:$0xfe]
        %v5692 = vld [vmem:[%s613 + $0x158] sm:$0xfe]
        %v5693 = vld [vmem:[%s613 + $0x160] sm:$0x1]
        %v5694 = vld [vmem:[%s613 + $0x168] sm:$0x1]
        %v5695 = vld [vmem:[%s613 + $0x170] sm:$0x1]
        %v5696 = vld [vmem:[%s613 + $0x178] sm:$0x1]
        %v5697 = vld [vmem:[%s613 + $0x1a0] sm:$0xfe]
        %v5698 = vld [vmem:[%s613 + $0x1a8] sm:$0xfe]
        %v5699 = vld [vmem:[%s613 + $0x1b0] sm:$0xfe]
        %v5700 = vld [vmem:[%s613 + $0x1b8] sm:$0xfe]
        %v5701 = vld [vmem:[%s613 + $0x1c0] sm:$0x1]
        %v5702 = vld [vmem:[%s613 + $0x1c8] sm:$0x1]
        %v5703 = vld [vmem:[%s613 + $0x1d0] sm:$0x1]
        %v5704 = vld [vmem:[%s613 + $0x1d8] sm:$0x1]
        %v5705 = vld [vmem:[%s613 + $0x200] sm:$0xfe]
        %v5706 = vld [vmem:[%s613 + $0x208] sm:$0xfe]
        %v5707 = vld [vmem:[%s613 + $0x210] sm:$0xfe]
        %v5708 = vld [vmem:[%s613 + $0x218] sm:$0xfe]
        %v5709 = vld [vmem:[%s613 + $0x220] sm:$0x1]
        %v5710 = vld [vmem:[%s613 + $0x228] sm:$0x1]
        %v5711 = vld [vmem:[%s613 + $0x230] sm:$0x1]
        %v5712 = vld [vmem:[%s613 + $0x238] sm:$0x1]
        %v5713 = vld [vmem:[%s613 + $0x260] sm:$0xfe]
        %v5714 = vld [vmem:[%s613 + $0x268] sm:$0xfe]
        %v5715 = vld [vmem:[%s613 + $0x270] sm:$0xfe]
        %v5716 = vld [vmem:[%s613 + $0x278] sm:$0xfe]
        %v5717 = vld [vmem:[%s613 + $0x280] sm:$0x1]
        %v5718 = vld [vmem:[%s613 + $0x288] sm:$0x1]
        %v5719 = vld [vmem:[%s613 + $0x290] sm:$0x1]
        %v5720 = vld [vmem:[%s613 + $0x298] sm:$0x1]
        %v5721 = vld [vmem:[%s613 + $0x2c0] sm:$0xfe]
        %v5722 = vld [vmem:[%s613 + $0x2c8] sm:$0xfe]
        %v5723 = vld [vmem:[%s613 + $0x2d0] sm:$0xfe]
        %v5724 = vld [vmem:[%s613 + $0x2d8] sm:$0xfe]
        %v5725 = vld [vmem:[%s613 + $0x2e0] sm:$0x1]
        %v5726 = vld [vmem:[%s613 + $0x2e8] sm:$0x1]
        %v5727 = vld [vmem:[%s613 + $0x2f0] sm:$0x1]
        %v5728 = vld [vmem:[%s613 + $0x2f8] sm:$0x1]
        %v5793 = vrot.slane %v5665, 1
        %v5794 = vrot.slane %v5669, 1
        %v5795 = vsel %vm1236, %v5793, %v5794
        %v5796 = vrot.slane %v5666, 1
        %v5797 = vrot.slane %v5670, 1
        %v5798 = vsel %vm1236, %v5796, %v5797
        %v5799 = vrot.slane %v5667, 1
        %v5800 = vrot.slane %v5671, 1
        %v5801 = vsel %vm1236, %v5799, %v5800
        %v5802 = vrot.slane %v5668, 1
        %v5803 = vrot.slane %v5672, 1
        %v5804 = vsel %vm1236, %v5802, %v5803
        %v5805 = vrot.slane %v5673, 1
        %v5806 = vrot.slane %v5677, 1
        %v5807 = vsel %vm1236, %v5805, %v5806
        %v5808 = vrot.slane %v5674, 1
        %v5809 = vrot.slane %v5678, 1
        %v5810 = vsel %vm1236, %v5808, %v5809
        %v5811 = vrot.slane %v5675, 1
        %v5812 = vrot.slane %v5679, 1
        %v5813 = vsel %vm1236, %v5811, %v5812
        %v5814 = vrot.slane %v5676, 1
        %v5815 = vrot.slane %v5680, 1
        %v5816 = vsel %vm1236, %v5814, %v5815
        %v5817 = vrot.slane %v5681, 1
        %v5818 = vrot.slane %v5685, 1
        %v5819 = vsel %vm1236, %v5817, %v5818
        %v5820 = vrot.slane %v5682, 1
        %v5821 = vrot.slane %v5686, 1
        %v5822 = vsel %vm1236, %v5820, %v5821
        %v5823 = vrot.slane %v5683, 1
        %v5824 = vrot.slane %v5687, 1
        %v5825 = vsel %vm1236, %v5823, %v5824
        %v5826 = vrot.slane %v5684, 1
        %v5827 = vrot.slane %v5688, 1
        %v5828 = vsel %vm1236, %v5826, %v5827
        %v5829 = vrot.slane %v5689, 1
        %v5830 = vrot.slane %v5693, 1
        %v5831 = vsel %vm1236, %v5829, %v5830
        %v5832 = vrot.slane %v5690, 1
        %v5833 = vrot.slane %v5694, 1
        %v5834 = vsel %vm1236, %v5832, %v5833
        %v5835 = vrot.slane %v5691, 1
        %v5836 = vrot.slane %v5695, 1
        %v5837 = vsel %vm1236, %v5835, %v5836
        %v5838 = vrot.slane %v5692, 1
        %v5839 = vrot.slane %v5696, 1
        %v5840 = vsel %vm1236, %v5838, %v5839
        %v5841 = vrot.slane %v5697, 1
        %v5842 = vrot.slane %v5701, 1
        %v5843 = vsel %vm1236, %v5841, %v5842
        %v5844 = vrot.slane %v5698, 1
        %v5845 = vrot.slane %v5702, 1
        %v5846 = vsel %vm1236, %v5844, %v5845
        %v5847 = vrot.slane %v5699, 1
        %v5848 = vrot.slane %v5703, 1
        %v5849 = vsel %vm1236, %v5847, %v5848
        %v5850 = vrot.slane %v5700, 1
        %v5851 = vrot.slane %v5704, 1
        %v5852 = vsel %vm1236, %v5850, %v5851
        %v5853 = vrot.slane %v5705, 1
        %v5854 = vrot.slane %v5709, 1
        %v5855 = vsel %vm1236, %v5853, %v5854
        %v5856 = vrot.slane %v5706, 1
        %v5857 = vrot.slane %v5710, 1
        %v5858 = vsel %vm1236, %v5856, %v5857
        %v5859 = vrot.slane %v5707, 1
        %v5860 = vrot.slane %v5711, 1
        %v5861 = vsel %vm1236, %v5859, %v5860
        %v5862 = vrot.slane %v5708, 1
        %v5863 = vrot.slane %v5712, 1
        %v5864 = vsel %vm1236, %v5862, %v5863
        %v5865 = vrot.slane %v5713, 1
        %v5866 = vrot.slane %v5717, 1
        %v5867 = vsel %vm1236, %v5865, %v5866
        %v5868 = vrot.slane %v5714, 1
        %v5869 = vrot.slane %v5718, 1
        %v5870 = vsel %vm1236, %v5868, %v5869
        %v5871 = vrot.slane %v5715, 1
        %v5872 = vrot.slane %v5719, 1
        %v5873 = vsel %vm1236, %v5871, %v5872
        %v5874 = vrot.slane %v5716, 1
        %v5875 = vrot.slane %v5720, 1
        %v5876 = vsel %vm1236, %v5874, %v5875
        %v5877 = vrot.slane %v5721, 1
        %v5878 = vrot.slane %v5725, 1
        %v5879 = vsel %vm1236, %v5877, %v5878
        %v5880 = vrot.slane %v5722, 1
        %v5881 = vrot.slane %v5726, 1
        %v5882 = vsel %vm1236, %v5880, %v5881
        %v5883 = vrot.slane %v5723, 1
        %v5884 = vrot.slane %v5727, 1
        %v5885 = vsel %vm1236, %v5883, %v5884
        %v5886 = vrot.slane %v5724, 1
        %v5887 = vrot.slane %v5728, 1
        %v5888 = vsel %vm1236, %v5886, %v5887
        %s5921 = scalar_lea.vmem [#allocation6], 56
        %v5922 = vld [vmem:[%s5921] sm:$0xf]
        %v5924 = vlaneseq
        %v5925 = vshrl.u32 %v5924, 7
        %v5926 = vsub.s32 0, %v5925
        %v5927 = vrot.slane %v5922, %v5926
        %v5928 = vlaneseq
        %v5929 = vshrl.u32 %v5928, 7
        %v5930 = vsub.s32 1, %v5929
        %v5931 = vrot.slane %v5922, %v5930
        %v5932 = vlaneseq
        %v5933 = vshrl.u32 %v5932, 7
        %v5934 = vsub.s32 2, %v5933
        %v5935 = vrot.slane %v5922, %v5934
        %v5936 = vlaneseq
        %v5937 = vshrl.u32 %v5936, 7
        %v5938 = vsub.s32 3, %v5937
        %v5939 = vrot.slane %v5922, %v5938
        %v5944 = vmul.f32 %v5795, %v5927
        %v5945 = vmul.f32 %v5798, %v5931
        %v5946 = vmul.f32 %v5801, %v5935
        %v5947 = vmul.f32 %v5804, %v5939
        %v5948 = vmul.f32 %v5807, %v5927
        %v5949 = vmul.f32 %v5810, %v5931
        %v5950 = vmul.f32 %v5813, %v5935
        %v5951 = vmul.f32 %v5816, %v5939
        %v5952 = vmul.f32 %v5819, %v5927
        %v5953 = vmul.f32 %v5822, %v5931
        %v5954 = vmul.f32 %v5825, %v5935
        %v5955 = vmul.f32 %v5828, %v5939
        %v5956 = vmul.f32 %v5831, %v5927
        %v5957 = vmul.f32 %v5834, %v5931
        %v5958 = vmul.f32 %v5837, %v5935
        %v5959 = vmul.f32 %v5840, %v5939
        %v5960 = vmul.f32 %v5843, %v5927
        %v5961 = vmul.f32 %v5846, %v5931
        %v5962 = vmul.f32 %v5849, %v5935
        %v5963 = vmul.f32 %v5852, %v5939
        %v5964 = vmul.f32 %v5855, %v5927
        %v5965 = vmul.f32 %v5858, %v5931
        %v5966 = vmul.f32 %v5861, %v5935
        %v5967 = vmul.f32 %v5864, %v5939
        %v5968 = vmul.f32 %v5867, %v5927
        %v5969 = vmul.f32 %v5870, %v5931
        %v5970 = vmul.f32 %v5873, %v5935
        %v5971 = vmul.f32 %v5876, %v5939
        %v5972 = vmul.f32 %v5879, %v5927
        %v5973 = vmul.f32 %v5882, %v5931
        %v5974 = vmul.f32 %v5885, %v5935
        %v5975 = vmul.f32 %v5888, %v5939
        %v5976 = vadd.f32 %v5633, %v5944
        %v5977 = vadd.f32 %v5634, %v5945
        %v5978 = vadd.f32 %v5635, %v5946
        %v5979 = vadd.f32 %v5636, %v5947
        %v5980 = vadd.f32 %v5637, %v5948
        %v5981 = vadd.f32 %v5638, %v5949
        %v5982 = vadd.f32 %v5639, %v5950
        %v5983 = vadd.f32 %v5640, %v5951
        %v5984 = vadd.f32 %v5641, %v5952
        %v5985 = vadd.f32 %v5642, %v5953
        %v5986 = vadd.f32 %v5643, %v5954
        %v5987 = vadd.f32 %v5644, %v5955
        %v5988 = vadd.f32 %v5645, %v5956
        %v5989 = vadd.f32 %v5646, %v5957
        %v5990 = vadd.f32 %v5647, %v5958
        %v5991 = vadd.f32 %v5648, %v5959
        %v5992 = vadd.f32 %v5649, %v5960
        %v5993 = vadd.f32 %v5650, %v5961
        %v5994 = vadd.f32 %v5651, %v5962
        %v5995 = vadd.f32 %v5652, %v5963
        %v5996 = vadd.f32 %v5653, %v5964
        %v5997 = vadd.f32 %v5654, %v5965
        %v5998 = vadd.f32 %v5655, %v5966
        %v5999 = vadd.f32 %v5656, %v5967
        %v6000 = vadd.f32 %v5657, %v5968
        %v6001 = vadd.f32 %v5658, %v5969
        %v6002 = vadd.f32 %v5659, %v5970
        %v6003 = vadd.f32 %v5660, %v5971
        %v6004 = vadd.f32 %v5661, %v5972
        %v6005 = vadd.f32 %v5662, %v5973
        %v6006 = vadd.f32 %v5663, %v5974
        %v6007 = vadd.f32 %v5664, %v5975
        %v6008 = vld [vmem:[%s2257] sm:$0x80]
        %v6009 = vld [vmem:[%s2257 + $0x8] sm:$0x80]
        %v6010 = vld [vmem:[%s2257 + $0x10] sm:$0x80]
        %v6011 = vld [vmem:[%s2257 + $0x18] sm:$0x80]
        %v6012 = vld [vmem:[%s2257 + $0x20] sm:$0x7f]
        %v6013 = vld [vmem:[%s2257 + $0x28] sm:$0x7f]
        %v6014 = vld [vmem:[%s2257 + $0x30] sm:$0x7f]
        %v6015 = vld [vmem:[%s2257 + $0x38] sm:$0x7f]
        %v6016 = vld [vmem:[%s2257 + $0x60] sm:$0x80]
        %v6017 = vld [vmem:[%s2257 + $0x68] sm:$0x80]
        %v6018 = vld [vmem:[%s2257 + $0x70] sm:$0x80]
        %v6019 = vld [vmem:[%s2257 + $0x78] sm:$0x80]
        %v6020 = vld [vmem:[%s2257 + $0x80] sm:$0x7f]
        %v6021 = vld [vmem:[%s2257 + $0x88] sm:$0x7f]
        %v6022 = vld [vmem:[%s2257 + $0x90] sm:$0x7f]
        %v6023 = vld [vmem:[%s2257 + $0x98] sm:$0x7f]
        %v6024 = vld [vmem:[%s2257 + $0xc0] sm:$0x80]
        %v6025 = vld [vmem:[%s2257 + $0xc8] sm:$0x80]
        %v6026 = vld [vmem:[%s2257 + $0xd0] sm:$0x80]
        %v6027 = vld [vmem:[%s2257 + $0xd8] sm:$0x80]
        %v6028 = vld [vmem:[%s2257 + $0xe0] sm:$0x7f]
        %v6029 = vld [vmem:[%s2257 + $0xe8] sm:$0x7f]
        %v6030 = vld [vmem:[%s2257 + $0xf0] sm:$0x7f]
        %v6031 = vld [vmem:[%s2257 + $0xf8] sm:$0x7f]
        %v6032 = vld [vmem:[%s2257 + $0x120] sm:$0x80]
        %v6033 = vld [vmem:[%s2257 + $0x128] sm:$0x80]
        %v6034 = vld [vmem:[%s2257 + $0x130] sm:$0x80]
        %v6035 = vld [vmem:[%s2257 + $0x138] sm:$0x80]
        %v6036 = vld [vmem:[%s2257 + $0x140] sm:$0x7f]
        %v6037 = vld [vmem:[%s2257 + $0x148] sm:$0x7f]
        %v6038 = vld [vmem:[%s2257 + $0x150] sm:$0x7f]
        %v6039 = vld [vmem:[%s2257 + $0x158] sm:$0x7f]
        %v6040 = vld [vmem:[%s2257 + $0x180] sm:$0x80]
        %v6041 = vld [vmem:[%s2257 + $0x188] sm:$0x80]
        %v6042 = vld [vmem:[%s2257 + $0x190] sm:$0x80]
        %v6043 = vld [vmem:[%s2257 + $0x198] sm:$0x80]
        %v6044 = vld [vmem:[%s2257 + $0x1a0] sm:$0x7f]
        %v6045 = vld [vmem:[%s2257 + $0x1a8] sm:$0x7f]
        %v6046 = vld [vmem:[%s2257 + $0x1b0] sm:$0x7f]
        %v6047 = vld [vmem:[%s2257 + $0x1b8] sm:$0x7f]
        %v6048 = vld [vmem:[%s2257 + $0x1e0] sm:$0x80]
        %v6049 = vld [vmem:[%s2257 + $0x1e8] sm:$0x80]
        %v6050 = vld [vmem:[%s2257 + $0x1f0] sm:$0x80]
        %v6051 = vld [vmem:[%s2257 + $0x1f8] sm:$0x80]
        %v6052 = vld [vmem:[%s2257 + $0x200] sm:$0x7f]
        %v6053 = vld [vmem:[%s2257 + $0x208] sm:$0x7f]
        %v6054 = vld [vmem:[%s2257 + $0x210] sm:$0x7f]
        %v6055 = vld [vmem:[%s2257 + $0x218] sm:$0x7f]
        %v6056 = vld [vmem:[%s2257 + $0x240] sm:$0x80]
        %v6057 = vld [vmem:[%s2257 + $0x248] sm:$0x80]
        %v6058 = vld [vmem:[%s2257 + $0x250] sm:$0x80]
        %v6059 = vld [vmem:[%s2257 + $0x258] sm:$0x80]
        %v6060 = vld [vmem:[%s2257 + $0x260] sm:$0x7f]
        %v6061 = vld [vmem:[%s2257 + $0x268] sm:$0x7f]
        %v6062 = vld [vmem:[%s2257 + $0x270] sm:$0x7f]
        %v6063 = vld [vmem:[%s2257 + $0x278] sm:$0x7f]
        %v6064 = vld [vmem:[%s2257 + $0x2a0] sm:$0x80]
        %v6065 = vld [vmem:[%s2257 + $0x2a8] sm:$0x80]
        %v6066 = vld [vmem:[%s2257 + $0x2b0] sm:$0x80]
        %v6067 = vld [vmem:[%s2257 + $0x2b8] sm:$0x80]
        %v6068 = vld [vmem:[%s2257 + $0x2c0] sm:$0x7f]
        %v6069 = vld [vmem:[%s2257 + $0x2c8] sm:$0x7f]
        %v6070 = vld [vmem:[%s2257 + $0x2d0] sm:$0x7f]
        %v6071 = vld [vmem:[%s2257 + $0x2d8] sm:$0x7f]
        %v6136 = vrot.slane %v6008, 7
        %v6137 = vrot.slane %v6012, 7
        %v6138 = vsel %vm774, %v6136, %v6137
        %v6139 = vrot.slane %v6009, 7
        %v6140 = vrot.slane %v6013, 7
        %v6141 = vsel %vm774, %v6139, %v6140
        %v6142 = vrot.slane %v6010, 7
        %v6143 = vrot.slane %v6014, 7
        %v6144 = vsel %vm774, %v6142, %v6143
        %v6145 = vrot.slane %v6011, 7
        %v6146 = vrot.slane %v6015, 7
        %v6147 = vsel %vm774, %v6145, %v6146
        %v6148 = vrot.slane %v6016, 7
        %v6149 = vrot.slane %v6020, 7
        %v6150 = vsel %vm774, %v6148, %v6149
        %v6151 = vrot.slane %v6017, 7
        %v6152 = vrot.slane %v6021, 7
        %v6153 = vsel %vm774, %v6151, %v6152
        %v6154 = vrot.slane %v6018, 7
        %v6155 = vrot.slane %v6022, 7
        %v6156 = vsel %vm774, %v6154, %v6155
        %v6157 = vrot.slane %v6019, 7
        %v6158 = vrot.slane %v6023, 7
        %v6159 = vsel %vm774, %v6157, %v6158
        %v6160 = vrot.slane %v6024, 7
        %v6161 = vrot.slane %v6028, 7
        %v6162 = vsel %vm774, %v6160, %v6161
        %v6163 = vrot.slane %v6025, 7
        %v6164 = vrot.slane %v6029, 7
        %v6165 = vsel %vm774, %v6163, %v6164
        %v6166 = vrot.slane %v6026, 7
        %v6167 = vrot.slane %v6030, 7
        %v6168 = vsel %vm774, %v6166, %v6167
        %v6169 = vrot.slane %v6027, 7
        %v6170 = vrot.slane %v6031, 7
        %v6171 = vsel %vm774, %v6169, %v6170
        %v6172 = vrot.slane %v6032, 7
        %v6173 = vrot.slane %v6036, 7
        %v6174 = vsel %vm774, %v6172, %v6173
        %v6175 = vrot.slane %v6033, 7
        %v6176 = vrot.slane %v6037, 7
        %v6177 = vsel %vm774, %v6175, %v6176
        %v6178 = vrot.slane %v6034, 7
        %v6179 = vrot.slane %v6038, 7
        %v6180 = vsel %vm774, %v6178, %v6179
        %v6181 = vrot.slane %v6035, 7
        %v6182 = vrot.slane %v6039, 7
        %v6183 = vsel %vm774, %v6181, %v6182
        %v6184 = vrot.slane %v6040, 7
        %v6185 = vrot.slane %v6044, 7
        %v6186 = vsel %vm774, %v6184, %v6185
        %v6187 = vrot.slane %v6041, 7
        %v6188 = vrot.slane %v6045, 7
        %v6189 = vsel %vm774, %v6187, %v6188
        %v6190 = vrot.slane %v6042, 7
        %v6191 = vrot.slane %v6046, 7
        %v6192 = vsel %vm774, %v6190, %v6191
        %v6193 = vrot.slane %v6043, 7
        %v6194 = vrot.slane %v6047, 7
        %v6195 = vsel %vm774, %v6193, %v6194
        %v6196 = vrot.slane %v6048, 7
        %v6197 = vrot.slane %v6052, 7
        %v6198 = vsel %vm774, %v6196, %v6197
        %v6199 = vrot.slane %v6049, 7
        %v6200 = vrot.slane %v6053, 7
        %v6201 = vsel %vm774, %v6199, %v6200
        %v6202 = vrot.slane %v6050, 7
        %v6203 = vrot.slane %v6054, 7
        %v6204 = vsel %vm774, %v6202, %v6203
        %v6205 = vrot.slane %v6051, 7
        %v6206 = vrot.slane %v6055, 7
        %v6207 = vsel %vm774, %v6205, %v6206
        %v6208 = vrot.slane %v6056, 7
        %v6209 = vrot.slane %v6060, 7
        %v6210 = vsel %vm774, %v6208, %v6209
        %v6211 = vrot.slane %v6057, 7
        %v6212 = vrot.slane %v6061, 7
        %v6213 = vsel %vm774, %v6211, %v6212
        %v6214 = vrot.slane %v6058, 7
        %v6215 = vrot.slane %v6062, 7
        %v6216 = vsel %vm774, %v6214, %v6215
        %v6217 = vrot.slane %v6059, 7
        %v6218 = vrot.slane %v6063, 7
        %v6219 = vsel %vm774, %v6217, %v6218
        %v6220 = vrot.slane %v6064, 7
        %v6221 = vrot.slane %v6068, 7
        %v6222 = vsel %vm774, %v6220, %v6221
        %v6223 = vrot.slane %v6065, 7
        %v6224 = vrot.slane %v6069, 7
        %v6225 = vsel %vm774, %v6223, %v6224
        %v6226 = vrot.slane %v6066, 7
        %v6227 = vrot.slane %v6070, 7
        %v6228 = vsel %vm774, %v6226, %v6227
        %v6229 = vrot.slane %v6067, 7
        %v6230 = vrot.slane %v6071, 7
        %v6231 = vsel %vm774, %v6229, %v6230
        %s6264 = scalar_lea.vmem [#allocation6], 60
        %v6265 = vld [vmem:[%s6264] sm:$0xf]
        %v6267 = vlaneseq
        %v6268 = vshrl.u32 %v6267, 7
        %v6269 = vsub.s32 0, %v6268
        %v6270 = vrot.slane %v6265, %v6269
        %v6271 = vlaneseq
        %v6272 = vshrl.u32 %v6271, 7
        %v6273 = vsub.s32 1, %v6272
        %v6274 = vrot.slane %v6265, %v6273
        %v6275 = vlaneseq
        %v6276 = vshrl.u32 %v6275, 7
        %v6277 = vsub.s32 2, %v6276
        %v6278 = vrot.slane %v6265, %v6277
        %v6279 = vlaneseq
        %v6280 = vshrl.u32 %v6279, 7
        %v6281 = vsub.s32 3, %v6280
        %v6282 = vrot.slane %v6265, %v6281
        %v6287 = vmul.f32 %v6138, %v6270
        %v6288 = vmul.f32 %v6141, %v6274
        %v6289 = vmul.f32 %v6144, %v6278
        %v6290 = vmul.f32 %v6147, %v6282
        %v6291 = vmul.f32 %v6150, %v6270
        %v6292 = vmul.f32 %v6153, %v6274
        %v6293 = vmul.f32 %v6156, %v6278
        %v6294 = vmul.f32 %v6159, %v6282
        %v6295 = vmul.f32 %v6162, %v6270
        %v6296 = vmul.f32 %v6165, %v6274
        %v6297 = vmul.f32 %v6168, %v6278
        %v6298 = vmul.f32 %v6171, %v6282
        %v6299 = vmul.f32 %v6174, %v6270
        %v6300 = vmul.f32 %v6177, %v6274
        %v6301 = vmul.f32 %v6180, %v6278
        %v6302 = vmul.f32 %v6183, %v6282
        %v6303 = vmul.f32 %v6186, %v6270
        %v6304 = vmul.f32 %v6189, %v6274
        %v6305 = vmul.f32 %v6192, %v6278
        %v6306 = vmul.f32 %v6195, %v6282
        %v6307 = vmul.f32 %v6198, %v6270
        %v6308 = vmul.f32 %v6201, %v6274
        %v6309 = vmul.f32 %v6204, %v6278
        %v6310 = vmul.f32 %v6207, %v6282
        %v6311 = vmul.f32 %v6210, %v6270
        %v6312 = vmul.f32 %v6213, %v6274
        %v6313 = vmul.f32 %v6216, %v6278
        %v6314 = vmul.f32 %v6219, %v6282
        %v6315 = vmul.f32 %v6222, %v6270
        %v6316 = vmul.f32 %v6225, %v6274
        %v6317 = vmul.f32 %v6228, %v6278
        %v6318 = vmul.f32 %v6231, %v6282
        %v6319 = vadd.f32 %v5976, %v6287
        %v6320 = vadd.f32 %v5977, %v6288
        %v6321 = vadd.f32 %v5978, %v6289
        %v6322 = vadd.f32 %v5979, %v6290
        %v6323 = vadd.f32 %v5980, %v6291
        %v6324 = vadd.f32 %v5981, %v6292
        %v6325 = vadd.f32 %v5982, %v6293
        %v6326 = vadd.f32 %v5983, %v6294
        %v6327 = vadd.f32 %v5984, %v6295
        %v6328 = vadd.f32 %v5985, %v6296
        %v6329 = vadd.f32 %v5986, %v6297
        %v6330 = vadd.f32 %v5987, %v6298
        %v6331 = vadd.f32 %v5988, %v6299
        %v6332 = vadd.f32 %v5989, %v6300
        %v6333 = vadd.f32 %v5990, %v6301
        %v6334 = vadd.f32 %v5991, %v6302
        %v6335 = vadd.f32 %v5992, %v6303
        %v6336 = vadd.f32 %v5993, %v6304
        %v6337 = vadd.f32 %v5994, %v6305
        %v6338 = vadd.f32 %v5995, %v6306
        %v6339 = vadd.f32 %v5996, %v6307
        %v6340 = vadd.f32 %v5997, %v6308
        %v6341 = vadd.f32 %v5998, %v6309
        %v6342 = vadd.f32 %v5999, %v6310
        %v6343 = vadd.f32 %v6000, %v6311
        %v6344 = vadd.f32 %v6001, %v6312
        %v6345 = vadd.f32 %v6002, %v6313
        %v6346 = vadd.f32 %v6003, %v6314
        %v6347 = vadd.f32 %v6004, %v6315
        %v6348 = vadd.f32 %v6005, %v6316
        %v6349 = vadd.f32 %v6006, %v6317
        %v6350 = vadd.f32 %v6007, %v6318
        %v6351 = vld [vmem:[%s2257 + $0x20] sm:$0xff]
        %v6352 = vld [vmem:[%s2257 + $0x28] sm:$0xff]
        %v6353 = vld [vmem:[%s2257 + $0x30] sm:$0xff]
        %v6354 = vld [vmem:[%s2257 + $0x38] sm:$0xff]
        %v6355 = vld [vmem:[%s2257 + $0x80] sm:$0xff]
        %v6356 = vld [vmem:[%s2257 + $0x88] sm:$0xff]
        %v6357 = vld [vmem:[%s2257 + $0x90] sm:$0xff]
        %v6358 = vld [vmem:[%s2257 + $0x98] sm:$0xff]
        %v6359 = vld [vmem:[%s2257 + $0xe0] sm:$0xff]
        %v6360 = vld [vmem:[%s2257 + $0xe8] sm:$0xff]
        %v6361 = vld [vmem:[%s2257 + $0xf0] sm:$0xff]
        %v6362 = vld [vmem:[%s2257 + $0xf8] sm:$0xff]
        %v6363 = vld [vmem:[%s2257 + $0x140] sm:$0xff]
        %v6364 = vld [vmem:[%s2257 + $0x148] sm:$0xff]
        %v6365 = vld [vmem:[%s2257 + $0x150] sm:$0xff]
        %v6366 = vld [vmem:[%s2257 + $0x158] sm:$0xff]
        %v6367 = vld [vmem:[%s2257 + $0x1a0] sm:$0xff]
        %v6368 = vld [vmem:[%s2257 + $0x1a8] sm:$0xff]
        %v6369 = vld [vmem:[%s2257 + $0x1b0] sm:$0xff]
        %v6370 = vld [vmem:[%s2257 + $0x1b8] sm:$0xff]
        %v6371 = vld [vmem:[%s2257 + $0x200] sm:$0xff]
        %v6372 = vld [vmem:[%s2257 + $0x208] sm:$0xff]
        %v6373 = vld [vmem:[%s2257 + $0x210] sm:$0xff]
        %v6374 = vld [vmem:[%s2257 + $0x218] sm:$0xff]
        %v6375 = vld [vmem:[%s2257 + $0x260] sm:$0xff]
        %v6376 = vld [vmem:[%s2257 + $0x268] sm:$0xff]
        %v6377 = vld [vmem:[%s2257 + $0x270] sm:$0xff]
        %v6378 = vld [vmem:[%s2257 + $0x278] sm:$0xff]
        %v6379 = vld [vmem:[%s2257 + $0x2c0] sm:$0xff]
        %v6380 = vld [vmem:[%s2257 + $0x2c8] sm:$0xff]
        %v6381 = vld [vmem:[%s2257 + $0x2d0] sm:$0xff]
        %v6382 = vld [vmem:[%s2257 + $0x2d8] sm:$0xff]
        %s6383 = scalar_lea.vmem [#allocation6], 64
        %v6384 = vld [vmem:[%s6383] sm:$0xf]
        %v6386 = vlaneseq
        %v6387 = vshrl.u32 %v6386, 7
        %v6388 = vsub.s32 0, %v6387
        %v6389 = vrot.slane %v6384, %v6388
        %v6390 = vlaneseq
        %v6391 = vshrl.u32 %v6390, 7
        %v6392 = vsub.s32 1, %v6391
        %v6393 = vrot.slane %v6384, %v6392
        %v6394 = vlaneseq
        %v6395 = vshrl.u32 %v6394, 7
        %v6396 = vsub.s32 2, %v6395
        %v6397 = vrot.slane %v6384, %v6396
        %v6398 = vlaneseq
        %v6399 = vshrl.u32 %v6398, 7
        %v6400 = vsub.s32 3, %v6399
        %v6401 = vrot.slane %v6384, %v6400
        %v6406 = vmul.f32 %v6351, %v6389
        %v6407 = vmul.f32 %v6352, %v6393
        %v6408 = vmul.f32 %v6353, %v6397
        %v6409 = vmul.f32 %v6354, %v6401
        %v6410 = vmul.f32 %v6355, %v6389
        %v6411 = vmul.f32 %v6356, %v6393
        %v6412 = vmul.f32 %v6357, %v6397
        %v6413 = vmul.f32 %v6358, %v6401
        %v6414 = vmul.f32 %v6359, %v6389
        %v6415 = vmul.f32 %v6360, %v6393
        %v6416 = vmul.f32 %v6361, %v6397
        %v6417 = vmul.f32 %v6362, %v6401
        %v6418 = vmul.f32 %v6363, %v6389
        %v6419 = vmul.f32 %v6364, %v6393
        %v6420 = vmul.f32 %v6365, %v6397
        %v6421 = vmul.f32 %v6366, %v6401
        %v6422 = vmul.f32 %v6367, %v6389
        %v6423 = vmul.f32 %v6368, %v6393
        %v6424 = vmul.f32 %v6369, %v6397
        %v6425 = vmul.f32 %v6370, %v6401
        %v6426 = vmul.f32 %v6371, %v6389
        %v6427 = vmul.f32 %v6372, %v6393
        %v6428 = vmul.f32 %v6373, %v6397
        %v6429 = vmul.f32 %v6374, %v6401
        %v6430 = vmul.f32 %v6375, %v6389
        %v6431 = vmul.f32 %v6376, %v6393
        %v6432 = vmul.f32 %v6377, %v6397
        %v6433 = vmul.f32 %v6378, %v6401
        %v6434 = vmul.f32 %v6379, %v6389
        %v6435 = vmul.f32 %v6380, %v6393
        %v6436 = vmul.f32 %v6381, %v6397
        %v6437 = vmul.f32 %v6382, %v6401
        %v6438 = vadd.f32 %v6319, %v6406
        %v6439 = vadd.f32 %v6320, %v6407
        %v6440 = vadd.f32 %v6321, %v6408
        %v6441 = vadd.f32 %v6322, %v6409
        %v6442 = vadd.f32 %v6323, %v6410
        %v6443 = vadd.f32 %v6324, %v6411
        %v6444 = vadd.f32 %v6325, %v6412
        %v6445 = vadd.f32 %v6326, %v6413
        %v6446 = vadd.f32 %v6327, %v6414
        %v6447 = vadd.f32 %v6328, %v6415
        %v6448 = vadd.f32 %v6329, %v6416
        %v6449 = vadd.f32 %v6330, %v6417
        %v6450 = vadd.f32 %v6331, %v6418
        %v6451 = vadd.f32 %v6332, %v6419
        %v6452 = vadd.f32 %v6333, %v6420
        %v6453 = vadd.f32 %v6334, %v6421
        %v6454 = vadd.f32 %v6335, %v6422
        %v6455 = vadd.f32 %v6336, %v6423
        %v6456 = vadd.f32 %v6337, %v6424
        %v6457 = vadd.f32 %v6338, %v6425
        %v6458 = vadd.f32 %v6339, %v6426
        %v6459 = vadd.f32 %v6340, %v6427
        %v6460 = vadd.f32 %v6341, %v6428
        %v6461 = vadd.f32 %v6342, %v6429
        %v6462 = vadd.f32 %v6343, %v6430
        %v6463 = vadd.f32 %v6344, %v6431
        %v6464 = vadd.f32 %v6345, %v6432
        %v6465 = vadd.f32 %v6346, %v6433
        %v6466 = vadd.f32 %v6347, %v6434
        %v6467 = vadd.f32 %v6348, %v6435
        %v6468 = vadd.f32 %v6349, %v6436
        %v6469 = vadd.f32 %v6350, %v6437
        %v6470 = vld [vmem:[%s2257 + $0x20] sm:$0xfe]
        %v6471 = vld [vmem:[%s2257 + $0x28] sm:$0xfe]
        %v6472 = vld [vmem:[%s2257 + $0x30] sm:$0xfe]
        %v6473 = vld [vmem:[%s2257 + $0x38] sm:$0xfe]
        %v6474 = vld [vmem:[%s2257 + $0x40] sm:$0x1]
        %v6475 = vld [vmem:[%s2257 + $0x48] sm:$0x1]
        %v6476 = vld [vmem:[%s2257 + $0x50] sm:$0x1]
        %v6477 = vld [vmem:[%s2257 + $0x58] sm:$0x1]
        %v6478 = vld [vmem:[%s2257 + $0x80] sm:$0xfe]
        %v6479 = vld [vmem:[%s2257 + $0x88] sm:$0xfe]
        %v6480 = vld [vmem:[%s2257 + $0x90] sm:$0xfe]
        %v6481 = vld [vmem:[%s2257 + $0x98] sm:$0xfe]
        %v6482 = vld [vmem:[%s2257 + $0xa0] sm:$0x1]
        %v6483 = vld [vmem:[%s2257 + $0xa8] sm:$0x1]
        %v6484 = vld [vmem:[%s2257 + $0xb0] sm:$0x1]
        %v6485 = vld [vmem:[%s2257 + $0xb8] sm:$0x1]
        %v6486 = vld [vmem:[%s2257 + $0xe0] sm:$0xfe]
        %v6487 = vld [vmem:[%s2257 + $0xe8] sm:$0xfe]
        %v6488 = vld [vmem:[%s2257 + $0xf0] sm:$0xfe]
        %v6489 = vld [vmem:[%s2257 + $0xf8] sm:$0xfe]
        %v6490 = vld [vmem:[%s2257 + $0x100] sm:$0x1]
        %v6491 = vld [vmem:[%s2257 + $0x108] sm:$0x1]
        %v6492 = vld [vmem:[%s2257 + $0x110] sm:$0x1]
        %v6493 = vld [vmem:[%s2257 + $0x118] sm:$0x1]
        %v6494 = vld [vmem:[%s2257 + $0x140] sm:$0xfe]
        %v6495 = vld [vmem:[%s2257 + $0x148] sm:$0xfe]
        %v6496 = vld [vmem:[%s2257 + $0x150] sm:$0xfe]
        %v6497 = vld [vmem:[%s2257 + $0x158] sm:$0xfe]
        %v6498 = vld [vmem:[%s2257 + $0x160] sm:$0x1]
        %v6499 = vld [vmem:[%s2257 + $0x168] sm:$0x1]
        %v6500 = vld [vmem:[%s2257 + $0x170] sm:$0x1]
        %v6501 = vld [vmem:[%s2257 + $0x178] sm:$0x1]
        %v6502 = vld [vmem:[%s2257 + $0x1a0] sm:$0xfe]
        %v6503 = vld [vmem:[%s2257 + $0x1a8] sm:$0xfe]
        %v6504 = vld [vmem:[%s2257 + $0x1b0] sm:$0xfe]
        %v6505 = vld [vmem:[%s2257 + $0x1b8] sm:$0xfe]
        %v6506 = vld [vmem:[%s2257 + $0x1c0] sm:$0x1]
        %v6507 = vld [vmem:[%s2257 + $0x1c8] sm:$0x1]
        %v6508 = vld [vmem:[%s2257 + $0x1d0] sm:$0x1]
        %v6509 = vld [vmem:[%s2257 + $0x1d8] sm:$0x1]
        %v6510 = vld [vmem:[%s2257 + $0x200] sm:$0xfe]
        %v6511 = vld [vmem:[%s2257 + $0x208] sm:$0xfe]
        %v6512 = vld [vmem:[%s2257 + $0x210] sm:$0xfe]
        %v6513 = vld [vmem:[%s2257 + $0x218] sm:$0xfe]
        %v6514 = vld [vmem:[%s2257 + $0x220] sm:$0x1]
        %v6515 = vld [vmem:[%s2257 + $0x228] sm:$0x1]
        %v6516 = vld [vmem:[%s2257 + $0x230] sm:$0x1]
        %v6517 = vld [vmem:[%s2257 + $0x238] sm:$0x1]
        %v6518 = vld [vmem:[%s2257 + $0x260] sm:$0xfe]
        %v6519 = vld [vmem:[%s2257 + $0x268] sm:$0xfe]
        %v6520 = vld [vmem:[%s2257 + $0x270] sm:$0xfe]
        %v6521 = vld [vmem:[%s2257 + $0x278] sm:$0xfe]
        %v6522 = vld [vmem:[%s2257 + $0x280] sm:$0x1]
        %v6523 = vld [vmem:[%s2257 + $0x288] sm:$0x1]
        %v6524 = vld [vmem:[%s2257 + $0x290] sm:$0x1]
        %v6525 = vld [vmem:[%s2257 + $0x298] sm:$0x1]
        %v6526 = vld [vmem:[%s2257 + $0x2c0] sm:$0xfe]
        %v6527 = vld [vmem:[%s2257 + $0x2c8] sm:$0xfe]
        %v6528 = vld [vmem:[%s2257 + $0x2d0] sm:$0xfe]
        %v6529 = vld [vmem:[%s2257 + $0x2d8] sm:$0xfe]
        %v6530 = vld [vmem:[%s2257 + $0x2e0] sm:$0x1]
        %v6531 = vld [vmem:[%s2257 + $0x2e8] sm:$0x1]
        %v6532 = vld [vmem:[%s2257 + $0x2f0] sm:$0x1]
        %v6533 = vld [vmem:[%s2257 + $0x2f8] sm:$0x1]
        %v6598 = vrot.slane %v6470, 1
        %v6599 = vrot.slane %v6474, 1
        %v6600 = vsel %vm1236, %v6598, %v6599
        %v6601 = vrot.slane %v6471, 1
        %v6602 = vrot.slane %v6475, 1
        %v6603 = vsel %vm1236, %v6601, %v6602
        %v6604 = vrot.slane %v6472, 1
        %v6605 = vrot.slane %v6476, 1
        %v6606 = vsel %vm1236, %v6604, %v6605
        %v6607 = vrot.slane %v6473, 1
        %v6608 = vrot.slane %v6477, 1
        %v6609 = vsel %vm1236, %v6607, %v6608
        %v6610 = vrot.slane %v6478, 1
        %v6611 = vrot.slane %v6482, 1
        %v6612 = vsel %vm1236, %v6610, %v6611
        %v6613 = vrot.slane %v6479, 1
        %v6614 = vrot.slane %v6483, 1
        %v6615 = vsel %vm1236, %v6613, %v6614
        %v6616 = vrot.slane %v6480, 1
        %v6617 = vrot.slane %v6484, 1
        %v6618 = vsel %vm1236, %v6616, %v6617
        %v6619 = vrot.slane %v6481, 1
        %v6620 = vrot.slane %v6485, 1
        %v6621 = vsel %vm1236, %v6619, %v6620
        %v6622 = vrot.slane %v6486, 1
        %v6623 = vrot.slane %v6490, 1
        %v6624 = vsel %vm1236, %v6622, %v6623
        %v6625 = vrot.slane %v6487, 1
        %v6626 = vrot.slane %v6491, 1
        %v6627 = vsel %vm1236, %v6625, %v6626
        %v6628 = vrot.slane %v6488, 1
        %v6629 = vrot.slane %v6492, 1
        %v6630 = vsel %vm1236, %v6628, %v6629
        %v6631 = vrot.slane %v6489, 1
        %v6632 = vrot.slane %v6493, 1
        %v6633 = vsel %vm1236, %v6631, %v6632
        %v6634 = vrot.slane %v6494, 1
        %v6635 = vrot.slane %v6498, 1
        %v6636 = vsel %vm1236, %v6634, %v6635
        %v6637 = vrot.slane %v6495, 1
        %v6638 = vrot.slane %v6499, 1
        %v6639 = vsel %vm1236, %v6637, %v6638
        %v6640 = vrot.slane %v6496, 1
        %v6641 = vrot.slane %v6500, 1
        %v6642 = vsel %vm1236, %v6640, %v6641
        %v6643 = vrot.slane %v6497, 1
        %v6644 = vrot.slane %v6501, 1
        %v6645 = vsel %vm1236, %v6643, %v6644
        %v6646 = vrot.slane %v6502, 1
        %v6647 = vrot.slane %v6506, 1
        %v6648 = vsel %vm1236, %v6646, %v6647
        %v6649 = vrot.slane %v6503, 1
        %v6650 = vrot.slane %v6507, 1
        %v6651 = vsel %vm1236, %v6649, %v6650
        %v6652 = vrot.slane %v6504, 1
        %v6653 = vrot.slane %v6508, 1
        %v6654 = vsel %vm1236, %v6652, %v6653
        %v6655 = vrot.slane %v6505, 1
        %v6656 = vrot.slane %v6509, 1
        %v6657 = vsel %vm1236, %v6655, %v6656
        %v6658 = vrot.slane %v6510, 1
        %v6659 = vrot.slane %v6514, 1
        %v6660 = vsel %vm1236, %v6658, %v6659
        %v6661 = vrot.slane %v6511, 1
        %v6662 = vrot.slane %v6515, 1
        %v6663 = vsel %vm1236, %v6661, %v6662
        %v6664 = vrot.slane %v6512, 1
        %v6665 = vrot.slane %v6516, 1
        %v6666 = vsel %vm1236, %v6664, %v6665
        %v6667 = vrot.slane %v6513, 1
        %v6668 = vrot.slane %v6517, 1
        %v6669 = vsel %vm1236, %v6667, %v6668
        %v6670 = vrot.slane %v6518, 1
        %v6671 = vrot.slane %v6522, 1
        %v6672 = vsel %vm1236, %v6670, %v6671
        %v6673 = vrot.slane %v6519, 1
        %v6674 = vrot.slane %v6523, 1
        %v6675 = vsel %vm1236, %v6673, %v6674
        %v6676 = vrot.slane %v6520, 1
        %v6677 = vrot.slane %v6524, 1
        %v6678 = vsel %vm1236, %v6676, %v6677
        %v6679 = vrot.slane %v6521, 1
        %v6680 = vrot.slane %v6525, 1
        %v6681 = vsel %vm1236, %v6679, %v6680
        %v6682 = vrot.slane %v6526, 1
        %v6683 = vrot.slane %v6530, 1
        %v6684 = vsel %vm1236, %v6682, %v6683
        %v6685 = vrot.slane %v6527, 1
        %v6686 = vrot.slane %v6531, 1
        %v6687 = vsel %vm1236, %v6685, %v6686
        %v6688 = vrot.slane %v6528, 1
        %v6689 = vrot.slane %v6532, 1
        %v6690 = vsel %vm1236, %v6688, %v6689
        %v6691 = vrot.slane %v6529, 1
        %v6692 = vrot.slane %v6533, 1
        %v6693 = vsel %vm1236, %v6691, %v6692
        %s6726 = scalar_lea.vmem [#allocation6], 68
        %v6727 = vld [vmem:[%s6726] sm:$0xf]
        %v6729 = vlaneseq
        %v6730 = vshrl.u32 %v6729, 7
        %v6731 = vsub.s32 0, %v6730
        %v6732 = vrot.slane %v6727, %v6731
        %v6733 = vlaneseq
        %v6734 = vshrl.u32 %v6733, 7
        %v6735 = vsub.s32 1, %v6734
        %v6736 = vrot.slane %v6727, %v6735
        %v6737 = vlaneseq
        %v6738 = vshrl.u32 %v6737, 7
        %v6739 = vsub.s32 2, %v6738
        %v6740 = vrot.slane %v6727, %v6739
        %v6741 = vlaneseq
        %v6742 = vshrl.u32 %v6741, 7
        %v6743 = vsub.s32 3, %v6742
        %v6744 = vrot.slane %v6727, %v6743
        %v6749 = vmul.f32 %v6600, %v6732
        %v6750 = vmul.f32 %v6603, %v6736
        %v6751 = vmul.f32 %v6606, %v6740
        %v6752 = vmul.f32 %v6609, %v6744
        %v6753 = vmul.f32 %v6612, %v6732
        %v6754 = vmul.f32 %v6615, %v6736
        %v6755 = vmul.f32 %v6618, %v6740
        %v6756 = vmul.f32 %v6621, %v6744
        %v6757 = vmul.f32 %v6624, %v6732
        %v6758 = vmul.f32 %v6627, %v6736
        %v6759 = vmul.f32 %v6630, %v6740
        %v6760 = vmul.f32 %v6633, %v6744
        %v6761 = vmul.f32 %v6636, %v6732
        %v6762 = vmul.f32 %v6639, %v6736
        %v6763 = vmul.f32 %v6642, %v6740
        %v6764 = vmul.f32 %v6645, %v6744
        %v6765 = vmul.f32 %v6648, %v6732
        %v6766 = vmul.f32 %v6651, %v6736
        %v6767 = vmul.f32 %v6654, %v6740
        %v6768 = vmul.f32 %v6657, %v6744
        %v6769 = vmul.f32 %v6660, %v6732
        %v6770 = vmul.f32 %v6663, %v6736
        %v6771 = vmul.f32 %v6666, %v6740
        %v6772 = vmul.f32 %v6669, %v6744
        %v6773 = vmul.f32 %v6672, %v6732
        %v6774 = vmul.f32 %v6675, %v6736
        %v6775 = vmul.f32 %v6678, %v6740
        %v6776 = vmul.f32 %v6681, %v6744
        %v6777 = vmul.f32 %v6684, %v6732
        %v6778 = vmul.f32 %v6687, %v6736
        %v6779 = vmul.f32 %v6690, %v6740
        %v6780 = vmul.f32 %v6693, %v6744
        %v6781 = vadd.f32 %v6438, %v6749
        %v6782 = vadd.f32 %v6439, %v6750
        %v6783 = vadd.f32 %v6440, %v6751
        %v6784 = vadd.f32 %v6441, %v6752
        %v6785 = vadd.f32 %v6442, %v6753
        %v6786 = vadd.f32 %v6443, %v6754
        %v6787 = vadd.f32 %v6444, %v6755
        %v6788 = vadd.f32 %v6445, %v6756
        %v6789 = vadd.f32 %v6446, %v6757
        %v6790 = vadd.f32 %v6447, %v6758
        %v6791 = vadd.f32 %v6448, %v6759
        %v6792 = vadd.f32 %v6449, %v6760
        %v6793 = vadd.f32 %v6450, %v6761
        %v6794 = vadd.f32 %v6451, %v6762
        %v6795 = vadd.f32 %v6452, %v6763
        %v6796 = vadd.f32 %v6453, %v6764
        %v6797 = vadd.f32 %v6454, %v6765
        %v6798 = vadd.f32 %v6455, %v6766
        %v6799 = vadd.f32 %v6456, %v6767
        %v6800 = vadd.f32 %v6457, %v6768
        %v6801 = vadd.f32 %v6458, %v6769
        %v6802 = vadd.f32 %v6459, %v6770
        %v6803 = vadd.f32 %v6460, %v6771
        %v6804 = vadd.f32 %v6461, %v6772
        %v6805 = vadd.f32 %v6462, %v6773
        %v6806 = vadd.f32 %v6463, %v6774
        %v6807 = vadd.f32 %v6464, %v6775
        %v6808 = vadd.f32 %v6465, %v6776
        %v6809 = vadd.f32 %v6466, %v6777
        %v6810 = vadd.f32 %v6467, %v6778
        %v6811 = vadd.f32 %v6468, %v6779
        %v6812 = vadd.f32 %v6469, %v6780
        %v6813 = vpack.c.bf16 %v6785, %v6781
        %v6814 = vpack.c.bf16 %v6786, %v6782
        %v6815 = vpack.c.bf16 %v6787, %v6783
        %v6816 = vpack.c.bf16 %v6788, %v6784
        %v6817 = vpack.c.bf16 %v6793, %v6789
        %v6818 = vpack.c.bf16 %v6794, %v6790
        %v6819 = vpack.c.bf16 %v6795, %v6791
        %v6820 = vpack.c.bf16 %v6796, %v6792
        %v6821 = vpack.c.bf16 %v6801, %v6797
        %v6822 = vpack.c.bf16 %v6802, %v6798
        %v6823 = vpack.c.bf16 %v6803, %v6799
        %v6824 = vpack.c.bf16 %v6804, %v6800
        %v6825 = vpack.c.bf16 %v6809, %v6805
        %v6826 = vpack.c.bf16 %v6810, %v6806
        %v6827 = vpack.c.bf16 %v6811, %v6807
        %v6828 = vpack.c.bf16 %v6812, %v6808
        %s6829 = scalar_lea.vmem [#allocation8], 1024
        %v6830 = vld [vmem:[%s6829] sm:$0xff]
        %v6831 = vld [vmem:[%s6829 + $0x8] sm:$0xff]
        %v6832 = vld [vmem:[%s6829 + $0x10] sm:$0xff]
        %v6833 = vld [vmem:[%s6829 + $0x18] sm:$0xff]
        %v6834 = vld [vmem:[%s6829 + $0x20] sm:$0xff]
        %v6835 = vld [vmem:[%s6829 + $0x28] sm:$0xff]
        %v6836 = vld [vmem:[%s6829 + $0x30] sm:$0xff]
        %v6837 = vld [vmem:[%s6829 + $0x38] sm:$0xff]
        %v6838 = vld [vmem:[%s6829 + $0x40] sm:$0xff]
        %v6839 = vld [vmem:[%s6829 + $0x48] sm:$0xff]
        %v6840 = vld [vmem:[%s6829 + $0x50] sm:$0xff]
        %v6841 = vld [vmem:[%s6829 + $0x58] sm:$0xff]
        %v6842 = vld [vmem:[%s6829 + $0x60] sm:$0xff]
        %v6843 = vld [vmem:[%s6829 + $0x68] sm:$0xff]
        %v6844 = vld [vmem:[%s6829 + $0x70] sm:$0xff]
        %v6845 = vld [vmem:[%s6829 + $0x78] sm:$0xff]
        %v6846 = vld [vmem:[%s6829 + $0x80] sm:$0xff]
        %v6847 = vld [vmem:[%s6829 + $0x88] sm:$0xff]
        %v6848 = vld [vmem:[%s6829 + $0x90] sm:$0xff]
        %v6849 = vld [vmem:[%s6829 + $0x98] sm:$0xff]
        %v6850 = vld [vmem:[%s6829 + $0xa0] sm:$0xff]
        %v6851 = vld [vmem:[%s6829 + $0xa8] sm:$0xff]
        %v6852 = vld [vmem:[%s6829 + $0xb0] sm:$0xff]
        %v6853 = vld [vmem:[%s6829 + $0xb8] sm:$0xff]
        %v6854 = vld [vmem:[%s6829 + $0xc0] sm:$0xff]
        %v6855 = vld [vmem:[%s6829 + $0xc8] sm:$0xff]
        %v6856 = vld [vmem:[%s6829 + $0xd0] sm:$0xff]
        %v6857 = vld [vmem:[%s6829 + $0xd8] sm:$0xff]
        %v6858 = vld [vmem:[%s6829 + $0xe0] sm:$0xff]
        %v6859 = vld [vmem:[%s6829 + $0xe8] sm:$0xff]
        %v6860 = vld [vmem:[%s6829 + $0xf0] sm:$0xff]
        %v6861 = vld [vmem:[%s6829 + $0xf8] sm:$0xff]
        %v6862 = vld [vmem:[%s6829 + $0x100] sm:$0xff]
        %v6863 = vld [vmem:[%s6829 + $0x108] sm:$0xff]
        %v6864 = vld [vmem:[%s6829 + $0x110] sm:$0xff]
        %v6865 = vld [vmem:[%s6829 + $0x118] sm:$0xff]
        %v6866 = vld [vmem:[%s6829 + $0x120] sm:$0xff]
        %v6867 = vld [vmem:[%s6829 + $0x128] sm:$0xff]
        %v6868 = vld [vmem:[%s6829 + $0x130] sm:$0xff]
        %v6869 = vld [vmem:[%s6829 + $0x138] sm:$0xff]
        %v6870 = vld [vmem:[%s6829 + $0x140] sm:$0xff]
        %v6871 = vld [vmem:[%s6829 + $0x148] sm:$0xff]
        %v6872 = vld [vmem:[%s6829 + $0x150] sm:$0xff]
        %v6873 = vld [vmem:[%s6829 + $0x158] sm:$0xff]
        %v6874 = vld [vmem:[%s6829 + $0x160] sm:$0xff]
        %v6875 = vld [vmem:[%s6829 + $0x168] sm:$0xff]
        %v6876 = vld [vmem:[%s6829 + $0x170] sm:$0xff]
        %v6877 = vld [vmem:[%s6829 + $0x178] sm:$0xff]
        %v6878 = vld [vmem:[%s6829 + $0x180] sm:$0xff]
        %v6879 = vld [vmem:[%s6829 + $0x188] sm:$0xff]
        %v6880 = vld [vmem:[%s6829 + $0x190] sm:$0xff]
        %v6881 = vld [vmem:[%s6829 + $0x198] sm:$0xff]
        %v6882 = vld [vmem:[%s6829 + $0x1a0] sm:$0xff]
        %v6883 = vld [vmem:[%s6829 + $0x1a8] sm:$0xff]
        %v6884 = vld [vmem:[%s6829 + $0x1b0] sm:$0xff]
        %v6885 = vld [vmem:[%s6829 + $0x1b8] sm:$0xff]
        %v6886 = vld [vmem:[%s6829 + $0x1c0] sm:$0xff]
        %v6887 = vld [vmem:[%s6829 + $0x1c8] sm:$0xff]
        %v6888 = vld [vmem:[%s6829 + $0x1d0] sm:$0xff]
        %v6889 = vld [vmem:[%s6829 + $0x1d8] sm:$0xff]
        %v6890 = vld [vmem:[%s6829 + $0x1e0] sm:$0xff]
        %v6891 = vld [vmem:[%s6829 + $0x1e8] sm:$0xff]
        %v6892 = vld [vmem:[%s6829 + $0x1f0] sm:$0xff]
        %v6893 = vld [vmem:[%s6829 + $0x1f8] sm:$0xff]
        %v6894 = vld [vmem:[%s6829 + $0x200] sm:$0xff]
        %v6895 = vld [vmem:[%s6829 + $0x208] sm:$0xff]
        %v6896 = vld [vmem:[%s6829 + $0x210] sm:$0xff]
        %v6897 = vld [vmem:[%s6829 + $0x218] sm:$0xff]
        %v6898 = vld [vmem:[%s6829 + $0x220] sm:$0xff]
        %v6899 = vld [vmem:[%s6829 + $0x228] sm:$0xff]
        %v6900 = vld [vmem:[%s6829 + $0x230] sm:$0xff]
        %v6901 = vld [vmem:[%s6829 + $0x238] sm:$0xff]
        %v6902 = vld [vmem:[%s6829 + $0x240] sm:$0xff]
        %v6903 = vld [vmem:[%s6829 + $0x248] sm:$0xff]
        %v6904 = vld [vmem:[%s6829 + $0x250] sm:$0xff]
        %v6905 = vld [vmem:[%s6829 + $0x258] sm:$0xff]
        %v6906 = vld [vmem:[%s6829 + $0x260] sm:$0xff]
        %v6907 = vld [vmem:[%s6829 + $0x268] sm:$0xff]
        %v6908 = vld [vmem:[%s6829 + $0x270] sm:$0xff]
        %v6909 = vld [vmem:[%s6829 + $0x278] sm:$0xff]
        %v6910 = vld [vmem:[%s6829 + $0x280] sm:$0xff]
        %v6911 = vld [vmem:[%s6829 + $0x288] sm:$0xff]
        %v6912 = vld [vmem:[%s6829 + $0x290] sm:$0xff]
        %v6913 = vld [vmem:[%s6829 + $0x298] sm:$0xff]
        %v6914 = vld [vmem:[%s6829 + $0x2a0] sm:$0xff]
        %v6915 = vld [vmem:[%s6829 + $0x2a8] sm:$0xff]
        %v6916 = vld [vmem:[%s6829 + $0x2b0] sm:$0xff]
        %v6917 = vld [vmem:[%s6829 + $0x2b8] sm:$0xff]
        %v6918 = vld [vmem:[%s6829 + $0x2c0] sm:$0xff]
        %v6919 = vld [vmem:[%s6829 + $0x2c8] sm:$0xff]
        %v6920 = vld [vmem:[%s6829 + $0x2d0] sm:$0xff]
        %v6921 = vld [vmem:[%s6829 + $0x2d8] sm:$0xff]
        %v6922 = vld [vmem:[%s6829 + $0x2e0] sm:$0xff]
        %v6923 = vld [vmem:[%s6829 + $0x2e8] sm:$0xff]
        %v6924 = vld [vmem:[%s6829 + $0x2f0] sm:$0xff]
        %v6925 = vld [vmem:[%s6829 + $0x2f8] sm:$0xff]
        %v6926 = vld [vmem:[%s6829 + $0x300] sm:$0xff]
        %v6927 = vld [vmem:[%s6829 + $0x308] sm:$0xff]
        %v6928 = vld [vmem:[%s6829 + $0x310] sm:$0xff]
        %v6929 = vld [vmem:[%s6829 + $0x318] sm:$0xff]
        %v6930 = vld [vmem:[%s6829 + $0x320] sm:$0xff]
        %v6931 = vld [vmem:[%s6829 + $0x328] sm:$0xff]
        %v6932 = vld [vmem:[%s6829 + $0x330] sm:$0xff]
        %v6933 = vld [vmem:[%s6829 + $0x338] sm:$0xff]
        %v6934 = vld [vmem:[%s6829 + $0x340] sm:$0xff]
        %v6935 = vld [vmem:[%s6829 + $0x348] sm:$0xff]
        %v6936 = vld [vmem:[%s6829 + $0x350] sm:$0xff]
        %v6937 = vld [vmem:[%s6829 + $0x358] sm:$0xff]
        %v6938 = vld [vmem:[%s6829 + $0x360] sm:$0xff]
        %v6939 = vld [vmem:[%s6829 + $0x368] sm:$0xff]
        %v6940 = vld [vmem:[%s6829 + $0x370] sm:$0xff]
        %v6941 = vld [vmem:[%s6829 + $0x378] sm:$0xff]
        %v6942 = vld [vmem:[%s6829 + $0x380] sm:$0xff]
        %v6943 = vld [vmem:[%s6829 + $0x388] sm:$0xff]
        %v6944 = vld [vmem:[%s6829 + $0x390] sm:$0xff]
        %v6945 = vld [vmem:[%s6829 + $0x398] sm:$0xff]
        %v6946 = vld [vmem:[%s6829 + $0x3a0] sm:$0xff]
        %v6947 = vld [vmem:[%s6829 + $0x3a8] sm:$0xff]
        %v6948 = vld [vmem:[%s6829 + $0x3b0] sm:$0xff]
        %v6949 = vld [vmem:[%s6829 + $0x3b8] sm:$0xff]
        %v6950 = vld [vmem:[%s6829 + $0x3c0] sm:$0xff]
        %v6951 = vld [vmem:[%s6829 + $0x3c8] sm:$0xff]
        %v6952 = vld [vmem:[%s6829 + $0x3d0] sm:$0xff]
        %v6953 = vld [vmem:[%s6829 + $0x3d8] sm:$0xff]
        %v6954 = vld [vmem:[%s6829 + $0x3e0] sm:$0xff]
        %v6955 = vld [vmem:[%s6829 + $0x3e8] sm:$0xff]
        %v6956 = vld [vmem:[%s6829 + $0x3f0] sm:$0xff]
        %v6957 = vld [vmem:[%s6829 + $0x3f8] sm:$0xff]
        %v7086 = vunpack.c.l.b16 %v6830
        %v7087 = vunpack.c.h.b16 %v6830
        %v7088 = vunpack.c.l.b16 %v6831
        %v7089 = vunpack.c.h.b16 %v6831
        %v7090 = vunpack.c.l.b16 %v6832
        %v7091 = vunpack.c.h.b16 %v6832
        %v7092 = vunpack.c.l.b16 %v6833
        %v7093 = vunpack.c.h.b16 %v6833
        %v7094 = vunpack.c.l.b16 %v6834
        %v7095 = vunpack.c.h.b16 %v6834
        %v7096 = vunpack.c.l.b16 %v6835
        %v7097 = vunpack.c.h.b16 %v6835
        %v7098 = vunpack.c.l.b16 %v6836
        %v7099 = vunpack.c.h.b16 %v6836
        %v7100 = vunpack.c.l.b16 %v6837
        %v7101 = vunpack.c.h.b16 %v6837
        %v7102 = vunpack.c.l.b16 %v6838
        %v7103 = vunpack.c.h.b16 %v6838
        %v7104 = vunpack.c.l.b16 %v6839
        %v7105 = vunpack.c.h.b16 %v6839
        %v7106 = vunpack.c.l.b16 %v6840
        %v7107 = vunpack.c.h.b16 %v6840
        %v7108 = vunpack.c.l.b16 %v6841
        %v7109 = vunpack.c.h.b16 %v6841
        %v7110 = vunpack.c.l.b16 %v6842
        %v7111 = vunpack.c.h.b16 %v6842
        %v7112 = vunpack.c.l.b16 %v6843
        %v7113 = vunpack.c.h.b16 %v6843
        %v7114 = vunpack.c.l.b16 %v6844
        %v7115 = vunpack.c.h.b16 %v6844
        %v7116 = vunpack.c.l.b16 %v6845
        %v7117 = vunpack.c.h.b16 %v6845
        %v7118 = vunpack.c.l.b16 %v6846
        %v7119 = vunpack.c.h.b16 %v6846
        %v7120 = vunpack.c.l.b16 %v6847
        %v7121 = vunpack.c.h.b16 %v6847
        %v7122 = vunpack.c.l.b16 %v6848
        %v7123 = vunpack.c.h.b16 %v6848
        %v7124 = vunpack.c.l.b16 %v6849
        %v7125 = vunpack.c.h.b16 %v6849
        %v7126 = vunpack.c.l.b16 %v6850
        %v7127 = vunpack.c.h.b16 %v6850
        %v7128 = vunpack.c.l.b16 %v6851
        %v7129 = vunpack.c.h.b16 %v6851
        %v7130 = vunpack.c.l.b16 %v6852
        %v7131 = vunpack.c.h.b16 %v6852
        %v7132 = vunpack.c.l.b16 %v6853
        %v7133 = vunpack.c.h.b16 %v6853
        %v7134 = vunpack.c.l.b16 %v6854
        %v7135 = vunpack.c.h.b16 %v6854
        %v7136 = vunpack.c.l.b16 %v6855
        %v7137 = vunpack.c.h.b16 %v6855
        %v7138 = vunpack.c.l.b16 %v6856
        %v7139 = vunpack.c.h.b16 %v6856
        %v7140 = vunpack.c.l.b16 %v6857
        %v7141 = vunpack.c.h.b16 %v6857
        %v7142 = vunpack.c.l.b16 %v6858
        %v7143 = vunpack.c.h.b16 %v6858
        %v7144 = vunpack.c.l.b16 %v6859
        %v7145 = vunpack.c.h.b16 %v6859
        %v7146 = vunpack.c.l.b16 %v6860
        %v7147 = vunpack.c.h.b16 %v6860
        %v7148 = vunpack.c.l.b16 %v6861
        %v7149 = vunpack.c.h.b16 %v6861
        %v7150 = vunpack.c.l.b16 %v6862
        %v7151 = vunpack.c.h.b16 %v6862
        %v7152 = vunpack.c.l.b16 %v6863
        %v7153 = vunpack.c.h.b16 %v6863
        %v7154 = vunpack.c.l.b16 %v6864
        %v7155 = vunpack.c.h.b16 %v6864
        %v7156 = vunpack.c.l.b16 %v6865
        %v7157 = vunpack.c.h.b16 %v6865
        %v7158 = vunpack.c.l.b16 %v6866
        %v7159 = vunpack.c.h.b16 %v6866
        %v7160 = vunpack.c.l.b16 %v6867
        %v7161 = vunpack.c.h.b16 %v6867
        %v7162 = vunpack.c.l.b16 %v6868
        %v7163 = vunpack.c.h.b16 %v6868
        %v7164 = vunpack.c.l.b16 %v6869
        %v7165 = vunpack.c.h.b16 %v6869
        %v7166 = vunpack.c.l.b16 %v6870
        %v7167 = vunpack.c.h.b16 %v6870
        %v7168 = vunpack.c.l.b16 %v6871
        %v7169 = vunpack.c.h.b16 %v6871
        %v7170 = vunpack.c.l.b16 %v6872
        %v7171 = vunpack.c.h.b16 %v6872
        %v7172 = vunpack.c.l.b16 %v6873
        %v7173 = vunpack.c.h.b16 %v6873
        %v7174 = vunpack.c.l.b16 %v6874
        %v7175 = vunpack.c.h.b16 %v6874
        %v7176 = vunpack.c.l.b16 %v6875
        %v7177 = vunpack.c.h.b16 %v6875
        %v7178 = vunpack.c.l.b16 %v6876
        %v7179 = vunpack.c.h.b16 %v6876
        %v7180 = vunpack.c.l.b16 %v6877
        %v7181 = vunpack.c.h.b16 %v6877
        %v7182 = vunpack.c.l.b16 %v6878
        %v7183 = vunpack.c.h.b16 %v6878
        %v7184 = vunpack.c.l.b16 %v6879
        %v7185 = vunpack.c.h.b16 %v6879
        %v7186 = vunpack.c.l.b16 %v6880
        %v7187 = vunpack.c.h.b16 %v6880
        %v7188 = vunpack.c.l.b16 %v6881
        %v7189 = vunpack.c.h.b16 %v6881
        %v7190 = vunpack.c.l.b16 %v6882
        %v7191 = vunpack.c.h.b16 %v6882
        %v7192 = vunpack.c.l.b16 %v6883
        %v7193 = vunpack.c.h.b16 %v6883
        %v7194 = vunpack.c.l.b16 %v6884
        %v7195 = vunpack.c.h.b16 %v6884
        %v7196 = vunpack.c.l.b16 %v6885
        %v7197 = vunpack.c.h.b16 %v6885
        %v7198 = vunpack.c.l.b16 %v6886
        %v7199 = vunpack.c.h.b16 %v6886
        %v7200 = vunpack.c.l.b16 %v6887
        %v7201 = vunpack.c.h.b16 %v6887
        %v7202 = vunpack.c.l.b16 %v6888
        %v7203 = vunpack.c.h.b16 %v6888
        %v7204 = vunpack.c.l.b16 %v6889
        %v7205 = vunpack.c.h.b16 %v6889
        %v7206 = vunpack.c.l.b16 %v6890
        %v7207 = vunpack.c.h.b16 %v6890
        %v7208 = vunpack.c.l.b16 %v6891
        %v7209 = vunpack.c.h.b16 %v6891
        %v7210 = vunpack.c.l.b16 %v6892
        %v7211 = vunpack.c.h.b16 %v6892
        %v7212 = vunpack.c.l.b16 %v6893
        %v7213 = vunpack.c.h.b16 %v6893
        %v7214 = vunpack.c.l.b16 %v6894
        %v7215 = vunpack.c.h.b16 %v6894
        %v7216 = vunpack.c.l.b16 %v6895
        %v7217 = vunpack.c.h.b16 %v6895
        %v7218 = vunpack.c.l.b16 %v6896
        %v7219 = vunpack.c.h.b16 %v6896
        %v7220 = vunpack.c.l.b16 %v6897
        %v7221 = vunpack.c.h.b16 %v6897
        %v7222 = vunpack.c.l.b16 %v6898
        %v7223 = vunpack.c.h.b16 %v6898
        %v7224 = vunpack.c.l.b16 %v6899
        %v7225 = vunpack.c.h.b16 %v6899
        %v7226 = vunpack.c.l.b16 %v6900
        %v7227 = vunpack.c.h.b16 %v6900
        %v7228 = vunpack.c.l.b16 %v6901
        %v7229 = vunpack.c.h.b16 %v6901
        %v7230 = vunpack.c.l.b16 %v6902
        %v7231 = vunpack.c.h.b16 %v6902
        %v7232 = vunpack.c.l.b16 %v6903
        %v7233 = vunpack.c.h.b16 %v6903
        %v7234 = vunpack.c.l.b16 %v6904
        %v7235 = vunpack.c.h.b16 %v6904
        %v7236 = vunpack.c.l.b16 %v6905
        %v7237 = vunpack.c.h.b16 %v6905
        %v7238 = vunpack.c.l.b16 %v6906
        %v7239 = vunpack.c.h.b16 %v6906
        %v7240 = vunpack.c.l.b16 %v6907
        %v7241 = vunpack.c.h.b16 %v6907
        %v7242 = vunpack.c.l.b16 %v6908
        %v7243 = vunpack.c.h.b16 %v6908
        %v7244 = vunpack.c.l.b16 %v6909
        %v7245 = vunpack.c.h.b16 %v6909
        %v7246 = vunpack.c.l.b16 %v6910
        %v7247 = vunpack.c.h.b16 %v6910
        %v7248 = vunpack.c.l.b16 %v6911
        %v7249 = vunpack.c.h.b16 %v6911
        %v7250 = vunpack.c.l.b16 %v6912
        %v7251 = vunpack.c.h.b16 %v6912
        %v7252 = vunpack.c.l.b16 %v6913
        %v7253 = vunpack.c.h.b16 %v6913
        %v7254 = vunpack.c.l.b16 %v6914
        %v7255 = vunpack.c.h.b16 %v6914
        %v7256 = vunpack.c.l.b16 %v6915
        %v7257 = vunpack.c.h.b16 %v6915
        %v7258 = vunpack.c.l.b16 %v6916
        %v7259 = vunpack.c.h.b16 %v6916
        %v7260 = vunpack.c.l.b16 %v6917
        %v7261 = vunpack.c.h.b16 %v6917
        %v7262 = vunpack.c.l.b16 %v6918
        %v7263 = vunpack.c.h.b16 %v6918
        %v7264 = vunpack.c.l.b16 %v6919
        %v7265 = vunpack.c.h.b16 %v6919
        %v7266 = vunpack.c.l.b16 %v6920
        %v7267 = vunpack.c.h.b16 %v6920
        %v7268 = vunpack.c.l.b16 %v6921
        %v7269 = vunpack.c.h.b16 %v6921
        %v7270 = vunpack.c.l.b16 %v6922
        %v7271 = vunpack.c.h.b16 %v6922
        %v7272 = vunpack.c.l.b16 %v6923
        %v7273 = vunpack.c.h.b16 %v6923
        %v7274 = vunpack.c.l.b16 %v6924
        %v7275 = vunpack.c.h.b16 %v6924
        %v7276 = vunpack.c.l.b16 %v6925
        %v7277 = vunpack.c.h.b16 %v6925
        %v7278 = vunpack.c.l.b16 %v6926
        %v7279 = vunpack.c.h.b16 %v6926
        %v7280 = vunpack.c.l.b16 %v6927
        %v7281 = vunpack.c.h.b16 %v6927
        %v7282 = vunpack.c.l.b16 %v6928
        %v7283 = vunpack.c.h.b16 %v6928
        %v7284 = vunpack.c.l.b16 %v6929
        %v7285 = vunpack.c.h.b16 %v6929
        %v7286 = vunpack.c.l.b16 %v6930
        %v7287 = vunpack.c.h.b16 %v6930
        %v7288 = vunpack.c.l.b16 %v6931
        %v7289 = vunpack.c.h.b16 %v6931
        %v7290 = vunpack.c.l.b16 %v6932
        %v7291 = vunpack.c.h.b16 %v6932
        %v7292 = vunpack.c.l.b16 %v6933
        %v7293 = vunpack.c.h.b16 %v6933
        %v7294 = vunpack.c.l.b16 %v6934
        %v7295 = vunpack.c.h.b16 %v6934
        %v7296 = vunpack.c.l.b16 %v6935
        %v7297 = vunpack.c.h.b16 %v6935
        %v7298 = vunpack.c.l.b16 %v6936
        %v7299 = vunpack.c.h.b16 %v6936
        %v7300 = vunpack.c.l.b16 %v6937
        %v7301 = vunpack.c.h.b16 %v6937
        %v7302 = vunpack.c.l.b16 %v6938
        %v7303 = vunpack.c.h.b16 %v6938
        %v7304 = vunpack.c.l.b16 %v6939
        %v7305 = vunpack.c.h.b16 %v6939
        %v7306 = vunpack.c.l.b16 %v6940
        %v7307 = vunpack.c.h.b16 %v6940
        %v7308 = vunpack.c.l.b16 %v6941
        %v7309 = vunpack.c.h.b16 %v6941
        %v7310 = vunpack.c.l.b16 %v6942
        %v7311 = vunpack.c.h.b16 %v6942
        %v7312 = vunpack.c.l.b16 %v6943
        %v7313 = vunpack.c.h.b16 %v6943
        %v7314 = vunpack.c.l.b16 %v6944
        %v7315 = vunpack.c.h.b16 %v6944
        %v7316 = vunpack.c.l.b16 %v6945
        %v7317 = vunpack.c.h.b16 %v6945
        %v7318 = vunpack.c.l.b16 %v6946
        %v7319 = vunpack.c.h.b16 %v6946
        %v7320 = vunpack.c.l.b16 %v6947
        %v7321 = vunpack.c.h.b16 %v6947
        %v7322 = vunpack.c.l.b16 %v6948
        %v7323 = vunpack.c.h.b16 %v6948
        %v7324 = vunpack.c.l.b16 %v6949
        %v7325 = vunpack.c.h.b16 %v6949
        %v7326 = vunpack.c.l.b16 %v6950
        %v7327 = vunpack.c.h.b16 %v6950
        %v7328 = vunpack.c.l.b16 %v6951
        %v7329 = vunpack.c.h.b16 %v6951
        %v7330 = vunpack.c.l.b16 %v6952
        %v7331 = vunpack.c.h.b16 %v6952
        %v7332 = vunpack.c.l.b16 %v6953
        %v7333 = vunpack.c.h.b16 %v6953
        %v7334 = vunpack.c.l.b16 %v6954
        %v7335 = vunpack.c.h.b16 %v6954
        %v7336 = vunpack.c.l.b16 %v6955
        %v7337 = vunpack.c.h.b16 %v6955
        %v7338 = vunpack.c.l.b16 %v6956
        %v7339 = vunpack.c.h.b16 %v6956
        %v7340 = vunpack.c.l.b16 %v6957
        %v7341 = vunpack.c.h.b16 %v6957
        %v7342 = vpack.c.b16 %v7090, %v7086
        %v7343 = vpack.c.b16 %v7091, %v7087
        %v7344 = vpack.c.b16 %v7092, %v7088
        %v7345 = vpack.c.b16 %v7093, %v7089
        %v7346 = vpack.c.b16 %v7098, %v7094
        %v7347 = vpack.c.b16 %v7099, %v7095
        %v7348 = vpack.c.b16 %v7100, %v7096
        %v7349 = vpack.c.b16 %v7101, %v7097
        %v7350 = vpack.c.b16 %v7106, %v7102
        %v7351 = vpack.c.b16 %v7107, %v7103
        %v7352 = vpack.c.b16 %v7108, %v7104
        %v7353 = vpack.c.b16 %v7109, %v7105
        %v7354 = vpack.c.b16 %v7114, %v7110
        %v7355 = vpack.c.b16 %v7115, %v7111
        %v7356 = vpack.c.b16 %v7116, %v7112
        %v7357 = vpack.c.b16 %v7117, %v7113
        %v7358 = vpack.c.b16 %v7122, %v7118
        %v7359 = vpack.c.b16 %v7123, %v7119
        %v7360 = vpack.c.b16 %v7124, %v7120
        %v7361 = vpack.c.b16 %v7125, %v7121
        %v7362 = vpack.c.b16 %v7130, %v7126
        %v7363 = vpack.c.b16 %v7131, %v7127
        %v7364 = vpack.c.b16 %v7132, %v7128
        %v7365 = vpack.c.b16 %v7133, %v7129
        %v7366 = vpack.c.b16 %v7138, %v7134
        %v7367 = vpack.c.b16 %v7139, %v7135
        %v7368 = vpack.c.b16 %v7140, %v7136
        %v7369 = vpack.c.b16 %v7141, %v7137
        %v7370 = vpack.c.b16 %v7146, %v7142
        %v7371 = vpack.c.b16 %v7147, %v7143
        %v7372 = vpack.c.b16 %v7148, %v7144
        %v7373 = vpack.c.b16 %v7149, %v7145
        %v7374 = vpack.c.b16 %v7154, %v7150
        %v7375 = vpack.c.b16 %v7155, %v7151
        %v7376 = vpack.c.b16 %v7156, %v7152
        %v7377 = vpack.c.b16 %v7157, %v7153
        %v7378 = vpack.c.b16 %v7162, %v7158
        %v7379 = vpack.c.b16 %v7163, %v7159
        %v7380 = vpack.c.b16 %v7164, %v7160
        %v7381 = vpack.c.b16 %v7165, %v7161
        %v7382 = vpack.c.b16 %v7170, %v7166
        %v7383 = vpack.c.b16 %v7171, %v7167
        %v7384 = vpack.c.b16 %v7172, %v7168
        %v7385 = vpack.c.b16 %v7173, %v7169
        %v7386 = vpack.c.b16 %v7178, %v7174
        %v7387 = vpack.c.b16 %v7179, %v7175
        %v7388 = vpack.c.b16 %v7180, %v7176
        %v7389 = vpack.c.b16 %v7181, %v7177
        %v7390 = vpack.c.b16 %v7186, %v7182
        %v7391 = vpack.c.b16 %v7187, %v7183
        %v7392 = vpack.c.b16 %v7188, %v7184
        %v7393 = vpack.c.b16 %v7189, %v7185
        %v7394 = vpack.c.b16 %v7194, %v7190
        %v7395 = vpack.c.b16 %v7195, %v7191
        %v7396 = vpack.c.b16 %v7196, %v7192
        %v7397 = vpack.c.b16 %v7197, %v7193
        %v7398 = vpack.c.b16 %v7202, %v7198
        %v7399 = vpack.c.b16 %v7203, %v7199
        %v7400 = vpack.c.b16 %v7204, %v7200
        %v7401 = vpack.c.b16 %v7205, %v7201
        %v7402 = vpack.c.b16 %v7210, %v7206
        %v7403 = vpack.c.b16 %v7211, %v7207
        %v7404 = vpack.c.b16 %v7212, %v7208
        %v7405 = vpack.c.b16 %v7213, %v7209
        %v7406 = vpack.c.b16 %v7218, %v7214
        %v7407 = vpack.c.b16 %v7219, %v7215
        %v7408 = vpack.c.b16 %v7220, %v7216
        %v7409 = vpack.c.b16 %v7221, %v7217
        %v7410 = vpack.c.b16 %v7226, %v7222
        %v7411 = vpack.c.b16 %v7227, %v7223
        %v7412 = vpack.c.b16 %v7228, %v7224
        %v7413 = vpack.c.b16 %v7229, %v7225
        %v7414 = vpack.c.b16 %v7234, %v7230
        %v7415 = vpack.c.b16 %v7235, %v7231
        %v7416 = vpack.c.b16 %v7236, %v7232
        %v7417 = vpack.c.b16 %v7237, %v7233
        %v7418 = vpack.c.b16 %v7242, %v7238
        %v7419 = vpack.c.b16 %v7243, %v7239
        %v7420 = vpack.c.b16 %v7244, %v7240
        %v7421 = vpack.c.b16 %v7245, %v7241
        %v7422 = vpack.c.b16 %v7250, %v7246
        %v7423 = vpack.c.b16 %v7251, %v7247
        %v7424 = vpack.c.b16 %v7252, %v7248
        %v7425 = vpack.c.b16 %v7253, %v7249
        %v7426 = vpack.c.b16 %v7258, %v7254
        %v7427 = vpack.c.b16 %v7259, %v7255
        %v7428 = vpack.c.b16 %v7260, %v7256
        %v7429 = vpack.c.b16 %v7261, %v7257
        %v7430 = vpack.c.b16 %v7266, %v7262
        %v7431 = vpack.c.b16 %v7267, %v7263
        %v7432 = vpack.c.b16 %v7268, %v7264
        %v7433 = vpack.c.b16 %v7269, %v7265
        %v7434 = vpack.c.b16 %v7274, %v7270
        %v7435 = vpack.c.b16 %v7275, %v7271
        %v7436 = vpack.c.b16 %v7276, %v7272
        %v7437 = vpack.c.b16 %v7277, %v7273
        %v7438 = vpack.c.b16 %v7282, %v7278
        %v7439 = vpack.c.b16 %v7283, %v7279
        %v7440 = vpack.c.b16 %v7284, %v7280
        %v7441 = vpack.c.b16 %v7285, %v7281
        %v7442 = vpack.c.b16 %v7290, %v7286
        %v7443 = vpack.c.b16 %v7291, %v7287
        %v7444 = vpack.c.b16 %v7292, %v7288
        %v7445 = vpack.c.b16 %v7293, %v7289
        %v7446 = vpack.c.b16 %v7298, %v7294
        %v7447 = vpack.c.b16 %v7299, %v7295
        %v7448 = vpack.c.b16 %v7300, %v7296
        %v7449 = vpack.c.b16 %v7301, %v7297
        %v7450 = vpack.c.b16 %v7306, %v7302
        %v7451 = vpack.c.b16 %v7307, %v7303
        %v7452 = vpack.c.b16 %v7308, %v7304
        %v7453 = vpack.c.b16 %v7309, %v7305
        %v7454 = vpack.c.b16 %v7314, %v7310
        %v7455 = vpack.c.b16 %v7315, %v7311
        %v7456 = vpack.c.b16 %v7316, %v7312
        %v7457 = vpack.c.b16 %v7317, %v7313
        %v7458 = vpack.c.b16 %v7322, %v7318
        %v7459 = vpack.c.b16 %v7323, %v7319
        %v7460 = vpack.c.b16 %v7324, %v7320
        %v7461 = vpack.c.b16 %v7325, %v7321
        %v7462 = vpack.c.b16 %v7330, %v7326
        %v7463 = vpack.c.b16 %v7331, %v7327
        %v7464 = vpack.c.b16 %v7332, %v7328
        %v7465 = vpack.c.b16 %v7333, %v7329
        %v7466 = vpack.c.b16 %v7338, %v7334
        %v7467 = vpack.c.b16 %v7339, %v7335
        %v7468 = vpack.c.b16 %v7340, %v7336
        %v7469 = vpack.c.b16 %v7341, %v7337
        %7598 = vmatprep.subr.bf16.mxu0 %v7343
        %7599 = vmatpush1.bf16.msra.mxu0 %v7342
        %7600 = vmatprep.subr.bf16.mxu0 %v7347
        %7601 = vmatpush1.bf16.msra.mxu0 %v7346
        %7602 = vmatprep.subr.bf16.mxu0 %v7351
        %7603 = vmatpush1.bf16.msra.mxu0 %v7350
        %7604 = vmatprep.subr.bf16.mxu0 %v7355
        %7605 = vmatpush1.bf16.msra.mxu0 %v7354
        %7606 = vmatprep.subr.bf16.mxu0 %v7359
        %7607 = vmatpush1.bf16.msra.mxu0 %v7358
        %7608 = vmatprep.subr.bf16.mxu0 %v7363
        %7609 = vmatpush1.bf16.msra.mxu0 %v7362
        %7610 = vmatprep.subr.bf16.mxu0 %v7367
        %7611 = vmatpush1.bf16.msra.mxu0 %v7366
        %7612 = vmatprep.subr.bf16.mxu0 %v7371
        %7613 = vmatpush1.bf16.msra.mxu0 %v7370
        %7614 = vmatprep.subr.bf16.mxu0 %v7375
        %7615 = vmatpush1.bf16.msra.mxu0 %v7374
        %7616 = vmatprep.subr.bf16.mxu0 %v7379
        %7617 = vmatpush1.bf16.msra.mxu0 %v7378
        %7618 = vmatprep.subr.bf16.mxu0 %v7383
        %7619 = vmatpush1.bf16.msra.mxu0 %v7382
        %7620 = vmatprep.subr.bf16.mxu0 %v7387
        %7621 = vmatpush1.bf16.msra.mxu0 %v7386
        %7622 = vmatprep.subr.bf16.mxu0 %v7391
        %7623 = vmatpush1.bf16.msra.mxu0 %v7390
        %7624 = vmatprep.subr.bf16.mxu0 %v7395
        %7625 = vmatpush1.bf16.msra.mxu0 %v7394
        %7626 = vmatprep.subr.bf16.mxu0 %v7399
        %7627 = vmatpush1.bf16.msra.mxu0 %v7398
        %7628 = vmatprep.subr.bf16.mxu0 %v7403
        %7629 = vmatpush1.bf16.msra.mxu0 %v7402
        %7630 = vmatprep.mubr.bf16.mxu0 %v6814
        %7631 = vmatmul.mubr.bf16.gmra.mrb[0].mxu0 %v6813
        %v7632 = vpop.f32.mrb[0].mxu0
        %v7633 = vadd.f32 0.0, %v7632
        %v7634 = vpop.f32.mrb[0].mxu0
        %v7635 = vadd.f32 0.0, %v7634
        %v7636 = vpop.f32.mrb[0].mxu0
        %v7637 = vadd.f32 0.0, %v7636
        %v7638 = vpop.f32.mrb[0].mxu0
        %v7639 = vadd.f32 0.0, %v7638
        %7640 = vmatprep.mubr.bf16.mxu0 %v6818
        %7641 = vmatmul.mubr.bf16.gmra.mrb[0].mxu0 %v6817
        %v7642 = vpop.f32.mrb[0].mxu0
        %v7643 = vadd.f32 0.0, %v7642
        %v7644 = vpop.f32.mrb[0].mxu0
        %v7645 = vadd.f32 0.0, %v7644
        %v7646 = vpop.f32.mrb[0].mxu0
        %v7647 = vadd.f32 0.0, %v7646
        %v7648 = vpop.f32.mrb[0].mxu0
        %v7649 = vadd.f32 0.0, %v7648
        %7650 = vmatprep.mubr.bf16.mxu0 %v6822
        %7651 = vmatmul.mubr.bf16.gmra.mrb[0].mxu0 %v6821
        %v7652 = vpop.f32.mrb[0].mxu0
        %v7653 = vadd.f32 0.0, %v7652
        %v7654 = vpop.f32.mrb[0].mxu0
        %v7655 = vadd.f32 0.0, %v7654
        %v7656 = vpop.f32.mrb[0].mxu0
        %v7657 = vadd.f32 0.0, %v7656
        %v7658 = vpop.f32.mrb[0].mxu0
        %v7659 = vadd.f32 0.0, %v7658
        %7660 = vmatprep.mubr.bf16.mxu0 %v6826
        %7661 = vmatmul.mubr.bf16.gmra.mrb[0].mxu0 %v6825
        %v7662 = vpop.f32.mrb[0].mxu0
        %v7663 = vadd.f32 0.0, %v7662
        %v7664 = vpop.f32.mrb[0].mxu0
        %v7665 = vadd.f32 0.0, %v7664
        %v7666 = vpop.f32.mrb[0].mxu0
        %v7667 = vadd.f32 0.0, %v7666
        %v7668 = vpop.f32.mrb[0].mxu0
        %v7669 = vadd.f32 0.0, %v7668
        %7670 = vdwg.mxu0
        %7671 = vmatprep.subr.bf16.mxu0 %v7407
        %7672 = vmatpush1.bf16.msra.mxu0 %v7406
        %7673 = vmatprep.subr.bf16.mxu0 %v7411
        %7674 = vmatpush1.bf16.msra.mxu0 %v7410
        %7675 = vmatprep.subr.bf16.mxu0 %v7415
        %7676 = vmatpush1.bf16.msra.mxu0 %v7414
        %7677 = vmatprep.subr.bf16.mxu0 %v7419
        %7678 = vmatpush1.bf16.msra.mxu0 %v7418
        %7679 = vmatprep.subr.bf16.mxu0 %v7423
        %7680 = vmatpush1.bf16.msra.mxu0 %v7422
        %7681 = vmatprep.subr.bf16.mxu0 %v7427
        %7682 = vmatpush1.bf16.msra.mxu0 %v7426
        %7683 = vmatprep.subr.bf16.mxu0 %v7431
        %7684 = vmatpush1.bf16.msra.mxu0 %v7430
        %7685 = vmatprep.subr.bf16.mxu0 %v7435
        %7686 = vmatpush1.bf16.msra.mxu0 %v7434
        %7687 = vmatprep.subr.bf16.mxu0 %v7439
        %7688 = vmatpush1.bf16.msra.mxu0 %v7438
        %7689 = vmatprep.subr.bf16.mxu0 %v7443
        %7690 = vmatpush1.bf16.msra.mxu0 %v7442
        %7691 = vmatprep.subr.bf16.mxu0 %v7447
        %7692 = vmatpush1.bf16.msra.mxu0 %v7446
        %7693 = vmatprep.subr.bf16.mxu0 %v7451
        %7694 = vmatpush1.bf16.msra.mxu0 %v7450
        %7695 = vmatprep.subr.bf16.mxu0 %v7455
        %7696 = vmatpush1.bf16.msra.mxu0 %v7454
        %7697 = vmatprep.subr.bf16.mxu0 %v7459
        %7698 = vmatpush1.bf16.msra.mxu0 %v7458
        %7699 = vmatprep.subr.bf16.mxu0 %v7463
        %7700 = vmatpush1.bf16.msra.mxu0 %v7462
        %7701 = vmatprep.subr.bf16.mxu0 %v7467
        %7702 = vmatpush1.bf16.msra.mxu0 %v7466
        %7703 = vmatprep.mubr.bf16.mxu0 %v6816
        %7704 = vmatmul.mubr.bf16.gmra.mrb[0].mxu0 %v6815
        %v7705 = vpop.f32.mrb[0].mxu0
        %v7706 = vadd.f32 %v7633, %v7705
        %v7707 = vpop.f32.mrb[0].mxu0
        %v7708 = vadd.f32 %v7635, %v7707
        %v7709 = vpop.f32.mrb[0].mxu0
        %v7710 = vadd.f32 %v7637, %v7709
        %v7711 = vpop.f32.mrb[0].mxu0
        %v7712 = vadd.f32 %v7639, %v7711
        %7713 = vmatprep.mubr.bf16.mxu0 %v6820
        %7714 = vmatmul.mubr.bf16.gmra.mrb[0].mxu0 %v6819
        %v7715 = vpop.f32.mrb[0].mxu0
        %v7716 = vadd.f32 %v7643, %v7715
        %v7717 = vpop.f32.mrb[0].mxu0
        %v7718 = vadd.f32 %v7645, %v7717
        %v7719 = vpop.f32.mrb[0].mxu0
        %v7720 = vadd.f32 %v7647, %v7719
        %v7721 = vpop.f32.mrb[0].mxu0
        %v7722 = vadd.f32 %v7649, %v7721
        %7723 = vmatprep.mubr.bf16.mxu0 %v6824
        %7724 = vmatmul.mubr.bf16.gmra.mrb[0].mxu0 %v6823
        %v7725 = vpop.f32.mrb[0].mxu0
        %v7726 = vadd.f32 %v7653, %v7725
        %v7727 = vpop.f32.mrb[0].mxu0
        %v7728 = vadd.f32 %v7655, %v7727
        %v7729 = vpop.f32.mrb[0].mxu0
        %v7730 = vadd.f32 %v7657, %v7729
        %v7731 = vpop.f32.mrb[0].mxu0
        %v7732 = vadd.f32 %v7659, %v7731
        %7733 = vmatprep.mubr.bf16.mxu0 %v6828
        %7734 = vmatmul.mubr.bf16.gmra.mrb[0].mxu0 %v6827
        %v7735 = vpop.f32.mrb[0].mxu0
        %v7736 = vadd.f32 %v7663, %v7735
        %v7737 = vpop.f32.mrb[0].mxu0
        %v7738 = vadd.f32 %v7665, %v7737
        %v7739 = vpop.f32.mrb[0].mxu0
        %v7740 = vadd.f32 %v7667, %v7739
        %v7741 = vpop.f32.mrb[0].mxu0
        %v7742 = vadd.f32 %v7669, %v7741
        %7743 = vdwg.mxu0
        %7744 = vmatprep.subr.bf16.mxu0 %v7345
        %7745 = vmatpush1.bf16.msra.mxu0 %v7344
        %7746 = vmatprep.subr.bf16.mxu0 %v7349
        %7747 = vmatpush1.bf16.msra.mxu0 %v7348
        %7748 = vmatprep.subr.bf16.mxu0 %v7353
        %7749 = vmatpush1.bf16.msra.mxu0 %v7352
        %7750 = vmatprep.subr.bf16.mxu0 %v7357
        %7751 = vmatpush1.bf16.msra.mxu0 %v7356
        %7752 = vmatprep.subr.bf16.mxu0 %v7361
        %7753 = vmatpush1.bf16.msra.mxu0 %v7360
        %7754 = vmatprep.subr.bf16.mxu0 %v7365
        %7755 = vmatpush1.bf16.msra.mxu0 %v7364
        %7756 = vmatprep.subr.bf16.mxu0 %v7369
        %7757 = vmatpush1.bf16.msra.mxu0 %v7368
        %7758 = vmatprep.subr.bf16.mxu0 %v7373
        %7759 = vmatpush1.bf16.msra.mxu0 %v7372
        %7760 = vmatprep.subr.bf16.mxu0 %v7377
        %7761 = vmatpush1.bf16.msra.mxu0 %v7376
        %7762 = vmatprep.subr.bf16.mxu0 %v7381
        %7763 = vmatpush1.bf16.msra.mxu0 %v7380
        %7764 = vmatprep.subr.bf16.mxu0 %v7385
        %7765 = vmatpush1.bf16.msra.mxu0 %v7384
        %7766 = vmatprep.subr.bf16.mxu0 %v7389
        %7767 = vmatpush1.bf16.msra.mxu0 %v7388
        %7768 = vmatprep.subr.bf16.mxu0 %v7393
        %7769 = vmatpush1.bf16.msra.mxu0 %v7392
        %7770 = vmatprep.subr.bf16.mxu0 %v7397
        %7771 = vmatpush1.bf16.msra.mxu0 %v7396
        %7772 = vmatprep.subr.bf16.mxu0 %v7401
        %7773 = vmatpush1.bf16.msra.mxu0 %v7400
        %7774 = vmatprep.subr.bf16.mxu0 %v7405
        %7775 = vmatpush1.bf16.msra.mxu0 %v7404
        %7776 = vmatprep.mubr.bf16.mxu0 %v6814
        %7777 = vmatmul.mubr.bf16.gmra.mrb[0].mxu0 %v6813
        %v7778 = vpop.f32.mrb[0].mxu0
        %v7779 = vadd.f32 0.0, %v7778
        %v7780 = vpop.f32.mrb[0].mxu0
        %v7781 = vadd.f32 0.0, %v7780
        %v7782 = vpop.f32.mrb[0].mxu0
        %v7783 = vadd.f32 0.0, %v7782
        %v7784 = vpop.f32.mrb[0].mxu0
        %v7785 = vadd.f32 0.0, %v7784
        %7786 = vmatprep.mubr.bf16.mxu0 %v6818
        %7787 = vmatmul.mubr.bf16.gmra.mrb[0].mxu0 %v6817
        %v7788 = vpop.f32.mrb[0].mxu0
        %v7789 = vadd.f32 0.0, %v7788
        %v7790 = vpop.f32.mrb[0].mxu0
        %v7791 = vadd.f32 0.0, %v7790
        %v7792 = vpop.f32.mrb[0].mxu0
        %v7793 = vadd.f32 0.0, %v7792
        %v7794 = vpop.f32.mrb[0].mxu0
        %v7795 = vadd.f32 0.0, %v7794
        %7796 = vmatprep.mubr.bf16.mxu0 %v6822
        %7797 = vmatmul.mubr.bf16.gmra.mrb[0].mxu0 %v6821
        %v7798 = vpop.f32.mrb[0].mxu0
        %v7799 = vadd.f32 0.0, %v7798
        %v7800 = vpop.f32.mrb[0].mxu0
        %v7801 = vadd.f32 0.0, %v7800
        %v7802 = vpop.f32.mrb[0].mxu0
        %v7803 = vadd.f32 0.0, %v7802
        %v7804 = vpop.f32.mrb[0].mxu0
        %v7805 = vadd.f32 0.0, %v7804
        %7806 = vmatprep.mubr.bf16.mxu0 %v6826
        %7807 = vmatmul.mubr.bf16.gmra.mrb[0].mxu0 %v6825
        %v7808 = vpop.f32.mrb[0].mxu0
        %v7809 = vadd.f32 0.0, %v7808
        %v7810 = vpop.f32.mrb[0].mxu0
        %v7811 = vadd.f32 0.0, %v7810
        %v7812 = vpop.f32.mrb[0].mxu0
        %v7813 = vadd.f32 0.0, %v7812
        %v7814 = vpop.f32.mrb[0].mxu0
        %v7815 = vadd.f32 0.0, %v7814
        %7816 = vdwg.mxu0
        %7817 = vmatprep.subr.bf16.mxu0 %v7409
        %7818 = vmatpush1.bf16.msra.mxu0 %v7408
        %7819 = vmatprep.subr.bf16.mxu0 %v7413
        %7820 = vmatpush1.bf16.msra.mxu0 %v7412
        %7821 = vmatprep.subr.bf16.mxu0 %v7417
        %7822 = vmatpush1.bf16.msra.mxu0 %v7416
        %7823 = vmatprep.subr.bf16.mxu0 %v7421
        %7824 = vmatpush1.bf16.msra.mxu0 %v7420
        %7825 = vmatprep.subr.bf16.mxu0 %v7425
        %7826 = vmatpush1.bf16.msra.mxu0 %v7424
        %7827 = vmatprep.subr.bf16.mxu0 %v7429
        %7828 = vmatpush1.bf16.msra.mxu0 %v7428
        %7829 = vmatprep.subr.bf16.mxu0 %v7433
        %7830 = vmatpush1.bf16.msra.mxu0 %v7432
        %7831 = vmatprep.subr.bf16.mxu0 %v7437
        %7832 = vmatpush1.bf16.msra.mxu0 %v7436
        %7833 = vmatprep.subr.bf16.mxu0 %v7441
        %7834 = vmatpush1.bf16.msra.mxu0 %v7440
        %7835 = vmatprep.subr.bf16.mxu0 %v7445
        %7836 = vmatpush1.bf16.msra.mxu0 %v7444
        %7837 = vmatprep.subr.bf16.mxu0 %v7449
        %7838 = vmatpush1.bf16.msra.mxu0 %v7448
        %7839 = vmatprep.subr.bf16.mxu0 %v7453
        %7840 = vmatpush1.bf16.msra.mxu0 %v7452
        %7841 = vmatprep.subr.bf16.mxu0 %v7457
        %7842 = vmatpush1.bf16.msra.mxu0 %v7456
        %7843 = vmatprep.subr.bf16.mxu0 %v7461
        %7844 = vmatpush1.bf16.msra.mxu0 %v7460
        %7845 = vmatprep.subr.bf16.mxu0 %v7465
        %7846 = vmatpush1.bf16.msra.mxu0 %v7464
        %7847 = vmatprep.subr.bf16.mxu0 %v7469
        %7848 = vmatpush1.bf16.msra.mxu0 %v7468
        %7849 = vmatprep.mubr.bf16.mxu0 %v6816
        %7850 = vmatmul.mubr.bf16.gmra.mrb[0].mxu0 %v6815
        %v7851 = vpop.f32.mrb[0].mxu0
        %v7852 = vadd.f32 %v7779, %v7851
        %v7853 = vpop.f32.mrb[0].mxu0
        %v7854 = vadd.f32 %v7781, %v7853
        %v7855 = vpop.f32.mrb[0].mxu0
        %v7856 = vadd.f32 %v7783, %v7855
        %v7857 = vpop.f32.mrb[0].mxu0
        %v7858 = vadd.f32 %v7785, %v7857
        %7859 = vmatprep.mubr.bf16.mxu0 %v6820
        %7860 = vmatmul.mubr.bf16.gmra.mrb[0].mxu0 %v6819
        %v7861 = vpop.f32.mrb[0].mxu0
        %v7862 = vadd.f32 %v7789, %v7861
        %v7863 = vpop.f32.mrb[0].mxu0
        %v7864 = vadd.f32 %v7791, %v7863
        %v7865 = vpop.f32.mrb[0].mxu0
        %v7866 = vadd.f32 %v7793, %v7865
        %v7867 = vpop.f32.mrb[0].mxu0
        %v7868 = vadd.f32 %v7795, %v7867
        %7869 = vmatprep.mubr.bf16.mxu0 %v6824
        %7870 = vmatmul.mubr.bf16.gmra.mrb[0].mxu0 %v6823
        %v7871 = vpop.f32.mrb[0].mxu0
        %v7872 = vadd.f32 %v7799, %v7871
        %v7873 = vpop.f32.mrb[0].mxu0
        %v7874 = vadd.f32 %v7801, %v7873
        %v7875 = vpop.f32.mrb[0].mxu0
        %v7876 = vadd.f32 %v7803, %v7875
        %v7877 = vpop.f32.mrb[0].mxu0
        %v7878 = vadd.f32 %v7805, %v7877
        %7879 = vmatprep.mubr.bf16.mxu0 %v6828
        %7880 = vmatmul.mubr.bf16.gmra.mrb[0].mxu0 %v6827
        %v7881 = vpop.f32.mrb[0].mxu0
        %v7882 = vadd.f32 %v7809, %v7881
        %v7883 = vpop.f32.mrb[0].mxu0
        %v7884 = vadd.f32 %v7811, %v7883
        %v7885 = vpop.f32.mrb[0].mxu0
        %v7886 = vadd.f32 %v7813, %v7885
        %v7887 = vpop.f32.mrb[0].mxu0
        %v7888 = vadd.f32 %v7815, %v7887
        %7889 = vdwg.mxu0
        %s7890 = scalar_lea.vmem [#allocation9], 4
        %v7891 = vld [vmem:[%s7890] sm:$0xf]
        %v7893 = vlaneseq
        %v7894 = vshrl.u32 %v7893, 7
        %v7895 = vsub.s32 0, %v7894
        %v7896 = vrot.slane %v7891, %v7895
        %v7897 = vlaneseq
        %v7898 = vshrl.u32 %v7897, 7
        %v7899 = vsub.s32 1, %v7898
        %v7900 = vrot.slane %v7891, %v7899
        %v7901 = vlaneseq
        %v7902 = vshrl.u32 %v7901, 7
        %v7903 = vsub.s32 2, %v7902
        %v7904 = vrot.slane %v7891, %v7903
        %v7905 = vlaneseq
        %v7906 = vshrl.u32 %v7905, 7
        %v7907 = vsub.s32 3, %v7906
        %v7908 = vrot.slane %v7891, %v7907
        %v7913 = vmul.f32 %v7706, %v7896
        %v7914 = vmul.f32 %v7708, %v7900
        %v7915 = vmul.f32 %v7852, %v7904
        %v7916 = vmul.f32 %v7854, %v7908
        %v7917 = vmul.f32 %v7710, %v7896
        %v7918 = vmul.f32 %v7712, %v7900
        %v7919 = vmul.f32 %v7856, %v7904
        %v7920 = vmul.f32 %v7858, %v7908
        %v7921 = vmul.f32 %v7716, %v7896
        %v7922 = vmul.f32 %v7718, %v7900
        %v7923 = vmul.f32 %v7862, %v7904
        %v7924 = vmul.f32 %v7864, %v7908
        %v7925 = vmul.f32 %v7720, %v7896
        %v7926 = vmul.f32 %v7722, %v7900
        %v7927 = vmul.f32 %v7866, %v7904
        %v7928 = vmul.f32 %v7868, %v7908
        %v7929 = vmul.f32 %v7726, %v7896
        %v7930 = vmul.f32 %v7728, %v7900
        %v7931 = vmul.f32 %v7872, %v7904
        %v7932 = vmul.f32 %v7874, %v7908
        %v7933 = vmul.f32 %v7730, %v7896
        %v7934 = vmul.f32 %v7732, %v7900
        %v7935 = vmul.f32 %v7876, %v7904
        %v7936 = vmul.f32 %v7878, %v7908
        %v7937 = vmul.f32 %v7736, %v7896
        %v7938 = vmul.f32 %v7738, %v7900
        %v7939 = vmul.f32 %v7882, %v7904
        %v7940 = vmul.f32 %v7884, %v7908
        %v7941 = vmul.f32 %v7740, %v7896
        %v7942 = vmul.f32 %v7742, %v7900
        %v7943 = vmul.f32 %v7886, %v7904
        %v7944 = vmul.f32 %v7888, %v7908
        %s7945 = scalar_lea.vmem [#allocation11], 4
        %v7946 = vld [vmem:[%s7945] sm:$0xf]
        %v7948 = vlaneseq
        %v7949 = vshrl.u32 %v7948, 7
        %v7950 = vsub.s32 0, %v7949
        %v7951 = vrot.slane %v7946, %v7950
        %v7952 = vlaneseq
        %v7953 = vshrl.u32 %v7952, 7
        %v7954 = vsub.s32 1, %v7953
        %v7955 = vrot.slane %v7946, %v7954
        %v7956 = vlaneseq
        %v7957 = vshrl.u32 %v7956, 7
        %v7958 = vsub.s32 2, %v7957
        %v7959 = vrot.slane %v7946, %v7958
        %v7960 = vlaneseq
        %v7961 = vshrl.u32 %v7960, 7
        %v7962 = vsub.s32 3, %v7961
        %v7963 = vrot.slane %v7946, %v7962
        %v7968 = vadd.f32 %v7913, %v7951
        %v7969 = vadd.f32 %v7914, %v7955
        %v7970 = vadd.f32 %v7915, %v7959
        %v7971 = vadd.f32 %v7916, %v7963
        %v7972 = vadd.f32 %v7917, %v7951
        %v7973 = vadd.f32 %v7918, %v7955
        %v7974 = vadd.f32 %v7919, %v7959
        %v7975 = vadd.f32 %v7920, %v7963
        %v7976 = vadd.f32 %v7921, %v7951
        %v7977 = vadd.f32 %v7922, %v7955
        %v7978 = vadd.f32 %v7923, %v7959
        %v7979 = vadd.f32 %v7924, %v7963
        %v7980 = vadd.f32 %v7925, %v7951
        %v7981 = vadd.f32 %v7926, %v7955
        %v7982 = vadd.f32 %v7927, %v7959
        %v7983 = vadd.f32 %v7928, %v7963
        %v7984 = vadd.f32 %v7929, %v7951
        %v7985 = vadd.f32 %v7930, %v7955
        %v7986 = vadd.f32 %v7931, %v7959
        %v7987 = vadd.f32 %v7932, %v7963
        %v7988 = vadd.f32 %v7933, %v7951
        %v7989 = vadd.f32 %v7934, %v7955
        %v7990 = vadd.f32 %v7935, %v7959
        %v7991 = vadd.f32 %v7936, %v7963
        %v7992 = vadd.f32 %v7937, %v7951
        %v7993 = vadd.f32 %v7938, %v7955
        %v7994 = vadd.f32 %v7939, %v7959
        %v7995 = vadd.f32 %v7940, %v7963
        %v7996 = vadd.f32 %v7941, %v7951
        %v7997 = vadd.f32 %v7942, %v7955
        %v7998 = vadd.f32 %v7943, %v7959
        %v7999 = vadd.f32 %v7944, %v7963
        %s8000 = scalar_lea.vmem [#allocation12], 8
        %v8001 = vld [vmem:[%s8000] sm:$0xf]
        %vm8002 = vcmp.ge.f32.partialorder %v7968, 0.0
        %vm8003 = vcmp.ge.f32.partialorder %v7969, 0.0
        %vm8004 = vcmp.ge.f32.partialorder %v7970, 0.0
        %vm8005 = vcmp.ge.f32.partialorder %v7971, 0.0
        %vm8006 = vcmp.ge.f32.partialorder %v7972, 0.0
        %vm8007 = vcmp.ge.f32.partialorder %v7973, 0.0
        %vm8008 = vcmp.ge.f32.partialorder %v7974, 0.0
        %vm8009 = vcmp.ge.f32.partialorder %v7975, 0.0
        %vm8010 = vcmp.ge.f32.partialorder %v7976, 0.0
        %vm8011 = vcmp.ge.f32.partialorder %v7977, 0.0
        %vm8012 = vcmp.ge.f32.partialorder %v7978, 0.0
        %vm8013 = vcmp.ge.f32.partialorder %v7979, 0.0
        %vm8014 = vcmp.ge.f32.partialorder %v7980, 0.0
        %vm8015 = vcmp.ge.f32.partialorder %v7981, 0.0
        %vm8016 = vcmp.ge.f32.partialorder %v7982, 0.0
        %vm8017 = vcmp.ge.f32.partialorder %v7983, 0.0
        %vm8018 = vcmp.ge.f32.partialorder %v7984, 0.0
        %vm8019 = vcmp.ge.f32.partialorder %v7985, 0.0
        %vm8020 = vcmp.ge.f32.partialorder %v7986, 0.0
        %vm8021 = vcmp.ge.f32.partialorder %v7987, 0.0
        %vm8022 = vcmp.ge.f32.partialorder %v7988, 0.0
        %vm8023 = vcmp.ge.f32.partialorder %v7989, 0.0
        %vm8024 = vcmp.ge.f32.partialorder %v7990, 0.0
        %vm8025 = vcmp.ge.f32.partialorder %v7991, 0.0
        %vm8026 = vcmp.ge.f32.partialorder %v7992, 0.0
        %vm8027 = vcmp.ge.f32.partialorder %v7993, 0.0
        %vm8028 = vcmp.ge.f32.partialorder %v7994, 0.0
        %vm8029 = vcmp.ge.f32.partialorder %v7995, 0.0
        %vm8030 = vcmp.ge.f32.partialorder %v7996, 0.0
        %vm8031 = vcmp.ge.f32.partialorder %v7997, 0.0
        %vm8032 = vcmp.ge.f32.partialorder %v7998, 0.0
        %vm8033 = vcmp.ge.f32.partialorder %v7999, 0.0
        %v8035 = vlaneseq
        %v8036 = vshrl.u32 %v8035, 7
        %v8037 = vsub.s32 0, %v8036
        %v8038 = vrot.slane %v8001, %v8037
        %v8039 = vlaneseq
        %v8040 = vshrl.u32 %v8039, 7
        %v8041 = vsub.s32 1, %v8040
        %v8042 = vrot.slane %v8001, %v8041
        %v8043 = vlaneseq
        %v8044 = vshrl.u32 %v8043, 7
        %v8045 = vsub.s32 2, %v8044
        %v8046 = vrot.slane %v8001, %v8045
        %v8047 = vlaneseq
        %v8048 = vshrl.u32 %v8047, 7
        %v8049 = vsub.s32 3, %v8048
        %v8050 = vrot.slane %v8001, %v8049
        %v8055 = vmul.f32 %v7968, %v8038
        %v8056 = vmul.f32 %v7969, %v8042
        %v8057 = vmul.f32 %v7970, %v8046
        %v8058 = vmul.f32 %v7971, %v8050
        %v8059 = vmul.f32 %v7972, %v8038
        %v8060 = vmul.f32 %v7973, %v8042
        %v8061 = vmul.f32 %v7974, %v8046
        %v8062 = vmul.f32 %v7975, %v8050
        %v8063 = vmul.f32 %v7976, %v8038
        %v8064 = vmul.f32 %v7977, %v8042
        %v8065 = vmul.f32 %v7978, %v8046
        %v8066 = vmul.f32 %v7979, %v8050
        %v8067 = vmul.f32 %v7980, %v8038
        %v8068 = vmul.f32 %v7981, %v8042
        %v8069 = vmul.f32 %v7982, %v8046
        %v8070 = vmul.f32 %v7983, %v8050
        %v8071 = vmul.f32 %v7984, %v8038
        %v8072 = vmul.f32 %v7985, %v8042
        %v8073 = vmul.f32 %v7986, %v8046
        %v8074 = vmul.f32 %v7987, %v8050
        %v8075 = vmul.f32 %v7988, %v8038
        %v8076 = vmul.f32 %v7989, %v8042
        %v8077 = vmul.f32 %v7990, %v8046
        %v8078 = vmul.f32 %v7991, %v8050
        %v8079 = vmul.f32 %v7992, %v8038
        %v8080 = vmul.f32 %v7993, %v8042
        %v8081 = vmul.f32 %v7994, %v8046
        %v8082 = vmul.f32 %v7995, %v8050
        %v8083 = vmul.f32 %v7996, %v8038
        %v8084 = vmul.f32 %v7997, %v8042
        %v8085 = vmul.f32 %v7998, %v8046
        %v8086 = vmul.f32 %v7999, %v8050
        %v8087 = vsel %vm8002, %v7968, %v8055
        %v8088 = vsel %vm8003, %v7969, %v8056
        %v8089 = vsel %vm8004, %v7970, %v8057
        %v8090 = vsel %vm8005, %v7971, %v8058
        %v8091 = vsel %vm8006, %v7972, %v8059
        %v8092 = vsel %vm8007, %v7973, %v8060
        %v8093 = vsel %vm8008, %v7974, %v8061
        %v8094 = vsel %vm8009, %v7975, %v8062
        %v8095 = vsel %vm8010, %v7976, %v8063
        %v8096 = vsel %vm8011, %v7977, %v8064
        %v8097 = vsel %vm8012, %v7978, %v8065
        %v8098 = vsel %vm8013, %v7979, %v8066
        %v8099 = vsel %vm8014, %v7980, %v8067
        %v8100 = vsel %vm8015, %v7981, %v8068
        %v8101 = vsel %vm8016, %v7982, %v8069
        %v8102 = vsel %vm8017, %v7983, %v8070
        %v8103 = vsel %vm8018, %v7984, %v8071
        %v8104 = vsel %vm8019, %v7985, %v8072
        %v8105 = vsel %vm8020, %v7986, %v8073
        %v8106 = vsel %vm8021, %v7987, %v8074
        %v8107 = vsel %vm8022, %v7988, %v8075
        %v8108 = vsel %vm8023, %v7989, %v8076
        %v8109 = vsel %vm8024, %v7990, %v8077
        %v8110 = vsel %vm8025, %v7991, %v8078
        %v8111 = vsel %vm8026, %v7992, %v8079
        %v8112 = vsel %vm8027, %v7993, %v8080
        %v8113 = vsel %vm8028, %v7994, %v8081
        %v8114 = vsel %vm8029, %v7995, %v8082
        %v8115 = vsel %vm8030, %v7996, %v8083
        %v8116 = vsel %vm8031, %v7997, %v8084
        %v8117 = vsel %vm8032, %v7998, %v8085
        %v8118 = vsel %vm8033, %v7999, %v8086
        %8119 = vst [vmem:[%s613 + $0x20] sm:$0xff] %v8087
        %8120 = vst [vmem:[%s613 + $0x28] sm:$0xff] %v8088
        %8121 = vst [vmem:[%s613 + $0x30] sm:$0xff] %v8089
        %8122 = vst [vmem:[%s613 + $0x38] sm:$0xff] %v8090
        %8123 = vst [vmem:[%s613 + $0x80] sm:$0xff] %v8091
        %8124 = vst [vmem:[%s613 + $0x88] sm:$0xff] %v8092
        %8125 = vst [vmem:[%s613 + $0x90] sm:$0xff] %v8093
        %8126 = vst [vmem:[%s613 + $0x98] sm:$0xff] %v8094
        %8127 = vst [vmem:[%s613 + $0xe0] sm:$0xff] %v8095
        %8128 = vst [vmem:[%s613 + $0xe8] sm:$0xff] %v8096
        %8129 = vst [vmem:[%s613 + $0xf0] sm:$0xff] %v8097
        %8130 = vst [vmem:[%s613 + $0xf8] sm:$0xff] %v8098
        %8131 = vst [vmem:[%s613 + $0x140] sm:$0xff] %v8099
        %8132 = vst [vmem:[%s613 + $0x148] sm:$0xff] %v8100
        %8133 = vst [vmem:[%s613 + $0x150] sm:$0xff] %v8101
        %8134 = vst [vmem:[%s613 + $0x158] sm:$0xff] %v8102
        %8135 = vst [vmem:[%s613 + $0x1a0] sm:$0xff] %v8103
        %8136 = vst [vmem:[%s613 + $0x1a8] sm:$0xff] %v8104
        %8137 = vst [vmem:[%s613 + $0x1b0] sm:$0xff] %v8105
        %8138 = vst [vmem:[%s613 + $0x1b8] sm:$0xff] %v8106
        %8139 = vst [vmem:[%s613 + $0x200] sm:$0xff] %v8107
        %8140 = vst [vmem:[%s613 + $0x208] sm:$0xff] %v8108
        %8141 = vst [vmem:[%s613 + $0x210] sm:$0xff] %v8109
        %8142 = vst [vmem:[%s613 + $0x218] sm:$0xff] %v8110
        %8143 = vst [vmem:[%s613 + $0x260] sm:$0xff] %v8111
        %8144 = vst [vmem:[%s613 + $0x268] sm:$0xff] %v8112
        %8145 = vst [vmem:[%s613 + $0x270] sm:$0xff] %v8113
        %8146 = vst [vmem:[%s613 + $0x278] sm:$0xff] %v8114
        %8147 = vst [vmem:[%s613 + $0x2c0] sm:$0xff] %v8115
        %8148 = vst [vmem:[%s613 + $0x2c8] sm:$0xff] %v8116
        %8149 = vst [vmem:[%s613 + $0x2d0] sm:$0xff] %v8117
        %8150 = vst [vmem:[%s613 + $0x2d8] sm:$0xff] %v8118
        %v8151 = vld [vmem:[#allocation2] sm:$0x80]
        %v8152 = vld [vmem:[#allocation2 + $0x8] sm:$0x80]
        %v8153 = vld [vmem:[#allocation2 + $0x10] sm:$0x80]
        %v8154 = vld [vmem:[#allocation2 + $0x18] sm:$0x80]
        %v8155 = vld [vmem:[#allocation2 + $0x20] sm:$0x7f]
        %v8156 = vld [vmem:[#allocation2 + $0x28] sm:$0x7f]
        %v8157 = vld [vmem:[#allocation2 + $0x30] sm:$0x7f]
        %v8158 = vld [vmem:[#allocation2 + $0x38] sm:$0x7f]
        %v8159 = vld [vmem:[#allocation2 + $0x60] sm:$0x80]
        %v8160 = vld [vmem:[#allocation2 + $0x68] sm:$0x80]
        %v8161 = vld [vmem:[#allocation2 + $0x70] sm:$0x80]
        %v8162 = vld [vmem:[#allocation2 + $0x78] sm:$0x80]
        %v8163 = vld [vmem:[#allocation2 + $0x80] sm:$0x7f]
        %v8164 = vld [vmem:[#allocation2 + $0x88] sm:$0x7f]
        %v8165 = vld [vmem:[#allocation2 + $0x90] sm:$0x7f]
        %v8166 = vld [vmem:[#allocation2 + $0x98] sm:$0x7f]
        %v8167 = vld [vmem:[#allocation2 + $0xc0] sm:$0x80]
        %v8168 = vld [vmem:[#allocation2 + $0xc8] sm:$0x80]
        %v8169 = vld [vmem:[#allocation2 + $0xd0] sm:$0x80]
        %v8170 = vld [vmem:[#allocation2 + $0xd8] sm:$0x80]
        %v8171 = vld [vmem:[#allocation2 + $0xe0] sm:$0x7f]
        %v8172 = vld [vmem:[#allocation2 + $0xe8] sm:$0x7f]
        %v8173 = vld [vmem:[#allocation2 + $0xf0] sm:$0x7f]
        %v8174 = vld [vmem:[#allocation2 + $0xf8] sm:$0x7f]
        %v8175 = vld [vmem:[#allocation2 + $0x120] sm:$0x80]
        %v8176 = vld [vmem:[#allocation2 + $0x128] sm:$0x80]
        %v8177 = vld [vmem:[#allocation2 + $0x130] sm:$0x80]
        %v8178 = vld [vmem:[#allocation2 + $0x138] sm:$0x80]
        %v8179 = vld [vmem:[#allocation2 + $0x140] sm:$0x7f]
        %v8180 = vld [vmem:[#allocation2 + $0x148] sm:$0x7f]
        %v8181 = vld [vmem:[#allocation2 + $0x150] sm:$0x7f]
        %v8182 = vld [vmem:[#allocation2 + $0x158] sm:$0x7f]
        %v8183 = vld [vmem:[#allocation2 + $0x180] sm:$0x80]
        %v8184 = vld [vmem:[#allocation2 + $0x188] sm:$0x80]
        %v8185 = vld [vmem:[#allocation2 + $0x190] sm:$0x80]
        %v8186 = vld [vmem:[#allocation2 + $0x198] sm:$0x80]
        %v8187 = vld [vmem:[#allocation2 + $0x1a0] sm:$0x7f]
        %v8188 = vld [vmem:[#allocation2 + $0x1a8] sm:$0x7f]
        %v8189 = vld [vmem:[#allocation2 + $0x1b0] sm:$0x7f]
        %v8190 = vld [vmem:[#allocation2 + $0x1b8] sm:$0x7f]
        %v8191 = vld [vmem:[#allocation2 + $0x1e0] sm:$0x80]
        %v8192 = vld [vmem:[#allocation2 + $0x1e8] sm:$0x80]
        %v8193 = vld [vmem:[#allocation2 + $0x1f0] sm:$0x80]
        %v8194 = vld [vmem:[#allocation2 + $0x1f8] sm:$0x80]
        %v8195 = vld [vmem:[#allocation2 + $0x200] sm:$0x7f]
        %v8196 = vld [vmem:[#allocation2 + $0x208] sm:$0x7f]
        %v8197 = vld [vmem:[#allocation2 + $0x210] sm:$0x7f]
        %v8198 = vld [vmem:[#allocation2 + $0x218] sm:$0x7f]
        %v8199 = vld [vmem:[#allocation2 + $0x240] sm:$0x80]
        %v8200 = vld [vmem:[#allocation2 + $0x248] sm:$0x80]
        %v8201 = vld [vmem:[#allocation2 + $0x250] sm:$0x80]
        %v8202 = vld [vmem:[#allocation2 + $0x258] sm:$0x80]
        %v8203 = vld [vmem:[#allocation2 + $0x260] sm:$0x7f]
        %v8204 = vld [vmem:[#allocation2 + $0x268] sm:$0x7f]
        %v8205 = vld [vmem:[#allocation2 + $0x270] sm:$0x7f]
        %v8206 = vld [vmem:[#allocation2 + $0x278] sm:$0x7f]
        %v8207 = vld [vmem:[#allocation2 + $0x2a0] sm:$0x80]
        %v8208 = vld [vmem:[#allocation2 + $0x2a8] sm:$0x80]
        %v8209 = vld [vmem:[#allocation2 + $0x2b0] sm:$0x80]
        %v8210 = vld [vmem:[#allocation2 + $0x2b8] sm:$0x80]
        %v8211 = vld [vmem:[#allocation2 + $0x2c0] sm:$0x7f]
        %v8212 = vld [vmem:[#allocation2 + $0x2c8] sm:$0x7f]
        %v8213 = vld [vmem:[#allocation2 + $0x2d0] sm:$0x7f]
        %v8214 = vld [vmem:[#allocation2 + $0x2d8] sm:$0x7f]
        %v8279 = vrot.slane %v8151, 7
        %v8280 = vrot.slane %v8155, 7
        %v8281 = vsel %vm774, %v8279, %v8280
        %v8282 = vrot.slane %v8152, 7
        %v8283 = vrot.slane %v8156, 7
        %v8284 = vsel %vm774, %v8282, %v8283
        %v8285 = vrot.slane %v8153, 7
        %v8286 = vrot.slane %v8157, 7
        %v8287 = vsel %vm774, %v8285, %v8286
        %v8288 = vrot.slane %v8154, 7
        %v8289 = vrot.slane %v8158, 7
        %v8290 = vsel %vm774, %v8288, %v8289
        %v8291 = vrot.slane %v8159, 7
        %v8292 = vrot.slane %v8163, 7
        %v8293 = vsel %vm774, %v8291, %v8292
        %v8294 = vrot.slane %v8160, 7
        %v8295 = vrot.slane %v8164, 7
        %v8296 = vsel %vm774, %v8294, %v8295
        %v8297 = vrot.slane %v8161, 7
        %v8298 = vrot.slane %v8165, 7
        %v8299 = vsel %vm774, %v8297, %v8298
        %v8300 = vrot.slane %v8162, 7
        %v8301 = vrot.slane %v8166, 7
        %v8302 = vsel %vm774, %v8300, %v8301
        %v8303 = vrot.slane %v8167, 7
        %v8304 = vrot.slane %v8171, 7
        %v8305 = vsel %vm774, %v8303, %v8304
        %v8306 = vrot.slane %v8168, 7
        %v8307 = vrot.slane %v8172, 7
        %v8308 = vsel %vm774, %v8306, %v8307
        %v8309 = vrot.slane %v8169, 7
        %v8310 = vrot.slane %v8173, 7
        %v8311 = vsel %vm774, %v8309, %v8310
        %v8312 = vrot.slane %v8170, 7
        %v8313 = vrot.slane %v8174, 7
        %v8314 = vsel %vm774, %v8312, %v8313
        %v8315 = vrot.slane %v8175, 7
        %v8316 = vrot.slane %v8179, 7
        %v8317 = vsel %vm774, %v8315, %v8316
        %v8318 = vrot.slane %v8176, 7
        %v8319 = vrot.slane %v8180, 7
        %v8320 = vsel %vm774, %v8318, %v8319
        %v8321 = vrot.slane %v8177, 7
        %v8322 = vrot.slane %v8181, 7
        %v8323 = vsel %vm774, %v8321, %v8322
        %v8324 = vrot.slane %v8178, 7
        %v8325 = vrot.slane %v8182, 7
        %v8326 = vsel %vm774, %v8324, %v8325
        %v8327 = vrot.slane %v8183, 7
        %v8328 = vrot.slane %v8187, 7
        %v8329 = vsel %vm774, %v8327, %v8328
        %v8330 = vrot.slane %v8184, 7
        %v8331 = vrot.slane %v8188, 7
        %v8332 = vsel %vm774, %v8330, %v8331
        %v8333 = vrot.slane %v8185, 7
        %v8334 = vrot.slane %v8189, 7
        %v8335 = vsel %vm774, %v8333, %v8334
        %v8336 = vrot.slane %v8186, 7
        %v8337 = vrot.slane %v8190, 7
        %v8338 = vsel %vm774, %v8336, %v8337
        %v8339 = vrot.slane %v8191, 7
        %v8340 = vrot.slane %v8195, 7
        %v8341 = vsel %vm774, %v8339, %v8340
        %v8342 = vrot.slane %v8192, 7
        %v8343 = vrot.slane %v8196, 7
        %v8344 = vsel %vm774, %v8342, %v8343
        %v8345 = vrot.slane %v8193, 7
        %v8346 = vrot.slane %v8197, 7
        %v8347 = vsel %vm774, %v8345, %v8346
        %v8348 = vrot.slane %v8194, 7
        %v8349 = vrot.slane %v8198, 7
        %v8350 = vsel %vm774, %v8348, %v8349
        %v8351 = vrot.slane %v8199, 7
        %v8352 = vrot.slane %v8203, 7
        %v8353 = vsel %vm774, %v8351, %v8352
        %v8354 = vrot.slane %v8200, 7
        %v8355 = vrot.slane %v8204, 7
        %v8356 = vsel %vm774, %v8354, %v8355
        %v8357 = vrot.slane %v8201, 7
        %v8358 = vrot.slane %v8205, 7
        %v8359 = vsel %vm774, %v8357, %v8358
        %v8360 = vrot.slane %v8202, 7
        %v8361 = vrot.slane %v8206, 7
        %v8362 = vsel %vm774, %v8360, %v8361
        %v8363 = vrot.slane %v8207, 7
        %v8364 = vrot.slane %v8211, 7
        %v8365 = vsel %vm774, %v8363, %v8364
        %v8366 = vrot.slane %v8208, 7
        %v8367 = vrot.slane %v8212, 7
        %v8368 = vsel %vm774, %v8366, %v8367
        %v8369 = vrot.slane %v8209, 7
        %v8370 = vrot.slane %v8213, 7
        %v8371 = vsel %vm774, %v8369, %v8370
        %v8372 = vrot.slane %v8210, 7
        %v8373 = vrot.slane %v8214, 7
        %v8374 = vsel %vm774, %v8372, %v8373
        %s8407 = scalar_lea.vmem [#allocation6], 72
        %v8408 = vld [vmem:[%s8407] sm:$0xf]
        %v8410 = vlaneseq
        %v8411 = vshrl.u32 %v8410, 7
        %v8412 = vsub.s32 0, %v8411
        %v8413 = vrot.slane %v8408, %v8412
        %v8414 = vlaneseq
        %v8415 = vshrl.u32 %v8414, 7
        %v8416 = vsub.s32 1, %v8415
        %v8417 = vrot.slane %v8408, %v8416
        %v8418 = vlaneseq
        %v8419 = vshrl.u32 %v8418, 7
        %v8420 = vsub.s32 2, %v8419
        %v8421 = vrot.slane %v8408, %v8420
        %v8422 = vlaneseq
        %v8423 = vshrl.u32 %v8422, 7
        %v8424 = vsub.s32 3, %v8423
        %v8425 = vrot.slane %v8408, %v8424
        %v8430 = vmul.f32 %v8281, %v8413
        %v8431 = vmul.f32 %v8284, %v8417
        %v8432 = vmul.f32 %v8287, %v8421
        %v8433 = vmul.f32 %v8290, %v8425
        %v8434 = vmul.f32 %v8293, %v8413
        %v8435 = vmul.f32 %v8296, %v8417
        %v8436 = vmul.f32 %v8299, %v8421
        %v8437 = vmul.f32 %v8302, %v8425
        %v8438 = vmul.f32 %v8305, %v8413
        %v8439 = vmul.f32 %v8308, %v8417
        %v8440 = vmul.f32 %v8311, %v8421
        %v8441 = vmul.f32 %v8314, %v8425
        %v8442 = vmul.f32 %v8317, %v8413
        %v8443 = vmul.f32 %v8320, %v8417
        %v8444 = vmul.f32 %v8323, %v8421
        %v8445 = vmul.f32 %v8326, %v8425
        %v8446 = vmul.f32 %v8329, %v8413
        %v8447 = vmul.f32 %v8332, %v8417
        %v8448 = vmul.f32 %v8335, %v8421
        %v8449 = vmul.f32 %v8338, %v8425
        %v8450 = vmul.f32 %v8341, %v8413
        %v8451 = vmul.f32 %v8344, %v8417
        %v8452 = vmul.f32 %v8347, %v8421
        %v8453 = vmul.f32 %v8350, %v8425
        %v8454 = vmul.f32 %v8353, %v8413
        %v8455 = vmul.f32 %v8356, %v8417
        %v8456 = vmul.f32 %v8359, %v8421
        %v8457 = vmul.f32 %v8362, %v8425
        %v8458 = vmul.f32 %v8365, %v8413
        %v8459 = vmul.f32 %v8368, %v8417
        %v8460 = vmul.f32 %v8371, %v8421
        %v8461 = vmul.f32 %v8374, %v8425
        %v8462 = vadd.f32 %v8430, 0.0
        %v8463 = vadd.f32 %v8431, 0.0
        %v8464 = vadd.f32 %v8432, 0.0
        %v8465 = vadd.f32 %v8433, 0.0
        %v8466 = vadd.f32 %v8434, 0.0
        %v8467 = vadd.f32 %v8435, 0.0
        %v8468 = vadd.f32 %v8436, 0.0
        %v8469 = vadd.f32 %v8437, 0.0
        %v8470 = vadd.f32 %v8438, 0.0
        %v8471 = vadd.f32 %v8439, 0.0
        %v8472 = vadd.f32 %v8440, 0.0
        %v8473 = vadd.f32 %v8441, 0.0
        %v8474 = vadd.f32 %v8442, 0.0
        %v8475 = vadd.f32 %v8443, 0.0
        %v8476 = vadd.f32 %v8444, 0.0
        %v8477 = vadd.f32 %v8445, 0.0
        %v8478 = vadd.f32 %v8446, 0.0
        %v8479 = vadd.f32 %v8447, 0.0
        %v8480 = vadd.f32 %v8448, 0.0
        %v8481 = vadd.f32 %v8449, 0.0
        %v8482 = vadd.f32 %v8450, 0.0
        %v8483 = vadd.f32 %v8451, 0.0
        %v8484 = vadd.f32 %v8452, 0.0
        %v8485 = vadd.f32 %v8453, 0.0
        %v8486 = vadd.f32 %v8454, 0.0
        %v8487 = vadd.f32 %v8455, 0.0
        %v8488 = vadd.f32 %v8456, 0.0
        %v8489 = vadd.f32 %v8457, 0.0
        %v8490 = vadd.f32 %v8458, 0.0
        %v8491 = vadd.f32 %v8459, 0.0
        %v8492 = vadd.f32 %v8460, 0.0
        %v8493 = vadd.f32 %v8461, 0.0
        %v8494 = vld [vmem:[#allocation2 + $0x20] sm:$0xff]
        %v8495 = vld [vmem:[#allocation2 + $0x28] sm:$0xff]
        %v8496 = vld [vmem:[#allocation2 + $0x30] sm:$0xff]
        %v8497 = vld [vmem:[#allocation2 + $0x38] sm:$0xff]
        %v8498 = vld [vmem:[#allocation2 + $0x80] sm:$0xff]
        %v8499 = vld [vmem:[#allocation2 + $0x88] sm:$0xff]
        %v8500 = vld [vmem:[#allocation2 + $0x90] sm:$0xff]
        %v8501 = vld [vmem:[#allocation2 + $0x98] sm:$0xff]
        %v8502 = vld [vmem:[#allocation2 + $0xe0] sm:$0xff]
        %v8503 = vld [vmem:[#allocation2 + $0xe8] sm:$0xff]
        %v8504 = vld [vmem:[#allocation2 + $0xf0] sm:$0xff]
        %v8505 = vld [vmem:[#allocation2 + $0xf8] sm:$0xff]
        %v8506 = vld [vmem:[#allocation2 + $0x140] sm:$0xff]
        %v8507 = vld [vmem:[#allocation2 + $0x148] sm:$0xff]
        %v8508 = vld [vmem:[#allocation2 + $0x150] sm:$0xff]
        %v8509 = vld [vmem:[#allocation2 + $0x158] sm:$0xff]
        %v8510 = vld [vmem:[#allocation2 + $0x1a0] sm:$0xff]
        %v8511 = vld [vmem:[#allocation2 + $0x1a8] sm:$0xff]
        %v8512 = vld [vmem:[#allocation2 + $0x1b0] sm:$0xff]
        %v8513 = vld [vmem:[#allocation2 + $0x1b8] sm:$0xff]
        %v8514 = vld [vmem:[#allocation2 + $0x200] sm:$0xff]
        %v8515 = vld [vmem:[#allocation2 + $0x208] sm:$0xff]
        %v8516 = vld [vmem:[#allocation2 + $0x210] sm:$0xff]
        %v8517 = vld [vmem:[#allocation2 + $0x218] sm:$0xff]
        %v8518 = vld [vmem:[#allocation2 + $0x260] sm:$0xff]
        %v8519 = vld [vmem:[#allocation2 + $0x268] sm:$0xff]
        %v8520 = vld [vmem:[#allocation2 + $0x270] sm:$0xff]
        %v8521 = vld [vmem:[#allocation2 + $0x278] sm:$0xff]
        %v8522 = vld [vmem:[#allocation2 + $0x2c0] sm:$0xff]
        %v8523 = vld [vmem:[#allocation2 + $0x2c8] sm:$0xff]
        %v8524 = vld [vmem:[#allocation2 + $0x2d0] sm:$0xff]
        %v8525 = vld [vmem:[#allocation2 + $0x2d8] sm:$0xff]
        %s8526 = scalar_lea.vmem [#allocation6], 76
        %v8527 = vld [vmem:[%s8526] sm:$0xf]
        %v8529 = vlaneseq
        %v8530 = vshrl.u32 %v8529, 7
        %v8531 = vsub.s32 0, %v8530
        %v8532 = vrot.slane %v8527, %v8531
        %v8533 = vlaneseq
        %v8534 = vshrl.u32 %v8533, 7
        %v8535 = vsub.s32 1, %v8534
        %v8536 = vrot.slane %v8527, %v8535
        %v8537 = vlaneseq
        %v8538 = vshrl.u32 %v8537, 7
        %v8539 = vsub.s32 2, %v8538
        %v8540 = vrot.slane %v8527, %v8539
        %v8541 = vlaneseq
        %v8542 = vshrl.u32 %v8541, 7
        %v8543 = vsub.s32 3, %v8542
        %v8544 = vrot.slane %v8527, %v8543
        %v8549 = vmul.f32 %v8494, %v8532
        %v8550 = vmul.f32 %v8495, %v8536
        %v8551 = vmul.f32 %v8496, %v8540
        %v8552 = vmul.f32 %v8497, %v8544
        %v8553 = vmul.f32 %v8498, %v8532
        %v8554 = vmul.f32 %v8499, %v8536
        %v8555 = vmul.f32 %v8500, %v8540
        %v8556 = vmul.f32 %v8501, %v8544
        %v8557 = vmul.f32 %v8502, %v8532
        %v8558 = vmul.f32 %v8503, %v8536
        %v8559 = vmul.f32 %v8504, %v8540
        %v8560 = vmul.f32 %v8505, %v8544
        %v8561 = vmul.f32 %v8506, %v8532
        %v8562 = vmul.f32 %v8507, %v8536
        %v8563 = vmul.f32 %v8508, %v8540
        %v8564 = vmul.f32 %v8509, %v8544
        %v8565 = vmul.f32 %v8510, %v8532
        %v8566 = vmul.f32 %v8511, %v8536
        %v8567 = vmul.f32 %v8512, %v8540
        %v8568 = vmul.f32 %v8513, %v8544
        %v8569 = vmul.f32 %v8514, %v8532
        %v8570 = vmul.f32 %v8515, %v8536
        %v8571 = vmul.f32 %v8516, %v8540
        %v8572 = vmul.f32 %v8517, %v8544
        %v8573 = vmul.f32 %v8518, %v8532
        %v8574 = vmul.f32 %v8519, %v8536
        %v8575 = vmul.f32 %v8520, %v8540
        %v8576 = vmul.f32 %v8521, %v8544
        %v8577 = vmul.f32 %v8522, %v8532
        %v8578 = vmul.f32 %v8523, %v8536
        %v8579 = vmul.f32 %v8524, %v8540
        %v8580 = vmul.f32 %v8525, %v8544
        %v8581 = vadd.f32 %v8462, %v8549
        %v8582 = vadd.f32 %v8463, %v8550
        %v8583 = vadd.f32 %v8464, %v8551
        %v8584 = vadd.f32 %v8465, %v8552
        %v8585 = vadd.f32 %v8466, %v8553
        %v8586 = vadd.f32 %v8467, %v8554
        %v8587 = vadd.f32 %v8468, %v8555
        %v8588 = vadd.f32 %v8469, %v8556
        %v8589 = vadd.f32 %v8470, %v8557
        %v8590 = vadd.f32 %v8471, %v8558
        %v8591 = vadd.f32 %v8472, %v8559
        %v8592 = vadd.f32 %v8473, %v8560
        %v8593 = vadd.f32 %v8474, %v8561
        %v8594 = vadd.f32 %v8475, %v8562
        %v8595 = vadd.f32 %v8476, %v8563
        %v8596 = vadd.f32 %v8477, %v8564
        %v8597 = vadd.f32 %v8478, %v8565
        %v8598 = vadd.f32 %v8479, %v8566
        %v8599 = vadd.f32 %v8480, %v8567
        %v8600 = vadd.f32 %v8481, %v8568
        %v8601 = vadd.f32 %v8482, %v8569
        %v8602 = vadd.f32 %v8483, %v8570
        %v8603 = vadd.f32 %v8484, %v8571
        %v8604 = vadd.f32 %v8485, %v8572
        %v8605 = vadd.f32 %v8486, %v8573
        %v8606 = vadd.f32 %v8487, %v8574
        %v8607 = vadd.f32 %v8488, %v8575
        %v8608 = vadd.f32 %v8489, %v8576
        %v8609 = vadd.f32 %v8490, %v8577
        %v8610 = vadd.f32 %v8491, %v8578
        %v8611 = vadd.f32 %v8492, %v8579
        %v8612 = vadd.f32 %v8493, %v8580
        %v8613 = vld [vmem:[#allocation2 + $0x20] sm:$0xfe]
        %v8614 = vld [vmem:[#allocation2 + $0x28] sm:$0xfe]
        %v8615 = vld [vmem:[#allocation2 + $0x30] sm:$0xfe]
        %v8616 = vld [vmem:[#allocation2 + $0x38] sm:$0xfe]
        %v8617 = vld [vmem:[#allocation2 + $0x40] sm:$0x1]
        %v8618 = vld [vmem:[#allocation2 + $0x48] sm:$0x1]
        %v8619 = vld [vmem:[#allocation2 + $0x50] sm:$0x1]
        %v8620 = vld [vmem:[#allocation2 + $0x58] sm:$0x1]
        %v8621 = vld [vmem:[#allocation2 + $0x80] sm:$0xfe]
        %v8622 = vld [vmem:[#allocation2 + $0x88] sm:$0xfe]
        %v8623 = vld [vmem:[#allocation2 + $0x90] sm:$0xfe]
        %v8624 = vld [vmem:[#allocation2 + $0x98] sm:$0xfe]
        %v8625 = vld [vmem:[#allocation2 + $0xa0] sm:$0x1]
        %v8626 = vld [vmem:[#allocation2 + $0xa8] sm:$0x1]
        %v8627 = vld [vmem:[#allocation2 + $0xb0] sm:$0x1]
        %v8628 = vld [vmem:[#allocation2 + $0xb8] sm:$0x1]
        %v8629 = vld [vmem:[#allocation2 + $0xe0] sm:$0xfe]
        %v8630 = vld [vmem:[#allocation2 + $0xe8] sm:$0xfe]
        %v8631 = vld [vmem:[#allocation2 + $0xf0] sm:$0xfe]
        %v8632 = vld [vmem:[#allocation2 + $0xf8] sm:$0xfe]
        %v8633 = vld [vmem:[#allocation2 + $0x100] sm:$0x1]
        %v8634 = vld [vmem:[#allocation2 + $0x108] sm:$0x1]
        %v8635 = vld [vmem:[#allocation2 + $0x110] sm:$0x1]
        %v8636 = vld [vmem:[#allocation2 + $0x118] sm:$0x1]
        %v8637 = vld [vmem:[#allocation2 + $0x140] sm:$0xfe]
        %v8638 = vld [vmem:[#allocation2 + $0x148] sm:$0xfe]
        %v8639 = vld [vmem:[#allocation2 + $0x150] sm:$0xfe]
        %v8640 = vld [vmem:[#allocation2 + $0x158] sm:$0xfe]
        %v8641 = vld [vmem:[#allocation2 + $0x160] sm:$0x1]
        %v8642 = vld [vmem:[#allocation2 + $0x168] sm:$0x1]
        %v8643 = vld [vmem:[#allocation2 + $0x170] sm:$0x1]
        %v8644 = vld [vmem:[#allocation2 + $0x178] sm:$0x1]
        %v8645 = vld [vmem:[#allocation2 + $0x1a0] sm:$0xfe]
        %v8646 = vld [vmem:[#allocation2 + $0x1a8] sm:$0xfe]
        %v8647 = vld [vmem:[#allocation2 + $0x1b0] sm:$0xfe]
        %v8648 = vld [vmem:[#allocation2 + $0x1b8] sm:$0xfe]
        %v8649 = vld [vmem:[#allocation2 + $0x1c0] sm:$0x1]
        %v8650 = vld [vmem:[#allocation2 + $0x1c8] sm:$0x1]
        %v8651 = vld [vmem:[#allocation2 + $0x1d0] sm:$0x1]
        %v8652 = vld [vmem:[#allocation2 + $0x1d8] sm:$0x1]
        %v8653 = vld [vmem:[#allocation2 + $0x200] sm:$0xfe]
        %v8654 = vld [vmem:[#allocation2 + $0x208] sm:$0xfe]
        %v8655 = vld [vmem:[#allocation2 + $0x210] sm:$0xfe]
        %v8656 = vld [vmem:[#allocation2 + $0x218] sm:$0xfe]
        %v8657 = vld [vmem:[#allocation2 + $0x220] sm:$0x1]
        %v8658 = vld [vmem:[#allocation2 + $0x228] sm:$0x1]
        %v8659 = vld [vmem:[#allocation2 + $0x230] sm:$0x1]
        %v8660 = vld [vmem:[#allocation2 + $0x238] sm:$0x1]
        %v8661 = vld [vmem:[#allocation2 + $0x260] sm:$0xfe]
        %v8662 = vld [vmem:[#allocation2 + $0x268] sm:$0xfe]
        %v8663 = vld [vmem:[#allocation2 + $0x270] sm:$0xfe]
        %v8664 = vld [vmem:[#allocation2 + $0x278] sm:$0xfe]
        %v8665 = vld [vmem:[#allocation2 + $0x280] sm:$0x1]
        %v8666 = vld [vmem:[#allocation2 + $0x288] sm:$0x1]
        %v8667 = vld [vmem:[#allocation2 + $0x290] sm:$0x1]
        %v8668 = vld [vmem:[#allocation2 + $0x298] sm:$0x1]
        %v8669 = vld [vmem:[#allocation2 + $0x2c0] sm:$0xfe]
        %v8670 = vld [vmem:[#allocation2 + $0x2c8] sm:$0xfe]
        %v8671 = vld [vmem:[#allocation2 + $0x2d0] sm:$0xfe]
        %v8672 = vld [vmem:[#allocation2 + $0x2d8] sm:$0xfe]
        %v8673 = vld [vmem:[#allocation2 + $0x2e0] sm:$0x1]
        %v8674 = vld [vmem:[#allocation2 + $0x2e8] sm:$0x1]
        %v8675 = vld [vmem:[#allocation2 + $0x2f0] sm:$0x1]
        %v8676 = vld [vmem:[#allocation2 + $0x2f8] sm:$0x1]
        %v8741 = vrot.slane %v8613, 1
        %v8742 = vrot.slane %v8617, 1
        %v8743 = vsel %vm1236, %v8741, %v8742
        %v8744 = vrot.slane %v8614, 1
        %v8745 = vrot.slane %v8618, 1
        %v8746 = vsel %vm1236, %v8744, %v8745
        %v8747 = vrot.slane %v8615, 1
        %v8748 = vrot.slane %v8619, 1
        %v8749 = vsel %vm1236, %v8747, %v8748
        %v8750 = vrot.slane %v8616, 1
        %v8751 = vrot.slane %v8620, 1
        %v8752 = vsel %vm1236, %v8750, %v8751
        %v8753 = vrot.slane %v8621, 1
        %v8754 = vrot.slane %v8625, 1
        %v8755 = vsel %vm1236, %v8753, %v8754
        %v8756 = vrot.slane %v8622, 1
        %v8757 = vrot.slane %v8626, 1
        %v8758 = vsel %vm1236, %v8756, %v8757
        %v8759 = vrot.slane %v8623, 1
        %v8760 = vrot.slane %v8627, 1
        %v8761 = vsel %vm1236, %v8759, %v8760
        %v8762 = vrot.slane %v8624, 1
        %v8763 = vrot.slane %v8628, 1
        %v8764 = vsel %vm1236, %v8762, %v8763
        %v8765 = vrot.slane %v8629, 1
        %v8766 = vrot.slane %v8633, 1
        %v8767 = vsel %vm1236, %v8765, %v8766
        %v8768 = vrot.slane %v8630, 1
        %v8769 = vrot.slane %v8634, 1
        %v8770 = vsel %vm1236, %v8768, %v8769
        %v8771 = vrot.slane %v8631, 1
        %v8772 = vrot.slane %v8635, 1
        %v8773 = vsel %vm1236, %v8771, %v8772
        %v8774 = vrot.slane %v8632, 1
        %v8775 = vrot.slane %v8636, 1
        %v8776 = vsel %vm1236, %v8774, %v8775
        %v8777 = vrot.slane %v8637, 1
        %v8778 = vrot.slane %v8641, 1
        %v8779 = vsel %vm1236, %v8777, %v8778
        %v8780 = vrot.slane %v8638, 1
        %v8781 = vrot.slane %v8642, 1
        %v8782 = vsel %vm1236, %v8780, %v8781
        %v8783 = vrot.slane %v8639, 1
        %v8784 = vrot.slane %v8643, 1
        %v8785 = vsel %vm1236, %v8783, %v8784
        %v8786 = vrot.slane %v8640, 1
        %v8787 = vrot.slane %v8644, 1
        %v8788 = vsel %vm1236, %v8786, %v8787
        %v8789 = vrot.slane %v8645, 1
        %v8790 = vrot.slane %v8649, 1
        %v8791 = vsel %vm1236, %v8789, %v8790
        %v8792 = vrot.slane %v8646, 1
        %v8793 = vrot.slane %v8650, 1
        %v8794 = vsel %vm1236, %v8792, %v8793
        %v8795 = vrot.slane %v8647, 1
        %v8796 = vrot.slane %v8651, 1
        %v8797 = vsel %vm1236, %v8795, %v8796
        %v8798 = vrot.slane %v8648, 1
        %v8799 = vrot.slane %v8652, 1
        %v8800 = vsel %vm1236, %v8798, %v8799
        %v8801 = vrot.slane %v8653, 1
        %v8802 = vrot.slane %v8657, 1
        %v8803 = vsel %vm1236, %v8801, %v8802
        %v8804 = vrot.slane %v8654, 1
        %v8805 = vrot.slane %v8658, 1
        %v8806 = vsel %vm1236, %v8804, %v8805
        %v8807 = vrot.slane %v8655, 1
        %v8808 = vrot.slane %v8659, 1
        %v8809 = vsel %vm1236, %v8807, %v8808
        %v8810 = vrot.slane %v8656, 1
        %v8811 = vrot.slane %v8660, 1
        %v8812 = vsel %vm1236, %v8810, %v8811
        %v8813 = vrot.slane %v8661, 1
        %v8814 = vrot.slane %v8665, 1
        %v8815 = vsel %vm1236, %v8813, %v8814
        %v8816 = vrot.slane %v8662, 1
        %v8817 = vrot.slane %v8666, 1
        %v8818 = vsel %vm1236, %v8816, %v8817
        %v8819 = vrot.slane %v8663, 1
        %v8820 = vrot.slane %v8667, 1
        %v8821 = vsel %vm1236, %v8819, %v8820
        %v8822 = vrot.slane %v8664, 1
        %v8823 = vrot.slane %v8668, 1
        %v8824 = vsel %vm1236, %v8822, %v8823
        %v8825 = vrot.slane %v8669, 1
        %v8826 = vrot.slane %v8673, 1
        %v8827 = vsel %vm1236, %v8825, %v8826
        %v8828 = vrot.slane %v8670, 1
        %v8829 = vrot.slane %v8674, 1
        %v8830 = vsel %vm1236, %v8828, %v8829
        %v8831 = vrot.slane %v8671, 1
        %v8832 = vrot.slane %v8675, 1
        %v8833 = vsel %vm1236, %v8831, %v8832
        %v8834 = vrot.slane %v8672, 1
        %v8835 = vrot.slane %v8676, 1
        %v8836 = vsel %vm1236, %v8834, %v8835
        %s8869 = scalar_lea.vmem [#allocation6], 80
        %v8870 = vld [vmem:[%s8869] sm:$0xf]
        %v8872 = vlaneseq
        %v8873 = vshrl.u32 %v8872, 7
        %v8874 = vsub.s32 0, %v8873
        %v8875 = vrot.slane %v8870, %v8874
        %v8876 = vlaneseq
        %v8877 = vshrl.u32 %v8876, 7
        %v8878 = vsub.s32 1, %v8877
        %v8879 = vrot.slane %v8870, %v8878
        %v8880 = vlaneseq
        %v8881 = vshrl.u32 %v8880, 7
        %v8882 = vsub.s32 2, %v8881
        %v8883 = vrot.slane %v8870, %v8882
        %v8884 = vlaneseq
        %v8885 = vshrl.u32 %v8884, 7
        %v8886 = vsub.s32 3, %v8885
        %v8887 = vrot.slane %v8870, %v8886
        %v8892 = vmul.f32 %v8743, %v8875
        %v8893 = vmul.f32 %v8746, %v8879
        %v8894 = vmul.f32 %v8749, %v8883
        %v8895 = vmul.f32 %v8752, %v8887
        %v8896 = vmul.f32 %v8755, %v8875
        %v8897 = vmul.f32 %v8758, %v8879
        %v8898 = vmul.f32 %v8761, %v8883
        %v8899 = vmul.f32 %v8764, %v8887
        %v8900 = vmul.f32 %v8767, %v8875
        %v8901 = vmul.f32 %v8770, %v8879
        %v8902 = vmul.f32 %v8773, %v8883
        %v8903 = vmul.f32 %v8776, %v8887
        %v8904 = vmul.f32 %v8779, %v8875
        %v8905 = vmul.f32 %v8782, %v8879
        %v8906 = vmul.f32 %v8785, %v8883
        %v8907 = vmul.f32 %v8788, %v8887
        %v8908 = vmul.f32 %v8791, %v8875
        %v8909 = vmul.f32 %v8794, %v8879
        %v8910 = vmul.f32 %v8797, %v8883
        %v8911 = vmul.f32 %v8800, %v8887
        %v8912 = vmul.f32 %v8803, %v8875
        %v8913 = vmul.f32 %v8806, %v8879
        %v8914 = vmul.f32 %v8809, %v8883
        %v8915 = vmul.f32 %v8812, %v8887
        %v8916 = vmul.f32 %v8815, %v8875
        %v8917 = vmul.f32 %v8818, %v8879
        %v8918 = vmul.f32 %v8821, %v8883
        %v8919 = vmul.f32 %v8824, %v8887
        %v8920 = vmul.f32 %v8827, %v8875
        %v8921 = vmul.f32 %v8830, %v8879
        %v8922 = vmul.f32 %v8833, %v8883
        %v8923 = vmul.f32 %v8836, %v8887
        %v8924 = vadd.f32 %v8581, %v8892
        %v8925 = vadd.f32 %v8582, %v8893
        %v8926 = vadd.f32 %v8583, %v8894
        %v8927 = vadd.f32 %v8584, %v8895
        %v8928 = vadd.f32 %v8585, %v8896
        %v8929 = vadd.f32 %v8586, %v8897
        %v8930 = vadd.f32 %v8587, %v8898
        %v8931 = vadd.f32 %v8588, %v8899
        %v8932 = vadd.f32 %v8589, %v8900
        %v8933 = vadd.f32 %v8590, %v8901
        %v8934 = vadd.f32 %v8591, %v8902
        %v8935 = vadd.f32 %v8592, %v8903
        %v8936 = vadd.f32 %v8593, %v8904
        %v8937 = vadd.f32 %v8594, %v8905
        %v8938 = vadd.f32 %v8595, %v8906
        %v8939 = vadd.f32 %v8596, %v8907
        %v8940 = vadd.f32 %v8597, %v8908
        %v8941 = vadd.f32 %v8598, %v8909
        %v8942 = vadd.f32 %v8599, %v8910
        %v8943 = vadd.f32 %v8600, %v8911
        %v8944 = vadd.f32 %v8601, %v8912
        %v8945 = vadd.f32 %v8602, %v8913
        %v8946 = vadd.f32 %v8603, %v8914
        %v8947 = vadd.f32 %v8604, %v8915
        %v8948 = vadd.f32 %v8605, %v8916
        %v8949 = vadd.f32 %v8606, %v8917
        %v8950 = vadd.f32 %v8607, %v8918
        %v8951 = vadd.f32 %v8608, %v8919
        %v8952 = vadd.f32 %v8609, %v8920
        %v8953 = vadd.f32 %v8610, %v8921
        %v8954 = vadd.f32 %v8611, %v8922
        %v8955 = vadd.f32 %v8612, %v8923
        %v8956 = vld [vmem:[%s613] sm:$0x80]
        %v8957 = vld [vmem:[%s613 + $0x8] sm:$0x80]
        %v8958 = vld [vmem:[%s613 + $0x10] sm:$0x80]
        %v8959 = vld [vmem:[%s613 + $0x18] sm:$0x80]
        %v8960 = vld [vmem:[%s613 + $0x20] sm:$0x7f]
        %v8961 = vld [vmem:[%s613 + $0x28] sm:$0x7f]
        %v8962 = vld [vmem:[%s613 + $0x30] sm:$0x7f]
        %v8963 = vld [vmem:[%s613 + $0x38] sm:$0x7f]
        %v8964 = vld [vmem:[%s613 + $0x60] sm:$0x80]
        %v8965 = vld [vmem:[%s613 + $0x68] sm:$0x80]
        %v8966 = vld [vmem:[%s613 + $0x70] sm:$0x80]
        %v8967 = vld [vmem:[%s613 + $0x78] sm:$0x80]
        %v8968 = vld [vmem:[%s613 + $0x80] sm:$0x7f]
        %v8969 = vld [vmem:[%s613 + $0x88] sm:$0x7f]
        %v8970 = vld [vmem:[%s613 + $0x90] sm:$0x7f]
        %v8971 = vld [vmem:[%s613 + $0x98] sm:$0x7f]
        %v8972 = vld [vmem:[%s613 + $0xc0] sm:$0x80]
        %v8973 = vld [vmem:[%s613 + $0xc8] sm:$0x80]
        %v8974 = vld [vmem:[%s613 + $0xd0] sm:$0x80]
        %v8975 = vld [vmem:[%s613 + $0xd8] sm:$0x80]
        %v8976 = vld [vmem:[%s613 + $0xe0] sm:$0x7f]
        %v8977 = vld [vmem:[%s613 + $0xe8] sm:$0x7f]
        %v8978 = vld [vmem:[%s613 + $0xf0] sm:$0x7f]
        %v8979 = vld [vmem:[%s613 + $0xf8] sm:$0x7f]
        %v8980 = vld [vmem:[%s613 + $0x120] sm:$0x80]
        %v8981 = vld [vmem:[%s613 + $0x128] sm:$0x80]
        %v8982 = vld [vmem:[%s613 + $0x130] sm:$0x80]
        %v8983 = vld [vmem:[%s613 + $0x138] sm:$0x80]
        %v8984 = vld [vmem:[%s613 + $0x140] sm:$0x7f]
        %v8985 = vld [vmem:[%s613 + $0x148] sm:$0x7f]
        %v8986 = vld [vmem:[%s613 + $0x150] sm:$0x7f]
        %v8987 = vld [vmem:[%s613 + $0x158] sm:$0x7f]
        %v8988 = vld [vmem:[%s613 + $0x180] sm:$0x80]
        %v8989 = vld [vmem:[%s613 + $0x188] sm:$0x80]
        %v8990 = vld [vmem:[%s613 + $0x190] sm:$0x80]
        %v8991 = vld [vmem:[%s613 + $0x198] sm:$0x80]
        %v8992 = vld [vmem:[%s613 + $0x1a0] sm:$0x7f]
        %v8993 = vld [vmem:[%s613 + $0x1a8] sm:$0x7f]
        %v8994 = vld [vmem:[%s613 + $0x1b0] sm:$0x7f]
        %v8995 = vld [vmem:[%s613 + $0x1b8] sm:$0x7f]
        %v8996 = vld [vmem:[%s613 + $0x1e0] sm:$0x80]
        %v8997 = vld [vmem:[%s613 + $0x1e8] sm:$0x80]
        %v8998 = vld [vmem:[%s613 + $0x1f0] sm:$0x80]
        %v8999 = vld [vmem:[%s613 + $0x1f8] sm:$0x80]
        %v9000 = vld [vmem:[%s613 + $0x200] sm:$0x7f]
        %v9001 = vld [vmem:[%s613 + $0x208] sm:$0x7f]
        %v9002 = vld [vmem:[%s613 + $0x210] sm:$0x7f]
        %v9003 = vld [vmem:[%s613 + $0x218] sm:$0x7f]
        %v9004 = vld [vmem:[%s613 + $0x240] sm:$0x80]
        %v9005 = vld [vmem:[%s613 + $0x248] sm:$0x80]
        %v9006 = vld [vmem:[%s613 + $0x250] sm:$0x80]
        %v9007 = vld [vmem:[%s613 + $0x258] sm:$0x80]
        %v9008 = vld [vmem:[%s613 + $0x260] sm:$0x7f]
        %v9009 = vld [vmem:[%s613 + $0x268] sm:$0x7f]
        %v9010 = vld [vmem:[%s613 + $0x270] sm:$0x7f]
        %v9011 = vld [vmem:[%s613 + $0x278] sm:$0x7f]
        %v9012 = vld [vmem:[%s613 + $0x2a0] sm:$0x80]
        %v9013 = vld [vmem:[%s613 + $0x2a8] sm:$0x80]
        %v9014 = vld [vmem:[%s613 + $0x2b0] sm:$0x80]
        %v9015 = vld [vmem:[%s613 + $0x2b8] sm:$0x80]
        %v9016 = vld [vmem:[%s613 + $0x2c0] sm:$0x7f]
        %v9017 = vld [vmem:[%s613 + $0x2c8] sm:$0x7f]
        %v9018 = vld [vmem:[%s613 + $0x2d0] sm:$0x7f]
        %v9019 = vld [vmem:[%s613 + $0x2d8] sm:$0x7f]
        %v9084 = vrot.slane %v8956, 7
        %v9085 = vrot.slane %v8960, 7
        %v9086 = vsel %vm774, %v9084, %v9085
        %v9087 = vrot.slane %v8957, 7
        %v9088 = vrot.slane %v8961, 7
        %v9089 = vsel %vm774, %v9087, %v9088
        %v9090 = vrot.slane %v8958, 7
        %v9091 = vrot.slane %v8962, 7
        %v9092 = vsel %vm774, %v9090, %v9091
        %v9093 = vrot.slane %v8959, 7
        %v9094 = vrot.slane %v8963, 7
        %v9095 = vsel %vm774, %v9093, %v9094
        %v9096 = vrot.slane %v8964, 7
        %v9097 = vrot.slane %v8968, 7
        %v9098 = vsel %vm774, %v9096, %v9097
        %v9099 = vrot.slane %v8965, 7
        %v9100 = vrot.slane %v8969, 7
        %v9101 = vsel %vm774, %v9099, %v9100
        %v9102 = vrot.slane %v8966, 7
        %v9103 = vrot.slane %v8970, 7
        %v9104 = vsel %vm774, %v9102, %v9103
        %v9105 = vrot.slane %v8967, 7
        %v9106 = vrot.slane %v8971, 7
        %v9107 = vsel %vm774, %v9105, %v9106
        %v9108 = vrot.slane %v8972, 7
        %v9109 = vrot.slane %v8976, 7
        %v9110 = vsel %vm774, %v9108, %v9109
        %v9111 = vrot.slane %v8973, 7
        %v9112 = vrot.slane %v8977, 7
        %v9113 = vsel %vm774, %v9111, %v9112
        %v9114 = vrot.slane %v8974, 7
        %v9115 = vrot.slane %v8978, 7
        %v9116 = vsel %vm774, %v9114, %v9115
        %v9117 = vrot.slane %v8975, 7
        %v9118 = vrot.slane %v8979, 7
        %v9119 = vsel %vm774, %v9117, %v9118
        %v9120 = vrot.slane %v8980, 7
        %v9121 = vrot.slane %v8984, 7
        %v9122 = vsel %vm774, %v9120, %v9121
        %v9123 = vrot.slane %v8981, 7
        %v9124 = vrot.slane %v8985, 7
        %v9125 = vsel %vm774, %v9123, %v9124
        %v9126 = vrot.slane %v8982, 7
        %v9127 = vrot.slane %v8986, 7
        %v9128 = vsel %vm774, %v9126, %v9127
        %v9129 = vrot.slane %v8983, 7
        %v9130 = vrot.slane %v8987, 7
        %v9131 = vsel %vm774, %v9129, %v9130
        %v9132 = vrot.slane %v8988, 7
        %v9133 = vrot.slane %v8992, 7
        %v9134 = vsel %vm774, %v9132, %v9133
        %v9135 = vrot.slane %v8989, 7
        %v9136 = vrot.slane %v8993, 7
        %v9137 = vsel %vm774, %v9135, %v9136
        %v9138 = vrot.slane %v8990, 7
        %v9139 = vrot.slane %v8994, 7
        %v9140 = vsel %vm774, %v9138, %v9139
        %v9141 = vrot.slane %v8991, 7
        %v9142 = vrot.slane %v8995, 7
        %v9143 = vsel %vm774, %v9141, %v9142
        %v9144 = vrot.slane %v8996, 7
        %v9145 = vrot.slane %v9000, 7
        %v9146 = vsel %vm774, %v9144, %v9145
        %v9147 = vrot.slane %v8997, 7
        %v9148 = vrot.slane %v9001, 7
        %v9149 = vsel %vm774, %v9147, %v9148
        %v9150 = vrot.slane %v8998, 7
        %v9151 = vrot.slane %v9002, 7
        %v9152 = vsel %vm774, %v9150, %v9151
        %v9153 = vrot.slane %v8999, 7
        %v9154 = vrot.slane %v9003, 7
        %v9155 = vsel %vm774, %v9153, %v9154
        %v9156 = vrot.slane %v9004, 7
        %v9157 = vrot.slane %v9008, 7
        %v9158 = vsel %vm774, %v9156, %v9157
        %v9159 = vrot.slane %v9005, 7
        %v9160 = vrot.slane %v9009, 7
        %v9161 = vsel %vm774, %v9159, %v9160
        %v9162 = vrot.slane %v9006, 7
        %v9163 = vrot.slane %v9010, 7
        %v9164 = vsel %vm774, %v9162, %v9163
        %v9165 = vrot.slane %v9007, 7
        %v9166 = vrot.slane %v9011, 7
        %v9167 = vsel %vm774, %v9165, %v9166
        %v9168 = vrot.slane %v9012, 7
        %v9169 = vrot.slane %v9016, 7
        %v9170 = vsel %vm774, %v9168, %v9169
        %v9171 = vrot.slane %v9013, 7
        %v9172 = vrot.slane %v9017, 7
        %v9173 = vsel %vm774, %v9171, %v9172
        %v9174 = vrot.slane %v9014, 7
        %v9175 = vrot.slane %v9018, 7
        %v9176 = vsel %vm774, %v9174, %v9175
        %v9177 = vrot.slane %v9015, 7
        %v9178 = vrot.slane %v9019, 7
        %v9179 = vsel %vm774, %v9177, %v9178
        %s9212 = scalar_lea.vmem [#allocation6], 84
        %v9213 = vld [vmem:[%s9212] sm:$0xf]
        %v9215 = vlaneseq
        %v9216 = vshrl.u32 %v9215, 7
        %v9217 = vsub.s32 0, %v9216
        %v9218 = vrot.slane %v9213, %v9217
        %v9219 = vlaneseq
        %v9220 = vshrl.u32 %v9219, 7
        %v9221 = vsub.s32 1, %v9220
        %v9222 = vrot.slane %v9213, %v9221
        %v9223 = vlaneseq
        %v9224 = vshrl.u32 %v9223, 7
        %v9225 = vsub.s32 2, %v9224
        %v9226 = vrot.slane %v9213, %v9225
        %v9227 = vlaneseq
        %v9228 = vshrl.u32 %v9227, 7
        %v9229 = vsub.s32 3, %v9228
        %v9230 = vrot.slane %v9213, %v9229
        %v9235 = vmul.f32 %v9086, %v9218
        %v9236 = vmul.f32 %v9089, %v9222
        %v9237 = vmul.f32 %v9092, %v9226
        %v9238 = vmul.f32 %v9095, %v9230
        %v9239 = vmul.f32 %v9098, %v9218
        %v9240 = vmul.f32 %v9101, %v9222
        %v9241 = vmul.f32 %v9104, %v9226
        %v9242 = vmul.f32 %v9107, %v9230
        %v9243 = vmul.f32 %v9110, %v9218
        %v9244 = vmul.f32 %v9113, %v9222
        %v9245 = vmul.f32 %v9116, %v9226
        %v9246 = vmul.f32 %v9119, %v9230
        %v9247 = vmul.f32 %v9122, %v9218
        %v9248 = vmul.f32 %v9125, %v9222
        %v9249 = vmul.f32 %v9128, %v9226
        %v9250 = vmul.f32 %v9131, %v9230
        %v9251 = vmul.f32 %v9134, %v9218
        %v9252 = vmul.f32 %v9137, %v9222
        %v9253 = vmul.f32 %v9140, %v9226
        %v9254 = vmul.f32 %v9143, %v9230
        %v9255 = vmul.f32 %v9146, %v9218
        %v9256 = vmul.f32 %v9149, %v9222
        %v9257 = vmul.f32 %v9152, %v9226
        %v9258 = vmul.f32 %v9155, %v9230
        %v9259 = vmul.f32 %v9158, %v9218
        %v9260 = vmul.f32 %v9161, %v9222
        %v9261 = vmul.f32 %v9164, %v9226
        %v9262 = vmul.f32 %v9167, %v9230
        %v9263 = vmul.f32 %v9170, %v9218
        %v9264 = vmul.f32 %v9173, %v9222
        %v9265 = vmul.f32 %v9176, %v9226
        %v9266 = vmul.f32 %v9179, %v9230
        %v9267 = vadd.f32 %v8924, %v9235
        %v9268 = vadd.f32 %v8925, %v9236
        %v9269 = vadd.f32 %v8926, %v9237
        %v9270 = vadd.f32 %v8927, %v9238
        %v9271 = vadd.f32 %v8928, %v9239
        %v9272 = vadd.f32 %v8929, %v9240
        %v9273 = vadd.f32 %v8930, %v9241
        %v9274 = vadd.f32 %v8931, %v9242
        %v9275 = vadd.f32 %v8932, %v9243
        %v9276 = vadd.f32 %v8933, %v9244
        %v9277 = vadd.f32 %v8934, %v9245
        %v9278 = vadd.f32 %v8935, %v9246
        %v9279 = vadd.f32 %v8936, %v9247
        %v9280 = vadd.f32 %v8937, %v9248
        %v9281 = vadd.f32 %v8938, %v9249
        %v9282 = vadd.f32 %v8939, %v9250
        %v9283 = vadd.f32 %v8940, %v9251
        %v9284 = vadd.f32 %v8941, %v9252
        %v9285 = vadd.f32 %v8942, %v9253
        %v9286 = vadd.f32 %v8943, %v9254
        %v9287 = vadd.f32 %v8944, %v9255
        %v9288 = vadd.f32 %v8945, %v9256
        %v9289 = vadd.f32 %v8946, %v9257
        %v9290 = vadd.f32 %v8947, %v9258
        %v9291 = vadd.f32 %v8948, %v9259
        %v9292 = vadd.f32 %v8949, %v9260
        %v9293 = vadd.f32 %v8950, %v9261
        %v9294 = vadd.f32 %v8951, %v9262
        %v9295 = vadd.f32 %v8952, %v9263
        %v9296 = vadd.f32 %v8953, %v9264
        %v9297 = vadd.f32 %v8954, %v9265
        %v9298 = vadd.f32 %v8955, %v9266
        %v9299 = vld [vmem:[%s613 + $0x20] sm:$0xff]
        %v9300 = vld [vmem:[%s613 + $0x28] sm:$0xff]
        %v9301 = vld [vmem:[%s613 + $0x30] sm:$0xff]
        %v9302 = vld [vmem:[%s613 + $0x38] sm:$0xff]
        %v9303 = vld [vmem:[%s613 + $0x80] sm:$0xff]
        %v9304 = vld [vmem:[%s613 + $0x88] sm:$0xff]
        %v9305 = vld [vmem:[%s613 + $0x90] sm:$0xff]
        %v9306 = vld [vmem:[%s613 + $0x98] sm:$0xff]
        %v9307 = vld [vmem:[%s613 + $0xe0] sm:$0xff]
        %v9308 = vld [vmem:[%s613 + $0xe8] sm:$0xff]
        %v9309 = vld [vmem:[%s613 + $0xf0] sm:$0xff]
        %v9310 = vld [vmem:[%s613 + $0xf8] sm:$0xff]
        %v9311 = vld [vmem:[%s613 + $0x140] sm:$0xff]
        %v9312 = vld [vmem:[%s613 + $0x148] sm:$0xff]
        %v9313 = vld [vmem:[%s613 + $0x150] sm:$0xff]
        %v9314 = vld [vmem:[%s613 + $0x158] sm:$0xff]
        %v9315 = vld [vmem:[%s613 + $0x1a0] sm:$0xff]
        %v9316 = vld [vmem:[%s613 + $0x1a8] sm:$0xff]
        %v9317 = vld [vmem:[%s613 + $0x1b0] sm:$0xff]
        %v9318 = vld [vmem:[%s613 + $0x1b8] sm:$0xff]
        %v9319 = vld [vmem:[%s613 + $0x200] sm:$0xff]
        %v9320 = vld [vmem:[%s613 + $0x208] sm:$0xff]
        %v9321 = vld [vmem:[%s613 + $0x210] sm:$0xff]
        %v9322 = vld [vmem:[%s613 + $0x218] sm:$0xff]
        %v9323 = vld [vmem:[%s613 + $0x260] sm:$0xff]
        %v9324 = vld [vmem:[%s613 + $0x268] sm:$0xff]
        %v9325 = vld [vmem:[%s613 + $0x270] sm:$0xff]
        %v9326 = vld [vmem:[%s613 + $0x278] sm:$0xff]
        %v9327 = vld [vmem:[%s613 + $0x2c0] sm:$0xff]
        %v9328 = vld [vmem:[%s613 + $0x2c8] sm:$0xff]
        %v9329 = vld [vmem:[%s613 + $0x2d0] sm:$0xff]
        %v9330 = vld [vmem:[%s613 + $0x2d8] sm:$0xff]
        %s9331 = scalar_lea.vmem [#allocation6], 88
        %v9332 = vld [vmem:[%s9331] sm:$0xf]
        %v9334 = vlaneseq
        %v9335 = vshrl.u32 %v9334, 7
        %v9336 = vsub.s32 0, %v9335
        %v9337 = vrot.slane %v9332, %v9336
        %v9338 = vlaneseq
        %v9339 = vshrl.u32 %v9338, 7
        %v9340 = vsub.s32 1, %v9339
        %v9341 = vrot.slane %v9332, %v9340
        %v9342 = vlaneseq
        %v9343 = vshrl.u32 %v9342, 7
        %v9344 = vsub.s32 2, %v9343
        %v9345 = vrot.slane %v9332, %v9344
        %v9346 = vlaneseq
        %v9347 = vshrl.u32 %v9346, 7
        %v9348 = vsub.s32 3, %v9347
        %v9349 = vrot.slane %v9332, %v9348
        %v9354 = vmul.f32 %v9299, %v9337
        %v9355 = vmul.f32 %v9300, %v9341
        %v9356 = vmul.f32 %v9301, %v9345
        %v9357 = vmul.f32 %v9302, %v9349
        %v9358 = vmul.f32 %v9303, %v9337
        %v9359 = vmul.f32 %v9304, %v9341
        %v9360 = vmul.f32 %v9305, %v9345
        %v9361 = vmul.f32 %v9306, %v9349
        %v9362 = vmul.f32 %v9307, %v9337
        %v9363 = vmul.f32 %v9308, %v9341
        %v9364 = vmul.f32 %v9309, %v9345
        %v9365 = vmul.f32 %v9310, %v9349
        %v9366 = vmul.f32 %v9311, %v9337
        %v9367 = vmul.f32 %v9312, %v9341
        %v9368 = vmul.f32 %v9313, %v9345
        %v9369 = vmul.f32 %v9314, %v9349
        %v9370 = vmul.f32 %v9315, %v9337
        %v9371 = vmul.f32 %v9316, %v9341
        %v9372 = vmul.f32 %v9317, %v9345
        %v9373 = vmul.f32 %v9318, %v9349
        %v9374 = vmul.f32 %v9319, %v9337
        %v9375 = vmul.f32 %v9320, %v9341
        %v9376 = vmul.f32 %v9321, %v9345
        %v9377 = vmul.f32 %v9322, %v9349
        %v9378 = vmul.f32 %v9323, %v9337
        %v9379 = vmul.f32 %v9324, %v9341
        %v9380 = vmul.f32 %v9325, %v9345
        %v9381 = vmul.f32 %v9326, %v9349
        %v9382 = vmul.f32 %v9327, %v9337
        %v9383 = vmul.f32 %v9328, %v9341
        %v9384 = vmul.f32 %v9329, %v9345
        %v9385 = vmul.f32 %v9330, %v9349
        %v9386 = vadd.f32 %v9267, %v9354
        %v9387 = vadd.f32 %v9268, %v9355
        %v9388 = vadd.f32 %v9269, %v9356
        %v9389 = vadd.f32 %v9270, %v9357
        %v9390 = vadd.f32 %v9271, %v9358
        %v9391 = vadd.f32 %v9272, %v9359
        %v9392 = vadd.f32 %v9273, %v9360
        %v9393 = vadd.f32 %v9274, %v9361
        %v9394 = vadd.f32 %v9275, %v9362
        %v9395 = vadd.f32 %v9276, %v9363
        %v9396 = vadd.f32 %v9277, %v9364
        %v9397 = vadd.f32 %v9278, %v9365
        %v9398 = vadd.f32 %v9279, %v9366
        %v9399 = vadd.f32 %v9280, %v9367
        %v9400 = vadd.f32 %v9281, %v9368
        %v9401 = vadd.f32 %v9282, %v9369
        %v9402 = vadd.f32 %v9283, %v9370
        %v9403 = vadd.f32 %v9284, %v9371
        %v9404 = vadd.f32 %v9285, %v9372
        %v9405 = vadd.f32 %v9286, %v9373
        %v9406 = vadd.f32 %v9287, %v9374
        %v9407 = vadd.f32 %v9288, %v9375
        %v9408 = vadd.f32 %v9289, %v9376
        %v9409 = vadd.f32 %v9290, %v9377
        %v9410 = vadd.f32 %v9291, %v9378
        %v9411 = vadd.f32 %v9292, %v9379
        %v9412 = vadd.f32 %v9293, %v9380
        %v9413 = vadd.f32 %v9294, %v9381
        %v9414 = vadd.f32 %v9295, %v9382
        %v9415 = vadd.f32 %v9296, %v9383
        %v9416 = vadd.f32 %v9297, %v9384
        %v9417 = vadd.f32 %v9298, %v9385
        %v9418 = vld [vmem:[%s613 + $0x20] sm:$0xfe]
        %v9419 = vld [vmem:[%s613 + $0x28] sm:$0xfe]
        %v9420 = vld [vmem:[%s613 + $0x30] sm:$0xfe]
        %v9421 = vld [vmem:[%s613 + $0x38] sm:$0xfe]
        %v9422 = vld [vmem:[%s613 + $0x40] sm:$0x1]
        %v9423 = vld [vmem:[%s613 + $0x48] sm:$0x1]
        %v9424 = vld [vmem:[%s613 + $0x50] sm:$0x1]
        %v9425 = vld [vmem:[%s613 + $0x58] sm:$0x1]
        %v9426 = vld [vmem:[%s613 + $0x80] sm:$0xfe]
        %v9427 = vld [vmem:[%s613 + $0x88] sm:$0xfe]
        %v9428 = vld [vmem:[%s613 + $0x90] sm:$0xfe]
        %v9429 = vld [vmem:[%s613 + $0x98] sm:$0xfe]
        %v9430 = vld [vmem:[%s613 + $0xa0] sm:$0x1]
        %v9431 = vld [vmem:[%s613 + $0xa8] sm:$0x1]
        %v9432 = vld [vmem:[%s613 + $0xb0] sm:$0x1]
        %v9433 = vld [vmem:[%s613 + $0xb8] sm:$0x1]
        %v9434 = vld [vmem:[%s613 + $0xe0] sm:$0xfe]
        %v9435 = vld [vmem:[%s613 + $0xe8] sm:$0xfe]
        %v9436 = vld [vmem:[%s613 + $0xf0] sm:$0xfe]
        %v9437 = vld [vmem:[%s613 + $0xf8] sm:$0xfe]
        %v9438 = vld [vmem:[%s613 + $0x100] sm:$0x1]
        %v9439 = vld [vmem:[%s613 + $0x108] sm:$0x1]
        %v9440 = vld [vmem:[%s613 + $0x110] sm:$0x1]
        %v9441 = vld [vmem:[%s613 + $0x118] sm:$0x1]
        %v9442 = vld [vmem:[%s613 + $0x140] sm:$0xfe]
        %v9443 = vld [vmem:[%s613 + $0x148] sm:$0xfe]
        %v9444 = vld [vmem:[%s613 + $0x150] sm:$0xfe]
        %v9445 = vld [vmem:[%s613 + $0x158] sm:$0xfe]
        %v9446 = vld [vmem:[%s613 + $0x160] sm:$0x1]
        %v9447 = vld [vmem:[%s613 + $0x168] sm:$0x1]
        %v9448 = vld [vmem:[%s613 + $0x170] sm:$0x1]
        %v9449 = vld [vmem:[%s613 + $0x178] sm:$0x1]
        %v9450 = vld [vmem:[%s613 + $0x1a0] sm:$0xfe]
        %v9451 = vld [vmem:[%s613 + $0x1a8] sm:$0xfe]
        %v9452 = vld [vmem:[%s613 + $0x1b0] sm:$0xfe]
        %v9453 = vld [vmem:[%s613 + $0x1b8] sm:$0xfe]
        %v9454 = vld [vmem:[%s613 + $0x1c0] sm:$0x1]
        %v9455 = vld [vmem:[%s613 + $0x1c8] sm:$0x1]
        %v9456 = vld [vmem:[%s613 + $0x1d0] sm:$0x1]
        %v9457 = vld [vmem:[%s613 + $0x1d8] sm:$0x1]
        %v9458 = vld [vmem:[%s613 + $0x200] sm:$0xfe]
        %v9459 = vld [vmem:[%s613 + $0x208] sm:$0xfe]
        %v9460 = vld [vmem:[%s613 + $0x210] sm:$0xfe]
        %v9461 = vld [vmem:[%s613 + $0x218] sm:$0xfe]
        %v9462 = vld [vmem:[%s613 + $0x220] sm:$0x1]
        %v9463 = vld [vmem:[%s613 + $0x228] sm:$0x1]
        %v9464 = vld [vmem:[%s613 + $0x230] sm:$0x1]
        %v9465 = vld [vmem:[%s613 + $0x238] sm:$0x1]
        %v9466 = vld [vmem:[%s613 + $0x260] sm:$0xfe]
        %v9467 = vld [vmem:[%s613 + $0x268] sm:$0xfe]
        %v9468 = vld [vmem:[%s613 + $0x270] sm:$0xfe]
        %v9469 = vld [vmem:[%s613 + $0x278] sm:$0xfe]
        %v9470 = vld [vmem:[%s613 + $0x280] sm:$0x1]
        %v9471 = vld [vmem:[%s613 + $0x288] sm:$0x1]
        %v9472 = vld [vmem:[%s613 + $0x290] sm:$0x1]
        %v9473 = vld [vmem:[%s613 + $0x298] sm:$0x1]
        %v9474 = vld [vmem:[%s613 + $0x2c0] sm:$0xfe]
        %v9475 = vld [vmem:[%s613 + $0x2c8] sm:$0xfe]
        %v9476 = vld [vmem:[%s613 + $0x2d0] sm:$0xfe]
        %v9477 = vld [vmem:[%s613 + $0x2d8] sm:$0xfe]
        %v9478 = vld [vmem:[%s613 + $0x2e0] sm:$0x1]
        %v9479 = vld [vmem:[%s613 + $0x2e8] sm:$0x1]
        %v9480 = vld [vmem:[%s613 + $0x2f0] sm:$0x1]
        %v9481 = vld [vmem:[%s613 + $0x2f8] sm:$0x1]
        %v9546 = vrot.slane %v9418, 1
        %v9547 = vrot.slane %v9422, 1
        %v9548 = vsel %vm1236, %v9546, %v9547
        %v9549 = vrot.slane %v9419, 1
        %v9550 = vrot.slane %v9423, 1
        %v9551 = vsel %vm1236, %v9549, %v9550
        %v9552 = vrot.slane %v9420, 1
        %v9553 = vrot.slane %v9424, 1
        %v9554 = vsel %vm1236, %v9552, %v9553
        %v9555 = vrot.slane %v9421, 1
        %v9556 = vrot.slane %v9425, 1
        %v9557 = vsel %vm1236, %v9555, %v9556
        %v9558 = vrot.slane %v9426, 1
        %v9559 = vrot.slane %v9430, 1
        %v9560 = vsel %vm1236, %v9558, %v9559
        %v9561 = vrot.slane %v9427, 1
        %v9562 = vrot.slane %v9431, 1
        %v9563 = vsel %vm1236, %v9561, %v9562
        %v9564 = vrot.slane %v9428, 1
        %v9565 = vrot.slane %v9432, 1
        %v9566 = vsel %vm1236, %v9564, %v9565
        %v9567 = vrot.slane %v9429, 1
        %v9568 = vrot.slane %v9433, 1
        %v9569 = vsel %vm1236, %v9567, %v9568
        %v9570 = vrot.slane %v9434, 1
        %v9571 = vrot.slane %v9438, 1
        %v9572 = vsel %vm1236, %v9570, %v9571
        %v9573 = vrot.slane %v9435, 1
        %v9574 = vrot.slane %v9439, 1
        %v9575 = vsel %vm1236, %v9573, %v9574
        %v9576 = vrot.slane %v9436, 1
        %v9577 = vrot.slane %v9440, 1
        %v9578 = vsel %vm1236, %v9576, %v9577
        %v9579 = vrot.slane %v9437, 1
        %v9580 = vrot.slane %v9441, 1
        %v9581 = vsel %vm1236, %v9579, %v9580
        %v9582 = vrot.slane %v9442, 1
        %v9583 = vrot.slane %v9446, 1
        %v9584 = vsel %vm1236, %v9582, %v9583
        %v9585 = vrot.slane %v9443, 1
        %v9586 = vrot.slane %v9447, 1
        %v9587 = vsel %vm1236, %v9585, %v9586
        %v9588 = vrot.slane %v9444, 1
        %v9589 = vrot.slane %v9448, 1
        %v9590 = vsel %vm1236, %v9588, %v9589
        %v9591 = vrot.slane %v9445, 1
        %v9592 = vrot.slane %v9449, 1
        %v9593 = vsel %vm1236, %v9591, %v9592
        %v9594 = vrot.slane %v9450, 1
        %v9595 = vrot.slane %v9454, 1
        %v9596 = vsel %vm1236, %v9594, %v9595
        %v9597 = vrot.slane %v9451, 1
        %v9598 = vrot.slane %v9455, 1
        %v9599 = vsel %vm1236, %v9597, %v9598
        %v9600 = vrot.slane %v9452, 1
        %v9601 = vrot.slane %v9456, 1
        %v9602 = vsel %vm1236, %v9600, %v9601
        %v9603 = vrot.slane %v9453, 1
        %v9604 = vrot.slane %v9457, 1
        %v9605 = vsel %vm1236, %v9603, %v9604
        %v9606 = vrot.slane %v9458, 1
        %v9607 = vrot.slane %v9462, 1
        %v9608 = vsel %vm1236, %v9606, %v9607
        %v9609 = vrot.slane %v9459, 1
        %v9610 = vrot.slane %v9463, 1
        %v9611 = vsel %vm1236, %v9609, %v9610
        %v9612 = vrot.slane %v9460, 1
        %v9613 = vrot.slane %v9464, 1
        %v9614 = vsel %vm1236, %v9612, %v9613
        %v9615 = vrot.slane %v9461, 1
        %v9616 = vrot.slane %v9465, 1
        %v9617 = vsel %vm1236, %v9615, %v9616
        %v9618 = vrot.slane %v9466, 1
        %v9619 = vrot.slane %v9470, 1
        %v9620 = vsel %vm1236, %v9618, %v9619
        %v9621 = vrot.slane %v9467, 1
        %v9622 = vrot.slane %v9471, 1
        %v9623 = vsel %vm1236, %v9621, %v9622
        %v9624 = vrot.slane %v9468, 1
        %v9625 = vrot.slane %v9472, 1
        %v9626 = vsel %vm1236, %v9624, %v9625
        %v9627 = vrot.slane %v9469, 1
        %v9628 = vrot.slane %v9473, 1
        %v9629 = vsel %vm1236, %v9627, %v9628
        %v9630 = vrot.slane %v9474, 1
        %v9631 = vrot.slane %v9478, 1
        %v9632 = vsel %vm1236, %v9630, %v9631
        %v9633 = vrot.slane %v9475, 1
        %v9634 = vrot.slane %v9479, 1
        %v9635 = vsel %vm1236, %v9633, %v9634
        %v9636 = vrot.slane %v9476, 1
        %v9637 = vrot.slane %v9480, 1
        %v9638 = vsel %vm1236, %v9636, %v9637
        %v9639 = vrot.slane %v9477, 1
        %v9640 = vrot.slane %v9481, 1
        %v9641 = vsel %vm1236, %v9639, %v9640
        %s9674 = scalar_lea.vmem [#allocation6], 92
        %v9675 = vld [vmem:[%s9674] sm:$0xf]
        %v9677 = vlaneseq
        %v9678 = vshrl.u32 %v9677, 7
        %v9679 = vsub.s32 0, %v9678
        %v9680 = vrot.slane %v9675, %v9679
        %v9681 = vlaneseq
        %v9682 = vshrl.u32 %v9681, 7
        %v9683 = vsub.s32 1, %v9682
        %v9684 = vrot.slane %v9675, %v9683
        %v9685 = vlaneseq
        %v9686 = vshrl.u32 %v9685, 7
        %v9687 = vsub.s32 2, %v9686
        %v9688 = vrot.slane %v9675, %v9687
        %v9689 = vlaneseq
        %v9690 = vshrl.u32 %v9689, 7
        %v9691 = vsub.s32 3, %v9690
        %v9692 = vrot.slane %v9675, %v9691
        %v9697 = vmul.f32 %v9548, %v9680
        %v9698 = vmul.f32 %v9551, %v9684
        %v9699 = vmul.f32 %v9554, %v9688
        %v9700 = vmul.f32 %v9557, %v9692
        %v9701 = vmul.f32 %v9560, %v9680
        %v9702 = vmul.f32 %v9563, %v9684
        %v9703 = vmul.f32 %v9566, %v9688
        %v9704 = vmul.f32 %v9569, %v9692
        %v9705 = vmul.f32 %v9572, %v9680
        %v9706 = vmul.f32 %v9575, %v9684
        %v9707 = vmul.f32 %v9578, %v9688
        %v9708 = vmul.f32 %v9581, %v9692
        %v9709 = vmul.f32 %v9584, %v9680
        %v9710 = vmul.f32 %v9587, %v9684
        %v9711 = vmul.f32 %v9590, %v9688
        %v9712 = vmul.f32 %v9593, %v9692
        %v9713 = vmul.f32 %v9596, %v9680
        %v9714 = vmul.f32 %v9599, %v9684
        %v9715 = vmul.f32 %v9602, %v9688
        %v9716 = vmul.f32 %v9605, %v9692
        %v9717 = vmul.f32 %v9608, %v9680
        %v9718 = vmul.f32 %v9611, %v9684
        %v9719 = vmul.f32 %v9614, %v9688
        %v9720 = vmul.f32 %v9617, %v9692
        %v9721 = vmul.f32 %v9620, %v9680
        %v9722 = vmul.f32 %v9623, %v9684
        %v9723 = vmul.f32 %v9626, %v9688
        %v9724 = vmul.f32 %v9629, %v9692
        %v9725 = vmul.f32 %v9632, %v9680
        %v9726 = vmul.f32 %v9635, %v9684
        %v9727 = vmul.f32 %v9638, %v9688
        %v9728 = vmul.f32 %v9641, %v9692
        %v9729 = vadd.f32 %v9386, %v9697
        %v9730 = vadd.f32 %v9387, %v9698
        %v9731 = vadd.f32 %v9388, %v9699
        %v9732 = vadd.f32 %v9389, %v9700
        %v9733 = vadd.f32 %v9390, %v9701
        %v9734 = vadd.f32 %v9391, %v9702
        %v9735 = vadd.f32 %v9392, %v9703
        %v9736 = vadd.f32 %v9393, %v9704
        %v9737 = vadd.f32 %v9394, %v9705
        %v9738 = vadd.f32 %v9395, %v9706
        %v9739 = vadd.f32 %v9396, %v9707
        %v9740 = vadd.f32 %v9397, %v9708
        %v9741 = vadd.f32 %v9398, %v9709
        %v9742 = vadd.f32 %v9399, %v9710
        %v9743 = vadd.f32 %v9400, %v9711
        %v9744 = vadd.f32 %v9401, %v9712
        %v9745 = vadd.f32 %v9402, %v9713
        %v9746 = vadd.f32 %v9403, %v9714
        %v9747 = vadd.f32 %v9404, %v9715
        %v9748 = vadd.f32 %v9405, %v9716
        %v9749 = vadd.f32 %v9406, %v9717
        %v9750 = vadd.f32 %v9407, %v9718
        %v9751 = vadd.f32 %v9408, %v9719
        %v9752 = vadd.f32 %v9409, %v9720
        %v9753 = vadd.f32 %v9410, %v9721
        %v9754 = vadd.f32 %v9411, %v9722
        %v9755 = vadd.f32 %v9412, %v9723
        %v9756 = vadd.f32 %v9413, %v9724
        %v9757 = vadd.f32 %v9414, %v9725
        %v9758 = vadd.f32 %v9415, %v9726
        %v9759 = vadd.f32 %v9416, %v9727
        %v9760 = vadd.f32 %v9417, %v9728
        %v9761 = vld [vmem:[%s2257] sm:$0x80]
        %v9762 = vld [vmem:[%s2257 + $0x8] sm:$0x80]
        %v9763 = vld [vmem:[%s2257 + $0x10] sm:$0x80]
        %v9764 = vld [vmem:[%s2257 + $0x18] sm:$0x80]
        %v9765 = vld [vmem:[%s2257 + $0x20] sm:$0x7f]
        %v9766 = vld [vmem:[%s2257 + $0x28] sm:$0x7f]
        %v9767 = vld [vmem:[%s2257 + $0x30] sm:$0x7f]
        %v9768 = vld [vmem:[%s2257 + $0x38] sm:$0x7f]
        %v9769 = vld [vmem:[%s2257 + $0x60] sm:$0x80]
        %v9770 = vld [vmem:[%s2257 + $0x68] sm:$0x80]
        %v9771 = vld [vmem:[%s2257 + $0x70] sm:$0x80]
        %v9772 = vld [vmem:[%s2257 + $0x78] sm:$0x80]
        %v9773 = vld [vmem:[%s2257 + $0x80] sm:$0x7f]
        %v9774 = vld [vmem:[%s2257 + $0x88] sm:$0x7f]
        %v9775 = vld [vmem:[%s2257 + $0x90] sm:$0x7f]
        %v9776 = vld [vmem:[%s2257 + $0x98] sm:$0x7f]
        %v9777 = vld [vmem:[%s2257 + $0xc0] sm:$0x80]
        %v9778 = vld [vmem:[%s2257 + $0xc8] sm:$0x80]
        %v9779 = vld [vmem:[%s2257 + $0xd0] sm:$0x80]
        %v9780 = vld [vmem:[%s2257 + $0xd8] sm:$0x80]
        %v9781 = vld [vmem:[%s2257 + $0xe0] sm:$0x7f]
        %v9782 = vld [vmem:[%s2257 + $0xe8] sm:$0x7f]
        %v9783 = vld [vmem:[%s2257 + $0xf0] sm:$0x7f]
        %v9784 = vld [vmem:[%s2257 + $0xf8] sm:$0x7f]
        %v9785 = vld [vmem:[%s2257 + $0x120] sm:$0x80]
        %v9786 = vld [vmem:[%s2257 + $0x128] sm:$0x80]
        %v9787 = vld [vmem:[%s2257 + $0x130] sm:$0x80]
        %v9788 = vld [vmem:[%s2257 + $0x138] sm:$0x80]
        %v9789 = vld [vmem:[%s2257 + $0x140] sm:$0x7f]
        %v9790 = vld [vmem:[%s2257 + $0x148] sm:$0x7f]
        %v9791 = vld [vmem:[%s2257 + $0x150] sm:$0x7f]
        %v9792 = vld [vmem:[%s2257 + $0x158] sm:$0x7f]
        %v9793 = vld [vmem:[%s2257 + $0x180] sm:$0x80]
        %v9794 = vld [vmem:[%s2257 + $0x188] sm:$0x80]
        %v9795 = vld [vmem:[%s2257 + $0x190] sm:$0x80]
        %v9796 = vld [vmem:[%s2257 + $0x198] sm:$0x80]
        %v9797 = vld [vmem:[%s2257 + $0x1a0] sm:$0x7f]
        %v9798 = vld [vmem:[%s2257 + $0x1a8] sm:$0x7f]
        %v9799 = vld [vmem:[%s2257 + $0x1b0] sm:$0x7f]
        %v9800 = vld [vmem:[%s2257 + $0x1b8] sm:$0x7f]
        %v9801 = vld [vmem:[%s2257 + $0x1e0] sm:$0x80]
        %v9802 = vld [vmem:[%s2257 + $0x1e8] sm:$0x80]
        %v9803 = vld [vmem:[%s2257 + $0x1f0] sm:$0x80]
        %v9804 = vld [vmem:[%s2257 + $0x1f8] sm:$0x80]
        %v9805 = vld [vmem:[%s2257 + $0x200] sm:$0x7f]
        %v9806 = vld [vmem:[%s2257 + $0x208] sm:$0x7f]
        %v9807 = vld [vmem:[%s2257 + $0x210] sm:$0x7f]
        %v9808 = vld [vmem:[%s2257 + $0x218] sm:$0x7f]
        %v9809 = vld [vmem:[%s2257 + $0x240] sm:$0x80]
        %v9810 = vld [vmem:[%s2257 + $0x248] sm:$0x80]
        %v9811 = vld [vmem:[%s2257 + $0x250] sm:$0x80]
        %v9812 = vld [vmem:[%s2257 + $0x258] sm:$0x80]
        %v9813 = vld [vmem:[%s2257 + $0x260] sm:$0x7f]
        %v9814 = vld [vmem:[%s2257 + $0x268] sm:$0x7f]
        %v9815 = vld [vmem:[%s2257 + $0x270] sm:$0x7f]
        %v9816 = vld [vmem:[%s2257 + $0x278] sm:$0x7f]
        %v9817 = vld [vmem:[%s2257 + $0x2a0] sm:$0x80]
        %v9818 = vld [vmem:[%s2257 + $0x2a8] sm:$0x80]
        %v9819 = vld [vmem:[%s2257 + $0x2b0] sm:$0x80]
        %v9820 = vld [vmem:[%s2257 + $0x2b8] sm:$0x80]
        %v9821 = vld [vmem:[%s2257 + $0x2c0] sm:$0x7f]
        %v9822 = vld [vmem:[%s2257 + $0x2c8] sm:$0x7f]
        %v9823 = vld [vmem:[%s2257 + $0x2d0] sm:$0x7f]
        %v9824 = vld [vmem:[%s2257 + $0x2d8] sm:$0x7f]
        %v9889 = vrot.slane %v9761, 7
        %v9890 = vrot.slane %v9765, 7
        %v9891 = vsel %vm774, %v9889, %v9890
        %v9892 = vrot.slane %v9762, 7
        %v9893 = vrot.slane %v9766, 7
        %v9894 = vsel %vm774, %v9892, %v9893
        %v9895 = vrot.slane %v9763, 7
        %v9896 = vrot.slane %v9767, 7
        %v9897 = vsel %vm774, %v9895, %v9896
        %v9898 = vrot.slane %v9764, 7
        %v9899 = vrot.slane %v9768, 7
        %v9900 = vsel %vm774, %v9898, %v9899
        %v9901 = vrot.slane %v9769, 7
        %v9902 = vrot.slane %v9773, 7
        %v9903 = vsel %vm774, %v9901, %v9902
        %v9904 = vrot.slane %v9770, 7
        %v9905 = vrot.slane %v9774, 7
        %v9906 = vsel %vm774, %v9904, %v9905
        %v9907 = vrot.slane %v9771, 7
        %v9908 = vrot.slane %v9775, 7
        %v9909 = vsel %vm774, %v9907, %v9908
        %v9910 = vrot.slane %v9772, 7
        %v9911 = vrot.slane %v9776, 7
        %v9912 = vsel %vm774, %v9910, %v9911
        %v9913 = vrot.slane %v9777, 7
        %v9914 = vrot.slane %v9781, 7
        %v9915 = vsel %vm774, %v9913, %v9914
        %v9916 = vrot.slane %v9778, 7
        %v9917 = vrot.slane %v9782, 7
        %v9918 = vsel %vm774, %v9916, %v9917
        %v9919 = vrot.slane %v9779, 7
        %v9920 = vrot.slane %v9783, 7
        %v9921 = vsel %vm774, %v9919, %v9920
        %v9922 = vrot.slane %v9780, 7
        %v9923 = vrot.slane %v9784, 7
        %v9924 = vsel %vm774, %v9922, %v9923
        %v9925 = vrot.slane %v9785, 7
        %v9926 = vrot.slane %v9789, 7
        %v9927 = vsel %vm774, %v9925, %v9926
        %v9928 = vrot.slane %v9786, 7
        %v9929 = vrot.slane %v9790, 7
        %v9930 = vsel %vm774, %v9928, %v9929
        %v9931 = vrot.slane %v9787, 7
        %v9932 = vrot.slane %v9791, 7
        %v9933 = vsel %vm774, %v9931, %v9932
        %v9934 = vrot.slane %v9788, 7
        %v9935 = vrot.slane %v9792, 7
        %v9936 = vsel %vm774, %v9934, %v9935
        %v9937 = vrot.slane %v9793, 7
        %v9938 = vrot.slane %v9797, 7
        %v9939 = vsel %vm774, %v9937, %v9938
        %v9940 = vrot.slane %v9794, 7
        %v9941 = vrot.slane %v9798, 7
        %v9942 = vsel %vm774, %v9940, %v9941
        %v9943 = vrot.slane %v9795, 7
        %v9944 = vrot.slane %v9799, 7
        %v9945 = vsel %vm774, %v9943, %v9944
        %v9946 = vrot.slane %v9796, 7
        %v9947 = vrot.slane %v9800, 7
        %v9948 = vsel %vm774, %v9946, %v9947
        %v9949 = vrot.slane %v9801, 7
        %v9950 = vrot.slane %v9805, 7
        %v9951 = vsel %vm774, %v9949, %v9950
        %v9952 = vrot.slane %v9802, 7
        %v9953 = vrot.slane %v9806, 7
        %v9954 = vsel %vm774, %v9952, %v9953
        %v9955 = vrot.slane %v9803, 7
        %v9956 = vrot.slane %v9807, 7
        %v9957 = vsel %vm774, %v9955, %v9956
        %v9958 = vrot.slane %v9804, 7
        %v9959 = vrot.slane %v9808, 7
        %v9960 = vsel %vm774, %v9958, %v9959
        %v9961 = vrot.slane %v9809, 7
        %v9962 = vrot.slane %v9813, 7
        %v9963 = vsel %vm774, %v9961, %v9962
        %v9964 = vrot.slane %v9810, 7
        %v9965 = vrot.slane %v9814, 7
        %v9966 = vsel %vm774, %v9964, %v9965
        %v9967 = vrot.slane %v9811, 7
        %v9968 = vrot.slane %v9815, 7
        %v9969 = vsel %vm774, %v9967, %v9968
        %v9970 = vrot.slane %v9812, 7
        %v9971 = vrot.slane %v9816, 7
        %v9972 = vsel %vm774, %v9970, %v9971
        %v9973 = vrot.slane %v9817, 7
        %v9974 = vrot.slane %v9821, 7
        %v9975 = vsel %vm774, %v9973, %v9974
        %v9976 = vrot.slane %v9818, 7
        %v9977 = vrot.slane %v9822, 7
        %v9978 = vsel %vm774, %v9976, %v9977
        %v9979 = vrot.slane %v9819, 7
        %v9980 = vrot.slane %v9823, 7
        %v9981 = vsel %vm774, %v9979, %v9980
        %v9982 = vrot.slane %v9820, 7
        %v9983 = vrot.slane %v9824, 7
        %v9984 = vsel %vm774, %v9982, %v9983
        %s10017 = scalar_lea.vmem [#allocation6], 96
        %v10018 = vld [vmem:[%s10017] sm:$0xf]
        %v10020 = vlaneseq
        %v10021 = vshrl.u32 %v10020, 7
        %v10022 = vsub.s32 0, %v10021
        %v10023 = vrot.slane %v10018, %v10022
        %v10024 = vlaneseq
        %v10025 = vshrl.u32 %v10024, 7
        %v10026 = vsub.s32 1, %v10025
        %v10027 = vrot.slane %v10018, %v10026
        %v10028 = vlaneseq
        %v10029 = vshrl.u32 %v10028, 7
        %v10030 = vsub.s32 2, %v10029
        %v10031 = vrot.slane %v10018, %v10030
        %v10032 = vlaneseq
        %v10033 = vshrl.u32 %v10032, 7
        %v10034 = vsub.s32 3, %v10033
        %v10035 = vrot.slane %v10018, %v10034
        %v10040 = vmul.f32 %v9891, %v10023
        %v10041 = vmul.f32 %v9894, %v10027
        %v10042 = vmul.f32 %v9897, %v10031
        %v10043 = vmul.f32 %v9900, %v10035
        %v10044 = vmul.f32 %v9903, %v10023
        %v10045 = vmul.f32 %v9906, %v10027
        %v10046 = vmul.f32 %v9909, %v10031
        %v10047 = vmul.f32 %v9912, %v10035
        %v10048 = vmul.f32 %v9915, %v10023
        %v10049 = vmul.f32 %v9918, %v10027
        %v10050 = vmul.f32 %v9921, %v10031
        %v10051 = vmul.f32 %v9924, %v10035
        %v10052 = vmul.f32 %v9927, %v10023
        %v10053 = vmul.f32 %v9930, %v10027
        %v10054 = vmul.f32 %v9933, %v10031
        %v10055 = vmul.f32 %v9936, %v10035
        %v10056 = vmul.f32 %v9939, %v10023
        %v10057 = vmul.f32 %v9942, %v10027
        %v10058 = vmul.f32 %v9945, %v10031
        %v10059 = vmul.f32 %v9948, %v10035
        %v10060 = vmul.f32 %v9951, %v10023
        %v10061 = vmul.f32 %v9954, %v10027
        %v10062 = vmul.f32 %v9957, %v10031
        %v10063 = vmul.f32 %v9960, %v10035
        %v10064 = vmul.f32 %v9963, %v10023
        %v10065 = vmul.f32 %v9966, %v10027
        %v10066 = vmul.f32 %v9969, %v10031
        %v10067 = vmul.f32 %v9972, %v10035
        %v10068 = vmul.f32 %v9975, %v10023
        %v10069 = vmul.f32 %v9978, %v10027
        %v10070 = vmul.f32 %v9981, %v10031
        %v10071 = vmul.f32 %v9984, %v10035
        %v10072 = vadd.f32 %v9729, %v10040
        %v10073 = vadd.f32 %v9730, %v10041
        %v10074 = vadd.f32 %v9731, %v10042
        %v10075 = vadd.f32 %v9732, %v10043
        %v10076 = vadd.f32 %v9733, %v10044
        %v10077 = vadd.f32 %v9734, %v10045
        %v10078 = vadd.f32 %v9735, %v10046
        %v10079 = vadd.f32 %v9736, %v10047
        %v10080 = vadd.f32 %v9737, %v10048
        %v10081 = vadd.f32 %v9738, %v10049
        %v10082 = vadd.f32 %v9739, %v10050
        %v10083 = vadd.f32 %v9740, %v10051
        %v10084 = vadd.f32 %v9741, %v10052
        %v10085 = vadd.f32 %v9742, %v10053
        %v10086 = vadd.f32 %v9743, %v10054
        %v10087 = vadd.f32 %v9744, %v10055
        %v10088 = vadd.f32 %v9745, %v10056
        %v10089 = vadd.f32 %v9746, %v10057
        %v10090 = vadd.f32 %v9747, %v10058
        %v10091 = vadd.f32 %v9748, %v10059
        %v10092 = vadd.f32 %v9749, %v10060
        %v10093 = vadd.f32 %v9750, %v10061
        %v10094 = vadd.f32 %v9751, %v10062
        %v10095 = vadd.f32 %v9752, %v10063
        %v10096 = vadd.f32 %v9753, %v10064
        %v10097 = vadd.f32 %v9754, %v10065
        %v10098 = vadd.f32 %v9755, %v10066
        %v10099 = vadd.f32 %v9756, %v10067
        %v10100 = vadd.f32 %v9757, %v10068
        %v10101 = vadd.f32 %v9758, %v10069
        %v10102 = vadd.f32 %v9759, %v10070
        %v10103 = vadd.f32 %v9760, %v10071
        %v10104 = vld [vmem:[%s2257 + $0x20] sm:$0xff]
        %v10105 = vld [vmem:[%s2257 + $0x28] sm:$0xff]
        %v10106 = vld [vmem:[%s2257 + $0x30] sm:$0xff]
        %v10107 = vld [vmem:[%s2257 + $0x38] sm:$0xff]
        %v10108 = vld [vmem:[%s2257 + $0x80] sm:$0xff]
        %v10109 = vld [vmem:[%s2257 + $0x88] sm:$0xff]
        %v10110 = vld [vmem:[%s2257 + $0x90] sm:$0xff]
        %v10111 = vld [vmem:[%s2257 + $0x98] sm:$0xff]
        %v10112 = vld [vmem:[%s2257 + $0xe0] sm:$0xff]
        %v10113 = vld [vmem:[%s2257 + $0xe8] sm:$0xff]
        %v10114 = vld [vmem:[%s2257 + $0xf0] sm:$0xff]
        %v10115 = vld [vmem:[%s2257 + $0xf8] sm:$0xff]
        %v10116 = vld [vmem:[%s2257 + $0x140] sm:$0xff]
        %v10117 = vld [vmem:[%s2257 + $0x148] sm:$0xff]
        %v10118 = vld [vmem:[%s2257 + $0x150] sm:$0xff]
        %v10119 = vld [vmem:[%s2257 + $0x158] sm:$0xff]
        %v10120 = vld [vmem:[%s2257 + $0x1a0] sm:$0xff]
        %v10121 = vld [vmem:[%s2257 + $0x1a8] sm:$0xff]
        %v10122 = vld [vmem:[%s2257 + $0x1b0] sm:$0xff]
        %v10123 = vld [vmem:[%s2257 + $0x1b8] sm:$0xff]
        %v10124 = vld [vmem:[%s2257 + $0x200] sm:$0xff]
        %v10125 = vld [vmem:[%s2257 + $0x208] sm:$0xff]
        %v10126 = vld [vmem:[%s2257 + $0x210] sm:$0xff]
        %v10127 = vld [vmem:[%s2257 + $0x218] sm:$0xff]
        %v10128 = vld [vmem:[%s2257 + $0x260] sm:$0xff]
        %v10129 = vld [vmem:[%s2257 + $0x268] sm:$0xff]
        %v10130 = vld [vmem:[%s2257 + $0x270] sm:$0xff]
        %v10131 = vld [vmem:[%s2257 + $0x278] sm:$0xff]
        %v10132 = vld [vmem:[%s2257 + $0x2c0] sm:$0xff]
        %v10133 = vld [vmem:[%s2257 + $0x2c8] sm:$0xff]
        %v10134 = vld [vmem:[%s2257 + $0x2d0] sm:$0xff]
        %v10135 = vld [vmem:[%s2257 + $0x2d8] sm:$0xff]
        %s10136 = scalar_lea.vmem [#allocation6], 100
        %v10137 = vld [vmem:[%s10136] sm:$0xf]
        %v10139 = vlaneseq
        %v10140 = vshrl.u32 %v10139, 7
        %v10141 = vsub.s32 0, %v10140
        %v10142 = vrot.slane %v10137, %v10141
        %v10143 = vlaneseq
        %v10144 = vshrl.u32 %v10143, 7
        %v10145 = vsub.s32 1, %v10144
        %v10146 = vrot.slane %v10137, %v10145
        %v10147 = vlaneseq
        %v10148 = vshrl.u32 %v10147, 7
        %v10149 = vsub.s32 2, %v10148
        %v10150 = vrot.slane %v10137, %v10149
        %v10151 = vlaneseq
        %v10152 = vshrl.u32 %v10151, 7
        %v10153 = vsub.s32 3, %v10152
        %v10154 = vrot.slane %v10137, %v10153
        %v10159 = vmul.f32 %v10104, %v10142
        %v10160 = vmul.f32 %v10105, %v10146
        %v10161 = vmul.f32 %v10106, %v10150
        %v10162 = vmul.f32 %v10107, %v10154
        %v10163 = vmul.f32 %v10108, %v10142
        %v10164 = vmul.f32 %v10109, %v10146
        %v10165 = vmul.f32 %v10110, %v10150
        %v10166 = vmul.f32 %v10111, %v10154
        %v10167 = vmul.f32 %v10112, %v10142
        %v10168 = vmul.f32 %v10113, %v10146
        %v10169 = vmul.f32 %v10114, %v10150
        %v10170 = vmul.f32 %v10115, %v10154
        %v10171 = vmul.f32 %v10116, %v10142
        %v10172 = vmul.f32 %v10117, %v10146
        %v10173 = vmul.f32 %v10118, %v10150
        %v10174 = vmul.f32 %v10119, %v10154
        %v10175 = vmul.f32 %v10120, %v10142
        %v10176 = vmul.f32 %v10121, %v10146
        %v10177 = vmul.f32 %v10122, %v10150
        %v10178 = vmul.f32 %v10123, %v10154
        %v10179 = vmul.f32 %v10124, %v10142
        %v10180 = vmul.f32 %v10125, %v10146
        %v10181 = vmul.f32 %v10126, %v10150
        %v10182 = vmul.f32 %v10127, %v10154
        %v10183 = vmul.f32 %v10128, %v10142
        %v10184 = vmul.f32 %v10129, %v10146
        %v10185 = vmul.f32 %v10130, %v10150
        %v10186 = vmul.f32 %v10131, %v10154
        %v10187 = vmul.f32 %v10132, %v10142
        %v10188 = vmul.f32 %v10133, %v10146
        %v10189 = vmul.f32 %v10134, %v10150
        %v10190 = vmul.f32 %v10135, %v10154
        %v10191 = vadd.f32 %v10072, %v10159
        %v10192 = vadd.f32 %v10073, %v10160
        %v10193 = vadd.f32 %v10074, %v10161
        %v10194 = vadd.f32 %v10075, %v10162
        %v10195 = vadd.f32 %v10076, %v10163
        %v10196 = vadd.f32 %v10077, %v10164
        %v10197 = vadd.f32 %v10078, %v10165
        %v10198 = vadd.f32 %v10079, %v10166
        %v10199 = vadd.f32 %v10080, %v10167
        %v10200 = vadd.f32 %v10081, %v10168
        %v10201 = vadd.f32 %v10082, %v10169
        %v10202 = vadd.f32 %v10083, %v10170
        %v10203 = vadd.f32 %v10084, %v10171
        %v10204 = vadd.f32 %v10085, %v10172
        %v10205 = vadd.f32 %v10086, %v10173
        %v10206 = vadd.f32 %v10087, %v10174
        %v10207 = vadd.f32 %v10088, %v10175
        %v10208 = vadd.f32 %v10089, %v10176
        %v10209 = vadd.f32 %v10090, %v10177
        %v10210 = vadd.f32 %v10091, %v10178
        %v10211 = vadd.f32 %v10092, %v10179
        %v10212 = vadd.f32 %v10093, %v10180
        %v10213 = vadd.f32 %v10094, %v10181
        %v10214 = vadd.f32 %v10095, %v10182
        %v10215 = vadd.f32 %v10096, %v10183
        %v10216 = vadd.f32 %v10097, %v10184
        %v10217 = vadd.f32 %v10098, %v10185
        %v10218 = vadd.f32 %v10099, %v10186
        %v10219 = vadd.f32 %v10100, %v10187
        %v10220 = vadd.f32 %v10101, %v10188
        %v10221 = vadd.f32 %v10102, %v10189
        %v10222 = vadd.f32 %v10103, %v10190
        %v10223 = vld [vmem:[%s2257 + $0x20] sm:$0xfe]
        %v10224 = vld [vmem:[%s2257 + $0x28] sm:$0xfe]
        %v10225 = vld [vmem:[%s2257 + $0x30] sm:$0xfe]
        %v10226 = vld [vmem:[%s2257 + $0x38] sm:$0xfe]
        %v10227 = vld [vmem:[%s2257 + $0x40] sm:$0x1]
        %v10228 = vld [vmem:[%s2257 + $0x48] sm:$0x1]
        %v10229 = vld [vmem:[%s2257 + $0x50] sm:$0x1]
        %v10230 = vld [vmem:[%s2257 + $0x58] sm:$0x1]
        %v10231 = vld [vmem:[%s2257 + $0x80] sm:$0xfe]
        %v10232 = vld [vmem:[%s2257 + $0x88] sm:$0xfe]
        %v10233 = vld [vmem:[%s2257 + $0x90] sm:$0xfe]
        %v10234 = vld [vmem:[%s2257 + $0x98] sm:$0xfe]
        %v10235 = vld [vmem:[%s2257 + $0xa0] sm:$0x1]
        %v10236 = vld [vmem:[%s2257 + $0xa8] sm:$0x1]
        %v10237 = vld [vmem:[%s2257 + $0xb0] sm:$0x1]
        %v10238 = vld [vmem:[%s2257 + $0xb8] sm:$0x1]
        %v10239 = vld [vmem:[%s2257 + $0xe0] sm:$0xfe]
        %v10240 = vld [vmem:[%s2257 + $0xe8] sm:$0xfe]
        %v10241 = vld [vmem:[%s2257 + $0xf0] sm:$0xfe]
        %v10242 = vld [vmem:[%s2257 + $0xf8] sm:$0xfe]
        %v10243 = vld [vmem:[%s2257 + $0x100] sm:$0x1]
        %v10244 = vld [vmem:[%s2257 + $0x108] sm:$0x1]
        %v10245 = vld [vmem:[%s2257 + $0x110] sm:$0x1]
        %v10246 = vld [vmem:[%s2257 + $0x118] sm:$0x1]
        %v10247 = vld [vmem:[%s2257 + $0x140] sm:$0xfe]
        %v10248 = vld [vmem:[%s2257 + $0x148] sm:$0xfe]
        %v10249 = vld [vmem:[%s2257 + $0x150] sm:$0xfe]
        %v10250 = vld [vmem:[%s2257 + $0x158] sm:$0xfe]
        %v10251 = vld [vmem:[%s2257 + $0x160] sm:$0x1]
        %v10252 = vld [vmem:[%s2257 + $0x168] sm:$0x1]
        %v10253 = vld [vmem:[%s2257 + $0x170] sm:$0x1]
        %v10254 = vld [vmem:[%s2257 + $0x178] sm:$0x1]
        %v10255 = vld [vmem:[%s2257 + $0x1a0] sm:$0xfe]
        %v10256 = vld [vmem:[%s2257 + $0x1a8] sm:$0xfe]
        %v10257 = vld [vmem:[%s2257 + $0x1b0] sm:$0xfe]
        %v10258 = vld [vmem:[%s2257 + $0x1b8] sm:$0xfe]
        %v10259 = vld [vmem:[%s2257 + $0x1c0] sm:$0x1]
        %v10260 = vld [vmem:[%s2257 + $0x1c8] sm:$0x1]
        %v10261 = vld [vmem:[%s2257 + $0x1d0] sm:$0x1]
        %v10262 = vld [vmem:[%s2257 + $0x1d8] sm:$0x1]
        %v10263 = vld [vmem:[%s2257 + $0x200] sm:$0xfe]
        %v10264 = vld [vmem:[%s2257 + $0x208] sm:$0xfe]
        %v10265 = vld [vmem:[%s2257 + $0x210] sm:$0xfe]
        %v10266 = vld [vmem:[%s2257 + $0x218] sm:$0xfe]
        %v10267 = vld [vmem:[%s2257 + $0x220] sm:$0x1]
        %v10268 = vld [vmem:[%s2257 + $0x228] sm:$0x1]
        %v10269 = vld [vmem:[%s2257 + $0x230] sm:$0x1]
        %v10270 = vld [vmem:[%s2257 + $0x238] sm:$0x1]
        %v10271 = vld [vmem:[%s2257 + $0x260] sm:$0xfe]
        %v10272 = vld [vmem:[%s2257 + $0x268] sm:$0xfe]
        %v10273 = vld [vmem:[%s2257 + $0x270] sm:$0xfe]
        %v10274 = vld [vmem:[%s2257 + $0x278] sm:$0xfe]
        %v10275 = vld [vmem:[%s2257 + $0x280] sm:$0x1]
        %v10276 = vld [vmem:[%s2257 + $0x288] sm:$0x1]
        %v10277 = vld [vmem:[%s2257 + $0x290] sm:$0x1]
        %v10278 = vld [vmem:[%s2257 + $0x298] sm:$0x1]
        %v10279 = vld [vmem:[%s2257 + $0x2c0] sm:$0xfe]
        %v10280 = vld [vmem:[%s2257 + $0x2c8] sm:$0xfe]
        %v10281 = vld [vmem:[%s2257 + $0x2d0] sm:$0xfe]
        %v10282 = vld [vmem:[%s2257 + $0x2d8] sm:$0xfe]
        %v10283 = vld [vmem:[%s2257 + $0x2e0] sm:$0x1]
        %v10284 = vld [vmem:[%s2257 + $0x2e8] sm:$0x1]
        %v10285 = vld [vmem:[%s2257 + $0x2f0] sm:$0x1]
        %v10286 = vld [vmem:[%s2257 + $0x2f8] sm:$0x1]
        %v10351 = vrot.slane %v10223, 1
        %v10352 = vrot.slane %v10227, 1
        %v10353 = vsel %vm1236, %v10351, %v10352
        %v10354 = vrot.slane %v10224, 1
        %v10355 = vrot.slane %v10228, 1
        %v10356 = vsel %vm1236, %v10354, %v10355
        %v10357 = vrot.slane %v10225, 1
        %v10358 = vrot.slane %v10229, 1
        %v10359 = vsel %vm1236, %v10357, %v10358
        %v10360 = vrot.slane %v10226, 1
        %v10361 = vrot.slane %v10230, 1
        %v10362 = vsel %vm1236, %v10360, %v10361
        %v10363 = vrot.slane %v10231, 1
        %v10364 = vrot.slane %v10235, 1
        %v10365 = vsel %vm1236, %v10363, %v10364
        %v10366 = vrot.slane %v10232, 1
        %v10367 = vrot.slane %v10236, 1
        %v10368 = vsel %vm1236, %v10366, %v10367
        %v10369 = vrot.slane %v10233, 1
        %v10370 = vrot.slane %v10237, 1
        %v10371 = vsel %vm1236, %v10369, %v10370
        %v10372 = vrot.slane %v10234, 1
        %v10373 = vrot.slane %v10238, 1
        %v10374 = vsel %vm1236, %v10372, %v10373
        %v10375 = vrot.slane %v10239, 1
        %v10376 = vrot.slane %v10243, 1
        %v10377 = vsel %vm1236, %v10375, %v10376
        %v10378 = vrot.slane %v10240, 1
        %v10379 = vrot.slane %v10244, 1
        %v10380 = vsel %vm1236, %v10378, %v10379
        %v10381 = vrot.slane %v10241, 1
        %v10382 = vrot.slane %v10245, 1
        %v10383 = vsel %vm1236, %v10381, %v10382
        %v10384 = vrot.slane %v10242, 1
        %v10385 = vrot.slane %v10246, 1
        %v10386 = vsel %vm1236, %v10384, %v10385
        %v10387 = vrot.slane %v10247, 1
        %v10388 = vrot.slane %v10251, 1
        %v10389 = vsel %vm1236, %v10387, %v10388
        %v10390 = vrot.slane %v10248, 1
        %v10391 = vrot.slane %v10252, 1
        %v10392 = vsel %vm1236, %v10390, %v10391
        %v10393 = vrot.slane %v10249, 1
        %v10394 = vrot.slane %v10253, 1
        %v10395 = vsel %vm1236, %v10393, %v10394
        %v10396 = vrot.slane %v10250, 1
        %v10397 = vrot.slane %v10254, 1
        %v10398 = vsel %vm1236, %v10396, %v10397
        %v10399 = vrot.slane %v10255, 1
        %v10400 = vrot.slane %v10259, 1
        %v10401 = vsel %vm1236, %v10399, %v10400
        %v10402 = vrot.slane %v10256, 1
        %v10403 = vrot.slane %v10260, 1
        %v10404 = vsel %vm1236, %v10402, %v10403
        %v10405 = vrot.slane %v10257, 1
        %v10406 = vrot.slane %v10261, 1
        %v10407 = vsel %vm1236, %v10405, %v10406
        %v10408 = vrot.slane %v10258, 1
        %v10409 = vrot.slane %v10262, 1
        %v10410 = vsel %vm1236, %v10408, %v10409
        %v10411 = vrot.slane %v10263, 1
        %v10412 = vrot.slane %v10267, 1
        %v10413 = vsel %vm1236, %v10411, %v10412
        %v10414 = vrot.slane %v10264, 1
        %v10415 = vrot.slane %v10268, 1
        %v10416 = vsel %vm1236, %v10414, %v10415
        %v10417 = vrot.slane %v10265, 1
        %v10418 = vrot.slane %v10269, 1
        %v10419 = vsel %vm1236, %v10417, %v10418
        %v10420 = vrot.slane %v10266, 1
        %v10421 = vrot.slane %v10270, 1
        %v10422 = vsel %vm1236, %v10420, %v10421
        %v10423 = vrot.slane %v10271, 1
        %v10424 = vrot.slane %v10275, 1
        %v10425 = vsel %vm1236, %v10423, %v10424
        %v10426 = vrot.slane %v10272, 1
        %v10427 = vrot.slane %v10276, 1
        %v10428 = vsel %vm1236, %v10426, %v10427
        %v10429 = vrot.slane %v10273, 1
        %v10430 = vrot.slane %v10277, 1
        %v10431 = vsel %vm1236, %v10429, %v10430
        %v10432 = vrot.slane %v10274, 1
        %v10433 = vrot.slane %v10278, 1
        %v10434 = vsel %vm1236, %v10432, %v10433
        %v10435 = vrot.slane %v10279, 1
        %v10436 = vrot.slane %v10283, 1
        %v10437 = vsel %vm1236, %v10435, %v10436
        %v10438 = vrot.slane %v10280, 1
        %v10439 = vrot.slane %v10284, 1
        %v10440 = vsel %vm1236, %v10438, %v10439
        %v10441 = vrot.slane %v10281, 1
        %v10442 = vrot.slane %v10285, 1
        %v10443 = vsel %vm1236, %v10441, %v10442
        %v10444 = vrot.slane %v10282, 1
        %v10445 = vrot.slane %v10286, 1
        %v10446 = vsel %vm1236, %v10444, %v10445
        %s10479 = scalar_lea.vmem [#allocation6], 104
        %v10480 = vld [vmem:[%s10479] sm:$0xf]
        %v10482 = vlaneseq
        %v10483 = vshrl.u32 %v10482, 7
        %v10484 = vsub.s32 0, %v10483
        %v10485 = vrot.slane %v10480, %v10484
        %v10486 = vlaneseq
        %v10487 = vshrl.u32 %v10486, 7
        %v10488 = vsub.s32 1, %v10487
        %v10489 = vrot.slane %v10480, %v10488
        %v10490 = vlaneseq
        %v10491 = vshrl.u32 %v10490, 7
        %v10492 = vsub.s32 2, %v10491
        %v10493 = vrot.slane %v10480, %v10492
        %v10494 = vlaneseq
        %v10495 = vshrl.u32 %v10494, 7
        %v10496 = vsub.s32 3, %v10495
        %v10497 = vrot.slane %v10480, %v10496
        %v10502 = vmul.f32 %v10353, %v10485
        %v10503 = vmul.f32 %v10356, %v10489
        %v10504 = vmul.f32 %v10359, %v10493
        %v10505 = vmul.f32 %v10362, %v10497
        %v10506 = vmul.f32 %v10365, %v10485
        %v10507 = vmul.f32 %v10368, %v10489
        %v10508 = vmul.f32 %v10371, %v10493
        %v10509 = vmul.f32 %v10374, %v10497
        %v10510 = vmul.f32 %v10377, %v10485
        %v10511 = vmul.f32 %v10380, %v10489
        %v10512 = vmul.f32 %v10383, %v10493
        %v10513 = vmul.f32 %v10386, %v10497
        %v10514 = vmul.f32 %v10389, %v10485
        %v10515 = vmul.f32 %v10392, %v10489
        %v10516 = vmul.f32 %v10395, %v10493
        %v10517 = vmul.f32 %v10398, %v10497
        %v10518 = vmul.f32 %v10401, %v10485
        %v10519 = vmul.f32 %v10404, %v10489
        %v10520 = vmul.f32 %v10407, %v10493
        %v10521 = vmul.f32 %v10410, %v10497
        %v10522 = vmul.f32 %v10413, %v10485
        %v10523 = vmul.f32 %v10416, %v10489
        %v10524 = vmul.f32 %v10419, %v10493
        %v10525 = vmul.f32 %v10422, %v10497
        %v10526 = vmul.f32 %v10425, %v10485
        %v10527 = vmul.f32 %v10428, %v10489
        %v10528 = vmul.f32 %v10431, %v10493
        %v10529 = vmul.f32 %v10434, %v10497
        %v10530 = vmul.f32 %v10437, %v10485
        %v10531 = vmul.f32 %v10440, %v10489
        %v10532 = vmul.f32 %v10443, %v10493
        %v10533 = vmul.f32 %v10446, %v10497
        %v10534 = vadd.f32 %v10191, %v10502
        %v10535 = vadd.f32 %v10192, %v10503
        %v10536 = vadd.f32 %v10193, %v10504
        %v10537 = vadd.f32 %v10194, %v10505
        %v10538 = vadd.f32 %v10195, %v10506
        %v10539 = vadd.f32 %v10196, %v10507
        %v10540 = vadd.f32 %v10197, %v10508
        %v10541 = vadd.f32 %v10198, %v10509
        %v10542 = vadd.f32 %v10199, %v10510
        %v10543 = vadd.f32 %v10200, %v10511
        %v10544 = vadd.f32 %v10201, %v10512
        %v10545 = vadd.f32 %v10202, %v10513
        %v10546 = vadd.f32 %v10203, %v10514
        %v10547 = vadd.f32 %v10204, %v10515
        %v10548 = vadd.f32 %v10205, %v10516
        %v10549 = vadd.f32 %v10206, %v10517
        %v10550 = vadd.f32 %v10207, %v10518
        %v10551 = vadd.f32 %v10208, %v10519
        %v10552 = vadd.f32 %v10209, %v10520
        %v10553 = vadd.f32 %v10210, %v10521
        %v10554 = vadd.f32 %v10211, %v10522
        %v10555 = vadd.f32 %v10212, %v10523
        %v10556 = vadd.f32 %v10213, %v10524
        %v10557 = vadd.f32 %v10214, %v10525
        %v10558 = vadd.f32 %v10215, %v10526
        %v10559 = vadd.f32 %v10216, %v10527
        %v10560 = vadd.f32 %v10217, %v10528
        %v10561 = vadd.f32 %v10218, %v10529
        %v10562 = vadd.f32 %v10219, %v10530
        %v10563 = vadd.f32 %v10220, %v10531
        %v10564 = vadd.f32 %v10221, %v10532
        %v10565 = vadd.f32 %v10222, %v10533
        %v10566 = vpack.c.bf16 %v10538, %v10534
        %v10567 = vpack.c.bf16 %v10539, %v10535
        %v10568 = vpack.c.bf16 %v10540, %v10536
        %v10569 = vpack.c.bf16 %v10541, %v10537
        %v10570 = vpack.c.bf16 %v10546, %v10542
        %v10571 = vpack.c.bf16 %v10547, %v10543
        %v10572 = vpack.c.bf16 %v10548, %v10544
        %v10573 = vpack.c.bf16 %v10549, %v10545
        %v10574 = vpack.c.bf16 %v10554, %v10550
        %v10575 = vpack.c.bf16 %v10555, %v10551
        %v10576 = vpack.c.bf16 %v10556, %v10552
        %v10577 = vpack.c.bf16 %v10557, %v10553
        %v10578 = vpack.c.bf16 %v10562, %v10558
        %v10579 = vpack.c.bf16 %v10563, %v10559
        %v10580 = vpack.c.bf16 %v10564, %v10560
        %v10581 = vpack.c.bf16 %v10565, %v10561
        %s10582 = scalar_lea.vmem [#allocation8], 2048
        %v10583 = vld [vmem:[%s10582] sm:$0xff]
        %v10584 = vld [vmem:[%s10582 + $0x8] sm:$0xff]
        %v10585 = vld [vmem:[%s10582 + $0x10] sm:$0xff]
        %v10586 = vld [vmem:[%s10582 + $0x18] sm:$0xff]
        %v10587 = vld [vmem:[%s10582 + $0x20] sm:$0xff]
        %v10588 = vld [vmem:[%s10582 + $0x28] sm:$0xff]
        %v10589 = vld [vmem:[%s10582 + $0x30] sm:$0xff]
        %v10590 = vld [vmem:[%s10582 + $0x38] sm:$0xff]
        %v10591 = vld [vmem:[%s10582 + $0x40] sm:$0xff]
        %v10592 = vld [vmem:[%s10582 + $0x48] sm:$0xff]
        %v10593 = vld [vmem:[%s10582 + $0x50] sm:$0xff]
        %v10594 = vld [vmem:[%s10582 + $0x58] sm:$0xff]
        %v10595 = vld [vmem:[%s10582 + $0x60] sm:$0xff]
        %v10596 = vld [vmem:[%s10582 + $0x68] sm:$0xff]
        %v10597 = vld [vmem:[%s10582 + $0x70] sm:$0xff]
        %v10598 = vld [vmem:[%s10582 + $0x78] sm:$0xff]
        %v10599 = vld [vmem:[%s10582 + $0x80] sm:$0xff]
        %v10600 = vld [vmem:[%s10582 + $0x88] sm:$0xff]
        %v10601 = vld [vmem:[%s10582 + $0x90] sm:$0xff]
        %v10602 = vld [vmem:[%s10582 + $0x98] sm:$0xff]
        %v10603 = vld [vmem:[%s10582 + $0xa0] sm:$0xff]
        %v10604 = vld [vmem:[%s10582 + $0xa8] sm:$0xff]
        %v10605 = vld [vmem:[%s10582 + $0xb0] sm:$0xff]
        %v10606 = vld [vmem:[%s10582 + $0xb8] sm:$0xff]
        %v10607 = vld [vmem:[%s10582 + $0xc0] sm:$0xff]
        %v10608 = vld [vmem:[%s10582 + $0xc8] sm:$0xff]
        %v10609 = vld [vmem:[%s10582 + $0xd0] sm:$0xff]
        %v10610 = vld [vmem:[%s10582 + $0xd8] sm:$0xff]
        %v10611 = vld [vmem:[%s10582 + $0xe0] sm:$0xff]
        %v10612 = vld [vmem:[%s10582 + $0xe8] sm:$0xff]
        %v10613 = vld [vmem:[%s10582 + $0xf0] sm:$0xff]
        %v10614 = vld [vmem:[%s10582 + $0xf8] sm:$0xff]
        %v10615 = vld [vmem:[%s10582 + $0x100] sm:$0xff]
        %v10616 = vld [vmem:[%s10582 + $0x108] sm:$0xff]
        %v10617 = vld [vmem:[%s10582 + $0x110] sm:$0xff]
        %v10618 = vld [vmem:[%s10582 + $0x118] sm:$0xff]
        %v10619 = vld [vmem:[%s10582 + $0x120] sm:$0xff]
        %v10620 = vld [vmem:[%s10582 + $0x128] sm:$0xff]
        %v10621 = vld [vmem:[%s10582 + $0x130] sm:$0xff]
        %v10622 = vld [vmem:[%s10582 + $0x138] sm:$0xff]
        %v10623 = vld [vmem:[%s10582 + $0x140] sm:$0xff]
        %v10624 = vld [vmem:[%s10582 + $0x148] sm:$0xff]
        %v10625 = vld [vmem:[%s10582 + $0x150] sm:$0xff]
        %v10626 = vld [vmem:[%s10582 + $0x158] sm:$0xff]
        %v10627 = vld [vmem:[%s10582 + $0x160] sm:$0xff]
        %v10628 = vld [vmem:[%s10582 + $0x168] sm:$0xff]
        %v10629 = vld [vmem:[%s10582 + $0x170] sm:$0xff]
        %v10630 = vld [vmem:[%s10582 + $0x178] sm:$0xff]
        %v10631 = vld [vmem:[%s10582 + $0x180] sm:$0xff]
        %v10632 = vld [vmem:[%s10582 + $0x188] sm:$0xff]
        %v10633 = vld [vmem:[%s10582 + $0x190] sm:$0xff]
        %v10634 = vld [vmem:[%s10582 + $0x198] sm:$0xff]
        %v10635 = vld [vmem:[%s10582 + $0x1a0] sm:$0xff]
        %v10636 = vld [vmem:[%s10582 + $0x1a8] sm:$0xff]
        %v10637 = vld [vmem:[%s10582 + $0x1b0] sm:$0xff]
        %v10638 = vld [vmem:[%s10582 + $0x1b8] sm:$0xff]
        %v10639 = vld [vmem:[%s10582 + $0x1c0] sm:$0xff]
        %v10640 = vld [vmem:[%s10582 + $0x1c8] sm:$0xff]
        %v10641 = vld [vmem:[%s10582 + $0x1d0] sm:$0xff]
        %v10642 = vld [vmem:[%s10582 + $0x1d8] sm:$0xff]
        %v10643 = vld [vmem:[%s10582 + $0x1e0] sm:$0xff]
        %v10644 = vld [vmem:[%s10582 + $0x1e8] sm:$0xff]
        %v10645 = vld [vmem:[%s10582 + $0x1f0] sm:$0xff]
        %v10646 = vld [vmem:[%s10582 + $0x1f8] sm:$0xff]
        %v10647 = vld [vmem:[%s10582 + $0x200] sm:$0xff]
        %v10648 = vld [vmem:[%s10582 + $0x208] sm:$0xff]
        %v10649 = vld [vmem:[%s10582 + $0x210] sm:$0xff]
        %v10650 = vld [vmem:[%s10582 + $0x218] sm:$0xff]
        %v10651 = vld [vmem:[%s10582 + $0x220] sm:$0xff]
        %v10652 = vld [vmem:[%s10582 + $0x228] sm:$0xff]
        %v10653 = vld [vmem:[%s10582 + $0x230] sm:$0xff]
        %v10654 = vld [vmem:[%s10582 + $0x238] sm:$0xff]
        %v10655 = vld [vmem:[%s10582 + $0x240] sm:$0xff]
        %v10656 = vld [vmem:[%s10582 + $0x248] sm:$0xff]
        %v10657 = vld [vmem:[%s10582 + $0x250] sm:$0xff]
        %v10658 = vld [vmem:[%s10582 + $0x258] sm:$0xff]
        %v10659 = vld [vmem:[%s10582 + $0x260] sm:$0xff]
        %v10660 = vld [vmem:[%s10582 + $0x268] sm:$0xff]
        %v10661 = vld [vmem:[%s10582 + $0x270] sm:$0xff]
        %v10662 = vld [vmem:[%s10582 + $0x278] sm:$0xff]
        %v10663 = vld [vmem:[%s10582 + $0x280] sm:$0xff]
        %v10664 = vld [vmem:[%s10582 + $0x288] sm:$0xff]
        %v10665 = vld [vmem:[%s10582 + $0x290] sm:$0xff]
        %v10666 = vld [vmem:[%s10582 + $0x298] sm:$0xff]
        %v10667 = vld [vmem:[%s10582 + $0x2a0] sm:$0xff]
        %v10668 = vld [vmem:[%s10582 + $0x2a8] sm:$0xff]
        %v10669 = vld [vmem:[%s10582 + $0x2b0] sm:$0xff]
        %v10670 = vld [vmem:[%s10582 + $0x2b8] sm:$0xff]
        %v10671 = vld [vmem:[%s10582 + $0x2c0] sm:$0xff]
        %v10672 = vld [vmem:[%s10582 + $0x2c8] sm:$0xff]
        %v10673 = vld [vmem:[%s10582 + $0x2d0] sm:$0xff]
        %v10674 = vld [vmem:[%s10582 + $0x2d8] sm:$0xff]
        %v10675 = vld [vmem:[%s10582 + $0x2e0] sm:$0xff]
        %v10676 = vld [vmem:[%s10582 + $0x2e8] sm:$0xff]
        %v10677 = vld [vmem:[%s10582 + $0x2f0] sm:$0xff]
        %v10678 = vld [vmem:[%s10582 + $0x2f8] sm:$0xff]
        %v10679 = vld [vmem:[%s10582 + $0x300] sm:$0xff]
        %v10680 = vld [vmem:[%s10582 + $0x308] sm:$0xff]
        %v10681 = vld [vmem:[%s10582 + $0x310] sm:$0xff]
        %v10682 = vld [vmem:[%s10582 + $0x318] sm:$0xff]
        %v10683 = vld [vmem:[%s10582 + $0x320] sm:$0xff]
        %v10684 = vld [vmem:[%s10582 + $0x328] sm:$0xff]
        %v10685 = vld [vmem:[%s10582 + $0x330] sm:$0xff]
        %v10686 = vld [vmem:[%s10582 + $0x338] sm:$0xff]
        %v10687 = vld [vmem:[%s10582 + $0x340] sm:$0xff]
        %v10688 = vld [vmem:[%s10582 + $0x348] sm:$0xff]
        %v10689 = vld [vmem:[%s10582 + $0x350] sm:$0xff]
        %v10690 = vld [vmem:[%s10582 + $0x358] sm:$0xff]
        %v10691 = vld [vmem:[%s10582 + $0x360] sm:$0xff]
        %v10692 = vld [vmem:[%s10582 + $0x368] sm:$0xff]
        %v10693 = vld [vmem:[%s10582 + $0x370] sm:$0xff]
        %v10694 = vld [vmem:[%s10582 + $0x378] sm:$0xff]
        %v10695 = vld [vmem:[%s10582 + $0x380] sm:$0xff]
        %v10696 = vld [vmem:[%s10582 + $0x388] sm:$0xff]
        %v10697 = vld [vmem:[%s10582 + $0x390] sm:$0xff]
        %v10698 = vld [vmem:[%s10582 + $0x398] sm:$0xff]
        %v10699 = vld [vmem:[%s10582 + $0x3a0] sm:$0xff]
        %v10700 = vld [vmem:[%s10582 + $0x3a8] sm:$0xff]
        %v10701 = vld [vmem:[%s10582 + $0x3b0] sm:$0xff]
        %v10702 = vld [vmem:[%s10582 + $0x3b8] sm:$0xff]
        %v10703 = vld [vmem:[%s10582 + $0x3c0] sm:$0xff]
        %v10704 = vld [vmem:[%s10582 + $0x3c8] sm:$0xff]
        %v10705 = vld [vmem:[%s10582 + $0x3d0] sm:$0xff]
        %v10706 = vld [vmem:[%s10582 + $0x3d8] sm:$0xff]
        %v10707 = vld [vmem:[%s10582 + $0x3e0] sm:$0xff]
        %v10708 = vld [vmem:[%s10582 + $0x3e8] sm:$0xff]
        %v10709 = vld [vmem:[%s10582 + $0x3f0] sm:$0xff]
        %v10710 = vld [vmem:[%s10582 + $0x3f8] sm:$0xff]
        %v10839 = vunpack.c.l.b16 %v10583
        %v10840 = vunpack.c.h.b16 %v10583
        %v10841 = vunpack.c.l.b16 %v10584
        %v10842 = vunpack.c.h.b16 %v10584
        %v10843 = vunpack.c.l.b16 %v10585
        %v10844 = vunpack.c.h.b16 %v10585
        %v10845 = vunpack.c.l.b16 %v10586
        %v10846 = vunpack.c.h.b16 %v10586
        %v10847 = vunpack.c.l.b16 %v10587
        %v10848 = vunpack.c.h.b16 %v10587
        %v10849 = vunpack.c.l.b16 %v10588
        %v10850 = vunpack.c.h.b16 %v10588
        %v10851 = vunpack.c.l.b16 %v10589
        %v10852 = vunpack.c.h.b16 %v10589
        %v10853 = vunpack.c.l.b16 %v10590
        %v10854 = vunpack.c.h.b16 %v10590
        %v10855 = vunpack.c.l.b16 %v10591
        %v10856 = vunpack.c.h.b16 %v10591
        %v10857 = vunpack.c.l.b16 %v10592
        %v10858 = vunpack.c.h.b16 %v10592
        %v10859 = vunpack.c.l.b16 %v10593
        %v10860 = vunpack.c.h.b16 %v10593
        %v10861 = vunpack.c.l.b16 %v10594
        %v10862 = vunpack.c.h.b16 %v10594
        %v10863 = vunpack.c.l.b16 %v10595
        %v10864 = vunpack.c.h.b16 %v10595
        %v10865 = vunpack.c.l.b16 %v10596
        %v10866 = vunpack.c.h.b16 %v10596
        %v10867 = vunpack.c.l.b16 %v10597
        %v10868 = vunpack.c.h.b16 %v10597
        %v10869 = vunpack.c.l.b16 %v10598
        %v10870 = vunpack.c.h.b16 %v10598
        %v10871 = vunpack.c.l.b16 %v10599
        %v10872 = vunpack.c.h.b16 %v10599
        %v10873 = vunpack.c.l.b16 %v10600
        %v10874 = vunpack.c.h.b16 %v10600
        %v10875 = vunpack.c.l.b16 %v10601
        %v10876 = vunpack.c.h.b16 %v10601
        %v10877 = vunpack.c.l.b16 %v10602
        %v10878 = vunpack.c.h.b16 %v10602
        %v10879 = vunpack.c.l.b16 %v10603
        %v10880 = vunpack.c.h.b16 %v10603
        %v10881 = vunpack.c.l.b16 %v10604
        %v10882 = vunpack.c.h.b16 %v10604
        %v10883 = vunpack.c.l.b16 %v10605
        %v10884 = vunpack.c.h.b16 %v10605
        %v10885 = vunpack.c.l.b16 %v10606
        %v10886 = vunpack.c.h.b16 %v10606
        %v10887 = vunpack.c.l.b16 %v10607
        %v10888 = vunpack.c.h.b16 %v10607
        %v10889 = vunpack.c.l.b16 %v10608
        %v10890 = vunpack.c.h.b16 %v10608
        %v10891 = vunpack.c.l.b16 %v10609
        %v10892 = vunpack.c.h.b16 %v10609
        %v10893 = vunpack.c.l.b16 %v10610
        %v10894 = vunpack.c.h.b16 %v10610
        %v10895 = vunpack.c.l.b16 %v10611
        %v10896 = vunpack.c.h.b16 %v10611
        %v10897 = vunpack.c.l.b16 %v10612
        %v10898 = vunpack.c.h.b16 %v10612
        %v10899 = vunpack.c.l.b16 %v10613
        %v10900 = vunpack.c.h.b16 %v10613
        %v10901 = vunpack.c.l.b16 %v10614
        %v10902 = vunpack.c.h.b16 %v10614
        %v10903 = vunpack.c.l.b16 %v10615
        %v10904 = vunpack.c.h.b16 %v10615
        %v10905 = vunpack.c.l.b16 %v10616
        %v10906 = vunpack.c.h.b16 %v10616
        %v10907 = vunpack.c.l.b16 %v10617
        %v10908 = vunpack.c.h.b16 %v10617
        %v10909 = vunpack.c.l.b16 %v10618
        %v10910 = vunpack.c.h.b16 %v10618
        %v10911 = vunpack.c.l.b16 %v10619
        %v10912 = vunpack.c.h.b16 %v10619
        %v10913 = vunpack.c.l.b16 %v10620
        %v10914 = vunpack.c.h.b16 %v10620
        %v10915 = vunpack.c.l.b16 %v10621
        %v10916 = vunpack.c.h.b16 %v10621
        %v10917 = vunpack.c.l.b16 %v10622
        %v10918 = vunpack.c.h.b16 %v10622
        %v10919 = vunpack.c.l.b16 %v10623
        %v10920 = vunpack.c.h.b16 %v10623
        %v10921 = vunpack.c.l.b16 %v10624
        %v10922 = vunpack.c.h.b16 %v10624
        %v10923 = vunpack.c.l.b16 %v10625
        %v10924 = vunpack.c.h.b16 %v10625
        %v10925 = vunpack.c.l.b16 %v10626
        %v10926 = vunpack.c.h.b16 %v10626
        %v10927 = vunpack.c.l.b16 %v10627
        %v10928 = vunpack.c.h.b16 %v10627
        %v10929 = vunpack.c.l.b16 %v10628
        %v10930 = vunpack.c.h.b16 %v10628
        %v10931 = vunpack.c.l.b16 %v10629
        %v10932 = vunpack.c.h.b16 %v10629
        %v10933 = vunpack.c.l.b16 %v10630
        %v10934 = vunpack.c.h.b16 %v10630
        %v10935 = vunpack.c.l.b16 %v10631
        %v10936 = vunpack.c.h.b16 %v10631
        %v10937 = vunpack.c.l.b16 %v10632
        %v10938 = vunpack.c.h.b16 %v10632
        %v10939 = vunpack.c.l.b16 %v10633
        %v10940 = vunpack.c.h.b16 %v10633
        %v10941 = vunpack.c.l.b16 %v10634
        %v10942 = vunpack.c.h.b16 %v10634
        %v10943 = vunpack.c.l.b16 %v10635
        %v10944 = vunpack.c.h.b16 %v10635
        %v10945 = vunpack.c.l.b16 %v10636
        %v10946 = vunpack.c.h.b16 %v10636
        %v10947 = vunpack.c.l.b16 %v10637
        %v10948 = vunpack.c.h.b16 %v10637
        %v10949 = vunpack.c.l.b16 %v10638
        %v10950 = vunpack.c.h.b16 %v10638
        %v10951 = vunpack.c.l.b16 %v10639
        %v10952 = vunpack.c.h.b16 %v10639
        %v10953 = vunpack.c.l.b16 %v10640
        %v10954 = vunpack.c.h.b16 %v10640
        %v10955 = vunpack.c.l.b16 %v10641
        %v10956 = vunpack.c.h.b16 %v10641
        %v10957 = vunpack.c.l.b16 %v10642
        %v10958 = vunpack.c.h.b16 %v10642
        %v10959 = vunpack.c.l.b16 %v10643
        %v10960 = vunpack.c.h.b16 %v10643
        %v10961 = vunpack.c.l.b16 %v10644
        %v10962 = vunpack.c.h.b16 %v10644
        %v10963 = vunpack.c.l.b16 %v10645
        %v10964 = vunpack.c.h.b16 %v10645
        %v10965 = vunpack.c.l.b16 %v10646
        %v10966 = vunpack.c.h.b16 %v10646
        %v10967 = vunpack.c.l.b16 %v10647
        %v10968 = vunpack.c.h.b16 %v10647
        %v10969 = vunpack.c.l.b16 %v10648
        %v10970 = vunpack.c.h.b16 %v10648
        %v10971 = vunpack.c.l.b16 %v10649
        %v10972 = vunpack.c.h.b16 %v10649
        %v10973 = vunpack.c.l.b16 %v10650
        %v10974 = vunpack.c.h.b16 %v10650
        %v10975 = vunpack.c.l.b16 %v10651
        %v10976 = vunpack.c.h.b16 %v10651
        %v10977 = vunpack.c.l.b16 %v10652
        %v10978 = vunpack.c.h.b16 %v10652
        %v10979 = vunpack.c.l.b16 %v10653
        %v10980 = vunpack.c.h.b16 %v10653
        %v10981 = vunpack.c.l.b16 %v10654
        %v10982 = vunpack.c.h.b16 %v10654
        %v10983 = vunpack.c.l.b16 %v10655
        %v10984 = vunpack.c.h.b16 %v10655
        %v10985 = vunpack.c.l.b16 %v10656
        %v10986 = vunpack.c.h.b16 %v10656
        %v10987 = vunpack.c.l.b16 %v10657
        %v10988 = vunpack.c.h.b16 %v10657
        %v10989 = vunpack.c.l.b16 %v10658
        %v10990 = vunpack.c.h.b16 %v10658
        %v10991 = vunpack.c.l.b16 %v10659
        %v10992 = vunpack.c.h.b16 %v10659
        %v10993 = vunpack.c.l.b16 %v10660
        %v10994 = vunpack.c.h.b16 %v10660
        %v10995 = vunpack.c.l.b16 %v10661
        %v10996 = vunpack.c.h.b16 %v10661
        %v10997 = vunpack.c.l.b16 %v10662
        %v10998 = vunpack.c.h.b16 %v10662
        %v10999 = vunpack.c.l.b16 %v10663
        %v11000 = vunpack.c.h.b16 %v10663
        %v11001 = vunpack.c.l.b16 %v10664
        %v11002 = vunpack.c.h.b16 %v10664
        %v11003 = vunpack.c.l.b16 %v10665
        %v11004 = vunpack.c.h.b16 %v10665
        %v11005 = vunpack.c.l.b16 %v10666
        %v11006 = vunpack.c.h.b16 %v10666
        %v11007 = vunpack.c.l.b16 %v10667
        %v11008 = vunpack.c.h.b16 %v10667
        %v11009 = vunpack.c.l.b16 %v10668
        %v11010 = vunpack.c.h.b16 %v10668
        %v11011 = vunpack.c.l.b16 %v10669
        %v11012 = vunpack.c.h.b16 %v10669
        %v11013 = vunpack.c.l.b16 %v10670
        %v11014 = vunpack.c.h.b16 %v10670
        %v11015 = vunpack.c.l.b16 %v10671
        %v11016 = vunpack.c.h.b16 %v10671
        %v11017 = vunpack.c.l.b16 %v10672
        %v11018 = vunpack.c.h.b16 %v10672
        %v11019 = vunpack.c.l.b16 %v10673
        %v11020 = vunpack.c.h.b16 %v10673
        %v11021 = vunpack.c.l.b16 %v10674
        %v11022 = vunpack.c.h.b16 %v10674
        %v11023 = vunpack.c.l.b16 %v10675
        %v11024 = vunpack.c.h.b16 %v10675
        %v11025 = vunpack.c.l.b16 %v10676
        %v11026 = vunpack.c.h.b16 %v10676
        %v11027 = vunpack.c.l.b16 %v10677
        %v11028 = vunpack.c.h.b16 %v10677
        %v11029 = vunpack.c.l.b16 %v10678
        %v11030 = vunpack.c.h.b16 %v10678
        %v11031 = vunpack.c.l.b16 %v10679
        %v11032 = vunpack.c.h.b16 %v10679
        %v11033 = vunpack.c.l.b16 %v10680
        %v11034 = vunpack.c.h.b16 %v10680
        %v11035 = vunpack.c.l.b16 %v10681
        %v11036 = vunpack.c.h.b16 %v10681
        %v11037 = vunpack.c.l.b16 %v10682
        %v11038 = vunpack.c.h.b16 %v10682
        %v11039 = vunpack.c.l.b16 %v10683
        %v11040 = vunpack.c.h.b16 %v10683
        %v11041 = vunpack.c.l.b16 %v10684
        %v11042 = vunpack.c.h.b16 %v10684
        %v11043 = vunpack.c.l.b16 %v10685
        %v11044 = vunpack.c.h.b16 %v10685
        %v11045 = vunpack.c.l.b16 %v10686
        %v11046 = vunpack.c.h.b16 %v10686
        %v11047 = vunpack.c.l.b16 %v10687
        %v11048 = vunpack.c.h.b16 %v10687
        %v11049 = vunpack.c.l.b16 %v10688
        %v11050 = vunpack.c.h.b16 %v10688
        %v11051 = vunpack.c.l.b16 %v10689
        %v11052 = vunpack.c.h.b16 %v10689
        %v11053 = vunpack.c.l.b16 %v10690
        %v11054 = vunpack.c.h.b16 %v10690
        %v11055 = vunpack.c.l.b16 %v10691
        %v11056 = vunpack.c.h.b16 %v10691
        %v11057 = vunpack.c.l.b16 %v10692
        %v11058 = vunpack.c.h.b16 %v10692
        %v11059 = vunpack.c.l.b16 %v10693
        %v11060 = vunpack.c.h.b16 %v10693
        %v11061 = vunpack.c.l.b16 %v10694
        %v11062 = vunpack.c.h.b16 %v10694
        %v11063 = vunpack.c.l.b16 %v10695
        %v11064 = vunpack.c.h.b16 %v10695
        %v11065 = vunpack.c.l.b16 %v10696
        %v11066 = vunpack.c.h.b16 %v10696
        %v11067 = vunpack.c.l.b16 %v10697
        %v11068 = vunpack.c.h.b16 %v10697
        %v11069 = vunpack.c.l.b16 %v10698
        %v11070 = vunpack.c.h.b16 %v10698
        %v11071 = vunpack.c.l.b16 %v10699
        %v11072 = vunpack.c.h.b16 %v10699
        %v11073 = vunpack.c.l.b16 %v10700
        %v11074 = vunpack.c.h.b16 %v10700
        %v11075 = vunpack.c.l.b16 %v10701
        %v11076 = vunpack.c.h.b16 %v10701
        %v11077 = vunpack.c.l.b16 %v10702
        %v11078 = vunpack.c.h.b16 %v10702
        %v11079 = vunpack.c.l.b16 %v10703
        %v11080 = vunpack.c.h.b16 %v10703
        %v11081 = vunpack.c.l.b16 %v10704
        %v11082 = vunpack.c.h.b16 %v10704
        %v11083 = vunpack.c.l.b16 %v10705
        %v11084 = vunpack.c.h.b16 %v10705
        %v11085 = vunpack.c.l.b16 %v10706
        %v11086 = vunpack.c.h.b16 %v10706
        %v11087 = vunpack.c.l.b16 %v10707
        %v11088 = vunpack.c.h.b16 %v10707
        %v11089 = vunpack.c.l.b16 %v10708
        %v11090 = vunpack.c.h.b16 %v10708
        %v11091 = vunpack.c.l.b16 %v10709
        %v11092 = vunpack.c.h.b16 %v10709
        %v11093 = vunpack.c.l.b16 %v10710
        %v11094 = vunpack.c.h.b16 %v10710
        %v11095 = vpack.c.b16 %v10843, %v10839
        %v11096 = vpack.c.b16 %v10844, %v10840
        %v11097 = vpack.c.b16 %v10845, %v10841
        %v11098 = vpack.c.b16 %v10846, %v10842
        %v11099 = vpack.c.b16 %v10851, %v10847
        %v11100 = vpack.c.b16 %v10852, %v10848
        %v11101 = vpack.c.b16 %v10853, %v10849
        %v11102 = vpack.c.b16 %v10854, %v10850
        %v11103 = vpack.c.b16 %v10859, %v10855
        %v11104 = vpack.c.b16 %v10860, %v10856
        %v11105 = vpack.c.b16 %v10861, %v10857
        %v11106 = vpack.c.b16 %v10862, %v10858
        %v11107 = vpack.c.b16 %v10867, %v10863
        %v11108 = vpack.c.b16 %v10868, %v10864
        %v11109 = vpack.c.b16 %v10869, %v10865
        %v11110 = vpack.c.b16 %v10870, %v10866
        %v11111 = vpack.c.b16 %v10875, %v10871
        %v11112 = vpack.c.b16 %v10876, %v10872
        %v11113 = vpack.c.b16 %v10877, %v10873
        %v11114 = vpack.c.b16 %v10878, %v10874
        %v11115 = vpack.c.b16 %v10883, %v10879
        %v11116 = vpack.c.b16 %v10884, %v10880
        %v11117 = vpack.c.b16 %v10885, %v10881
        %v11118 = vpack.c.b16 %v10886, %v10882
        %v11119 = vpack.c.b16 %v10891, %v10887
        %v11120 = vpack.c.b16 %v10892, %v10888
        %v11121 = vpack.c.b16 %v10893, %v10889
        %v11122 = vpack.c.b16 %v10894, %v10890
        %v11123 = vpack.c.b16 %v10899, %v10895
        %v11124 = vpack.c.b16 %v10900, %v10896
        %v11125 = vpack.c.b16 %v10901, %v10897
        %v11126 = vpack.c.b16 %v10902, %v10898
        %v11127 = vpack.c.b16 %v10907, %v10903
        %v11128 = vpack.c.b16 %v10908, %v10904
        %v11129 = vpack.c.b16 %v10909, %v10905
        %v11130 = vpack.c.b16 %v10910, %v10906
        %v11131 = vpack.c.b16 %v10915, %v10911
        %v11132 = vpack.c.b16 %v10916, %v10912
        %v11133 = vpack.c.b16 %v10917, %v10913
        %v11134 = vpack.c.b16 %v10918, %v10914
        %v11135 = vpack.c.b16 %v10923, %v10919
        %v11136 = vpack.c.b16 %v10924, %v10920
        %v11137 = vpack.c.b16 %v10925, %v10921
        %v11138 = vpack.c.b16 %v10926, %v10922
        %v11139 = vpack.c.b16 %v10931, %v10927
        %v11140 = vpack.c.b16 %v10932, %v10928
        %v11141 = vpack.c.b16 %v10933, %v10929
        %v11142 = vpack.c.b16 %v10934, %v10930
        %v11143 = vpack.c.b16 %v10939, %v10935
        %v11144 = vpack.c.b16 %v10940, %v10936
        %v11145 = vpack.c.b16 %v10941, %v10937
        %v11146 = vpack.c.b16 %v10942, %v10938
        %v11147 = vpack.c.b16 %v10947, %v10943
        %v11148 = vpack.c.b16 %v10948, %v10944
        %v11149 = vpack.c.b16 %v10949, %v10945
        %v11150 = vpack.c.b16 %v10950, %v10946
        %v11151 = vpack.c.b16 %v10955, %v10951
        %v11152 = vpack.c.b16 %v10956, %v10952
        %v11153 = vpack.c.b16 %v10957, %v10953
        %v11154 = vpack.c.b16 %v10958, %v10954
        %v11155 = vpack.c.b16 %v10963, %v10959
        %v11156 = vpack.c.b16 %v10964, %v10960
        %v11157 = vpack.c.b16 %v10965, %v10961
        %v11158 = vpack.c.b16 %v10966, %v10962
        %v11159 = vpack.c.b16 %v10971, %v10967
        %v11160 = vpack.c.b16 %v10972, %v10968
        %v11161 = vpack.c.b16 %v10973, %v10969
        %v11162 = vpack.c.b16 %v10974, %v10970
        %v11163 = vpack.c.b16 %v10979, %v10975
        %v11164 = vpack.c.b16 %v10980, %v10976
        %v11165 = vpack.c.b16 %v10981, %v10977
        %v11166 = vpack.c.b16 %v10982, %v10978
        %v11167 = vpack.c.b16 %v10987, %v10983
        %v11168 = vpack.c.b16 %v10988, %v10984
        %v11169 = vpack.c.b16 %v10989, %v10985
        %v11170 = vpack.c.b16 %v10990, %v10986
        %v11171 = vpack.c.b16 %v10995, %v10991
        %v11172 = vpack.c.b16 %v10996, %v10992
        %v11173 = vpack.c.b16 %v10997, %v10993
        %v11174 = vpack.c.b16 %v10998, %v10994
        %v11175 = vpack.c.b16 %v11003, %v10999
        %v11176 = vpack.c.b16 %v11004, %v11000
        %v11177 = vpack.c.b16 %v11005, %v11001
        %v11178 = vpack.c.b16 %v11006, %v11002
        %v11179 = vpack.c.b16 %v11011, %v11007
        %v11180 = vpack.c.b16 %v11012, %v11008
        %v11181 = vpack.c.b16 %v11013, %v11009
        %v11182 = vpack.c.b16 %v11014, %v11010
        %v11183 = vpack.c.b16 %v11019, %v11015
        %v11184 = vpack.c.b16 %v11020, %v11016
        %v11185 = vpack.c.b16 %v11021, %v11017
        %v11186 = vpack.c.b16 %v11022, %v11018
        %v11187 = vpack.c.b16 %v11027, %v11023
        %v11188 = vpack.c.b16 %v11028, %v11024
        %v11189 = vpack.c.b16 %v11029, %v11025
        %v11190 = vpack.c.b16 %v11030, %v11026
        %v11191 = vpack.c.b16 %v11035, %v11031
        %v11192 = vpack.c.b16 %v11036, %v11032
        %v11193 = vpack.c.b16 %v11037, %v11033
        %v11194 = vpack.c.b16 %v11038, %v11034
        %v11195 = vpack.c.b16 %v11043, %v11039
        %v11196 = vpack.c.b16 %v11044, %v11040
        %v11197 = vpack.c.b16 %v11045, %v11041
        %v11198 = vpack.c.b16 %v11046, %v11042
        %v11199 = vpack.c.b16 %v11051, %v11047
        %v11200 = vpack.c.b16 %v11052, %v11048
        %v11201 = vpack.c.b16 %v11053, %v11049
        %v11202 = vpack.c.b16 %v11054, %v11050
        %v11203 = vpack.c.b16 %v11059, %v11055
        %v11204 = vpack.c.b16 %v11060, %v11056
        %v11205 = vpack.c.b16 %v11061, %v11057
        %v11206 = vpack.c.b16 %v11062, %v11058
        %v11207 = vpack.c.b16 %v11067, %v11063
        %v11208 = vpack.c.b16 %v11068, %v11064
        %v11209 = vpack.c.b16 %v11069, %v11065
        %v11210 = vpack.c.b16 %v11070, %v11066
        %v11211 = vpack.c.b16 %v11075, %v11071
        %v11212 = vpack.c.b16 %v11076, %v11072
        %v11213 = vpack.c.b16 %v11077, %v11073
        %v11214 = vpack.c.b16 %v11078, %v11074
        %v11215 = vpack.c.b16 %v11083, %v11079
        %v11216 = vpack.c.b16 %v11084, %v11080
        %v11217 = vpack.c.b16 %v11085, %v11081
        %v11218 = vpack.c.b16 %v11086, %v11082
        %v11219 = vpack.c.b16 %v11091, %v11087
        %v11220 = vpack.c.b16 %v11092, %v11088
        %v11221 = vpack.c.b16 %v11093, %v11089
        %v11222 = vpack.c.b16 %v11094, %v11090
        %11351 = vmatprep.subr.bf16.mxu0 %v11096
        %11352 = vmatpush1.bf16.msra.mxu0 %v11095
        %11353 = vmatprep.subr.bf16.mxu0 %v11100
        %11354 = vmatpush1.bf16.msra.mxu0 %v11099
        %11355 = vmatprep.subr.bf16.mxu0 %v11104
        %11356 = vmatpush1.bf16.msra.mxu0 %v11103
        %11357 = vmatprep.subr.bf16.mxu0 %v11108
        %11358 = vmatpush1.bf16.msra.mxu0 %v11107
        %11359 = vmatprep.subr.bf16.mxu0 %v11112
        %11360 = vmatpush1.bf16.msra.mxu0 %v11111
        %11361 = vmatprep.subr.bf16.mxu0 %v11116
        %11362 = vmatpush1.bf16.msra.mxu0 %v11115
        %11363 = vmatprep.subr.bf16.mxu0 %v11120
        %11364 = vmatpush1.bf16.msra.mxu0 %v11119
        %11365 = vmatprep.subr.bf16.mxu0 %v11124
        %11366 = vmatpush1.bf16.msra.mxu0 %v11123
        %11367 = vmatprep.subr.bf16.mxu0 %v11128
        %11368 = vmatpush1.bf16.msra.mxu0 %v11127
        %11369 = vmatprep.subr.bf16.mxu0 %v11132
        %11370 = vmatpush1.bf16.msra.mxu0 %v11131
        %11371 = vmatprep.subr.bf16.mxu0 %v11136
        %11372 = vmatpush1.bf16.msra.mxu0 %v11135
        %11373 = vmatprep.subr.bf16.mxu0 %v11140
        %11374 = vmatpush1.bf16.msra.mxu0 %v11139
        %11375 = vmatprep.subr.bf16.mxu0 %v11144
        %11376 = vmatpush1.bf16.msra.mxu0 %v11143
        %11377 = vmatprep.subr.bf16.mxu0 %v11148
        %11378 = vmatpush1.bf16.msra.mxu0 %v11147
        %11379 = vmatprep.subr.bf16.mxu0 %v11152
        %11380 = vmatpush1.bf16.msra.mxu0 %v11151
        %11381 = vmatprep.subr.bf16.mxu0 %v11156
        %11382 = vmatpush1.bf16.msra.mxu0 %v11155
        %11383 = vmatprep.mubr.bf16.mxu0 %v10567
        %11384 = vmatmul.mubr.bf16.gmra.mrb[0].mxu0 %v10566
        %v11385 = vpop.f32.mrb[0].mxu0
        %v11386 = vadd.f32 0.0, %v11385
        %v11387 = vpop.f32.mrb[0].mxu0
        %v11388 = vadd.f32 0.0, %v11387
        %v11389 = vpop.f32.mrb[0].mxu0
        %v11390 = vadd.f32 0.0, %v11389
        %v11391 = vpop.f32.mrb[0].mxu0
        %v11392 = vadd.f32 0.0, %v11391
        %11393 = vmatprep.mubr.bf16.mxu0 %v10571
        %11394 = vmatmul.mubr.bf16.gmra.mrb[0].mxu0 %v10570
        %v11395 = vpop.f32.mrb[0].mxu0
        %v11396 = vadd.f32 0.0, %v11395
        %v11397 = vpop.f32.mrb[0].mxu0
        %v11398 = vadd.f32 0.0, %v11397
        %v11399 = vpop.f32.mrb[0].mxu0
        %v11400 = vadd.f32 0.0, %v11399
        %v11401 = vpop.f32.mrb[0].mxu0
        %v11402 = vadd.f32 0.0, %v11401
        %11403 = vmatprep.mubr.bf16.mxu0 %v10575
        %11404 = vmatmul.mubr.bf16.gmra.mrb[0].mxu0 %v10574
        %v11405 = vpop.f32.mrb[0].mxu0
        %v11406 = vadd.f32 0.0, %v11405
        %v11407 = vpop.f32.mrb[0].mxu0
        %v11408 = vadd.f32 0.0, %v11407
        %v11409 = vpop.f32.mrb[0].mxu0
        %v11410 = vadd.f32 0.0, %v11409
        %v11411 = vpop.f32.mrb[0].mxu0
        %v11412 = vadd.f32 0.0, %v11411
        %11413 = vmatprep.mubr.bf16.mxu0 %v10579
        %11414 = vmatmul.mubr.bf16.gmra.mrb[0].mxu0 %v10578
        %v11415 = vpop.f32.mrb[0].mxu0
        %v11416 = vadd.f32 0.0, %v11415
        %v11417 = vpop.f32.mrb[0].mxu0
        %v11418 = vadd.f32 0.0, %v11417
        %v11419 = vpop.f32.mrb[0].mxu0
        %v11420 = vadd.f32 0.0, %v11419
        %v11421 = vpop.f32.mrb[0].mxu0
        %v11422 = vadd.f32 0.0, %v11421
        %11423 = vdwg.mxu0
        %11424 = vmatprep.subr.bf16.mxu0 %v11160
        %11425 = vmatpush1.bf16.msra.mxu0 %v11159
        %11426 = vmatprep.subr.bf16.mxu0 %v11164
        %11427 = vmatpush1.bf16.msra.mxu0 %v11163
        %11428 = vmatprep.subr.bf16.mxu0 %v11168
        %11429 = vmatpush1.bf16.msra.mxu0 %v11167
        %11430 = vmatprep.subr.bf16.mxu0 %v11172
        %11431 = vmatpush1.bf16.msra.mxu0 %v11171
        %11432 = vmatprep.subr.bf16.mxu0 %v11176
        %11433 = vmatpush1.bf16.msra.mxu0 %v11175
        %11434 = vmatprep.subr.bf16.mxu0 %v11180
        %11435 = vmatpush1.bf16.msra.mxu0 %v11179
        %11436 = vmatprep.subr.bf16.mxu0 %v11184
        %11437 = vmatpush1.bf16.msra.mxu0 %v11183
        %11438 = vmatprep.subr.bf16.mxu0 %v11188
        %11439 = vmatpush1.bf16.msra.mxu0 %v11187
        %11440 = vmatprep.subr.bf16.mxu0 %v11192
        %11441 = vmatpush1.bf16.msra.mxu0 %v11191
        %11442 = vmatprep.subr.bf16.mxu0 %v11196
        %11443 = vmatpush1.bf16.msra.mxu0 %v11195
        %11444 = vmatprep.subr.bf16.mxu0 %v11200
        %11445 = vmatpush1.bf16.msra.mxu0 %v11199
        %11446 = vmatprep.subr.bf16.mxu0 %v11204
        %11447 = vmatpush1.bf16.msra.mxu0 %v11203
        %11448 = vmatprep.subr.bf16.mxu0 %v11208
        %11449 = vmatpush1.bf16.msra.mxu0 %v11207
        %11450 = vmatprep.subr.bf16.mxu0 %v11212
        %11451 = vmatpush1.bf16.msra.mxu0 %v11211
        %11452 = vmatprep.subr.bf16.mxu0 %v11216
        %11453 = vmatpush1.bf16.msra.mxu0 %v11215
        %11454 = vmatprep.subr.bf16.mxu0 %v11220
        %11455 = vmatpush1.bf16.msra.mxu0 %v11219
        %11456 = vmatprep.mubr.bf16.mxu0 %v10569
        %11457 = vmatmul.mubr.bf16.gmra.mrb[0].mxu0 %v10568
        %v11458 = vpop.f32.mrb[0].mxu0
        %v11459 = vadd.f32 %v11386, %v11458
        %v11460 = vpop.f32.mrb[0].mxu0
        %v11461 = vadd.f32 %v11388, %v11460
        %v11462 = vpop.f32.mrb[0].mxu0
        %v11463 = vadd.f32 %v11390, %v11462
        %v11464 = vpop.f32.mrb[0].mxu0
        %v11465 = vadd.f32 %v11392, %v11464
        %11466 = vmatprep.mubr.bf16.mxu0 %v10573
        %11467 = vmatmul.mubr.bf16.gmra.mrb[0].mxu0 %v10572
        %v11468 = vpop.f32.mrb[0].mxu0
        %v11469 = vadd.f32 %v11396, %v11468
        %v11470 = vpop.f32.mrb[0].mxu0
        %v11471 = vadd.f32 %v11398, %v11470
        %v11472 = vpop.f32.mrb[0].mxu0
        %v11473 = vadd.f32 %v11400, %v11472
        %v11474 = vpop.f32.mrb[0].mxu0
        %v11475 = vadd.f32 %v11402, %v11474
        %11476 = vmatprep.mubr.bf16.mxu0 %v10577
        %11477 = vmatmul.mubr.bf16.gmra.mrb[0].mxu0 %v10576
        %v11478 = vpop.f32.mrb[0].mxu0
        %v11479 = vadd.f32 %v11406, %v11478
        %v11480 = vpop.f32.mrb[0].mxu0
        %v11481 = vadd.f32 %v11408, %v11480
        %v11482 = vpop.f32.mrb[0].mxu0
        %v11483 = vadd.f32 %v11410, %v11482
        %v11484 = vpop.f32.mrb[0].mxu0
        %v11485 = vadd.f32 %v11412, %v11484
        %11486 = vmatprep.mubr.bf16.mxu0 %v10581
        %11487 = vmatmul.mubr.bf16.gmra.mrb[0].mxu0 %v10580
        %v11488 = vpop.f32.mrb[0].mxu0
        %v11489 = vadd.f32 %v11416, %v11488
        %v11490 = vpop.f32.mrb[0].mxu0
        %v11491 = vadd.f32 %v11418, %v11490
        %v11492 = vpop.f32.mrb[0].mxu0
        %v11493 = vadd.f32 %v11420, %v11492
        %v11494 = vpop.f32.mrb[0].mxu0
        %v11495 = vadd.f32 %v11422, %v11494
        %11496 = vdwg.mxu0
        %11497 = vmatprep.subr.bf16.mxu0 %v11098
        %11498 = vmatpush1.bf16.msra.mxu0 %v11097
        %11499 = vmatprep.subr.bf16.mxu0 %v11102
        %11500 = vmatpush1.bf16.msra.mxu0 %v11101
        %11501 = vmatprep.subr.bf16.mxu0 %v11106
        %11502 = vmatpush1.bf16.msra.mxu0 %v11105
        %11503 = vmatprep.subr.bf16.mxu0 %v11110
        %11504 = vmatpush1.bf16.msra.mxu0 %v11109
        %11505 = vmatprep.subr.bf16.mxu0 %v11114
        %11506 = vmatpush1.bf16.msra.mxu0 %v11113
        %11507 = vmatprep.subr.bf16.mxu0 %v11118
        %11508 = vmatpush1.bf16.msra.mxu0 %v11117
        %11509 = vmatprep.subr.bf16.mxu0 %v11122
        %11510 = vmatpush1.bf16.msra.mxu0 %v11121
        %11511 = vmatprep.subr.bf16.mxu0 %v11126
        %11512 = vmatpush1.bf16.msra.mxu0 %v11125
        %11513 = vmatprep.subr.bf16.mxu0 %v11130
        %11514 = vmatpush1.bf16.msra.mxu0 %v11129
        %11515 = vmatprep.subr.bf16.mxu0 %v11134
        %11516 = vmatpush1.bf16.msra.mxu0 %v11133
        %11517 = vmatprep.subr.bf16.mxu0 %v11138
        %11518 = vmatpush1.bf16.msra.mxu0 %v11137
        %11519 = vmatprep.subr.bf16.mxu0 %v11142
        %11520 = vmatpush1.bf16.msra.mxu0 %v11141
        %11521 = vmatprep.subr.bf16.mxu0 %v11146
        %11522 = vmatpush1.bf16.msra.mxu0 %v11145
        %11523 = vmatprep.subr.bf16.mxu0 %v11150
        %11524 = vmatpush1.bf16.msra.mxu0 %v11149
        %11525 = vmatprep.subr.bf16.mxu0 %v11154
        %11526 = vmatpush1.bf16.msra.mxu0 %v11153
        %11527 = vmatprep.subr.bf16.mxu0 %v11158
        %11528 = vmatpush1.bf16.msra.mxu0 %v11157
        %11529 = vmatprep.mubr.bf16.mxu0 %v10567
        %11530 = vmatmul.mubr.bf16.gmra.mrb[0].mxu0 %v10566
        %v11531 = vpop.f32.mrb[0].mxu0
        %v11532 = vadd.f32 0.0, %v11531
        %v11533 = vpop.f32.mrb[0].mxu0
        %v11534 = vadd.f32 0.0, %v11533
        %v11535 = vpop.f32.mrb[0].mxu0
        %v11536 = vadd.f32 0.0, %v11535
        %v11537 = vpop.f32.mrb[0].mxu0
        %v11538 = vadd.f32 0.0, %v11537
        %11539 = vmatprep.mubr.bf16.mxu0 %v10571
        %11540 = vmatmul.mubr.bf16.gmra.mrb[0].mxu0 %v10570
        %v11541 = vpop.f32.mrb[0].mxu0
        %v11542 = vadd.f32 0.0, %v11541
        %v11543 = vpop.f32.mrb[0].mxu0
        %v11544 = vadd.f32 0.0, %v11543
        %v11545 = vpop.f32.mrb[0].mxu0
        %v11546 = vadd.f32 0.0, %v11545
        %v11547 = vpop.f32.mrb[0].mxu0
        %v11548 = vadd.f32 0.0, %v11547
        %11549 = vmatprep.mubr.bf16.mxu0 %v10575
        %11550 = vmatmul.mubr.bf16.gmra.mrb[0].mxu0 %v10574
        %v11551 = vpop.f32.mrb[0].mxu0
        %v11552 = vadd.f32 0.0, %v11551
        %v11553 = vpop.f32.mrb[0].mxu0
        %v11554 = vadd.f32 0.0, %v11553
        %v11555 = vpop.f32.mrb[0].mxu0
        %v11556 = vadd.f32 0.0, %v11555
        %v11557 = vpop.f32.mrb[0].mxu0
        %v11558 = vadd.f32 0.0, %v11557
        %11559 = vmatprep.mubr.bf16.mxu0 %v10579
        %11560 = vmatmul.mubr.bf16.gmra.mrb[0].mxu0 %v10578
        %v11561 = vpop.f32.mrb[0].mxu0
        %v11562 = vadd.f32 0.0, %v11561
        %v11563 = vpop.f32.mrb[0].mxu0
        %v11564 = vadd.f32 0.0, %v11563
        %v11565 = vpop.f32.mrb[0].mxu0
        %v11566 = vadd.f32 0.0, %v11565
        %v11567 = vpop.f32.mrb[0].mxu0
        %v11568 = vadd.f32 0.0, %v11567
        %11569 = vdwg.mxu0
        %11570 = vmatprep.subr.bf16.mxu0 %v11162
        %11571 = vmatpush1.bf16.msra.mxu0 %v11161
        %11572 = vmatprep.subr.bf16.mxu0 %v11166
        %11573 = vmatpush1.bf16.msra.mxu0 %v11165
        %11574 = vmatprep.subr.bf16.mxu0 %v11170
        %11575 = vmatpush1.bf16.msra.mxu0 %v11169
        %11576 = vmatprep.subr.bf16.mxu0 %v11174
        %11577 = vmatpush1.bf16.msra.mxu0 %v11173
        %11578 = vmatprep.subr.bf16.mxu0 %v11178
        %11579 = vmatpush1.bf16.msra.mxu0 %v11177
        %11580 = vmatprep.subr.bf16.mxu0 %v11182
        %11581 = vmatpush1.bf16.msra.mxu0 %v11181
        %11582 = vmatprep.subr.bf16.mxu0 %v11186
        %11583 = vmatpush1.bf16.msra.mxu0 %v11185
        %11584 = vmatprep.subr.bf16.mxu0 %v11190
        %11585 = vmatpush1.bf16.msra.mxu0 %v11189
        %11586 = vmatprep.subr.bf16.mxu0 %v11194
        %11587 = vmatpush1.bf16.msra.mxu0 %v11193
        %11588 = vmatprep.subr.bf16.mxu0 %v11198
        %11589 = vmatpush1.bf16.msra.mxu0 %v11197
        %11590 = vmatprep.subr.bf16.mxu0 %v11202
        %11591 = vmatpush1.bf16.msra.mxu0 %v11201
        %11592 = vmatprep.subr.bf16.mxu0 %v11206
        %11593 = vmatpush1.bf16.msra.mxu0 %v11205
        %11594 = vmatprep.subr.bf16.mxu0 %v11210
        %11595 = vmatpush1.bf16.msra.mxu0 %v11209
        %11596 = vmatprep.subr.bf16.mxu0 %v11214
        %11597 = vmatpush1.bf16.msra.mxu0 %v11213
        %11598 = vmatprep.subr.bf16.mxu0 %v11218
        %11599 = vmatpush1.bf16.msra.mxu0 %v11217
        %11600 = vmatprep.subr.bf16.mxu0 %v11222
        %11601 = vmatpush1.bf16.msra.mxu0 %v11221
        %11602 = vmatprep.mubr.bf16.mxu0 %v10569
        %11603 = vmatmul.mubr.bf16.gmra.mrb[0].mxu0 %v10568
        %v11604 = vpop.f32.mrb[0].mxu0
        %v11605 = vadd.f32 %v11532, %v11604
        %v11606 = vpop.f32.mrb[0].mxu0
        %v11607 = vadd.f32 %v11534, %v11606
        %v11608 = vpop.f32.mrb[0].mxu0
        %v11609 = vadd.f32 %v11536, %v11608
        %v11610 = vpop.f32.mrb[0].mxu0
        %v11611 = vadd.f32 %v11538, %v11610
        %11612 = vmatprep.mubr.bf16.mxu0 %v10573
        %11613 = vmatmul.mubr.bf16.gmra.mrb[0].mxu0 %v10572
        %v11614 = vpop.f32.mrb[0].mxu0
        %v11615 = vadd.f32 %v11542, %v11614
        %v11616 = vpop.f32.mrb[0].mxu0
        %v11617 = vadd.f32 %v11544, %v11616
        %v11618 = vpop.f32.mrb[0].mxu0
        %v11619 = vadd.f32 %v11546, %v11618
        %v11620 = vpop.f32.mrb[0].mxu0
        %v11621 = vadd.f32 %v11548, %v11620
        %11622 = vmatprep.mubr.bf16.mxu0 %v10577
        %11623 = vmatmul.mubr.bf16.gmra.mrb[0].mxu0 %v10576
        %v11624 = vpop.f32.mrb[0].mxu0
        %v11625 = vadd.f32 %v11552, %v11624
        %v11626 = vpop.f32.mrb[0].mxu0
        %v11627 = vadd.f32 %v11554, %v11626
        %v11628 = vpop.f32.mrb[0].mxu0
        %v11629 = vadd.f32 %v11556, %v11628
        %v11630 = vpop.f32.mrb[0].mxu0
        %v11631 = vadd.f32 %v11558, %v11630
        %11632 = vmatprep.mubr.bf16.mxu0 %v10581
        %11633 = vmatmul.mubr.bf16.gmra.mrb[0].mxu0 %v10580
        %v11634 = vpop.f32.mrb[0].mxu0
        %v11635 = vadd.f32 %v11562, %v11634
        %v11636 = vpop.f32.mrb[0].mxu0
        %v11637 = vadd.f32 %v11564, %v11636
        %v11638 = vpop.f32.mrb[0].mxu0
        %v11639 = vadd.f32 %v11566, %v11638
        %v11640 = vpop.f32.mrb[0].mxu0
        %v11641 = vadd.f32 %v11568, %v11640
        %11642 = vdwg.mxu0
        %s11643 = scalar_lea.vmem [#allocation9], 8
        %v11644 = vld [vmem:[%s11643] sm:$0xf]
        %v11646 = vlaneseq
        %v11647 = vshrl.u32 %v11646, 7
        %v11648 = vsub.s32 0, %v11647
        %v11649 = vrot.slane %v11644, %v11648
        %v11650 = vlaneseq
        %v11651 = vshrl.u32 %v11650, 7
        %v11652 = vsub.s32 1, %v11651
        %v11653 = vrot.slane %v11644, %v11652
        %v11654 = vlaneseq
        %v11655 = vshrl.u32 %v11654, 7
        %v11656 = vsub.s32 2, %v11655
        %v11657 = vrot.slane %v11644, %v11656
        %v11658 = vlaneseq
        %v11659 = vshrl.u32 %v11658, 7
        %v11660 = vsub.s32 3, %v11659
        %v11661 = vrot.slane %v11644, %v11660
        %v11666 = vmul.f32 %v11459, %v11649
        %v11667 = vmul.f32 %v11461, %v11653
        %v11668 = vmul.f32 %v11605, %v11657
        %v11669 = vmul.f32 %v11607, %v11661
        %v11670 = vmul.f32 %v11463, %v11649
        %v11671 = vmul.f32 %v11465, %v11653
        %v11672 = vmul.f32 %v11609, %v11657
        %v11673 = vmul.f32 %v11611, %v11661
        %v11674 = vmul.f32 %v11469, %v11649
        %v11675 = vmul.f32 %v11471, %v11653
        %v11676 = vmul.f32 %v11615, %v11657
        %v11677 = vmul.f32 %v11617, %v11661
        %v11678 = vmul.f32 %v11473, %v11649
        %v11679 = vmul.f32 %v11475, %v11653
        %v11680 = vmul.f32 %v11619, %v11657
        %v11681 = vmul.f32 %v11621, %v11661
        %v11682 = vmul.f32 %v11479, %v11649
        %v11683 = vmul.f32 %v11481, %v11653
        %v11684 = vmul.f32 %v11625, %v11657
        %v11685 = vmul.f32 %v11627, %v11661
        %v11686 = vmul.f32 %v11483, %v11649
        %v11687 = vmul.f32 %v11485, %v11653
        %v11688 = vmul.f32 %v11629, %v11657
        %v11689 = vmul.f32 %v11631, %v11661
        %v11690 = vmul.f32 %v11489, %v11649
        %v11691 = vmul.f32 %v11491, %v11653
        %v11692 = vmul.f32 %v11635, %v11657
        %v11693 = vmul.f32 %v11637, %v11661
        %v11694 = vmul.f32 %v11493, %v11649
        %v11695 = vmul.f32 %v11495, %v11653
        %v11696 = vmul.f32 %v11639, %v11657
        %v11697 = vmul.f32 %v11641, %v11661
        %s11698 = scalar_lea.vmem [#allocation11], 8
        %v11699 = vld [vmem:[%s11698] sm:$0xf]
        %v11701 = vlaneseq
        %v11702 = vshrl.u32 %v11701, 7
        %v11703 = vsub.s32 0, %v11702
        %v11704 = vrot.slane %v11699, %v11703
        %v11705 = vlaneseq
        %v11706 = vshrl.u32 %v11705, 7
        %v11707 = vsub.s32 1, %v11706
        %v11708 = vrot.slane %v11699, %v11707
        %v11709 = vlaneseq
        %v11710 = vshrl.u32 %v11709, 7
        %v11711 = vsub.s32 2, %v11710
        %v11712 = vrot.slane %v11699, %v11711
        %v11713 = vlaneseq
        %v11714 = vshrl.u32 %v11713, 7
        %v11715 = vsub.s32 3, %v11714
        %v11716 = vrot.slane %v11699, %v11715
        %v11721 = vadd.f32 %v11666, %v11704
        %v11722 = vadd.f32 %v11667, %v11708
        %v11723 = vadd.f32 %v11668, %v11712
        %v11724 = vadd.f32 %v11669, %v11716
        %v11725 = vadd.f32 %v11670, %v11704
        %v11726 = vadd.f32 %v11671, %v11708
        %v11727 = vadd.f32 %v11672, %v11712
        %v11728 = vadd.f32 %v11673, %v11716
        %v11729 = vadd.f32 %v11674, %v11704
        %v11730 = vadd.f32 %v11675, %v11708
        %v11731 = vadd.f32 %v11676, %v11712
        %v11732 = vadd.f32 %v11677, %v11716
        %v11733 = vadd.f32 %v11678, %v11704
        %v11734 = vadd.f32 %v11679, %v11708
        %v11735 = vadd.f32 %v11680, %v11712
        %v11736 = vadd.f32 %v11681, %v11716
        %v11737 = vadd.f32 %v11682, %v11704
        %v11738 = vadd.f32 %v11683, %v11708
        %v11739 = vadd.f32 %v11684, %v11712
        %v11740 = vadd.f32 %v11685, %v11716
        %v11741 = vadd.f32 %v11686, %v11704
        %v11742 = vadd.f32 %v11687, %v11708
        %v11743 = vadd.f32 %v11688, %v11712
        %v11744 = vadd.f32 %v11689, %v11716
        %v11745 = vadd.f32 %v11690, %v11704
        %v11746 = vadd.f32 %v11691, %v11708
        %v11747 = vadd.f32 %v11692, %v11712
        %v11748 = vadd.f32 %v11693, %v11716
        %v11749 = vadd.f32 %v11694, %v11704
        %v11750 = vadd.f32 %v11695, %v11708
        %v11751 = vadd.f32 %v11696, %v11712
        %v11752 = vadd.f32 %v11697, %v11716
        %v11753 = vadd.f32 %v463, %v11721
        %v11754 = vadd.f32 %v464, %v11722
        %v11755 = vadd.f32 %v465, %v11723
        %v11756 = vadd.f32 %v466, %v11724
        %v11757 = vadd.f32 %v467, %v11725
        %v11758 = vadd.f32 %v468, %v11726
        %v11759 = vadd.f32 %v469, %v11727
        %v11760 = vadd.f32 %v470, %v11728
        %v11761 = vadd.f32 %v471, %v11729
        %v11762 = vadd.f32 %v472, %v11730
        %v11763 = vadd.f32 %v473, %v11731
        %v11764 = vadd.f32 %v474, %v11732
        %v11765 = vadd.f32 %v475, %v11733
        %v11766 = vadd.f32 %v476, %v11734
        %v11767 = vadd.f32 %v477, %v11735
        %v11768 = vadd.f32 %v478, %v11736
        %v11769 = vadd.f32 %v479, %v11737
        %v11770 = vadd.f32 %v480, %v11738
        %v11771 = vadd.f32 %v481, %v11739
        %v11772 = vadd.f32 %v482, %v11740
        %v11773 = vadd.f32 %v483, %v11741
        %v11774 = vadd.f32 %v484, %v11742
        %v11775 = vadd.f32 %v485, %v11743
        %v11776 = vadd.f32 %v486, %v11744
        %v11777 = vadd.f32 %v487, %v11745
        %v11778 = vadd.f32 %v488, %v11746
        %v11779 = vadd.f32 %v489, %v11747
        %v11780 = vadd.f32 %v490, %v11748
        %v11781 = vadd.f32 %v491, %v11749
        %v11782 = vadd.f32 %v492, %v11750
        %v11783 = vadd.f32 %v493, %v11751
        %v11784 = vadd.f32 %v494, %v11752
        %11785 = vst [vmem:[%s342] sm:$0xff] %v11753
        %11786 = vst [vmem:[%s342 + $0x8] sm:$0xff] %v11754
        %11787 = vst [vmem:[%s342 + $0x10] sm:$0xff] %v11755
        %11788 = vst [vmem:[%s342 + $0x18] sm:$0xff] %v11756
        %11789 = vst [vmem:[%s342 + $0x20] sm:$0xff] %v11757
        %11790 = vst [vmem:[%s342 + $0x28] sm:$0xff] %v11758
        %11791 = vst [vmem:[%s342 + $0x30] sm:$0xff] %v11759
        %11792 = vst [vmem:[%s342 + $0x38] sm:$0xff] %v11760
        %11793 = vst [vmem:[%s342 + $0x40] sm:$0xff] %v11761
        %11794 = vst [vmem:[%s342 + $0x48] sm:$0xff] %v11762
        %11795 = vst [vmem:[%s342 + $0x50] sm:$0xff] %v11763
        %11796 = vst [vmem:[%s342 + $0x58] sm:$0xff] %v11764
        %11797 = vst [vmem:[%s342 + $0x60] sm:$0xff] %v11765
        %11798 = vst [vmem:[%s342 + $0x68] sm:$0xff] %v11766
        %11799 = vst [vmem:[%s342 + $0x70] sm:$0xff] %v11767
        %11800 = vst [vmem:[%s342 + $0x78] sm:$0xff] %v11768
        %11801 = vst [vmem:[%s342 + $0x80] sm:$0xff] %v11769
        %11802 = vst [vmem:[%s342 + $0x88] sm:$0xff] %v11770
        %11803 = vst [vmem:[%s342 + $0x90] sm:$0xff] %v11771
        %11804 = vst [vmem:[%s342 + $0x98] sm:$0xff] %v11772
        %11805 = vst [vmem:[%s342 + $0xa0] sm:$0xff] %v11773
        %11806 = vst [vmem:[%s342 + $0xa8] sm:$0xff] %v11774
        %11807 = vst [vmem:[%s342 + $0xb0] sm:$0xff] %v11775
        %11808 = vst [vmem:[%s342 + $0xb8] sm:$0xff] %v11776
        %11809 = vst [vmem:[%s342 + $0xc0] sm:$0xff] %v11777
        %11810 = vst [vmem:[%s342 + $0xc8] sm:$0xff] %v11778
        %11811 = vst [vmem:[%s342 + $0xd0] sm:$0xff] %v11779
        %11812 = vst [vmem:[%s342 + $0xd8] sm:$0xff] %v11780
        %11813 = vst [vmem:[%s342 + $0xe0] sm:$0xff] %v11781
        %11814 = vst [vmem:[%s342 + $0xe8] sm:$0xff] %v11782
        %11815 = vst [vmem:[%s342 + $0xf0] sm:$0xff] %v11783
        %11816 = vst [vmem:[%s342 + $0xf8] sm:$0xff] %v11784
        %s11817 = sand.u32 %s165, 1
        %s11818 = scalar_lea.sflag [#allocation5], %s11817
        %s11819 = sand.u32 %s165, 1
        %s11820 = smul.addr %s11819, 256
        %s11821 = scalar_lea.vmem [#allocation14], %s11820
        // Predicated region
        $region69: #{middle_block_forward.1} parent=43 // pred_check
          %p11822 = pneg %p175
        $region70: #{middle_block_forward.1} parent=43 // pred_check_branch
          %11824 = sbr.rel (%p11822) target = $region72
        $region71: #{middle_block_forward.1} parent=43 // pred_region
          %s11826 = ssub.s32 4096, 4096
          %11827 = vsyncadd %s11818, %s11826
          %s11828 = smul.addr %s26, 32
          %s11829 = smul.addr %s11828, 128
          %s11830 = scalar_lea.hbm %s6, %s11829
          %s11831 = sshll.u32 %s11821, 4
          %s11832 = int_to_ptr.vmem [resolvable:$true] %s11831
          %11837 = dma.vmem_to_hbm [thread:$0]  %s11832, 4096, %s11830, %s11818, 512, 512, 32
        $region72: #{middle_block_forward.1} parent=43 // pred_fallthru
          _
      $region44: #{middle_block_forward.1} parent=5 // pred_fallthru
        _
      %p11838 = scmp.le.s32.totalorder 2, %s21
      // Predicated region
      $region73: #{middle_block_forward.1} parent=5 // pred_check
        %p11839 = pneg %p11838
      $region74: #{middle_block_forward.1} parent=5 // pred_check_branch
        %11841 = sbr.rel (%p11839) target = $region76
      $region75: #{middle_block_forward.1} parent=5 // pred_region
        %s11842 = ssub.s32 %s21, 2
        // Predicated region
        $region77: #{middle_block_forward.1} parent=75 // pred_check
          %p11843 = pneg %p181
        $region78: #{middle_block_forward.1} parent=75 // pred_check_branch
          %11845 = sbr.rel (%p11843) target = $region80
        $region79: #{middle_block_forward.1} parent=75 // pred_region
          %s11846 = sand.u32 %s166, 1
          %s11847 = scalar_lea.sflag [#allocation5], %s11846
          %s11848 = sand.u32 %s166, 1
          %s11849 = smul.addr %s11848, 256
          %s11850 = scalar_lea.vmem [#allocation14], %s11849
          %11851 = dma.done %s11847, 4096
        $region80: #{middle_block_forward.1} parent=75 // pred_fallthru
          _
      $region76: #{middle_block_forward.1} parent=5 // pred_fallthru
        _
    $region6: #{middle_block_forward.1} parent=1 // loop_footer
      %s25 = sadd.s32 1, %s21
    $region7: #{middle_block_forward.1} parent=1 // loop_footer_branch
      %20 = sbr.rel target = $region3
    $region8: #{middle_block_forward.1} parent=1 // loop_exit
      _
    %11852 = vsyncpa [#allocation4], 1
    %s11853 = scalar_lea.sflag [#allocation4], 1
    %11854 = vsyncpa %s11853, 1
    %11855 = vsyncpa [#allocation7], 1
    %11856 = vsyncpa [#allocation10], 1
    %11857 = vsyncpa [#allocation13], 1
    %11858 = vsyncpa [#allocation5], 1
    %s11859 = scalar_lea.sflag [#allocation5], 1
    %11860 = vsyncpa %s11859, 1

</llo_original>
